<compile_context>
chip_gen: v7x
topology: tpu7x:2x2x1
jax: 0.10.0
libtpu: 0.0.40
codegen_flags: <defaults>
</compile_context>

<pallas_src>
import functools

import jax
import jax.numpy as jnp
from jax.experimental import pallas as pl
from jax.experimental.pallas import tpu as pltpu

EPS = 1e-5
N_PRIM = 3  # number of candidate ops in MixedOp (PRIMITIVES), synthetic


# ----------------------------------------------------------------------------
# Fused Pallas kernel
# ----------------------------------------------------------------------------
def basic_block_kernel(patches1_ref,                      # (M, K1p)    bf16
                       xpad_ref,                          # (M, Cp)     bf16
                       w1_ref,                            # (K1p, Cp)   bf16
                       b1_ref, g1_ref, be1_ref,           # (1, Cp)     f32
                       w2_ref,                            # (9*Cp, Cp)  bf16
                       b2_ref, g2_ref, be2_ref,           # (1, Cp)     f32
                       wsc_ref,                           # (Cp, Cp)    bf16
                       bsc_ref, gsc_ref, besc_ref,        # (1, Cp)     f32
                       out_ref,                           # (M, Cp)     f32
                       y1pad_ref,                         # scratch f32
                       p2_ref,                            # scratch bf16
                       *, n, h, w, cp, eps):
    m = n * h * w
    hw = h * w
    inv_m = 1.0 / m

    def bn(y, gamma, beta):
        # one-pass batch statistics (biased variance), training-mode BN
        s1 = jnp.sum(y, axis=0, keepdims=True)
        s2 = jnp.sum(y * y, axis=0, keepdims=True)
        mean = s1 * inv_m
        var = s2 * inv_m - mean * mean
        return (y - mean) * (jax.lax.rsqrt(var + eps) * gamma) + beta

    # ---- conv1 (MixedOp, alpha pre-folded): single K1p MXU contraction -----
    y1 = jnp.dot(patches1_ref[...], w1_ref[...],
                 preferred_element_type=jnp.float32) + b1_ref[...]
    act1 = jnp.maximum(bn(y1, g1_ref[...], be1_ref[...]), 0.0)   # bn1 + relu

    # ---- scatter act1 into an H-padded, row-flattened VMEM copy -------------
    # layout (rows of width Cp): [W guard rows] + per image:
    #   [W top-pad rows, H*W real rows] + [W bottom-pad rows] ... + [W guard].
    # Only pad/guard rows are zero-filled; real rows are fully overwritten.
    zrow = jnp.zeros((2 * w, cp), jnp.float32)
    y1pad_ref[0:2 * w, :] = zrow                           # guard + top pad 0
    for img in range(n):
        dst = w * (img * (h + 2) + 2)                      # 8-aligned start
        y1pad_ref[dst + hw:dst + hw + 2 * w, :] = zrow     # bottom pad + next
        y1pad_ref[dst:dst + hw, :] = act1[img * hw:(img + 1) * hw, :]

    # ---- in-kernel im2col for conv2: 9 shifted 2-D slices -------------------
    # H-direction zero padding comes from the buffer layout; W-direction zero
    # padding is emulated by masking rows whose shifted read wrapped into the
    # neighbouring image row.
    jj = jax.lax.broadcasted_iota(jnp.int32, (hw, 1), 0) % w   # output col j
    mask_l = jj >= 1          # input col j-1 exists (needed for dj == 0)
    mask_r = jj <= w - 2      # input col j+1 exists (needed for dj == 2)
    for di in range(3):
        for dj in range(3):
            t = di * 3 + dj
            for img in range(n):
                src = w * (img * (h + 2) + 1 + di) + (dj - 1)
                tap = y1pad_ref[src:src + hw, :]
                if dj == 0:
                    tap = jnp.where(mask_l, tap, 0.0)
                elif dj == 2:
                    tap = jnp.where(mask_r, tap, 0.0)
                p2_ref[img * hw:(img + 1) * hw, t * cp:(t + 1) * cp] = (
                    tap.astype(jnp.bfloat16))

    # ---- conv2 (MixedOp, alpha pre-folded): single K=9*Cp MXU contraction ---
    y2 = jnp.dot(p2_ref[...], w2_ref[...],
                 preferred_element_type=jnp.float32) + b2_ref[...]
    z2 = bn(y2, g2_ref[...], be2_ref[...])                        # bn2

    # ---- shortcut: 1x1 conv + bn on the channel-padded input (lane-dense K) -
    s = jnp.dot(xpad_ref[...], wsc_ref[...],
                preferred_element_type=jnp.float32) + bsc_ref[...]
    zs = bn(s, gsc_ref[...], besc_ref[...])

    # ---- residual add + ReLU; (M, Cp) store is lane-dense -------------------
    out_ref[...] = jnp.maximum(z2 + zs, 0.0)


# ----------------------------------------------------------------------------
# Wrapper (plain-JAX glue: alpha folding, channel padding, im2col, pallas_call)
# ----------------------------------------------------------------------------
def _pad_last(a, target):
    pad = target - a.shape[-1]
    if pad == 0:
        return a
    return jnp.pad(a, [(0, 0)] * (a.ndim - 1) + [(0, pad)])


def _im2col_3x3(x_nhwc):
    """pad=1, stride=1 im2col packed lane-contiguously -> (M, 9*C)."""
    n, h, w, c = x_nhwc.shape
    xp = jnp.pad(x_nhwc, ((0, 0), (1, 1), (1, 1), (0, 0)))
    taps = [xp[:, di:di + h, dj:dj + w, :].reshape(n * h * w, c)
            for di in range(3) for dj in range(3)]
    return jnp.concatenate(taps, axis=-1)


def basic_block_forward(x_nchw, params, alpha_lst, alpha_param=None):
    """BasicBlock.forward(x, alpha_lst, alpha_param) — soft mode, stride=1."""
    del alpha_param  # unused in mode='soft', same as the PyTorch forward
    x = jnp.transpose(x_nchw, (0, 2, 3, 1)).astype(jnp.float32)   # NCHW->NHWC
    n, h, w, cin = x.shape
    planes = params["w1"].shape[-1]
    cp = ((planes + 127) // 128) * 128          # lane-dense channel padding
    k1p = ((9 * cin + 127) // 128) * 128        # lane-dense conv1 K padding
    m = n * h * w

    a0 = alpha_lst[0].astype(jnp.float32)
    a1 = alpha_lst[1].astype(jnp.float32)

    # fold alpha into weights / biases (soft MixedOp is linear in op outputs)
    w1 = jnp.tensordot(a0, params["w1"], axes=1)          # (3,3,Cin,planes)
    b1 = jnp.tensordot(a0, params["b1"], axes=1)          # (planes,)
    w2 = jnp.tensordot(a1, params["w2"], axes=1)          # (3,3,planes,planes)
    b2 = jnp.tensordot(a1, params["b2"], axes=1)

    # channel-pad to Cp / K1p, lay out for single-contraction matmuls, cast bf16
    w1p = _pad_last(w1, cp).reshape(9 * cin, cp)
    w1p = jnp.pad(w1p, ((0, k1p - 9 * cin), (0, 0))).astype(jnp.bfloat16)
    w2p = _pad_last(w2, cp)                               # pad out-channels
    w2p = jnp.pad(w2p, ((0, 0), (0, 0), (0, cp - planes), (0, 0)))
    w2p = w2p.reshape(9 * cp, cp).astype(jnp.bfloat16)    # pad in-channels
    wscp = jnp.pad(params["wsc"],
                   ((0, cp - cin), (0, cp - planes))).astype(jnp.bfloat16)

    def vec(v):                                           # (planes,)->(1,Cp)
        return _pad_last(v.astype(jnp.float32).reshape(1, -1), cp)

    patches1 = _pad_last(_im2col_3x3(x), k1p).astype(jnp.bfloat16)  # (M, K1p)
    xpad = _pad_last(x.reshape(m, cin), cp).astype(jnp.bfloat16)    # (M, Cp)

    kernel = functools.partial(basic_block_kernel, n=n, h=h, w=w,
                               cp=cp, eps=EPS)
    vmem = pl.BlockSpec(memory_space=pltpu.MemorySpace.VMEM)
    out = pl.pallas_call(
        kernel,
        out_shape=jax.ShapeDtypeStruct((m, cp), jnp.float32),
        in_specs=[vmem] * 14,
        out_specs=vmem,
        scratch_shapes=[
            pltpu.VMEM(((n * (h + 2) + 2) * w, cp), jnp.float32),  # y1 padded
            pltpu.VMEM((m, 9 * cp), jnp.bfloat16),                 # conv2 im2col
        ],
        compiler_params=pltpu.CompilerParams(
            vmem_limit_bytes=32 * 1024 * 1024),
    )(patches1, xpad,
      w1p, vec(b1), vec(params["g1"]), vec(params["be1"]),
      w2p, vec(b2), vec(params["g2"]), vec(params["be2"]),
      wscp, vec(params["bsc"]), vec(params["gsc"]), vec(params["besc"]))

    out = out.reshape(n, h, w, cp)[..., :planes]          # drop channel pad
    return jnp.transpose(out, (0, 3, 1, 2))               # back to NCHW


# ----------------------------------------------------------------------------
# Pure-JAX reference (f32) for correctness check
# ----------------------------------------------------------------------------
def _ref_forward(x_nchw, p, alpha_lst):
    x = jnp.transpose(x_nchw, (0, 2, 3, 1)).astype(jnp.float32)

    def conv3x3(inp, w, b):
        return jax.lax.conv_general_dilated(
            inp, w, (1, 1), "SAME",
            dimension_numbers=("NHWC", "HWIO", "NHWC")) + b

    def mixed(inp, w_all, b_all, alpha):
        return sum(alpha[q] * conv3x3(inp, w_all[q], b_all[q])
                   for q in range(w_all.shape[0]))

    def bn(y, g, be, relu=False):
        mu = jnp.mean(y, axis=(0, 1, 2), keepdims=True)
        v = jnp.mean(jnp.square(y - mu), axis=(0, 1, 2), keepdims=True)
        z = (y - mu) * jax.lax.rsqrt(v + EPS) * g + be
        return jnp.maximum(z, 0.0) if relu else z

    y = bn(mixed(x, p["w1"], p["b1"], alpha_lst[0]), p["g1"], p["be1"], True)
    y2 = bn(mixed(y, p["w2"], p["b2"], alpha_lst[1]), p["g2"], p["be2"], False)
    s = jnp.einsum("nhwc,cd->nhwd", x, p["wsc"]) + p["bsc"]
    s = bn(s, p["gsc"], p["besc"], False)
    return jnp.transpose(jnp.maximum(y2 + s, 0.0), (0, 3, 1, 2))


# ----------------------------------------------------------------------------
# Main
# ----------------------------------------------------------------------------
if __name__ == "__main__":
    N, Cin, H, W = 2, 4, 16, 16
    planes = 8                  # in_planes != planes -> shortcut conv1x1 + BN

    key = jax.random.PRNGKey(0)
    ks = jax.random.split(key, 8)

    params = {
        # MixedOp 1: P candidate 3x3 convs, Cin -> planes (stride=1, pad=1)
        "w1": 0.1 * jax.random.normal(ks[0], (N_PRIM, 3, 3, Cin, planes), jnp.float32),
        "b1": 0.1 * jax.random.normal(ks[1], (N_PRIM, planes), jnp.float32),
        # MixedOp 2: planes -> planes
        "w2": 0.1 * jax.random.normal(ks[2], (N_PRIM, 3, 3, planes, planes), jnp.float32),
        "b2": 0.1 * jax.random.normal(ks[3], (N_PRIM, planes), jnp.float32),
        # shortcut conv1x1 (bias=True) + BN
        "wsc": 0.1 * jax.random.normal(ks[4], (Cin, planes), jnp.float32),
        "bsc": 0.1 * jax.random.normal(ks[5], (planes,), jnp.float32),
        # BatchNorm affine params (PyTorch defaults: gamma=1, beta=0)
        "g1": jnp.ones((planes,), jnp.float32), "be1": jnp.zeros((planes,), jnp.float32),
        "g2": jnp.ones((planes,), jnp.float32), "be2": jnp.zeros((planes,), jnp.float32),
        "gsc": jnp.ones((planes,), jnp.float32), "besc": jnp.zeros((planes,), jnp.float32),
    }

    # architecture weights: alpha_lst[i] is a softmax over the P primitives
    alpha_logits = jax.random.normal(ks[6], (2, N_PRIM), jnp.float32)
    alpha_lst = jax.nn.softmax(alpha_logits, axis=-1)
    alpha_param = alpha_logits  # unused in soft mode (kept for API parity)

    x = jax.random.normal(ks[7], (N, Cin, H, W), jnp.float32)

    out = basic_block_forward(x, params, alpha_lst, alpha_param)
    out = jax.block_until_ready(out)
    assert out.shape == (N, planes, H, W), out.shape

    ref = jax.block_until_ready(_ref_forward(x, params, alpha_lst))
    assert jnp.all(jnp.isfinite(out))
    # bf16 MXU inputs (f32 accumulation) -> slightly looser tolerance than f32
    assert jnp.allclose(out, ref, atol=2e-2, rtol=2e-2), (
        float(jnp.max(jnp.abs(out - ref))))

    print("KERNEL_OK")
</pallas_src>

<mosaic_0001>
module attributes {stable_mosaic.version = 11 : i64} {
  func.func @basic_block_kernel(%arg0: memref<512x128xbf16, #tpu.memory_space<vmem>>, %arg1: memref<512x128xbf16, #tpu.memory_space<vmem>>, %arg2: memref<128x128xbf16, #tpu.memory_space<vmem>>, %arg3: memref<1x128xf32, #tpu.memory_space<vmem>>, %arg4: memref<1x128xf32, #tpu.memory_space<vmem>>, %arg5: memref<1x128xf32, #tpu.memory_space<vmem>>, %arg6: memref<1152x128xbf16, #tpu.memory_space<vmem>>, %arg7: memref<1x128xf32, #tpu.memory_space<vmem>>, %arg8: memref<1x128xf32, #tpu.memory_space<vmem>>, %arg9: memref<1x128xf32, #tpu.memory_space<vmem>>, %arg10: memref<128x128xbf16, #tpu.memory_space<vmem>>, %arg11: memref<1x128xf32, #tpu.memory_space<vmem>>, %arg12: memref<1x128xf32, #tpu.memory_space<vmem>>, %arg13: memref<1x128xf32, #tpu.memory_space<vmem>>, %arg14: memref<512x128xf32, #tpu.memory_space<vmem>>, %arg15: memref<608x128xf32, #tpu.memory_space<vmem>>, %arg16: memref<512x1152xbf16, #tpu.memory_space<vmem>>) attributes {dimension_semantics = [], scalar_prefetch = 0 : i64, scratch_operands = 2 : i64, tpu.core_type = #tpu.core_type<tc>} {
    %c0 = arith.constant 0 : index
    %c0_0 = arith.constant 0 : index
    %0 = vector.load %arg0[%c0, %c0_0] : memref<512x128xbf16, #tpu.memory_space<vmem>>, vector<512x128xbf16>
    %c0_1 = arith.constant 0 : index
    %c0_2 = arith.constant 0 : index
    %1 = vector.load %arg2[%c0_1, %c0_2] : memref<128x128xbf16, #tpu.memory_space<vmem>>, vector<128x128xbf16>
    %cst = arith.constant dense<0.000000e+00> : vector<512x128xf32>
    %2 = tpu.matmul %0, %1, %cst {dimension_numbers = #tpu.dot_dimension_numbers<[1], [0], [0], [1], [0, 0, 1, 1], [], []>} : vector<512x128xbf16>, vector<128x128xbf16>, vector<512x128xf32> -> vector<512x128xf32>
    %c0_3 = arith.constant 0 : index
    %c0_4 = arith.constant 0 : index
    %3 = vector.load %arg3[%c0_3, %c0_4] : memref<1x128xf32, #tpu.memory_space<vmem>>, vector<1x128xf32>
    %4 = vector.broadcast %3 : vector<1x128xf32> to vector<512x128xf32>
    %5 = arith.addf %2, %4 : vector<512x128xf32>
    %c0_5 = arith.constant 0 : index
    %c0_6 = arith.constant 0 : index
    %6 = vector.load %arg4[%c0_5, %c0_6] : memref<1x128xf32, #tpu.memory_space<vmem>>, vector<1x128xf32>
    %c0_7 = arith.constant 0 : index
    %c0_8 = arith.constant 0 : index
    %7 = vector.load %arg5[%c0_7, %c0_8] : memref<1x128xf32, #tpu.memory_space<vmem>>, vector<1x128xf32>
    %cst_9 = arith.constant dense<0.000000e+00> : vector<128xf32>
    %8 = vector.multi_reduction <add>, %5, %cst_9 [0] : vector<512x128xf32> to vector<128xf32>
    %9 = vector.shape_cast %8 : vector<128xf32> to vector<1x128xf32>
    %10 = arith.mulf %5, %5 : vector<512x128xf32>
    %cst_10 = arith.constant dense<0.000000e+00> : vector<128xf32>
    %11 = vector.multi_reduction <add>, %10, %cst_10 [0] : vector<512x128xf32> to vector<128xf32>
    %12 = vector.shape_cast %11 : vector<128xf32> to vector<1x128xf32>
    %cst_11 = arith.constant 0.001953125 : f32
    %13 = vector.broadcast %cst_11 : f32 to vector<1x128xf32>
    %14 = arith.mulf %9, %13 : vector<1x128xf32>
    %cst_12 = arith.constant 0.001953125 : f32
    %15 = vector.broadcast %cst_12 : f32 to vector<1x128xf32>
    %16 = arith.mulf %12, %15 : vector<1x128xf32>
    %17 = arith.mulf %14, %14 : vector<1x128xf32>
    %18 = arith.subf %16, %17 : vector<1x128xf32>
    %19 = vector.broadcast %14 : vector<1x128xf32> to vector<512x128xf32>
    %20 = arith.subf %5, %19 : vector<512x128xf32>
    %cst_13 = arith.constant 9.99999974E-6 : f32
    %21 = vector.broadcast %cst_13 : f32 to vector<1x128xf32>
    %22 = arith.addf %18, %21 : vector<1x128xf32>
    %23 = math.rsqrt %22 : vector<1x128xf32>
    %24 = arith.mulf %23, %6 : vector<1x128xf32>
    %25 = vector.broadcast %24 : vector<1x128xf32> to vector<512x128xf32>
    %26 = arith.mulf %20, %25 : vector<512x128xf32>
    %27 = vector.broadcast %7 : vector<1x128xf32> to vector<512x128xf32>
    %28 = arith.addf %26, %27 : vector<512x128xf32>
    %cst_14 = arith.constant 0.000000e+00 : f32
    %29 = vector.broadcast %cst_14 : f32 to vector<512x128xf32>
    %30 = arith.maximumf %28, %29 : vector<512x128xf32>
    %cst_15 = arith.constant 0.000000e+00 : f32
    %31 = vector.broadcast %cst_15 : f32 to vector<32x128xf32>
    %c0_16 = arith.constant 0 : index
    %c0_17 = arith.constant 0 : index
    %32 = vector.load %arg15[%c0_16, %c0_17] : memref<608x128xf32, #tpu.memory_space<vmem>>, vector<32x128xf32>
    tpu.vector_store %arg15[%c0_16, %c0_17], %31 {strides = array<i32>} : memref<608x128xf32, #tpu.memory_space<vmem>>, vector<32x128xf32>,
    %c288 = arith.constant 288 : index
    %c0_18 = arith.constant 0 : index
    %33 = vector.load %arg15[%c288, %c0_18] : memref<608x128xf32, #tpu.memory_space<vmem>>, vector<32x128xf32>
    tpu.vector_store %arg15[%c288, %c0_18], %31 {strides = array<i32>} : memref<608x128xf32, #tpu.memory_space<vmem>>, vector<32x128xf32>,
    %34 = vector.extract_strided_slice %30 {offsets = [0, 0], sizes = [256, 128], strides = [1, 1]} : vector<512x128xf32> to vector<256x128xf32>
    %c32 = arith.constant 32 : index
    %c0_19 = arith.constant 0 : index
    %35 = vector.load %arg15[%c32, %c0_19] : memref<608x128xf32, #tpu.memory_space<vmem>>, vector<256x128xf32>
    tpu.vector_store %arg15[%c32, %c0_19], %34 {strides = array<i32>} : memref<608x128xf32, #tpu.memory_space<vmem>>, vector<256x128xf32>,
    %c576 = arith.constant 576 : index
    %c0_20 = arith.constant 0 : index
    %36 = vector.load %arg15[%c576, %c0_20] : memref<608x128xf32, #tpu.memory_space<vmem>>, vector<32x128xf32>
    tpu.vector_store %arg15[%c576, %c0_20], %31 {strides = array<i32>} : memref<608x128xf32, #tpu.memory_space<vmem>>, vector<32x128xf32>,
    %37 = vector.extract_strided_slice %30 {offsets = [256, 0], sizes = [256, 128], strides = [1, 1]} : vector<512x128xf32> to vector<256x128xf32>
    %c320 = arith.constant 320 : index
    %c0_21 = arith.constant 0 : index
    %38 = vector.load %arg15[%c320, %c0_21] : memref<608x128xf32, #tpu.memory_space<vmem>>, vector<256x128xf32>
    tpu.vector_store %arg15[%c320, %c0_21], %37 {strides = array<i32>} : memref<608x128xf32, #tpu.memory_space<vmem>>, vector<256x128xf32>,
    %39 = tpu.iota {dimensions = array<i32: 0>} : vector<256x1xi32>
    %c16_i32 = arith.constant 16 : i32
    %c0_i32 = arith.constant 0 : i32
    %40 = arith.cmpi eq, %c16_i32, %c0_i32 : i32
    %c1_i32 = arith.constant 1 : i32
    %41 = arith.select %40, %c1_i32, %c16_i32 : i32
    %42 = vector.broadcast %41 : i32 to vector<256x1xi32>
    %43 = arith.remsi %39, %42 : vector<256x1xi32>
    %c0_i32_22 = arith.constant 0 : i32
    %44 = vector.broadcast %c0_i32_22 : i32 to vector<256x1xi32>
    %45 = arith.cmpi ne, %43, %44 : vector<256x1xi32>
    %c0_i32_23 = arith.constant 0 : i32
    %46 = vector.broadcast %c0_i32_23 : i32 to vector<256x1xi32>
    %47 = arith.cmpi slt, %43, %46 : vector<256x1xi32>
    %c0_i32_24 = arith.constant 0 : i32
    %48 = arith.cmpi slt, %41, %c0_i32_24 : i32
    %49 = vector.broadcast %48 : i1 to vector<256x1xi1>
    %50 = vector.broadcast %49 : vector<256x1xi1> to vector<256x1xi1>
    %51 = arith.xori %47, %50 : vector<256x1xi1>
    %52 = arith.andi %51, %45 : vector<256x1xi1>
    %53 = vector.broadcast %41 : i32 to vector<256x1xi32>
    %54 = arith.addi %43, %53 : vector<256x1xi32>
    %55 = arith.select %52, %54, %43 : vector<256x1xi1>, vector<256x1xi32>
    %c1_i32_25 = arith.constant 1 : i32
    %56 = vector.broadcast %c1_i32_25 : i32 to vector<256x1xi32>
    %57 = arith.cmpi sge, %55, %56 : vector<256x1xi32>
    %c14_i32 = arith.constant 14 : i32
    %58 = vector.broadcast %c14_i32 : i32 to vector<256x1xi32>
    %59 = arith.cmpi sle, %55, %58 : vector<256x1xi32>
    %c15 = arith.constant 15 : index
    %c0_26 = arith.constant 0 : index
    %60 = vector.load %arg15[%c15, %c0_26] : memref<608x128xf32, #tpu.memory_space<vmem>>, vector<256x128xf32>
    %cst_27 = arith.constant 0.000000e+00 : f32
    %61 = vector.shape_cast %57 : vector<256x1xi1> to vector<256x1xi1>
    %62 = vector.broadcast %61 : vector<256x1xi1> to vector<256x128xi1>
    %63 = vector.broadcast %cst_27 : f32 to vector<256x128xf32>
    %64 = arith.select %62, %60, %63 : vector<256x128xi1>, vector<256x128xf32>
    %65 = arith.truncf %64 : vector<256x128xf32> to vector<256x128xbf16>
    %c0_28 = arith.constant 0 : index
    %c0_29 = arith.constant 0 : index
    %66 = vector.load %arg16[%c0_28, %c0_29] : memref<512x1152xbf16, #tpu.memory_space<vmem>>, vector<256x128xbf16>
    tpu.vector_store %arg16[%c0_28, %c0_29], %65 {strides = array<i32>} : memref<512x1152xbf16, #tpu.memory_space<vmem>>, vector<256x128xbf16>,
    %c303 = arith.constant 303 : index
    %c0_30 = arith.constant 0 : index
    %67 = vector.load %arg15[%c303, %c0_30] : memref<608x128xf32, #tpu.memory_space<vmem>>, vector<256x128xf32>
    %cst_31 = arith.constant 0.000000e+00 : f32
    %68 = vector.shape_cast %57 : vector<256x1xi1> to vector<256x1xi1>
    %69 = vector.broadcast %68 : vector<256x1xi1> to vector<256x128xi1>
    %70 = vector.broadcast %cst_31 : f32 to vector<256x128xf32>
    %71 = arith.select %69, %67, %70 : vector<256x128xi1>, vector<256x128xf32>
    %72 = arith.truncf %71 : vector<256x128xf32> to vector<256x128xbf16>
    %c256 = arith.constant 256 : index
    %c0_32 = arith.constant 0 : index
    %73 = vector.load %arg16[%c256, %c0_32] : memref<512x1152xbf16, #tpu.memory_space<vmem>>, vector<256x128xbf16>
    tpu.vector_store %arg16[%c256, %c0_32], %72 {strides = array<i32>} : memref<512x1152xbf16, #tpu.memory_space<vmem>>, vector<256x128xbf16>,
    %c16 = arith.constant 16 : index
    %c0_33 = arith.constant 0 : index
    %74 = vector.load %arg15[%c16, %c0_33] : memref<608x128xf32, #tpu.memory_space<vmem>>, vector<256x128xf32>
    %75 = arith.truncf %74 : vector<256x128xf32> to vector<256x128xbf16>
    %c0_34 = arith.constant 0 : index
    %c128 = arith.constant 128 : index
    %76 = vector.load %arg16[%c0_34, %c128] : memref<512x1152xbf16, #tpu.memory_space<vmem>>, vector<256x128xbf16>
    tpu.vector_store %arg16[%c0_34, %c128], %75 {strides = array<i32>} : memref<512x1152xbf16, #tpu.memory_space<vmem>>, vector<256x128xbf16>,
    %c304 = arith.constant 304 : index
    %c0_35 = arith.constant 0 : index
    %77 = vector.load %arg15[%c304, %c0_35] : memref<608x128xf32, #tpu.memory_space<vmem>>, vector<256x128xf32>
    %78 = arith.truncf %77 : vector<256x128xf32> to vector<256x128xbf16>
    %c256_36 = arith.constant 256 : index
    %c128_37 = arith.constant 128 : index
    %79 = vector.load %arg16[%c256_36, %c128_37] : memref<512x1152xbf16, #tpu.memory_space<vmem>>, vector<256x128xbf16>
    tpu.vector_store %arg16[%c256_36, %c128_37], %78 {strides = array<i32>} : memref<512x1152xbf16, #tpu.memory_space<vmem>>, vector<256x128xbf16>,
    %c17 = arith.constant 17 : index
    %c0_38 = arith.constant 0 : index
    %80 = vector.load %arg15[%c17, %c0_38] : memref<608x128xf32, #tpu.memory_space<vmem>>, vector<256x128xf32>
    %cst_39 = arith.constant 0.000000e+00 : f32
    %81 = vector.shape_cast %59 : vector<256x1xi1> to vector<256x1xi1>
    %82 = vector.broadcast %81 : vector<256x1xi1> to vector<256x128xi1>
    %83 = vector.broadcast %cst_39 : f32 to vector<256x128xf32>
    %84 = arith.select %82, %80, %83 : vector<256x128xi1>, vector<256x128xf32>
    %85 = arith.truncf %84 : vector<256x128xf32> to vector<256x128xbf16>
    %c0_40 = arith.constant 0 : index
    %c256_41 = arith.constant 256 : index
    %86 = vector.load %arg16[%c0_40, %c256_41] : memref<512x1152xbf16, #tpu.memory_space<vmem>>, vector<256x128xbf16>
    tpu.vector_store %arg16[%c0_40, %c256_41], %85 {strides = array<i32>} : memref<512x1152xbf16, #tpu.memory_space<vmem>>, vector<256x128xbf16>,
    %c305 = arith.constant 305 : index
    %c0_42 = arith.constant 0 : index
    %87 = vector.load %arg15[%c305, %c0_42] : memref<608x128xf32, #tpu.memory_space<vmem>>, vector<256x128xf32>
    %cst_43 = arith.constant 0.000000e+00 : f32
    %88 = vector.shape_cast %59 : vector<256x1xi1> to vector<256x1xi1>
    %89 = vector.broadcast %88 : vector<256x1xi1> to vector<256x128xi1>
    %90 = vector.broadcast %cst_43 : f32 to vector<256x128xf32>
    %91 = arith.select %89, %87, %90 : vector<256x128xi1>, vector<256x128xf32>
    %92 = arith.truncf %91 : vector<256x128xf32> to vector<256x128xbf16>
    %c256_44 = arith.constant 256 : index
    %c256_45 = arith.constant 256 : index
    %93 = vector.load %arg16[%c256_44, %c256_45] : memref<512x1152xbf16, #tpu.memory_space<vmem>>, vector<256x128xbf16>
    tpu.vector_store %arg16[%c256_44, %c256_45], %92 {strides = array<i32>} : memref<512x1152xbf16, #tpu.memory_space<vmem>>, vector<256x128xbf16>,
    %c31 = arith.constant 31 : index
    %c0_46 = arith.constant 0 : index
    %94 = vector.load %arg15[%c31, %c0_46] : memref<608x128xf32, #tpu.memory_space<vmem>>, vector<256x128xf32>
    %cst_47 = arith.constant 0.000000e+00 : f32
    %95 = vector.shape_cast %57 : vector<256x1xi1> to vector<256x1xi1>
    %96 = vector.broadcast %95 : vector<256x1xi1> to vector<256x128xi1>
    %97 = vector.broadcast %cst_47 : f32 to vector<256x128xf32>
    %98 = arith.select %96, %94, %97 : vector<256x128xi1>, vector<256x128xf32>
    %99 = arith.truncf %98 : vector<256x128xf32> to vector<256x128xbf16>
    %c0_48 = arith.constant 0 : index
    %c384 = arith.constant 384 : index
    %100 = vector.load %arg16[%c0_48, %c384] : memref<512x1152xbf16, #tpu.memory_space<vmem>>, vector<256x128xbf16>
    tpu.vector_store %arg16[%c0_48, %c384], %99 {strides = array<i32>} : memref<512x1152xbf16, #tpu.memory_space<vmem>>, vector<256x128xbf16>,
    %c319 = arith.constant 319 : index
    %c0_49 = arith.constant 0 : index
    %101 = vector.load %arg15[%c319, %c0_49] : memref<608x128xf32, #tpu.memory_space<vmem>>, vector<256x128xf32>
    %cst_50 = arith.constant 0.000000e+00 : f32
    %102 = vector.shape_cast %57 : vector<256x1xi1> to vector<256x1xi1>
    %103 = vector.broadcast %102 : vector<256x1xi1> to vector<256x128xi1>
    %104 = vector.broadcast %cst_50 : f32 to vector<256x128xf32>
    %105 = arith.select %103, %101, %104 : vector<256x128xi1>, vector<256x128xf32>
    %106 = arith.truncf %105 : vector<256x128xf32> to vector<256x128xbf16>
    %c256_51 = arith.constant 256 : index
    %c384_52 = arith.constant 384 : index
    %107 = vector.load %arg16[%c256_51, %c384_52] : memref<512x1152xbf16, #tpu.memory_space<vmem>>, vector<256x128xbf16>
    tpu.vector_store %arg16[%c256_51, %c384_52], %106 {strides = array<i32>} : memref<512x1152xbf16, #tpu.memory_space<vmem>>, vector<256x128xbf16>,
    %c32_53 = arith.constant 32 : index
    %c0_54 = arith.constant 0 : index
    %108 = vector.load %arg15[%c32_53, %c0_54] : memref<608x128xf32, #tpu.memory_space<vmem>>, vector<256x128xf32>
    %109 = arith.truncf %108 : vector<256x128xf32> to vector<256x128xbf16>
    %c0_55 = arith.constant 0 : index
    %c512 = arith.constant 512 : index
    %110 = vector.load %arg16[%c0_55, %c512] : memref<512x1152xbf16, #tpu.memory_space<vmem>>, vector<256x128xbf16>
    tpu.vector_store %arg16[%c0_55, %c512], %109 {strides = array<i32>} : memref<512x1152xbf16, #tpu.memory_space<vmem>>, vector<256x128xbf16>,
    %c320_56 = arith.constant 320 : index
    %c0_57 = arith.constant 0 : index
    %111 = vector.load %arg15[%c320_56, %c0_57] : memref<608x128xf32, #tpu.memory_space<vmem>>, vector<256x128xf32>
    %112 = arith.truncf %111 : vector<256x128xf32> to vector<256x128xbf16>
    %c256_58 = arith.constant 256 : index
    %c512_59 = arith.constant 512 : index
    %113 = vector.load %arg16[%c256_58, %c512_59] : memref<512x1152xbf16, #tpu.memory_space<vmem>>, vector<256x128xbf16>
    tpu.vector_store %arg16[%c256_58, %c512_59], %112 {strides = array<i32>} : memref<512x1152xbf16, #tpu.memory_space<vmem>>, vector<256x128xbf16>,
    %c33 = arith.constant 33 : index
    %c0_60 = arith.constant 0 : index
    %114 = vector.load %arg15[%c33, %c0_60] : memref<608x128xf32, #tpu.memory_space<vmem>>, vector<256x128xf32>
    %cst_61 = arith.constant 0.000000e+00 : f32
    %115 = vector.shape_cast %59 : vector<256x1xi1> to vector<256x1xi1>
    %116 = vector.broadcast %115 : vector<256x1xi1> to vector<256x128xi1>
    %117 = vector.broadcast %cst_61 : f32 to vector<256x128xf32>
    %118 = arith.select %116, %114, %117 : vector<256x128xi1>, vector<256x128xf32>
    %119 = arith.truncf %118 : vector<256x128xf32> to vector<256x128xbf16>
    %c0_62 = arith.constant 0 : index
    %c640 = arith.constant 640 : index
    %120 = vector.load %arg16[%c0_62, %c640] : memref<512x1152xbf16, #tpu.memory_space<vmem>>, vector<256x128xbf16>
    tpu.vector_store %arg16[%c0_62, %c640], %119 {strides = array<i32>} : memref<512x1152xbf16, #tpu.memory_space<vmem>>, vector<256x128xbf16>,
    %c321 = arith.constant 321 : index
    %c0_63 = arith.constant 0 : index
    %121 = vector.load %arg15[%c321, %c0_63] : memref<608x128xf32, #tpu.memory_space<vmem>>, vector<256x128xf32>
    %cst_64 = arith.constant 0.000000e+00 : f32
    %122 = vector.shape_cast %59 : vector<256x1xi1> to vector<256x1xi1>
    %123 = vector.broadcast %122 : vector<256x1xi1> to vector<256x128xi1>
    %124 = vector.broadcast %cst_64 : f32 to vector<256x128xf32>
    %125 = arith.select %123, %121, %124 : vector<256x128xi1>, vector<256x128xf32>
    %126 = arith.truncf %125 : vector<256x128xf32> to vector<256x128xbf16>
    %c256_65 = arith.constant 256 : index
    %c640_66 = arith.constant 640 : index
    %127 = vector.load %arg16[%c256_65, %c640_66] : memref<512x1152xbf16, #tpu.memory_space<vmem>>, vector<256x128xbf16>
    tpu.vector_store %arg16[%c256_65, %c640_66], %126 {strides = array<i32>} : memref<512x1152xbf16, #tpu.memory_space<vmem>>, vector<256x128xbf16>,
    %c47 = arith.constant 47 : index
    %c0_67 = arith.constant 0 : index
    %128 = vector.load %arg15[%c47, %c0_67] : memref<608x128xf32, #tpu.memory_space<vmem>>, vector<256x128xf32>
    %cst_68 = arith.constant 0.000000e+00 : f32
    %129 = vector.shape_cast %57 : vector<256x1xi1> to vector<256x1xi1>
    %130 = vector.broadcast %129 : vector<256x1xi1> to vector<256x128xi1>
    %131 = vector.broadcast %cst_68 : f32 to vector<256x128xf32>
    %132 = arith.select %130, %128, %131 : vector<256x128xi1>, vector<256x128xf32>
    %133 = arith.truncf %132 : vector<256x128xf32> to vector<256x128xbf16>
    %c0_69 = arith.constant 0 : index
    %c768 = arith.constant 768 : index
    %134 = vector.load %arg16[%c0_69, %c768] : memref<512x1152xbf16, #tpu.memory_space<vmem>>, vector<256x128xbf16>
    tpu.vector_store %arg16[%c0_69, %c768], %133 {strides = array<i32>} : memref<512x1152xbf16, #tpu.memory_space<vmem>>, vector<256x128xbf16>,
    %c335 = arith.constant 335 : index
    %c0_70 = arith.constant 0 : index
    %135 = vector.load %arg15[%c335, %c0_70] : memref<608x128xf32, #tpu.memory_space<vmem>>, vector<256x128xf32>
    %cst_71 = arith.constant 0.000000e+00 : f32
    %136 = vector.shape_cast %57 : vector<256x1xi1> to vector<256x1xi1>
    %137 = vector.broadcast %136 : vector<256x1xi1> to vector<256x128xi1>
    %138 = vector.broadcast %cst_71 : f32 to vector<256x128xf32>
    %139 = arith.select %137, %135, %138 : vector<256x128xi1>, vector<256x128xf32>
    %140 = arith.truncf %139 : vector<256x128xf32> to vector<256x128xbf16>
    %c256_72 = arith.constant 256 : index
    %c768_73 = arith.constant 768 : index
    %141 = vector.load %arg16[%c256_72, %c768_73] : memref<512x1152xbf16, #tpu.memory_space<vmem>>, vector<256x128xbf16>
    tpu.vector_store %arg16[%c256_72, %c768_73], %140 {strides = array<i32>} : memref<512x1152xbf16, #tpu.memory_space<vmem>>, vector<256x128xbf16>,
    %c48 = arith.constant 48 : index
    %c0_74 = arith.constant 0 : index
    %142 = vector.load %arg15[%c48, %c0_74] : memref<608x128xf32, #tpu.memory_space<vmem>>, vector<256x128xf32>
    %143 = arith.truncf %142 : vector<256x128xf32> to vector<256x128xbf16>
    %c0_75 = arith.constant 0 : index
    %c896 = arith.constant 896 : index
    %144 = vector.load %arg16[%c0_75, %c896] : memref<512x1152xbf16, #tpu.memory_space<vmem>>, vector<256x128xbf16>
    tpu.vector_store %arg16[%c0_75, %c896], %143 {strides = array<i32>} : memref<512x1152xbf16, #tpu.memory_space<vmem>>, vector<256x128xbf16>,
    %c336 = arith.constant 336 : index
    %c0_76 = arith.constant 0 : index
    %145 = vector.load %arg15[%c336, %c0_76] : memref<608x128xf32, #tpu.memory_space<vmem>>, vector<256x128xf32>
    %146 = arith.truncf %145 : vector<256x128xf32> to vector<256x128xbf16>
    %c256_77 = arith.constant 256 : index
    %c896_78 = arith.constant 896 : index
    %147 = vector.load %arg16[%c256_77, %c896_78] : memref<512x1152xbf16, #tpu.memory_space<vmem>>, vector<256x128xbf16>
    tpu.vector_store %arg16[%c256_77, %c896_78], %146 {strides = array<i32>} : memref<512x1152xbf16, #tpu.memory_space<vmem>>, vector<256x128xbf16>,
    %c49 = arith.constant 49 : index
    %c0_79 = arith.constant 0 : index
    %148 = vector.load %arg15[%c49, %c0_79] : memref<608x128xf32, #tpu.memory_space<vmem>>, vector<256x128xf32>
    %cst_80 = arith.constant 0.000000e+00 : f32
    %149 = vector.shape_cast %59 : vector<256x1xi1> to vector<256x1xi1>
    %150 = vector.broadcast %149 : vector<256x1xi1> to vector<256x128xi1>
    %151 = vector.broadcast %cst_80 : f32 to vector<256x128xf32>
    %152 = arith.select %150, %148, %151 : vector<256x128xi1>, vector<256x128xf32>
    %153 = arith.truncf %152 : vector<256x128xf32> to vector<256x128xbf16>
    %c0_81 = arith.constant 0 : index
    %c1024 = arith.constant 1024 : index
    %154 = vector.load %arg16[%c0_81, %c1024] : memref<512x1152xbf16, #tpu.memory_space<vmem>>, vector<256x128xbf16>
    tpu.vector_store %arg16[%c0_81, %c1024], %153 {strides = array<i32>} : memref<512x1152xbf16, #tpu.memory_space<vmem>>, vector<256x128xbf16>,
    %c337 = arith.constant 337 : index
    %c0_82 = arith.constant 0 : index
    %155 = vector.load %arg15[%c337, %c0_82] : memref<608x128xf32, #tpu.memory_space<vmem>>, vector<256x128xf32>
    %cst_83 = arith.constant 0.000000e+00 : f32
    %156 = vector.shape_cast %59 : vector<256x1xi1> to vector<256x1xi1>
    %157 = vector.broadcast %156 : vector<256x1xi1> to vector<256x128xi1>
    %158 = vector.broadcast %cst_83 : f32 to vector<256x128xf32>
    %159 = arith.select %157, %155, %158 : vector<256x128xi1>, vector<256x128xf32>
    %160 = arith.truncf %159 : vector<256x128xf32> to vector<256x128xbf16>
    %c256_84 = arith.constant 256 : index
    %c1024_85 = arith.constant 1024 : index
    %161 = vector.load %arg16[%c256_84, %c1024_85] : memref<512x1152xbf16, #tpu.memory_space<vmem>>, vector<256x128xbf16>
    tpu.vector_store %arg16[%c256_84, %c1024_85], %160 {strides = array<i32>} : memref<512x1152xbf16, #tpu.memory_space<vmem>>, vector<256x128xbf16>,
    %c0_86 = arith.constant 0 : index
    %c0_87 = arith.constant 0 : index
    %162 = vector.load %arg16[%c0_86, %c0_87] : memref<512x1152xbf16, #tpu.memory_space<vmem>>, vector<512x1152xbf16>
    %c0_88 = arith.constant 0 : index
    %c0_89 = arith.constant 0 : index
    %163 = vector.load %arg6[%c0_88, %c0_89] : memref<1152x128xbf16, #tpu.memory_space<vmem>>, vector<1152x128xbf16>
    %cst_90 = arith.constant dense<0.000000e+00> : vector<512x128xf32>
    %164 = tpu.matmul %162, %163, %cst_90 {dimension_numbers = #tpu.dot_dimension_numbers<[1], [0], [0], [1], [0, 0, 1, 1], [], []>} : vector<512x1152xbf16>, vector<1152x128xbf16>, vector<512x128xf32> -> vector<512x128xf32>
    %c0_91 = arith.constant 0 : index
    %c0_92 = arith.constant 0 : index
    %165 = vector.load %arg7[%c0_91, %c0_92] : memref<1x128xf32, #tpu.memory_space<vmem>>, vector<1x128xf32>
    %166 = vector.broadcast %165 : vector<1x128xf32> to vector<512x128xf32>
    %167 = arith.addf %164, %166 : vector<512x128xf32>
    %c0_93 = arith.constant 0 : index
    %c0_94 = arith.constant 0 : index
    %168 = vector.load %arg8[%c0_93, %c0_94] : memref<1x128xf32, #tpu.memory_space<vmem>>, vector<1x128xf32>
    %c0_95 = arith.constant 0 : index
    %c0_96 = arith.constant 0 : index
    %169 = vector.load %arg9[%c0_95, %c0_96] : memref<1x128xf32, #tpu.memory_space<vmem>>, vector<1x128xf32>
    %cst_97 = arith.constant dense<0.000000e+00> : vector<128xf32>
    %170 = vector.multi_reduction <add>, %167, %cst_97 [0] : vector<512x128xf32> to vector<128xf32>
    %171 = vector.shape_cast %170 : vector<128xf32> to vector<1x128xf32>
    %172 = arith.mulf %167, %167 : vector<512x128xf32>
    %cst_98 = arith.constant dense<0.000000e+00> : vector<128xf32>
    %173 = vector.multi_reduction <add>, %172, %cst_98 [0] : vector<512x128xf32> to vector<128xf32>
    %174 = vector.shape_cast %173 : vector<128xf32> to vector<1x128xf32>
    %cst_99 = arith.constant 0.001953125 : f32
    %175 = vector.broadcast %cst_99 : f32 to vector<1x128xf32>
    %176 = arith.mulf %171, %175 : vector<1x128xf32>
    %cst_100 = arith.constant 0.001953125 : f32
    %177 = vector.broadcast %cst_100 : f32 to vector<1x128xf32>
    %178 = arith.mulf %174, %177 : vector<1x128xf32>
    %179 = arith.mulf %176, %176 : vector<1x128xf32>
    %180 = arith.subf %178, %179 : vector<1x128xf32>
    %181 = vector.broadcast %176 : vector<1x128xf32> to vector<512x128xf32>
    %182 = arith.subf %167, %181 : vector<512x128xf32>
    %cst_101 = arith.constant 9.99999974E-6 : f32
    %183 = vector.broadcast %cst_101 : f32 to vector<1x128xf32>
    %184 = arith.addf %180, %183 : vector<1x128xf32>
    %185 = math.rsqrt %184 : vector<1x128xf32>
    %186 = arith.mulf %185, %168 : vector<1x128xf32>
    %187 = vector.broadcast %186 : vector<1x128xf32> to vector<512x128xf32>
    %188 = arith.mulf %182, %187 : vector<512x128xf32>
    %189 = vector.broadcast %169 : vector<1x128xf32> to vector<512x128xf32>
    %190 = arith.addf %188, %189 : vector<512x128xf32>
    %c0_102 = arith.constant 0 : index
    %c0_103 = arith.constant 0 : index
    %191 = vector.load %arg1[%c0_102, %c0_103] : memref<512x128xbf16, #tpu.memory_space<vmem>>, vector<512x128xbf16>
    %c0_104 = arith.constant 0 : index
    %c0_105 = arith.constant 0 : index
    %192 = vector.load %arg10[%c0_104, %c0_105] : memref<128x128xbf16, #tpu.memory_space<vmem>>, vector<128x128xbf16>
    %cst_106 = arith.constant dense<0.000000e+00> : vector<512x128xf32>
    %193 = tpu.matmul %191, %192, %cst_106 {dimension_numbers = #tpu.dot_dimension_numbers<[1], [0], [0], [1], [0, 0, 1, 1], [], []>} : vector<512x128xbf16>, vector<128x128xbf16>, vector<512x128xf32> -> vector<512x128xf32>
    %c0_107 = arith.constant 0 : index
    %c0_108 = arith.constant 0 : index
    %194 = vector.load %arg11[%c0_107, %c0_108] : memref<1x128xf32, #tpu.memory_space<vmem>>, vector<1x128xf32>
    %195 = vector.broadcast %194 : vector<1x128xf32> to vector<512x128xf32>
    %196 = arith.addf %193, %195 : vector<512x128xf32>
    %c0_109 = arith.constant 0 : index
    %c0_110 = arith.constant 0 : index
    %197 = vector.load %arg12[%c0_109, %c0_110] : memref<1x128xf32, #tpu.memory_space<vmem>>, vector<1x128xf32>
    %c0_111 = arith.constant 0 : index
    %c0_112 = arith.constant 0 : index
    %198 = vector.load %arg13[%c0_111, %c0_112] : memref<1x128xf32, #tpu.memory_space<vmem>>, vector<1x128xf32>
    %cst_113 = arith.constant dense<0.000000e+00> : vector<128xf32>
    %199 = vector.multi_reduction <add>, %196, %cst_113 [0] : vector<512x128xf32> to vector<128xf32>
    %200 = vector.shape_cast %199 : vector<128xf32> to vector<1x128xf32>
    %201 = arith.mulf %196, %196 : vector<512x128xf32>
    %cst_114 = arith.constant dense<0.000000e+00> : vector<128xf32>
    %202 = vector.multi_reduction <add>, %201, %cst_114 [0] : vector<512x128xf32> to vector<128xf32>
    %203 = vector.shape_cast %202 : vector<128xf32> to vector<1x128xf32>
    %cst_115 = arith.constant 0.001953125 : f32
    %204 = vector.broadcast %cst_115 : f32 to vector<1x128xf32>
    %205 = arith.mulf %200, %204 : vector<1x128xf32>
    %cst_116 = arith.constant 0.001953125 : f32
    %206 = vector.broadcast %cst_116 : f32 to vector<1x128xf32>
    %207 = arith.mulf %203, %206 : vector<1x128xf32>
    %208 = arith.mulf %205, %205 : vector<1x128xf32>
    %209 = arith.subf %207, %208 : vector<1x128xf32>
    %210 = vector.broadcast %205 : vector<1x128xf32> to vector<512x128xf32>
    %211 = arith.subf %196, %210 : vector<512x128xf32>
    %cst_117 = arith.constant 9.99999974E-6 : f32
    %212 = vector.broadcast %cst_117 : f32 to vector<1x128xf32>
    %213 = arith.addf %209, %212 : vector<1x128xf32>
    %214 = math.rsqrt %213 : vector<1x128xf32>
    %215 = arith.mulf %214, %197 : vector<1x128xf32>
    %216 = vector.broadcast %215 : vector<1x128xf32> to vector<512x128xf32>
    %217 = arith.mulf %211, %216 : vector<512x128xf32>
    %218 = vector.broadcast %198 : vector<1x128xf32> to vector<512x128xf32>
    %219 = arith.addf %217, %218 : vector<512x128xf32>
    %220 = arith.addf %190, %219 : vector<512x128xf32>
    %cst_118 = arith.constant 0.000000e+00 : f32
    %221 = vector.broadcast %cst_118 : f32 to vector<512x128xf32>
    %222 = arith.maximumf %220, %221 : vector<512x128xf32>
    %c0_119 = arith.constant 0 : index
    %c0_120 = arith.constant 0 : index
    %223 = vector.load %arg14[%c0_119, %c0_120] : memref<512x128xf32, #tpu.memory_space<vmem>>, vector<512x128xf32>
    tpu.vector_store %arg14[%c0_119, %c0_120], %222 {strides = array<i32>} : memref<512x128xf32, #tpu.memory_space<vmem>>, vector<512x128xf32>,
    return
  }
}

</mosaic_0001>

<llo_original>
// kernel: tpu_custom_call.1
$region0: #{tpu_custom_call.1}
  #allocation0 [shape = 'u32[]', space=smem, size = 0x4, offset = 0x4, fixed_abs, tag = 'smem constant byte address 0x4 - core index']
  #allocation1 [shape = 'u32[144,128]{1,0:T(1,128)}', space=vmem, size = 0x12000, scoped, tag = 'internal scratch']
  #allocation2 [shape = 'f32[608,128]{1,0:T(8,128)}', space=vmem, size = 0x4c000, scoped, tag = 'scratch operand']
  #allocation3 [shape = 'bf16[512,1152]{1,0:T(16,128)(2,1)}', space=vmem, size = 0x120000, scoped, tag = 'scratch operand']
  %s0 = inlined_call_operand.hbm [shape: bf16[512,128], index: 0, kind: input, shape index: {}]
  %s1 = inlined_call_operand.hbm [shape: bf16[512,128], index: 1, kind: input, shape index: {}]
  %s2 = inlined_call_operand.hbm [shape: bf16[128,128], index: 2, kind: input, shape index: {}]
  %s3 = inlined_call_operand.vmem [shape: f32[1,128], index: 3, kind: input, shape index: {}]
  %s4 = inlined_call_operand.vmem [shape: f32[1,128], index: 4, kind: input, shape index: {}]
  %s5 = inlined_call_operand.vmem [shape: f32[1,128], index: 5, kind: input, shape index: {}]
  %s6 = inlined_call_operand.hbm [shape: bf16[1152,128], index: 6, kind: input, shape index: {}]
  %s7 = inlined_call_operand.vmem [shape: f32[1,128], index: 7, kind: input, shape index: {}]
  %s8 = inlined_call_operand.vmem [shape: f32[1,128], index: 8, kind: input, shape index: {}]
  %s9 = inlined_call_operand.vmem [shape: f32[1,128], index: 9, kind: input, shape index: {}]
  %s10 = inlined_call_operand.hbm [shape: bf16[128,128], index: 10, kind: input, shape index: {}]
  %s11 = inlined_call_operand.vmem [shape: f32[1,128], index: 11, kind: input, shape index: {}]
  %s12 = inlined_call_operand.vmem [shape: f32[1,128], index: 12, kind: input, shape index: {}]
  %s13 = inlined_call_operand.vmem [shape: f32[1,128], index: 13, kind: input, shape index: {}]
  %s14 = inlined_call_operand.hbm [shape: f32[512,128], index: 14, kind: output, shape index: {}]
  %s15 = sld [smem:[#allocation0]]
  $region86: #{tpu_custom_call.1} parent=0
    _
  %s17 = ssub.s32 1, %s15
  %s18 = scalar_select 0, %s17, %s15
  $region1: #{tpu_custom_call.1} parent=0
    #allocation4 [shape = 'u8[131072]{0}', space=vmem, size = 0x20000, scoped, tag = 'input window, operand 0, single buffered']
    #allocation5 [shape = 's32[1]{0}', space=sflag, size = 0x4, scoped, tag = 'scoped memory for tpu_custom_call.1']
    #allocation6 [shape = 's32[1]{0}', space=sflag, size = 0x4, scoped, tag = 'scoped memory for tpu_custom_call.1']
    #allocation7 [shape = 'u8[131072]{0}', space=vmem, size = 0x20000, scoped, tag = 'input window, operand 1, single buffered']
    #allocation8 [shape = 's32[1]{0}', space=sflag, size = 0x4, scoped, tag = 'scoped memory for tpu_custom_call.1']
    #allocation9 [shape = 'u8[32768]{0}', space=vmem, size = 0x8000, scoped, tag = 'input window, operand 2, single buffered']
    #allocation10 [shape = 'u8[294912]{0}', space=vmem, size = 0x48000, scoped, tag = 'input window, operand 6, single buffered']
    #allocation11 [shape = 's32[1]{0}', space=sflag, size = 0x4, scoped, tag = 'scoped memory for tpu_custom_call.1']
    #allocation12 [shape = 'u8[32768]{0}', space=vmem, size = 0x8000, scoped, tag = 'input window, operand 10, single buffered']
    #allocation13 [shape = 'u8[262144]{0}', space=vmem, size = 0x40000, scoped, tag = 'output window, operand 0, single buffered']
    %19 = vsyncpa [#allocation5], 0
    %20 = vsyncpa [#allocation8], 0
    %21 = vsyncpa [#allocation11], 0
    %22 = vsyncpa [#allocation6], 0
    // Predicated region
    $region2: #{tpu_custom_call.1} parent=1 // pred_check
      _
    $region3: #{tpu_custom_call.1} parent=1 // pred_check_branch
      %24 = sbr.rel (0) target = $region5
    $region4: #{tpu_custom_call.1} parent=1 // pred_region
      %s26 = ssub.s32 4096, 4096
      %27 = vsyncadd [#allocation5], %s26
      %s28 = sshll.u32 [#allocation4], 4
      %s29 = int_to_ptr.vmem [resolvable:$true] %s28
      %34 = dma.hbm_to_vmem [thread:$0]  %s0, 4096, %s29, [#allocation5], 64, 64, 4
    $region5: #{tpu_custom_call.1} parent=1 // pred_fallthru
      _
    // Predicated region
    $region6: #{tpu_custom_call.1} parent=1 // pred_check
      _
    $region7: #{tpu_custom_call.1} parent=1 // pred_check_branch
      %36 = sbr.rel (0) target = $region9
    $region8: #{tpu_custom_call.1} parent=1 // pred_region
      %s38 = ssub.s32 4096, 4096
      %39 = vsyncadd [#allocation8], %s38
      %s40 = sshll.u32 [#allocation7], 4
      %s41 = int_to_ptr.vmem [resolvable:$true] %s40
      %46 = dma.hbm_to_vmem [thread:$0]  %s1, 4096, %s41, [#allocation8], 64, 64, 4
    $region9: #{tpu_custom_call.1} parent=1 // pred_fallthru
      _
    // Predicated region
    $region10: #{tpu_custom_call.1} parent=1 // pred_check
      _
    $region11: #{tpu_custom_call.1} parent=1 // pred_check_branch
      %48 = sbr.rel (0) target = $region13
    $region12: #{tpu_custom_call.1} parent=1 // pred_region
      %s50 = ssub.s32 1024, 1024
      %51 = vsyncadd [#allocation8], %s50
      %s52 = sshll.u32 [#allocation9], 4
      %s53 = int_to_ptr.vmem [resolvable:$true] %s52
      %58 = dma.hbm_to_vmem [thread:$0]  %s2, 1024, %s53, [#allocation8], 64, 64, 4
    $region13: #{tpu_custom_call.1} parent=1 // pred_fallthru
      _
    // Predicated region
    $region14: #{tpu_custom_call.1} parent=1 // pred_check
      _
    $region15: #{tpu_custom_call.1} parent=1 // pred_check_branch
      %60 = sbr.rel (0) target = $region17
    $region16: #{tpu_custom_call.1} parent=1 // pred_region
      _
    $region17: #{tpu_custom_call.1} parent=1 // pred_fallthru
      _
    // Predicated region
    $region18: #{tpu_custom_call.1} parent=1 // pred_check
      _
    $region19: #{tpu_custom_call.1} parent=1 // pred_check_branch
      %62 = sbr.rel (0) target = $region21
    $region20: #{tpu_custom_call.1} parent=1 // pred_region
      _
    $region21: #{tpu_custom_call.1} parent=1 // pred_fallthru
      _
    // Predicated region
    $region22: #{tpu_custom_call.1} parent=1 // pred_check
      _
    $region23: #{tpu_custom_call.1} parent=1 // pred_check_branch
      %64 = sbr.rel (0) target = $region25
    $region24: #{tpu_custom_call.1} parent=1 // pred_region
      _
    $region25: #{tpu_custom_call.1} parent=1 // pred_fallthru
      _
    // Predicated region
    $region26: #{tpu_custom_call.1} parent=1 // pred_check
      _
    $region27: #{tpu_custom_call.1} parent=1 // pred_check_branch
      %66 = sbr.rel (0) target = $region29
    $region28: #{tpu_custom_call.1} parent=1 // pred_region
      %s68 = ssub.s32 9216, 9216
      %69 = vsyncadd [#allocation11], %s68
      %s70 = sshll.u32 [#allocation10], 4
      %s71 = int_to_ptr.vmem [resolvable:$true] %s70
      %76 = dma.hbm_to_vmem [thread:$0]  %s6, 9216, %s71, [#allocation11], 64, 64, 4
    $region29: #{tpu_custom_call.1} parent=1 // pred_fallthru
      _
    // Predicated region
    $region30: #{tpu_custom_call.1} parent=1 // pred_check
      _
    $region31: #{tpu_custom_call.1} parent=1 // pred_check_branch
      %78 = sbr.rel (0) target = $region33
    $region32: #{tpu_custom_call.1} parent=1 // pred_region
      _
    $region33: #{tpu_custom_call.1} parent=1 // pred_fallthru
      _
    // Predicated region
    $region34: #{tpu_custom_call.1} parent=1 // pred_check
      _
    $region35: #{tpu_custom_call.1} parent=1 // pred_check_branch
      %80 = sbr.rel (0) target = $region37
    $region36: #{tpu_custom_call.1} parent=1 // pred_region
      _
    $region37: #{tpu_custom_call.1} parent=1 // pred_fallthru
      _
    // Predicated region
    $region38: #{tpu_custom_call.1} parent=1 // pred_check
      _
    $region39: #{tpu_custom_call.1} parent=1 // pred_check_branch
      %82 = sbr.rel (0) target = $region41
    $region40: #{tpu_custom_call.1} parent=1 // pred_region
      _
    $region41: #{tpu_custom_call.1} parent=1 // pred_fallthru
      _
    // Predicated region
    $region42: #{tpu_custom_call.1} parent=1 // pred_check
      _
    $region43: #{tpu_custom_call.1} parent=1 // pred_check_branch
      %84 = sbr.rel (0) target = $region45
    $region44: #{tpu_custom_call.1} parent=1 // pred_region
      %s86 = ssub.s32 1024, 1024
      %87 = vsyncadd [#allocation11], %s86
      %s88 = sshll.u32 [#allocation12], 4
      %s89 = int_to_ptr.vmem [resolvable:$true] %s88
      %94 = dma.hbm_to_vmem [thread:$0]  %s10, 1024, %s89, [#allocation11], 64, 64, 4
    $region45: #{tpu_custom_call.1} parent=1 // pred_fallthru
      _
    // Predicated region
    $region46: #{tpu_custom_call.1} parent=1 // pred_check
      _
    $region47: #{tpu_custom_call.1} parent=1 // pred_check_branch
      %96 = sbr.rel (0) target = $region49
    $region48: #{tpu_custom_call.1} parent=1 // pred_region
      _
    $region49: #{tpu_custom_call.1} parent=1 // pred_fallthru
      _
    // Predicated region
    $region50: #{tpu_custom_call.1} parent=1 // pred_check
      _
    $region51: #{tpu_custom_call.1} parent=1 // pred_check_branch
      %98 = sbr.rel (0) target = $region53
    $region52: #{tpu_custom_call.1} parent=1 // pred_region
      _
    $region53: #{tpu_custom_call.1} parent=1 // pred_fallthru
      _
    // Predicated region
    $region54: #{tpu_custom_call.1} parent=1 // pred_check
      _
    $region55: #{tpu_custom_call.1} parent=1 // pred_check_branch
      %100 = sbr.rel (0) target = $region57
    $region56: #{tpu_custom_call.1} parent=1 // pred_region
      _
    $region57: #{tpu_custom_call.1} parent=1 // pred_fallthru
      _
    // Predicated region
    $region58: #{tpu_custom_call.1} parent=1 // pred_check
      _
    $region59: #{tpu_custom_call.1} parent=1 // pred_check_branch
      %102 = sbr.rel (0) target = $region61
    $region60: #{tpu_custom_call.1} parent=1 // pred_region
      %103 = dma.done [#allocation5], 4096
    $region61: #{tpu_custom_call.1} parent=1 // pred_fallthru
      _
    // Predicated region
    $region62: #{tpu_custom_call.1} parent=1 // pred_check
      _
    $region63: #{tpu_custom_call.1} parent=1 // pred_check_branch
      %105 = sbr.rel (0) target = $region65
    $region64: #{tpu_custom_call.1} parent=1 // pred_region
      %106 = dma.done [#allocation8], 4096
    $region65: #{tpu_custom_call.1} parent=1 // pred_fallthru
      _
    // Predicated region
    $region66: #{tpu_custom_call.1} parent=1 // pred_check
      _
    $region67: #{tpu_custom_call.1} parent=1 // pred_check_branch
      %108 = sbr.rel (0) target = $region69
    $region68: #{tpu_custom_call.1} parent=1 // pred_region
      %109 = dma.done [#allocation8], 1024
    $region69: #{tpu_custom_call.1} parent=1 // pred_fallthru
      _
    // Predicated region
    $region70: #{tpu_custom_call.1} parent=1 // pred_check
      _
    $region71: #{tpu_custom_call.1} parent=1 // pred_check_branch
      %111 = sbr.rel (0) target = $region73
    $region72: #{tpu_custom_call.1} parent=1 // pred_region
      %112 = dma.done [#allocation11], 9216
    $region73: #{tpu_custom_call.1} parent=1 // pred_fallthru
      _
    // Predicated region
    $region74: #{tpu_custom_call.1} parent=1 // pred_check
      _
    $region75: #{tpu_custom_call.1} parent=1 // pred_check_branch
      %114 = sbr.rel (0) target = $region77
    $region76: #{tpu_custom_call.1} parent=1 // pred_region
      %115 = dma.done [#allocation11], 1024
    $region77: #{tpu_custom_call.1} parent=1 // pred_fallthru
      _
    %v117 = vld [vmem:[#allocation4] sm:$0xf]
    %v118 = vld [vmem:[#allocation4 + $0x4] sm:$0xf]
    %v119 = vld [vmem:[#allocation4 + $0x8] sm:$0xf]
    %v120 = vld [vmem:[#allocation4 + $0xc] sm:$0xf]
    %v121 = vld [vmem:[#allocation4 + $0x10] sm:$0xf]
    %v122 = vld [vmem:[#allocation4 + $0x14] sm:$0xf]
    %v123 = vld [vmem:[#allocation4 + $0x18] sm:$0xf]
    %v124 = vld [vmem:[#allocation4 + $0x1c] sm:$0xf]
    %v125 = vld [vmem:[#allocation4 + $0x20] sm:$0xf]
    %v126 = vld [vmem:[#allocation4 + $0x24] sm:$0xf]
    %v127 = vld [vmem:[#allocation4 + $0x28] sm:$0xf]
    %v128 = vld [vmem:[#allocation4 + $0x2c] sm:$0xf]
    %v129 = vld [vmem:[#allocation4 + $0x30] sm:$0xf]
    %v130 = vld [vmem:[#allocation4 + $0x34] sm:$0xf]
    %v131 = vld [vmem:[#allocation4 + $0x38] sm:$0xf]
    %v132 = vld [vmem:[#allocation4 + $0x3c] sm:$0xf]
    %v133 = vld [vmem:[#allocation4 + $0x40] sm:$0xf]
    %v134 = vld [vmem:[#allocation4 + $0x44] sm:$0xf]
    %v135 = vld [vmem:[#allocation4 + $0x48] sm:$0xf]
    %v136 = vld [vmem:[#allocation4 + $0x4c] sm:$0xf]
    %v137 = vld [vmem:[#allocation4 + $0x50] sm:$0xf]
    %v138 = vld [vmem:[#allocation4 + $0x54] sm:$0xf]
    %v139 = vld [vmem:[#allocation4 + $0x58] sm:$0xf]
    %v140 = vld [vmem:[#allocation4 + $0x5c] sm:$0xf]
    %v141 = vld [vmem:[#allocation4 + $0x60] sm:$0xf]
    %v142 = vld [vmem:[#allocation4 + $0x64] sm:$0xf]
    %v143 = vld [vmem:[#allocation4 + $0x68] sm:$0xf]
    %v144 = vld [vmem:[#allocation4 + $0x6c] sm:$0xf]
    %v145 = vld [vmem:[#allocation4 + $0x70] sm:$0xf]
    %v146 = vld [vmem:[#allocation4 + $0x74] sm:$0xf]
    %v147 = vld [vmem:[#allocation4 + $0x78] sm:$0xf]
    %v148 = vld [vmem:[#allocation4 + $0x7c] sm:$0xf]
    %v149 = vld [vmem:[#allocation4 + $0x80] sm:$0xf]
    %v150 = vld [vmem:[#allocation4 + $0x84] sm:$0xf]
    %v151 = vld [vmem:[#allocation4 + $0x88] sm:$0xf]
    %v152 = vld [vmem:[#allocation4 + $0x8c] sm:$0xf]
    %v153 = vld [vmem:[#allocation4 + $0x90] sm:$0xf]
    %v154 = vld [vmem:[#allocation4 + $0x94] sm:$0xf]
    %v155 = vld [vmem:[#allocation4 + $0x98] sm:$0xf]
    %v156 = vld [vmem:[#allocation4 + $0x9c] sm:$0xf]
    %v157 = vld [vmem:[#allocation4 + $0xa0] sm:$0xf]
    %v158 = vld [vmem:[#allocation4 + $0xa4] sm:$0xf]
    %v159 = vld [vmem:[#allocation4 + $0xa8] sm:$0xf]
    %v160 = vld [vmem:[#allocation4 + $0xac] sm:$0xf]
    %v161 = vld [vmem:[#allocation4 + $0xb0] sm:$0xf]
    %v162 = vld [vmem:[#allocation4 + $0xb4] sm:$0xf]
    %v163 = vld [vmem:[#allocation4 + $0xb8] sm:$0xf]
    %v164 = vld [vmem:[#allocation4 + $0xbc] sm:$0xf]
    %v165 = vld [vmem:[#allocation4 + $0xc0] sm:$0xf]
    %v166 = vld [vmem:[#allocation4 + $0xc4] sm:$0xf]
    %v167 = vld [vmem:[#allocation4 + $0xc8] sm:$0xf]
    %v168 = vld [vmem:[#allocation4 + $0xcc] sm:$0xf]
    %v169 = vld [vmem:[#allocation4 + $0xd0] sm:$0xf]
    %v170 = vld [vmem:[#allocation4 + $0xd4] sm:$0xf]
    %v171 = vld [vmem:[#allocation4 + $0xd8] sm:$0xf]
    %v172 = vld [vmem:[#allocation4 + $0xdc] sm:$0xf]
    %v173 = vld [vmem:[#allocation4 + $0xe0] sm:$0xf]
    %v174 = vld [vmem:[#allocation4 + $0xe4] sm:$0xf]
    %v175 = vld [vmem:[#allocation4 + $0xe8] sm:$0xf]
    %v176 = vld [vmem:[#allocation4 + $0xec] sm:$0xf]
    %v177 = vld [vmem:[#allocation4 + $0xf0] sm:$0xf]
    %v178 = vld [vmem:[#allocation4 + $0xf4] sm:$0xf]
    %v179 = vld [vmem:[#allocation4 + $0xf8] sm:$0xf]
    %v180 = vld [vmem:[#allocation4 + $0xfc] sm:$0xf]
    %v181 = vld [vmem:[#allocation9] sm:$0xf]
    %v182 = vld [vmem:[#allocation9 + $0x4] sm:$0xf]
    %v183 = vld [vmem:[#allocation9 + $0x8] sm:$0xf]
    %v184 = vld [vmem:[#allocation9 + $0xc] sm:$0xf]
    %v185 = vld [vmem:[#allocation9 + $0x10] sm:$0xf]
    %v186 = vld [vmem:[#allocation9 + $0x14] sm:$0xf]
    %v187 = vld [vmem:[#allocation9 + $0x18] sm:$0xf]
    %v188 = vld [vmem:[#allocation9 + $0x1c] sm:$0xf]
    %v189 = vld [vmem:[#allocation9 + $0x20] sm:$0xf]
    %v190 = vld [vmem:[#allocation9 + $0x24] sm:$0xf]
    %v191 = vld [vmem:[#allocation9 + $0x28] sm:$0xf]
    %v192 = vld [vmem:[#allocation9 + $0x2c] sm:$0xf]
    %v193 = vld [vmem:[#allocation9 + $0x30] sm:$0xf]
    %v194 = vld [vmem:[#allocation9 + $0x34] sm:$0xf]
    %v195 = vld [vmem:[#allocation9 + $0x38] sm:$0xf]
    %v196 = vld [vmem:[#allocation9 + $0x3c] sm:$0xf]
    %v197 = vld [vmem:[%s3] sm:$0x1]
    %v199 = vlaneseq
    %v200 = vshrl.u32 %v199, 7
    %v201 = vsub.s32 0, %v200
    %v202 = vrot.slane %v197, %v201
    %v268 = vunpack.c.l.b16 %v117
    %v269 = vunpack.c.l.b16 %v118
    %v270 = vunpack.c.l.b16 %v119
    %v271 = vunpack.c.l.b16 %v120
    %v272 = vunpack.c.l.b16 %v121
    %v273 = vunpack.c.l.b16 %v122
    %v274 = vunpack.c.l.b16 %v123
    %v275 = vunpack.c.l.b16 %v124
    %v276 = vunpack.c.l.b16 %v125
    %v277 = vunpack.c.l.b16 %v126
    %v278 = vunpack.c.l.b16 %v127
    %v279 = vunpack.c.l.b16 %v128
    %v280 = vunpack.c.l.b16 %v129
    %v281 = vunpack.c.l.b16 %v130
    %v282 = vunpack.c.l.b16 %v131
    %v283 = vunpack.c.l.b16 %v132
    %v284 = vunpack.c.l.b16 %v133
    %v285 = vunpack.c.l.b16 %v134
    %v286 = vunpack.c.l.b16 %v135
    %v287 = vunpack.c.l.b16 %v136
    %v288 = vunpack.c.l.b16 %v137
    %v289 = vunpack.c.l.b16 %v138
    %v290 = vunpack.c.l.b16 %v139
    %v291 = vunpack.c.l.b16 %v140
    %v292 = vunpack.c.l.b16 %v141
    %v293 = vunpack.c.l.b16 %v142
    %v294 = vunpack.c.l.b16 %v143
    %v295 = vunpack.c.l.b16 %v144
    %v296 = vunpack.c.l.b16 %v145
    %v297 = vunpack.c.l.b16 %v146
    %v298 = vunpack.c.l.b16 %v147
    %v299 = vunpack.c.l.b16 %v148
    %v300 = vunpack.c.l.b16 %v149
    %v301 = vunpack.c.l.b16 %v150
    %v302 = vunpack.c.l.b16 %v151
    %v303 = vunpack.c.l.b16 %v152
    %v304 = vunpack.c.l.b16 %v153
    %v305 = vunpack.c.l.b16 %v154
    %v306 = vunpack.c.l.b16 %v155
    %v307 = vunpack.c.l.b16 %v156
    %v308 = vunpack.c.l.b16 %v157
    %v309 = vunpack.c.l.b16 %v158
    %v310 = vunpack.c.l.b16 %v159
    %v311 = vunpack.c.l.b16 %v160
    %v312 = vunpack.c.l.b16 %v161
    %v313 = vunpack.c.l.b16 %v162
    %v314 = vunpack.c.l.b16 %v163
    %v315 = vunpack.c.l.b16 %v164
    %v316 = vunpack.c.l.b16 %v165
    %v317 = vunpack.c.l.b16 %v166
    %v318 = vunpack.c.l.b16 %v167
    %v319 = vunpack.c.l.b16 %v168
    %v320 = vunpack.c.l.b16 %v169
    %v321 = vunpack.c.l.b16 %v170
    %v322 = vunpack.c.l.b16 %v171
    %v323 = vunpack.c.l.b16 %v172
    %v324 = vunpack.c.l.b16 %v173
    %v325 = vunpack.c.l.b16 %v174
    %v326 = vunpack.c.l.b16 %v175
    %v327 = vunpack.c.l.b16 %v176
    %v328 = vunpack.c.l.b16 %v177
    %v329 = vunpack.c.l.b16 %v178
    %v330 = vunpack.c.l.b16 %v179
    %v331 = vunpack.c.l.b16 %v180
    %v332 = vpack.c.b16 %v269, %v268
    %v333 = vpack.c.b16 %v271, %v270
    %v334 = vpack.c.b16 %v273, %v272
    %v335 = vpack.c.b16 %v275, %v274
    %v336 = vpack.c.b16 %v277, %v276
    %v337 = vpack.c.b16 %v279, %v278
    %v338 = vpack.c.b16 %v281, %v280
    %v339 = vpack.c.b16 %v283, %v282
    %v340 = vpack.c.b16 %v285, %v284
    %v341 = vpack.c.b16 %v287, %v286
    %v342 = vpack.c.b16 %v289, %v288
    %v343 = vpack.c.b16 %v291, %v290
    %v344 = vpack.c.b16 %v293, %v292
    %v345 = vpack.c.b16 %v295, %v294
    %v346 = vpack.c.b16 %v297, %v296
    %v347 = vpack.c.b16 %v299, %v298
    %v348 = vpack.c.b16 %v301, %v300
    %v349 = vpack.c.b16 %v303, %v302
    %v350 = vpack.c.b16 %v305, %v304
    %v351 = vpack.c.b16 %v307, %v306
    %v352 = vpack.c.b16 %v309, %v308
    %v353 = vpack.c.b16 %v311, %v310
    %v354 = vpack.c.b16 %v313, %v312
    %v355 = vpack.c.b16 %v315, %v314
    %v356 = vpack.c.b16 %v317, %v316
    %v357 = vpack.c.b16 %v319, %v318
    %v358 = vpack.c.b16 %v321, %v320
    %v359 = vpack.c.b16 %v323, %v322
    %v360 = vpack.c.b16 %v325, %v324
    %v361 = vpack.c.b16 %v327, %v326
    %v362 = vpack.c.b16 %v329, %v328
    %v363 = vpack.c.b16 %v331, %v330
    %v412 = vunpack.c.l.b16 %v181
    %v413 = vunpack.c.l.b16 %v182
    %v414 = vunpack.c.l.b16 %v183
    %v415 = vunpack.c.l.b16 %v184
    %v416 = vunpack.c.l.b16 %v185
    %v417 = vunpack.c.l.b16 %v186
    %v418 = vunpack.c.l.b16 %v187
    %v419 = vunpack.c.l.b16 %v188
    %v420 = vunpack.c.l.b16 %v189
    %v421 = vunpack.c.l.b16 %v190
    %v422 = vunpack.c.l.b16 %v191
    %v423 = vunpack.c.l.b16 %v192
    %v424 = vunpack.c.l.b16 %v193
    %v425 = vunpack.c.l.b16 %v194
    %v426 = vunpack.c.l.b16 %v195
    %v427 = vunpack.c.l.b16 %v196
    %v428 = vpack.c.b16 %v413, %v412
    %v429 = vpack.c.b16 %v415, %v414
    %v430 = vpack.c.b16 %v417, %v416
    %v431 = vpack.c.b16 %v419, %v418
    %v432 = vpack.c.b16 %v421, %v420
    %v433 = vpack.c.b16 %v423, %v422
    %v434 = vpack.c.b16 %v425, %v424
    %v435 = vpack.c.b16 %v427, %v426
    %444 = vmatprep.subr.bf16.mxu0 0
    %445 = vmatpush1.bf16.msra.mxu0 %v428
    %446 = vmatprep.subr.bf16.mxu0 0
    %447 = vmatpush1.bf16.msra.mxu0 %v429
    %448 = vmatprep.subr.bf16.mxu0 0
    %449 = vmatpush1.bf16.msra.mxu0 %v430
    %450 = vmatprep.subr.bf16.mxu0 0
    %451 = vmatpush1.bf16.msra.mxu0 %v431
    %452 = vmatprep.subr.bf16.mxu0 0
    %453 = vmatpush1.bf16.msra.mxu0 %v432
    %454 = vmatprep.subr.bf16.mxu0 0
    %455 = vmatpush1.bf16.msra.mxu0 %v433
    %456 = vmatprep.subr.bf16.mxu0 0
    %457 = vmatpush1.bf16.msra.mxu0 %v434
    %458 = vmatprep.subr.bf16.mxu0 0
    %459 = vmatpush1.bf16.msra.mxu0 %v435
    %460 = vmatprep.subr.bf16.mxu0 0
    %461 = vmatpush1.bf16.msra.mxu0 0
    %462 = vmatprep.subr.bf16.mxu0 0
    %463 = vmatpush1.bf16.msra.mxu0 0
    %464 = vmatprep.subr.bf16.mxu0 0
    %465 = vmatpush1.bf16.msra.mxu0 0
    %466 = vmatprep.subr.bf16.mxu0 0
    %467 = vmatpush1.bf16.msra.mxu0 0
    %468 = vmatprep.subr.bf16.mxu0 0
    %469 = vmatpush1.bf16.msra.mxu0 0
    %470 = vmatprep.subr.bf16.mxu0 0
    %471 = vmatpush1.bf16.msra.mxu0 0
    %472 = vmatprep.subr.bf16.mxu0 0
    %473 = vmatpush1.bf16.msra.mxu0 0
    %474 = vmatprep.subr.bf16.mxu0 0
    %475 = vmatpush1.bf16.msra.mxu0 0
    %476 = vmatprep.mubr.bf16.mxu0 0
    %477 = vmatmul.mubr.bf16.gmra.mrb[0].mxu0 %v332
    %v478 = vpop.f32.mrb[0].mxu0
    %v479 = vadd.f32 %v202, %v478
    %v480 = vpop.f32.mrb[0].mxu0
    %v481 = vpop.f32.mrb[0].mxu0
    %v482 = vadd.f32 %v202, %v481
    %v483 = vpop.f32.mrb[0].mxu0
    %484 = vmatprep.mubr.bf16.mxu0 0
    %485 = vmatmul.mubr.bf16.gmra.mrb[0].mxu0 %v333
    %v486 = vpop.f32.mrb[0].mxu0
    %v487 = vadd.f32 %v202, %v486
    %v488 = vpop.f32.mrb[0].mxu0
    %v489 = vpop.f32.mrb[0].mxu0
    %v490 = vadd.f32 %v202, %v489
    %v491 = vpop.f32.mrb[0].mxu0
    %492 = vmatprep.mubr.bf16.mxu0 0
    %493 = vmatmul.mubr.bf16.gmra.mrb[0].mxu0 %v334
    %v494 = vpop.f32.mrb[0].mxu0
    %v495 = vadd.f32 %v202, %v494
    %v496 = vpop.f32.mrb[0].mxu0
    %v497 = vpop.f32.mrb[0].mxu0
    %v498 = vadd.f32 %v202, %v497
    %v499 = vpop.f32.mrb[0].mxu0
    %500 = vmatprep.mubr.bf16.mxu0 0
    %501 = vmatmul.mubr.bf16.gmra.mrb[0].mxu0 %v335
    %v502 = vpop.f32.mrb[0].mxu0
    %v503 = vadd.f32 %v202, %v502
    %v504 = vpop.f32.mrb[0].mxu0
    %v505 = vpop.f32.mrb[0].mxu0
    %v506 = vadd.f32 %v202, %v505
    %v507 = vpop.f32.mrb[0].mxu0
    %508 = vmatprep.mubr.bf16.mxu0 0
    %509 = vmatmul.mubr.bf16.gmra.mrb[0].mxu0 %v336
    %v510 = vpop.f32.mrb[0].mxu0
    %v511 = vadd.f32 %v202, %v510
    %v512 = vpop.f32.mrb[0].mxu0
    %v513 = vpop.f32.mrb[0].mxu0
    %v514 = vadd.f32 %v202, %v513
    %v515 = vpop.f32.mrb[0].mxu0
    %516 = vmatprep.mubr.bf16.mxu0 0
    %517 = vmatmul.mubr.bf16.gmra.mrb[0].mxu0 %v337
    %v518 = vpop.f32.mrb[0].mxu0
    %v519 = vadd.f32 %v202, %v518
    %v520 = vpop.f32.mrb[0].mxu0
    %v521 = vpop.f32.mrb[0].mxu0
    %v522 = vadd.f32 %v202, %v521
    %v523 = vpop.f32.mrb[0].mxu0
    %524 = vmatprep.mubr.bf16.mxu0 0
    %525 = vmatmul.mubr.bf16.gmra.mrb[0].mxu0 %v338
    %v526 = vpop.f32.mrb[0].mxu0
    %v527 = vadd.f32 %v202, %v526
    %v528 = vpop.f32.mrb[0].mxu0
    %v529 = vpop.f32.mrb[0].mxu0
    %v530 = vadd.f32 %v202, %v529
    %v531 = vpop.f32.mrb[0].mxu0
    %532 = vmatprep.mubr.bf16.mxu0 0
    %533 = vmatmul.mubr.bf16.gmra.mrb[0].mxu0 %v339
    %v534 = vpop.f32.mrb[0].mxu0
    %v535 = vadd.f32 %v202, %v534
    %v536 = vpop.f32.mrb[0].mxu0
    %v537 = vpop.f32.mrb[0].mxu0
    %v538 = vadd.f32 %v202, %v537
    %v539 = vpop.f32.mrb[0].mxu0
    %540 = vmatprep.mubr.bf16.mxu0 0
    %541 = vmatmul.mubr.bf16.gmra.mrb[0].mxu0 %v340
    %v542 = vpop.f32.mrb[0].mxu0
    %v543 = vadd.f32 %v202, %v542
    %v544 = vpop.f32.mrb[0].mxu0
    %v545 = vpop.f32.mrb[0].mxu0
    %v546 = vadd.f32 %v202, %v545
    %v547 = vpop.f32.mrb[0].mxu0
    %548 = vmatprep.mubr.bf16.mxu0 0
    %549 = vmatmul.mubr.bf16.gmra.mrb[0].mxu0 %v341
    %v550 = vpop.f32.mrb[0].mxu0
    %v551 = vadd.f32 %v202, %v550
    %v552 = vpop.f32.mrb[0].mxu0
    %v553 = vpop.f32.mrb[0].mxu0
    %v554 = vadd.f32 %v202, %v553
    %v555 = vpop.f32.mrb[0].mxu0
    %556 = vmatprep.mubr.bf16.mxu0 0
    %557 = vmatmul.mubr.bf16.gmra.mrb[0].mxu0 %v342
    %v558 = vpop.f32.mrb[0].mxu0
    %v559 = vadd.f32 %v202, %v558
    %v560 = vpop.f32.mrb[0].mxu0
    %v561 = vpop.f32.mrb[0].mxu0
    %v562 = vadd.f32 %v202, %v561
    %v563 = vpop.f32.mrb[0].mxu0
    %564 = vmatprep.mubr.bf16.mxu0 0
    %565 = vmatmul.mubr.bf16.gmra.mrb[0].mxu0 %v343
    %v566 = vpop.f32.mrb[0].mxu0
    %v567 = vadd.f32 %v202, %v566
    %v568 = vpop.f32.mrb[0].mxu0
    %v569 = vpop.f32.mrb[0].mxu0
    %v570 = vadd.f32 %v202, %v569
    %v571 = vpop.f32.mrb[0].mxu0
    %572 = vmatprep.mubr.bf16.mxu0 0
    %573 = vmatmul.mubr.bf16.gmra.mrb[0].mxu0 %v344
    %v574 = vpop.f32.mrb[0].mxu0
    %v575 = vadd.f32 %v202, %v574
    %v576 = vpop.f32.mrb[0].mxu0
    %v577 = vpop.f32.mrb[0].mxu0
    %v578 = vadd.f32 %v202, %v577
    %v579 = vpop.f32.mrb[0].mxu0
    %580 = vmatprep.mubr.bf16.mxu0 0
    %581 = vmatmul.mubr.bf16.gmra.mrb[0].mxu0 %v345
    %v582 = vpop.f32.mrb[0].mxu0
    %v583 = vadd.f32 %v202, %v582
    %v584 = vpop.f32.mrb[0].mxu0
    %v585 = vpop.f32.mrb[0].mxu0
    %v586 = vadd.f32 %v202, %v585
    %v587 = vpop.f32.mrb[0].mxu0
    %588 = vmatprep.mubr.bf16.mxu0 0
    %589 = vmatmul.mubr.bf16.gmra.mrb[0].mxu0 %v346
    %v590 = vpop.f32.mrb[0].mxu0
    %v591 = vadd.f32 %v202, %v590
    %v592 = vpop.f32.mrb[0].mxu0
    %v593 = vpop.f32.mrb[0].mxu0
    %v594 = vadd.f32 %v202, %v593
    %v595 = vpop.f32.mrb[0].mxu0
    %596 = vmatprep.mubr.bf16.mxu0 0
    %597 = vmatmul.mubr.bf16.gmra.mrb[0].mxu0 %v347
    %v598 = vpop.f32.mrb[0].mxu0
    %v599 = vadd.f32 %v202, %v598
    %v600 = vpop.f32.mrb[0].mxu0
    %v601 = vpop.f32.mrb[0].mxu0
    %v602 = vadd.f32 %v202, %v601
    %v603 = vpop.f32.mrb[0].mxu0
    %604 = vmatprep.mubr.bf16.mxu0 0
    %605 = vmatmul.mubr.bf16.gmra.mrb[0].mxu0 %v348
    %v606 = vpop.f32.mrb[0].mxu0
    %v607 = vadd.f32 %v202, %v606
    %v608 = vpop.f32.mrb[0].mxu0
    %v609 = vpop.f32.mrb[0].mxu0
    %v610 = vadd.f32 %v202, %v609
    %v611 = vpop.f32.mrb[0].mxu0
    %612 = vmatprep.mubr.bf16.mxu0 0
    %613 = vmatmul.mubr.bf16.gmra.mrb[0].mxu0 %v349
    %v614 = vpop.f32.mrb[0].mxu0
    %v615 = vadd.f32 %v202, %v614
    %v616 = vpop.f32.mrb[0].mxu0
    %v617 = vpop.f32.mrb[0].mxu0
    %v618 = vadd.f32 %v202, %v617
    %v619 = vpop.f32.mrb[0].mxu0
    %620 = vmatprep.mubr.bf16.mxu0 0
    %621 = vmatmul.mubr.bf16.gmra.mrb[0].mxu0 %v350
    %v622 = vpop.f32.mrb[0].mxu0
    %v623 = vadd.f32 %v202, %v622
    %v624 = vpop.f32.mrb[0].mxu0
    %v625 = vpop.f32.mrb[0].mxu0
    %v626 = vadd.f32 %v202, %v625
    %v627 = vpop.f32.mrb[0].mxu0
    %628 = vmatprep.mubr.bf16.mxu0 0
    %629 = vmatmul.mubr.bf16.gmra.mrb[0].mxu0 %v351
    %v630 = vpop.f32.mrb[0].mxu0
    %v631 = vadd.f32 %v202, %v630
    %v632 = vpop.f32.mrb[0].mxu0
    %v633 = vpop.f32.mrb[0].mxu0
    %v634 = vadd.f32 %v202, %v633
    %v635 = vpop.f32.mrb[0].mxu0
    %636 = vmatprep.mubr.bf16.mxu0 0
    %637 = vmatmul.mubr.bf16.gmra.mrb[0].mxu0 %v352
    %v638 = vpop.f32.mrb[0].mxu0
    %v639 = vadd.f32 %v202, %v638
    %v640 = vpop.f32.mrb[0].mxu0
    %v641 = vpop.f32.mrb[0].mxu0
    %v642 = vadd.f32 %v202, %v641
    %v643 = vpop.f32.mrb[0].mxu0
    %644 = vmatprep.mubr.bf16.mxu0 0
    %645 = vmatmul.mubr.bf16.gmra.mrb[0].mxu0 %v353
    %v646 = vpop.f32.mrb[0].mxu0
    %v647 = vadd.f32 %v202, %v646
    %v648 = vpop.f32.mrb[0].mxu0
    %v649 = vpop.f32.mrb[0].mxu0
    %v650 = vadd.f32 %v202, %v649
    %v651 = vpop.f32.mrb[0].mxu0
    %652 = vmatprep.mubr.bf16.mxu0 0
    %653 = vmatmul.mubr.bf16.gmra.mrb[0].mxu0 %v354
    %v654 = vpop.f32.mrb[0].mxu0
    %v655 = vadd.f32 %v202, %v654
    %v656 = vpop.f32.mrb[0].mxu0
    %v657 = vpop.f32.mrb[0].mxu0
    %v658 = vadd.f32 %v202, %v657
    %v659 = vpop.f32.mrb[0].mxu0
    %660 = vmatprep.mubr.bf16.mxu0 0
    %661 = vmatmul.mubr.bf16.gmra.mrb[0].mxu0 %v355
    %v662 = vpop.f32.mrb[0].mxu0
    %v663 = vadd.f32 %v202, %v662
    %v664 = vpop.f32.mrb[0].mxu0
    %v665 = vpop.f32.mrb[0].mxu0
    %v666 = vadd.f32 %v202, %v665
    %v667 = vpop.f32.mrb[0].mxu0
    %668 = vmatprep.mubr.bf16.mxu0 0
    %669 = vmatmul.mubr.bf16.gmra.mrb[0].mxu0 %v356
    %v670 = vpop.f32.mrb[0].mxu0
    %v671 = vadd.f32 %v202, %v670
    %v672 = vpop.f32.mrb[0].mxu0
    %v673 = vpop.f32.mrb[0].mxu0
    %v674 = vadd.f32 %v202, %v673
    %v675 = vpop.f32.mrb[0].mxu0
    %676 = vmatprep.mubr.bf16.mxu0 0
    %677 = vmatmul.mubr.bf16.gmra.mrb[0].mxu0 %v357
    %v678 = vpop.f32.mrb[0].mxu0
    %v679 = vadd.f32 %v202, %v678
    %v680 = vpop.f32.mrb[0].mxu0
    %v681 = vpop.f32.mrb[0].mxu0
    %v682 = vadd.f32 %v202, %v681
    %v683 = vpop.f32.mrb[0].mxu0
    %684 = vmatprep.mubr.bf16.mxu0 0
    %685 = vmatmul.mubr.bf16.gmra.mrb[0].mxu0 %v358
    %v686 = vpop.f32.mrb[0].mxu0
    %v687 = vadd.f32 %v202, %v686
    %v688 = vpop.f32.mrb[0].mxu0
    %v689 = vpop.f32.mrb[0].mxu0
    %v690 = vadd.f32 %v202, %v689
    %v691 = vpop.f32.mrb[0].mxu0
    %692 = vmatprep.mubr.bf16.mxu0 0
    %693 = vmatmul.mubr.bf16.gmra.mrb[0].mxu0 %v359
    %v694 = vpop.f32.mrb[0].mxu0
    %v695 = vadd.f32 %v202, %v694
    %v696 = vpop.f32.mrb[0].mxu0
    %v697 = vpop.f32.mrb[0].mxu0
    %v698 = vadd.f32 %v202, %v697
    %v699 = vpop.f32.mrb[0].mxu0
    %700 = vmatprep.mubr.bf16.mxu0 0
    %701 = vmatmul.mubr.bf16.gmra.mrb[0].mxu0 %v360
    %v702 = vpop.f32.mrb[0].mxu0
    %v703 = vadd.f32 %v202, %v702
    %v704 = vpop.f32.mrb[0].mxu0
    %v705 = vpop.f32.mrb[0].mxu0
    %v706 = vadd.f32 %v202, %v705
    %v707 = vpop.f32.mrb[0].mxu0
    %708 = vmatprep.mubr.bf16.mxu0 0
    %709 = vmatmul.mubr.bf16.gmra.mrb[0].mxu0 %v361
    %v710 = vpop.f32.mrb[0].mxu0
    %v711 = vadd.f32 %v202, %v710
    %v712 = vpop.f32.mrb[0].mxu0
    %v713 = vpop.f32.mrb[0].mxu0
    %v714 = vadd.f32 %v202, %v713
    %v715 = vpop.f32.mrb[0].mxu0
    %716 = vmatprep.mubr.bf16.mxu0 0
    %717 = vmatmul.mubr.bf16.gmra.mrb[0].mxu0 %v362
    %v718 = vpop.f32.mrb[0].mxu0
    %v719 = vadd.f32 %v202, %v718
    %v720 = vpop.f32.mrb[0].mxu0
    %v721 = vpop.f32.mrb[0].mxu0
    %v722 = vadd.f32 %v202, %v721
    %v723 = vpop.f32.mrb[0].mxu0
    %724 = vmatprep.mubr.bf16.mxu0 0
    %725 = vmatmul.mubr.bf16.gmra.mrb[0].mxu0 %v363
    %v726 = vpop.f32.mrb[0].mxu0
    %v727 = vadd.f32 %v202, %v726
    %v728 = vpop.f32.mrb[0].mxu0
    %v729 = vpop.f32.mrb[0].mxu0
    %v730 = vadd.f32 %v202, %v729
    %v731 = vpop.f32.mrb[0].mxu0
    %732 = vdwg.mxu0
    %v733 = vld [vmem:[%s4] sm:$0x1]
    %v734 = vld [vmem:[%s5] sm:$0x1]
    %v735 = vadd.f32 %v479, %v482
    %v736 = vadd.f32 %v735, %v487
    %v737 = vadd.f32 %v736, %v490
    %v738 = vadd.f32 %v737, %v495
    %v739 = vadd.f32 %v738, %v498
    %v740 = vadd.f32 %v739, %v503
    %v741 = vadd.f32 %v740, %v506
    %v742 = vadd.f32 %v741, %v511
    %v743 = vadd.f32 %v742, %v514
    %v744 = vadd.f32 %v743, %v519
    %v745 = vadd.f32 %v744, %v522
    %v746 = vadd.f32 %v745, %v527
    %v747 = vadd.f32 %v746, %v530
    %v748 = vadd.f32 %v747, %v535
    %v749 = vadd.f32 %v748, %v538
    %v750 = vadd.f32 %v749, %v543
    %v751 = vadd.f32 %v750, %v546
    %v752 = vadd.f32 %v751, %v551
    %v753 = vadd.f32 %v752, %v554
    %v754 = vadd.f32 %v753, %v559
    %v755 = vadd.f32 %v754, %v562
    %v756 = vadd.f32 %v755, %v567
    %v757 = vadd.f32 %v756, %v570
    %v758 = vadd.f32 %v757, %v575
    %v759 = vadd.f32 %v758, %v578
    %v760 = vadd.f32 %v759, %v583
    %v761 = vadd.f32 %v760, %v586
    %v762 = vadd.f32 %v761, %v591
    %v763 = vadd.f32 %v762, %v594
    %v764 = vadd.f32 %v763, %v599
    %v765 = vadd.f32 %v764, %v602
    %v766 = vadd.f32 %v765, %v607
    %v767 = vadd.f32 %v766, %v610
    %v768 = vadd.f32 %v767, %v615
    %v769 = vadd.f32 %v768, %v618
    %v770 = vadd.f32 %v769, %v623
    %v771 = vadd.f32 %v770, %v626
    %v772 = vadd.f32 %v771, %v631
    %v773 = vadd.f32 %v772, %v634
    %v774 = vadd.f32 %v773, %v639
    %v775 = vadd.f32 %v774, %v642
    %v776 = vadd.f32 %v775, %v647
    %v777 = vadd.f32 %v776, %v650
    %v778 = vadd.f32 %v777, %v655
    %v779 = vadd.f32 %v778, %v658
    %v780 = vadd.f32 %v779, %v663
    %v781 = vadd.f32 %v780, %v666
    %v782 = vadd.f32 %v781, %v671
    %v783 = vadd.f32 %v782, %v674
    %v784 = vadd.f32 %v783, %v679
    %v785 = vadd.f32 %v784, %v682
    %v786 = vadd.f32 %v785, %v687
    %v787 = vadd.f32 %v786, %v690
    %v788 = vadd.f32 %v787, %v695
    %v789 = vadd.f32 %v788, %v698
    %v790 = vadd.f32 %v789, %v703
    %v791 = vadd.f32 %v790, %v706
    %v792 = vadd.f32 %v791, %v711
    %v793 = vadd.f32 %v792, %v714
    %v794 = vadd.f32 %v793, %v719
    %v795 = vadd.f32 %v794, %v722
    %v796 = vadd.f32 %v795, %v727
    %v797 = vadd.f32 %v796, %v730
    %v798 = vrot.slane %v797, 4
    %v799 = vadd.f32 %v797, %v798
    %v800 = vrot.slane %v799, 2
    %v801 = vadd.f32 %v799, %v800
    %v802 = vrot.slane %v801, 1
    %v803 = vadd.f32 %v801, %v802
    %v804 = vmul.f32 %v479, %v479
    %v805 = vmul.f32 %v482, %v482
    %v806 = vmul.f32 %v487, %v487
    %v807 = vmul.f32 %v490, %v490
    %v808 = vmul.f32 %v495, %v495
    %v809 = vmul.f32 %v498, %v498
    %v810 = vmul.f32 %v503, %v503
    %v811 = vmul.f32 %v506, %v506
    %v812 = vmul.f32 %v511, %v511
    %v813 = vmul.f32 %v514, %v514
    %v814 = vmul.f32 %v519, %v519
    %v815 = vmul.f32 %v522, %v522
    %v816 = vmul.f32 %v527, %v527
    %v817 = vmul.f32 %v530, %v530
    %v818 = vmul.f32 %v535, %v535
    %v819 = vmul.f32 %v538, %v538
    %v820 = vmul.f32 %v543, %v543
    %v821 = vmul.f32 %v546, %v546
    %v822 = vmul.f32 %v551, %v551
    %v823 = vmul.f32 %v554, %v554
    %v824 = vmul.f32 %v559, %v559
    %v825 = vmul.f32 %v562, %v562
    %v826 = vmul.f32 %v567, %v567
    %v827 = vmul.f32 %v570, %v570
    %v828 = vmul.f32 %v575, %v575
    %v829 = vmul.f32 %v578, %v578
    %v830 = vmul.f32 %v583, %v583
    %v831 = vmul.f32 %v586, %v586
    %v832 = vmul.f32 %v591, %v591
    %v833 = vmul.f32 %v594, %v594
    %v834 = vmul.f32 %v599, %v599
    %v835 = vmul.f32 %v602, %v602
    %v836 = vmul.f32 %v607, %v607
    %v837 = vmul.f32 %v610, %v610
    %v838 = vmul.f32 %v615, %v615
    %v839 = vmul.f32 %v618, %v618
    %v840 = vmul.f32 %v623, %v623
    %v841 = vmul.f32 %v626, %v626
    %v842 = vmul.f32 %v631, %v631
    %v843 = vmul.f32 %v634, %v634
    %v844 = vmul.f32 %v639, %v639
    %v845 = vmul.f32 %v642, %v642
    %v846 = vmul.f32 %v647, %v647
    %v847 = vmul.f32 %v650, %v650
    %v848 = vmul.f32 %v655, %v655
    %v849 = vmul.f32 %v658, %v658
    %v850 = vmul.f32 %v663, %v663
    %v851 = vmul.f32 %v666, %v666
    %v852 = vmul.f32 %v671, %v671
    %v853 = vmul.f32 %v674, %v674
    %v854 = vmul.f32 %v679, %v679
    %v855 = vmul.f32 %v682, %v682
    %v856 = vmul.f32 %v687, %v687
    %v857 = vmul.f32 %v690, %v690
    %v858 = vmul.f32 %v695, %v695
    %v859 = vmul.f32 %v698, %v698
    %v860 = vmul.f32 %v703, %v703
    %v861 = vmul.f32 %v706, %v706
    %v862 = vmul.f32 %v711, %v711
    %v863 = vmul.f32 %v714, %v714
    %v864 = vmul.f32 %v719, %v719
    %v865 = vmul.f32 %v722, %v722
    %v866 = vmul.f32 %v727, %v727
    %v867 = vmul.f32 %v730, %v730
    %v868 = vadd.f32 %v804, %v805
    %v869 = vadd.f32 %v868, %v806
    %v870 = vadd.f32 %v869, %v807
    %v871 = vadd.f32 %v870, %v808
    %v872 = vadd.f32 %v871, %v809
    %v873 = vadd.f32 %v872, %v810
    %v874 = vadd.f32 %v873, %v811
    %v875 = vadd.f32 %v874, %v812
    %v876 = vadd.f32 %v875, %v813
    %v877 = vadd.f32 %v876, %v814
    %v878 = vadd.f32 %v877, %v815
    %v879 = vadd.f32 %v878, %v816
    %v880 = vadd.f32 %v879, %v817
    %v881 = vadd.f32 %v880, %v818
    %v882 = vadd.f32 %v881, %v819
    %v883 = vadd.f32 %v882, %v820
    %v884 = vadd.f32 %v883, %v821
    %v885 = vadd.f32 %v884, %v822
    %v886 = vadd.f32 %v885, %v823
    %v887 = vadd.f32 %v886, %v824
    %v888 = vadd.f32 %v887, %v825
    %v889 = vadd.f32 %v888, %v826
    %v890 = vadd.f32 %v889, %v827
    %v891 = vadd.f32 %v890, %v828
    %v892 = vadd.f32 %v891, %v829
    %v893 = vadd.f32 %v892, %v830
    %v894 = vadd.f32 %v893, %v831
    %v895 = vadd.f32 %v894, %v832
    %v896 = vadd.f32 %v895, %v833
    %v897 = vadd.f32 %v896, %v834
    %v898 = vadd.f32 %v897, %v835
    %v899 = vadd.f32 %v898, %v836
    %v900 = vadd.f32 %v899, %v837
    %v901 = vadd.f32 %v900, %v838
    %v902 = vadd.f32 %v901, %v839
    %v903 = vadd.f32 %v902, %v840
    %v904 = vadd.f32 %v903, %v841
    %v905 = vadd.f32 %v904, %v842
    %v906 = vadd.f32 %v905, %v843
    %v907 = vadd.f32 %v906, %v844
    %v908 = vadd.f32 %v907, %v845
    %v909 = vadd.f32 %v908, %v846
    %v910 = vadd.f32 %v909, %v847
    %v911 = vadd.f32 %v910, %v848
    %v912 = vadd.f32 %v911, %v849
    %v913 = vadd.f32 %v912, %v850
    %v914 = vadd.f32 %v913, %v851
    %v915 = vadd.f32 %v914, %v852
    %v916 = vadd.f32 %v915, %v853
    %v917 = vadd.f32 %v916, %v854
    %v918 = vadd.f32 %v917, %v855
    %v919 = vadd.f32 %v918, %v856
    %v920 = vadd.f32 %v919, %v857
    %v921 = vadd.f32 %v920, %v858
    %v922 = vadd.f32 %v921, %v859
    %v923 = vadd.f32 %v922, %v860
    %v924 = vadd.f32 %v923, %v861
    %v925 = vadd.f32 %v924, %v862
    %v926 = vadd.f32 %v925, %v863
    %v927 = vadd.f32 %v926, %v864
    %v928 = vadd.f32 %v927, %v865
    %v929 = vadd.f32 %v928, %v866
    %v930 = vadd.f32 %v929, %v867
    %v931 = vrot.slane %v930, 4
    %v932 = vadd.f32 %v930, %v931
    %v933 = vrot.slane %v932, 2
    %v934 = vadd.f32 %v932, %v933
    %v935 = vrot.slane %v934, 1
    %v936 = vadd.f32 %v934, %v935
    %v937 = vmul.f32 %v803, 0.001953125
    %v938 = vmul.f32 %v936, 0.001953125
    %v939 = vmul.f32 %v937, %v937
    %v940 = vsub.f32 %v938, %v939
    %v941 = vsub.f32 %v479, %v937
    %v942 = vsub.f32 %v482, %v937
    %v943 = vsub.f32 %v487, %v937
    %v944 = vsub.f32 %v490, %v937
    %v945 = vsub.f32 %v495, %v937
    %v946 = vsub.f32 %v498, %v937
    %v947 = vsub.f32 %v503, %v937
    %v948 = vsub.f32 %v506, %v937
    %v949 = vsub.f32 %v511, %v937
    %v950 = vsub.f32 %v514, %v937
    %v951 = vsub.f32 %v519, %v937
    %v952 = vsub.f32 %v522, %v937
    %v953 = vsub.f32 %v527, %v937
    %v954 = vsub.f32 %v530, %v937
    %v955 = vsub.f32 %v535, %v937
    %v956 = vsub.f32 %v538, %v937
    %v957 = vsub.f32 %v543, %v937
    %v958 = vsub.f32 %v546, %v937
    %v959 = vsub.f32 %v551, %v937
    %v960 = vsub.f32 %v554, %v937
    %v961 = vsub.f32 %v559, %v937
    %v962 = vsub.f32 %v562, %v937
    %v963 = vsub.f32 %v567, %v937
    %v964 = vsub.f32 %v570, %v937
    %v965 = vsub.f32 %v575, %v937
    %v966 = vsub.f32 %v578, %v937
    %v967 = vsub.f32 %v583, %v937
    %v968 = vsub.f32 %v586, %v937
    %v969 = vsub.f32 %v591, %v937
    %v970 = vsub.f32 %v594, %v937
    %v971 = vsub.f32 %v599, %v937
    %v972 = vsub.f32 %v602, %v937
    %v973 = vsub.f32 %v607, %v937
    %v974 = vsub.f32 %v610, %v937
    %v975 = vsub.f32 %v615, %v937
    %v976 = vsub.f32 %v618, %v937
    %v977 = vsub.f32 %v623, %v937
    %v978 = vsub.f32 %v626, %v937
    %v979 = vsub.f32 %v631, %v937
    %v980 = vsub.f32 %v634, %v937
    %v981 = vsub.f32 %v639, %v937
    %v982 = vsub.f32 %v642, %v937
    %v983 = vsub.f32 %v647, %v937
    %v984 = vsub.f32 %v650, %v937
    %v985 = vsub.f32 %v655, %v937
    %v986 = vsub.f32 %v658, %v937
    %v987 = vsub.f32 %v663, %v937
    %v988 = vsub.f32 %v666, %v937
    %v989 = vsub.f32 %v671, %v937
    %v990 = vsub.f32 %v674, %v937
    %v991 = vsub.f32 %v679, %v937
    %v992 = vsub.f32 %v682, %v937
    %v993 = vsub.f32 %v687, %v937
    %v994 = vsub.f32 %v690, %v937
    %v995 = vsub.f32 %v695, %v937
    %v996 = vsub.f32 %v698, %v937
    %v997 = vsub.f32 %v703, %v937
    %v998 = vsub.f32 %v706, %v937
    %v999 = vsub.f32 %v711, %v937
    %v1000 = vsub.f32 %v714, %v937
    %v1001 = vsub.f32 %v719, %v937
    %v1002 = vsub.f32 %v722, %v937
    %v1003 = vsub.f32 %v727, %v937
    %v1004 = vsub.f32 %v730, %v937
    %v1005 = vadd.f32 %v940, 1e-05
    %v1006 = vrsqrt.pop %v1005
    %v1007 = vmul.f32 %v1006, %v733
    %v1008 = vlaneseq
    %v1009 = vshrl.u32 %v1008, 7
    %v1010 = vsub.s32 0, %v1009
    %v1011 = vrot.slane %v1007, %v1010
    %v1012 = vmul.f32 %v941, %v1011
    %v1013 = vmul.f32 %v942, %v1011
    %v1014 = vmul.f32 %v943, %v1011
    %v1015 = vmul.f32 %v944, %v1011
    %v1016 = vmul.f32 %v945, %v1011
    %v1017 = vmul.f32 %v946, %v1011
    %v1018 = vmul.f32 %v947, %v1011
    %v1019 = vmul.f32 %v948, %v1011
    %v1020 = vmul.f32 %v949, %v1011
    %v1021 = vmul.f32 %v950, %v1011
    %v1022 = vmul.f32 %v951, %v1011
    %v1023 = vmul.f32 %v952, %v1011
    %v1024 = vmul.f32 %v953, %v1011
    %v1025 = vmul.f32 %v954, %v1011
    %v1026 = vmul.f32 %v955, %v1011
    %v1027 = vmul.f32 %v956, %v1011
    %v1028 = vmul.f32 %v957, %v1011
    %v1029 = vmul.f32 %v958, %v1011
    %v1030 = vmul.f32 %v959, %v1011
    %v1031 = vmul.f32 %v960, %v1011
    %v1032 = vmul.f32 %v961, %v1011
    %v1033 = vmul.f32 %v962, %v1011
    %v1034 = vmul.f32 %v963, %v1011
    %v1035 = vmul.f32 %v964, %v1011
    %v1036 = vmul.f32 %v965, %v1011
    %v1037 = vmul.f32 %v966, %v1011
    %v1038 = vmul.f32 %v967, %v1011
    %v1039 = vmul.f32 %v968, %v1011
    %v1040 = vmul.f32 %v969, %v1011
    %v1041 = vmul.f32 %v970, %v1011
    %v1042 = vmul.f32 %v971, %v1011
    %v1043 = vmul.f32 %v972, %v1011
    %v1044 = vmul.f32 %v973, %v1011
    %v1045 = vmul.f32 %v974, %v1011
    %v1046 = vmul.f32 %v975, %v1011
    %v1047 = vmul.f32 %v976, %v1011
    %v1048 = vmul.f32 %v977, %v1011
    %v1049 = vmul.f32 %v978, %v1011
    %v1050 = vmul.f32 %v979, %v1011
    %v1051 = vmul.f32 %v980, %v1011
    %v1052 = vmul.f32 %v981, %v1011
    %v1053 = vmul.f32 %v982, %v1011
    %v1054 = vmul.f32 %v983, %v1011
    %v1055 = vmul.f32 %v984, %v1011
    %v1056 = vmul.f32 %v985, %v1011
    %v1057 = vmul.f32 %v986, %v1011
    %v1058 = vmul.f32 %v987, %v1011
    %v1059 = vmul.f32 %v988, %v1011
    %v1060 = vmul.f32 %v989, %v1011
    %v1061 = vmul.f32 %v990, %v1011
    %v1062 = vmul.f32 %v991, %v1011
    %v1063 = vmul.f32 %v992, %v1011
    %v1064 = vmul.f32 %v993, %v1011
    %v1065 = vmul.f32 %v994, %v1011
    %v1066 = vmul.f32 %v995, %v1011
    %v1067 = vmul.f32 %v996, %v1011
    %v1068 = vmul.f32 %v997, %v1011
    %v1069 = vmul.f32 %v998, %v1011
    %v1070 = vmul.f32 %v999, %v1011
    %v1071 = vmul.f32 %v1000, %v1011
    %v1072 = vmul.f32 %v1001, %v1011
    %v1073 = vmul.f32 %v1002, %v1011
    %v1074 = vmul.f32 %v1003, %v1011
    %v1075 = vmul.f32 %v1004, %v1011
    %v1077 = vlaneseq
    %v1078 = vshrl.u32 %v1077, 7
    %v1079 = vsub.s32 0, %v1078
    %v1080 = vrot.slane %v734, %v1079
    %v1082 = vadd.f32 %v1012, %v1080
    %v1083 = vadd.f32 %v1013, %v1080
    %v1084 = vadd.f32 %v1014, %v1080
    %v1085 = vadd.f32 %v1015, %v1080
    %v1086 = vadd.f32 %v1016, %v1080
    %v1087 = vadd.f32 %v1017, %v1080
    %v1088 = vadd.f32 %v1018, %v1080
    %v1089 = vadd.f32 %v1019, %v1080
    %v1090 = vadd.f32 %v1020, %v1080
    %v1091 = vadd.f32 %v1021, %v1080
    %v1092 = vadd.f32 %v1022, %v1080
    %v1093 = vadd.f32 %v1023, %v1080
    %v1094 = vadd.f32 %v1024, %v1080
    %v1095 = vadd.f32 %v1025, %v1080
    %v1096 = vadd.f32 %v1026, %v1080
    %v1097 = vadd.f32 %v1027, %v1080
    %v1098 = vadd.f32 %v1028, %v1080
    %v1099 = vadd.f32 %v1029, %v1080
    %v1100 = vadd.f32 %v1030, %v1080
    %v1101 = vadd.f32 %v1031, %v1080
    %v1102 = vadd.f32 %v1032, %v1080
    %v1103 = vadd.f32 %v1033, %v1080
    %v1104 = vadd.f32 %v1034, %v1080
    %v1105 = vadd.f32 %v1035, %v1080
    %v1106 = vadd.f32 %v1036, %v1080
    %v1107 = vadd.f32 %v1037, %v1080
    %v1108 = vadd.f32 %v1038, %v1080
    %v1109 = vadd.f32 %v1039, %v1080
    %v1110 = vadd.f32 %v1040, %v1080
    %v1111 = vadd.f32 %v1041, %v1080
    %v1112 = vadd.f32 %v1042, %v1080
    %v1113 = vadd.f32 %v1043, %v1080
    %v1114 = vadd.f32 %v1044, %v1080
    %v1115 = vadd.f32 %v1045, %v1080
    %v1116 = vadd.f32 %v1046, %v1080
    %v1117 = vadd.f32 %v1047, %v1080
    %v1118 = vadd.f32 %v1048, %v1080
    %v1119 = vadd.f32 %v1049, %v1080
    %v1120 = vadd.f32 %v1050, %v1080
    %v1121 = vadd.f32 %v1051, %v1080
    %v1122 = vadd.f32 %v1052, %v1080
    %v1123 = vadd.f32 %v1053, %v1080
    %v1124 = vadd.f32 %v1054, %v1080
    %v1125 = vadd.f32 %v1055, %v1080
    %v1126 = vadd.f32 %v1056, %v1080
    %v1127 = vadd.f32 %v1057, %v1080
    %v1128 = vadd.f32 %v1058, %v1080
    %v1129 = vadd.f32 %v1059, %v1080
    %v1130 = vadd.f32 %v1060, %v1080
    %v1131 = vadd.f32 %v1061, %v1080
    %v1132 = vadd.f32 %v1062, %v1080
    %v1133 = vadd.f32 %v1063, %v1080
    %v1134 = vadd.f32 %v1064, %v1080
    %v1135 = vadd.f32 %v1065, %v1080
    %v1136 = vadd.f32 %v1066, %v1080
    %v1137 = vadd.f32 %v1067, %v1080
    %v1138 = vadd.f32 %v1068, %v1080
    %v1139 = vadd.f32 %v1069, %v1080
    %v1140 = vadd.f32 %v1070, %v1080
    %v1141 = vadd.f32 %v1071, %v1080
    %v1142 = vadd.f32 %v1072, %v1080
    %v1143 = vadd.f32 %v1073, %v1080
    %v1144 = vadd.f32 %v1074, %v1080
    %v1145 = vadd.f32 %v1075, %v1080
    %v1146 = vmax.f32 %v1082, 0.0
    %v1147 = vmax.f32 %v1083, 0.0
    %v1148 = vmax.f32 %v1084, 0.0
    %v1149 = vmax.f32 %v1085, 0.0
    %v1150 = vmax.f32 %v1086, 0.0
    %v1151 = vmax.f32 %v1087, 0.0
    %v1152 = vmax.f32 %v1088, 0.0
    %v1153 = vmax.f32 %v1089, 0.0
    %v1154 = vmax.f32 %v1090, 0.0
    %v1155 = vmax.f32 %v1091, 0.0
    %v1156 = vmax.f32 %v1092, 0.0
    %v1157 = vmax.f32 %v1093, 0.0
    %v1158 = vmax.f32 %v1094, 0.0
    %v1159 = vmax.f32 %v1095, 0.0
    %v1160 = vmax.f32 %v1096, 0.0
    %v1161 = vmax.f32 %v1097, 0.0
    %v1162 = vmax.f32 %v1098, 0.0
    %v1163 = vmax.f32 %v1099, 0.0
    %v1164 = vmax.f32 %v1100, 0.0
    %v1165 = vmax.f32 %v1101, 0.0
    %v1166 = vmax.f32 %v1102, 0.0
    %v1167 = vmax.f32 %v1103, 0.0
    %v1168 = vmax.f32 %v1104, 0.0
    %v1169 = vmax.f32 %v1105, 0.0
    %v1170 = vmax.f32 %v1106, 0.0
    %v1171 = vmax.f32 %v1107, 0.0
    %v1172 = vmax.f32 %v1108, 0.0
    %v1173 = vmax.f32 %v1109, 0.0
    %v1174 = vmax.f32 %v1110, 0.0
    %v1175 = vmax.f32 %v1111, 0.0
    %v1176 = vmax.f32 %v1112, 0.0
    %v1177 = vmax.f32 %v1113, 0.0
    %v1178 = vmax.f32 %v1114, 0.0
    %v1179 = vmax.f32 %v1115, 0.0
    %v1180 = vmax.f32 %v1116, 0.0
    %v1181 = vmax.f32 %v1117, 0.0
    %v1182 = vmax.f32 %v1118, 0.0
    %v1183 = vmax.f32 %v1119, 0.0
    %v1184 = vmax.f32 %v1120, 0.0
    %v1185 = vmax.f32 %v1121, 0.0
    %v1186 = vmax.f32 %v1122, 0.0
    %v1187 = vmax.f32 %v1123, 0.0
    %v1188 = vmax.f32 %v1124, 0.0
    %v1189 = vmax.f32 %v1125, 0.0
    %v1190 = vmax.f32 %v1126, 0.0
    %v1191 = vmax.f32 %v1127, 0.0
    %v1192 = vmax.f32 %v1128, 0.0
    %v1193 = vmax.f32 %v1129, 0.0
    %v1194 = vmax.f32 %v1130, 0.0
    %v1195 = vmax.f32 %v1131, 0.0
    %v1196 = vmax.f32 %v1132, 0.0
    %v1197 = vmax.f32 %v1133, 0.0
    %v1198 = vmax.f32 %v1134, 0.0
    %v1199 = vmax.f32 %v1135, 0.0
    %v1200 = vmax.f32 %v1136, 0.0
    %v1201 = vmax.f32 %v1137, 0.0
    %v1202 = vmax.f32 %v1138, 0.0
    %v1203 = vmax.f32 %v1139, 0.0
    %v1204 = vmax.f32 %v1140, 0.0
    %v1205 = vmax.f32 %v1141, 0.0
    %v1206 = vmax.f32 %v1142, 0.0
    %v1207 = vmax.f32 %v1143, 0.0
    %v1208 = vmax.f32 %v1144, 0.0
    %v1209 = vmax.f32 %v1145, 0.0
    %1210 = vst [vmem:[#allocation2] sm:$0xff] 0.0
    %1211 = vst [vmem:[#allocation2 + $0x8] sm:$0xff] 0.0
    %1212 = vst [vmem:[#allocation2 + $0x10] sm:$0xff] 0.0
    %1213 = vst [vmem:[#allocation2 + $0x18] sm:$0xff] 0.0
    %1214 = vst [vmem:[#allocation2 + $0x120] sm:$0xff] 0.0
    %1215 = vst [vmem:[#allocation2 + $0x128] sm:$0xff] 0.0
    %1216 = vst [vmem:[#allocation2 + $0x130] sm:$0xff] 0.0
    %1217 = vst [vmem:[#allocation2 + $0x138] sm:$0xff] 0.0
    %1218 = vst [vmem:[#allocation2 + $0x20] sm:$0xff] %v1146
    %1219 = vst [vmem:[#allocation2 + $0x28] sm:$0xff] %v1147
    %1220 = vst [vmem:[#allocation2 + $0x30] sm:$0xff] %v1148
    %1221 = vst [vmem:[#allocation2 + $0x38] sm:$0xff] %v1149
    %1222 = vst [vmem:[#allocation2 + $0x40] sm:$0xff] %v1150
    %1223 = vst [vmem:[#allocation2 + $0x48] sm:$0xff] %v1151
    %1224 = vst [vmem:[#allocation2 + $0x50] sm:$0xff] %v1152
    %1225 = vst [vmem:[#allocation2 + $0x58] sm:$0xff] %v1153
    %1226 = vst [vmem:[#allocation2 + $0x60] sm:$0xff] %v1154
    %1227 = vst [vmem:[#allocation2 + $0x68] sm:$0xff] %v1155
    %1228 = vst [vmem:[#allocation2 + $0x70] sm:$0xff] %v1156
    %1229 = vst [vmem:[#allocation2 + $0x78] sm:$0xff] %v1157
    %1230 = vst [vmem:[#allocation2 + $0x80] sm:$0xff] %v1158
    %1231 = vst [vmem:[#allocation2 + $0x88] sm:$0xff] %v1159
    %1232 = vst [vmem:[#allocation2 + $0x90] sm:$0xff] %v1160
    %1233 = vst [vmem:[#allocation2 + $0x98] sm:$0xff] %v1161
    %1234 = vst [vmem:[#allocation2 + $0xa0] sm:$0xff] %v1162
    %1235 = vst [vmem:[#allocation2 + $0xa8] sm:$0xff] %v1163
    %1236 = vst [vmem:[#allocation2 + $0xb0] sm:$0xff] %v1164
    %1237 = vst [vmem:[#allocation2 + $0xb8] sm:$0xff] %v1165
    %1238 = vst [vmem:[#allocation2 + $0xc0] sm:$0xff] %v1166
    %1239 = vst [vmem:[#allocation2 + $0xc8] sm:$0xff] %v1167
    %1240 = vst [vmem:[#allocation2 + $0xd0] sm:$0xff] %v1168
    %1241 = vst [vmem:[#allocation2 + $0xd8] sm:$0xff] %v1169
    %1242 = vst [vmem:[#allocation2 + $0xe0] sm:$0xff] %v1170
    %1243 = vst [vmem:[#allocation2 + $0xe8] sm:$0xff] %v1171
    %1244 = vst [vmem:[#allocation2 + $0xf0] sm:$0xff] %v1172
    %1245 = vst [vmem:[#allocation2 + $0xf8] sm:$0xff] %v1173
    %1246 = vst [vmem:[#allocation2 + $0x100] sm:$0xff] %v1174
    %1247 = vst [vmem:[#allocation2 + $0x108] sm:$0xff] %v1175
    %1248 = vst [vmem:[#allocation2 + $0x110] sm:$0xff] %v1176
    %1249 = vst [vmem:[#allocation2 + $0x118] sm:$0xff] %v1177
    %1250 = vst [vmem:[#allocation2 + $0x240] sm:$0xff] 0.0
    %1251 = vst [vmem:[#allocation2 + $0x248] sm:$0xff] 0.0
    %1252 = vst [vmem:[#allocation2 + $0x250] sm:$0xff] 0.0
    %1253 = vst [vmem:[#allocation2 + $0x258] sm:$0xff] 0.0
    %1254 = vst [vmem:[#allocation2 + $0x140] sm:$0xff] %v1178
    %1255 = vst [vmem:[#allocation2 + $0x148] sm:$0xff] %v1179
    %1256 = vst [vmem:[#allocation2 + $0x150] sm:$0xff] %v1180
    %1257 = vst [vmem:[#allocation2 + $0x158] sm:$0xff] %v1181
    %1258 = vst [vmem:[#allocation2 + $0x160] sm:$0xff] %v1182
    %1259 = vst [vmem:[#allocation2 + $0x168] sm:$0xff] %v1183
    %1260 = vst [vmem:[#allocation2 + $0x170] sm:$0xff] %v1184
    %1261 = vst [vmem:[#allocation2 + $0x178] sm:$0xff] %v1185
    %1262 = vst [vmem:[#allocation2 + $0x180] sm:$0xff] %v1186
    %1263 = vst [vmem:[#allocation2 + $0x188] sm:$0xff] %v1187
    %1264 = vst [vmem:[#allocation2 + $0x190] sm:$0xff] %v1188
    %1265 = vst [vmem:[#allocation2 + $0x198] sm:$0xff] %v1189
    %1266 = vst [vmem:[#allocation2 + $0x1a0] sm:$0xff] %v1190
    %1267 = vst [vmem:[#allocation2 + $0x1a8] sm:$0xff] %v1191
    %1268 = vst [vmem:[#allocation2 + $0x1b0] sm:$0xff] %v1192
    %1269 = vst [vmem:[#allocation2 + $0x1b8] sm:$0xff] %v1193
    %1270 = vst [vmem:[#allocation2 + $0x1c0] sm:$0xff] %v1194
    %1271 = vst [vmem:[#allocation2 + $0x1c8] sm:$0xff] %v1195
    %1272 = vst [vmem:[#allocation2 + $0x1d0] sm:$0xff] %v1196
    %1273 = vst [vmem:[#allocation2 + $0x1d8] sm:$0xff] %v1197
    %1274 = vst [vmem:[#allocation2 + $0x1e0] sm:$0xff] %v1198
    %1275 = vst [vmem:[#allocation2 + $0x1e8] sm:$0xff] %v1199
    %1276 = vst [vmem:[#allocation2 + $0x1f0] sm:$0xff] %v1200
    %1277 = vst [vmem:[#allocation2 + $0x1f8] sm:$0xff] %v1201
    %1278 = vst [vmem:[#allocation2 + $0x200] sm:$0xff] %v1202
    %1279 = vst [vmem:[#allocation2 + $0x208] sm:$0xff] %v1203
    %1280 = vst [vmem:[#allocation2 + $0x210] sm:$0xff] %v1204
    %1281 = vst [vmem:[#allocation2 + $0x218] sm:$0xff] %v1205
    %1282 = vst [vmem:[#allocation2 + $0x220] sm:$0xff] %v1206
    %1283 = vst [vmem:[#allocation2 + $0x228] sm:$0xff] %v1207
    %1284 = vst [vmem:[#allocation2 + $0x230] sm:$0xff] %v1208
    %1285 = vst [vmem:[#allocation2 + $0x238] sm:$0xff] %v1209
    %v1286 = vlaneseq
    %v1287 = vshrl.u32 %v1286, 7
    %v1288 = vadd.s32 %v1287, 8
    %v1289 = vadd.s32 %v1287, 16
    %v1290 = vadd.s32 %v1287, 24
    %v1291 = vadd.s32 %v1287, 32
    %v1292 = vadd.s32 %v1287, 40
    %v1293 = vadd.s32 %v1287, 48
    %v1294 = vadd.s32 %v1287, 56
    %v1295 = vadd.s32 %v1287, 64
    %v1296 = vadd.s32 %v1287, 72
    %v1297 = vadd.s32 %v1287, 80
    %v1298 = vadd.s32 %v1287, 88
    %v1299 = vadd.s32 %v1287, 96
    %v1300 = vadd.s32 %v1287, 104
    %v1301 = vadd.s32 %v1287, 112
    %v1302 = vadd.s32 %v1287, 120
    %v1303 = vadd.s32 %v1287, 128
    %v1304 = vadd.s32 %v1287, 136
    %v1305 = vadd.s32 %v1287, 144
    %v1306 = vadd.s32 %v1287, 152
    %v1307 = vadd.s32 %v1287, 160
    %v1308 = vadd.s32 %v1287, 168
    %v1309 = vadd.s32 %v1287, 176
    %v1310 = vadd.s32 %v1287, 184
    %v1311 = vadd.s32 %v1287, 192
    %v1312 = vadd.s32 %v1287, 200
    %v1313 = vadd.s32 %v1287, 208
    %v1314 = vadd.s32 %v1287, 216
    %v1315 = vadd.s32 %v1287, 224
    %v1316 = vadd.s32 %v1287, 232
    %v1317 = vadd.s32 %v1287, 240
    %v1318 = vadd.s32 %v1287, 248
    %vm1319 = vcmp.lt.s32.totalorder %v1287, 0
    %v1320 = vsub.s32 0, %v1287
    %v1321 = vsel %vm1319, %v1320, %v1287
    %v1322 = vshrl.u32 %v1321, 4
    %v1323 = vand.u32 %v1321, 15
    %v1324 = vsub.s32 0, %v1323
    %v1325 = vsel %vm1319, %v1324, %v1323
    %vm1326 = vcmp.lt.s32.totalorder %v1288, 0
    %v1327 = vsub.s32 0, %v1288
    %v1328 = vsel %vm1326, %v1327, %v1288
    %v1329 = vshrl.u32 %v1328, 4
    %v1330 = vand.u32 %v1328, 15
    %v1331 = vsub.s32 0, %v1330
    %v1332 = vsel %vm1326, %v1331, %v1330
    %vm1333 = vcmp.lt.s32.totalorder %v1289, 0
    %v1334 = vsub.s32 0, %v1289
    %v1335 = vsel %vm1333, %v1334, %v1289
    %v1336 = vshrl.u32 %v1335, 4
    %v1337 = vand.u32 %v1335, 15
    %v1338 = vsub.s32 0, %v1337
    %v1339 = vsel %vm1333, %v1338, %v1337
    %vm1340 = vcmp.lt.s32.totalorder %v1290, 0
    %v1341 = vsub.s32 0, %v1290
    %v1342 = vsel %vm1340, %v1341, %v1290
    %v1343 = vshrl.u32 %v1342, 4
    %v1344 = vand.u32 %v1342, 15
    %v1345 = vsub.s32 0, %v1344
    %v1346 = vsel %vm1340, %v1345, %v1344
    %vm1347 = vcmp.lt.s32.totalorder %v1291, 0
    %v1348 = vsub.s32 0, %v1291
    %v1349 = vsel %vm1347, %v1348, %v1291
    %v1350 = vshrl.u32 %v1349, 4
    %v1351 = vand.u32 %v1349, 15
    %v1352 = vsub.s32 0, %v1351
    %v1353 = vsel %vm1347, %v1352, %v1351
    %vm1354 = vcmp.lt.s32.totalorder %v1292, 0
    %v1355 = vsub.s32 0, %v1292
    %v1356 = vsel %vm1354, %v1355, %v1292
    %v1357 = vshrl.u32 %v1356, 4
    %v1358 = vand.u32 %v1356, 15
    %v1359 = vsub.s32 0, %v1358
    %v1360 = vsel %vm1354, %v1359, %v1358
    %vm1361 = vcmp.lt.s32.totalorder %v1293, 0
    %v1362 = vsub.s32 0, %v1293
    %v1363 = vsel %vm1361, %v1362, %v1293
    %v1364 = vshrl.u32 %v1363, 4
    %v1365 = vand.u32 %v1363, 15
    %v1366 = vsub.s32 0, %v1365
    %v1367 = vsel %vm1361, %v1366, %v1365
    %vm1368 = vcmp.lt.s32.totalorder %v1294, 0
    %v1369 = vsub.s32 0, %v1294
    %v1370 = vsel %vm1368, %v1369, %v1294
    %v1371 = vshrl.u32 %v1370, 4
    %v1372 = vand.u32 %v1370, 15
    %v1373 = vsub.s32 0, %v1372
    %v1374 = vsel %vm1368, %v1373, %v1372
    %vm1375 = vcmp.lt.s32.totalorder %v1295, 0
    %v1376 = vsub.s32 0, %v1295
    %v1377 = vsel %vm1375, %v1376, %v1295
    %v1378 = vshrl.u32 %v1377, 4
    %v1379 = vand.u32 %v1377, 15
    %v1380 = vsub.s32 0, %v1379
    %v1381 = vsel %vm1375, %v1380, %v1379
    %vm1382 = vcmp.lt.s32.totalorder %v1296, 0
    %v1383 = vsub.s32 0, %v1296
    %v1384 = vsel %vm1382, %v1383, %v1296
    %v1385 = vshrl.u32 %v1384, 4
    %v1386 = vand.u32 %v1384, 15
    %v1387 = vsub.s32 0, %v1386
    %v1388 = vsel %vm1382, %v1387, %v1386
    %vm1389 = vcmp.lt.s32.totalorder %v1297, 0
    %v1390 = vsub.s32 0, %v1297
    %v1391 = vsel %vm1389, %v1390, %v1297
    %v1392 = vshrl.u32 %v1391, 4
    %v1393 = vand.u32 %v1391, 15
    %v1394 = vsub.s32 0, %v1393
    %v1395 = vsel %vm1389, %v1394, %v1393
    %vm1396 = vcmp.lt.s32.totalorder %v1298, 0
    %v1397 = vsub.s32 0, %v1298
    %v1398 = vsel %vm1396, %v1397, %v1298
    %v1399 = vshrl.u32 %v1398, 4
    %v1400 = vand.u32 %v1398, 15
    %v1401 = vsub.s32 0, %v1400
    %v1402 = vsel %vm1396, %v1401, %v1400
    %vm1403 = vcmp.lt.s32.totalorder %v1299, 0
    %v1404 = vsub.s32 0, %v1299
    %v1405 = vsel %vm1403, %v1404, %v1299
    %v1406 = vshrl.u32 %v1405, 4
    %v1407 = vand.u32 %v1405, 15
    %v1408 = vsub.s32 0, %v1407
    %v1409 = vsel %vm1403, %v1408, %v1407
    %vm1410 = vcmp.lt.s32.totalorder %v1300, 0
    %v1411 = vsub.s32 0, %v1300
    %v1412 = vsel %vm1410, %v1411, %v1300
    %v1413 = vshrl.u32 %v1412, 4
    %v1414 = vand.u32 %v1412, 15
    %v1415 = vsub.s32 0, %v1414
    %v1416 = vsel %vm1410, %v1415, %v1414
    %vm1417 = vcmp.lt.s32.totalorder %v1301, 0
    %v1418 = vsub.s32 0, %v1301
    %v1419 = vsel %vm1417, %v1418, %v1301
    %v1420 = vshrl.u32 %v1419, 4
    %v1421 = vand.u32 %v1419, 15
    %v1422 = vsub.s32 0, %v1421
    %v1423 = vsel %vm1417, %v1422, %v1421
    %vm1424 = vcmp.lt.s32.totalorder %v1302, 0
    %v1425 = vsub.s32 0, %v1302
    %v1426 = vsel %vm1424, %v1425, %v1302
    %v1427 = vshrl.u32 %v1426, 4
    %v1428 = vand.u32 %v1426, 15
    %v1429 = vsub.s32 0, %v1428
    %v1430 = vsel %vm1424, %v1429, %v1428
    %vm1431 = vcmp.lt.s32.totalorder %v1303, 0
    %v1432 = vsub.s32 0, %v1303
    %v1433 = vsel %vm1431, %v1432, %v1303
    %v1434 = vshrl.u32 %v1433, 4
    %v1435 = vand.u32 %v1433, 15
    %v1436 = vsub.s32 0, %v1435
    %v1437 = vsel %vm1431, %v1436, %v1435
    %vm1438 = vcmp.lt.s32.totalorder %v1304, 0
    %v1439 = vsub.s32 0, %v1304
    %v1440 = vsel %vm1438, %v1439, %v1304
    %v1441 = vshrl.u32 %v1440, 4
    %v1442 = vand.u32 %v1440, 15
    %v1443 = vsub.s32 0, %v1442
    %v1444 = vsel %vm1438, %v1443, %v1442
    %vm1445 = vcmp.lt.s32.totalorder %v1305, 0
    %v1446 = vsub.s32 0, %v1305
    %v1447 = vsel %vm1445, %v1446, %v1305
    %v1448 = vshrl.u32 %v1447, 4
    %v1449 = vand.u32 %v1447, 15
    %v1450 = vsub.s32 0, %v1449
    %v1451 = vsel %vm1445, %v1450, %v1449
    %vm1452 = vcmp.lt.s32.totalorder %v1306, 0
    %v1453 = vsub.s32 0, %v1306
    %v1454 = vsel %vm1452, %v1453, %v1306
    %v1455 = vshrl.u32 %v1454, 4
    %v1456 = vand.u32 %v1454, 15
    %v1457 = vsub.s32 0, %v1456
    %v1458 = vsel %vm1452, %v1457, %v1456
    %vm1459 = vcmp.lt.s32.totalorder %v1307, 0
    %v1460 = vsub.s32 0, %v1307
    %v1461 = vsel %vm1459, %v1460, %v1307
    %v1462 = vshrl.u32 %v1461, 4
    %v1463 = vand.u32 %v1461, 15
    %v1464 = vsub.s32 0, %v1463
    %v1465 = vsel %vm1459, %v1464, %v1463
    %vm1466 = vcmp.lt.s32.totalorder %v1308, 0
    %v1467 = vsub.s32 0, %v1308
    %v1468 = vsel %vm1466, %v1467, %v1308
    %v1469 = vshrl.u32 %v1468, 4
    %v1470 = vand.u32 %v1468, 15
    %v1471 = vsub.s32 0, %v1470
    %v1472 = vsel %vm1466, %v1471, %v1470
    %vm1473 = vcmp.lt.s32.totalorder %v1309, 0
    %v1474 = vsub.s32 0, %v1309
    %v1475 = vsel %vm1473, %v1474, %v1309
    %v1476 = vshrl.u32 %v1475, 4
    %v1477 = vand.u32 %v1475, 15
    %v1478 = vsub.s32 0, %v1477
    %v1479 = vsel %vm1473, %v1478, %v1477
    %vm1480 = vcmp.lt.s32.totalorder %v1310, 0
    %v1481 = vsub.s32 0, %v1310
    %v1482 = vsel %vm1480, %v1481, %v1310
    %v1483 = vshrl.u32 %v1482, 4
    %v1484 = vand.u32 %v1482, 15
    %v1485 = vsub.s32 0, %v1484
    %v1486 = vsel %vm1480, %v1485, %v1484
    %vm1487 = vcmp.lt.s32.totalorder %v1311, 0
    %v1488 = vsub.s32 0, %v1311
    %v1489 = vsel %vm1487, %v1488, %v1311
    %v1490 = vshrl.u32 %v1489, 4
    %v1491 = vand.u32 %v1489, 15
    %v1492 = vsub.s32 0, %v1491
    %v1493 = vsel %vm1487, %v1492, %v1491
    %vm1494 = vcmp.lt.s32.totalorder %v1312, 0
    %v1495 = vsub.s32 0, %v1312
    %v1496 = vsel %vm1494, %v1495, %v1312
    %v1497 = vshrl.u32 %v1496, 4
    %v1498 = vand.u32 %v1496, 15
    %v1499 = vsub.s32 0, %v1498
    %v1500 = vsel %vm1494, %v1499, %v1498
    %vm1501 = vcmp.lt.s32.totalorder %v1313, 0
    %v1502 = vsub.s32 0, %v1313
    %v1503 = vsel %vm1501, %v1502, %v1313
    %v1504 = vshrl.u32 %v1503, 4
    %v1505 = vand.u32 %v1503, 15
    %v1506 = vsub.s32 0, %v1505
    %v1507 = vsel %vm1501, %v1506, %v1505
    %vm1508 = vcmp.lt.s32.totalorder %v1314, 0
    %v1509 = vsub.s32 0, %v1314
    %v1510 = vsel %vm1508, %v1509, %v1314
    %v1511 = vshrl.u32 %v1510, 4
    %v1512 = vand.u32 %v1510, 15
    %v1513 = vsub.s32 0, %v1512
    %v1514 = vsel %vm1508, %v1513, %v1512
    %vm1515 = vcmp.lt.s32.totalorder %v1315, 0
    %v1516 = vsub.s32 0, %v1315
    %v1517 = vsel %vm1515, %v1516, %v1315
    %v1518 = vshrl.u32 %v1517, 4
    %v1519 = vand.u32 %v1517, 15
    %v1520 = vsub.s32 0, %v1519
    %v1521 = vsel %vm1515, %v1520, %v1519
    %vm1522 = vcmp.lt.s32.totalorder %v1316, 0
    %v1523 = vsub.s32 0, %v1316
    %v1524 = vsel %vm1522, %v1523, %v1316
    %v1525 = vshrl.u32 %v1524, 4
    %v1526 = vand.u32 %v1524, 15
    %v1527 = vsub.s32 0, %v1526
    %v1528 = vsel %vm1522, %v1527, %v1526
    %vm1529 = vcmp.lt.s32.totalorder %v1317, 0
    %v1530 = vsub.s32 0, %v1317
    %v1531 = vsel %vm1529, %v1530, %v1317
    %v1532 = vshrl.u32 %v1531, 4
    %v1533 = vand.u32 %v1531, 15
    %v1534 = vsub.s32 0, %v1533
    %v1535 = vsel %vm1529, %v1534, %v1533
    %vm1536 = vcmp.lt.s32.totalorder %v1318, 0
    %v1537 = vsub.s32 0, %v1318
    %v1538 = vsel %vm1536, %v1537, %v1318
    %v1539 = vshrl.u32 %v1538, 4
    %v1540 = vand.u32 %v1538, 15
    %v1541 = vsub.s32 0, %v1540
    %v1542 = vsel %vm1536, %v1541, %v1540
    %vm1543 = vcmp.ne.s32.totalorder %v1325, 0
    %vm1544 = vcmp.ne.s32.totalorder %v1332, 0
    %vm1545 = vcmp.ne.s32.totalorder %v1339, 0
    %vm1546 = vcmp.ne.s32.totalorder %v1346, 0
    %vm1547 = vcmp.ne.s32.totalorder %v1353, 0
    %vm1548 = vcmp.ne.s32.totalorder %v1360, 0
    %vm1549 = vcmp.ne.s32.totalorder %v1367, 0
    %vm1550 = vcmp.ne.s32.totalorder %v1374, 0
    %vm1551 = vcmp.ne.s32.totalorder %v1381, 0
    %vm1552 = vcmp.ne.s32.totalorder %v1388, 0
    %vm1553 = vcmp.ne.s32.totalorder %v1395, 0
    %vm1554 = vcmp.ne.s32.totalorder %v1402, 0
    %vm1555 = vcmp.ne.s32.totalorder %v1409, 0
    %vm1556 = vcmp.ne.s32.totalorder %v1416, 0
    %vm1557 = vcmp.ne.s32.totalorder %v1423, 0
    %vm1558 = vcmp.ne.s32.totalorder %v1430, 0
    %vm1559 = vcmp.ne.s32.totalorder %v1437, 0
    %vm1560 = vcmp.ne.s32.totalorder %v1444, 0
    %vm1561 = vcmp.ne.s32.totalorder %v1451, 0
    %vm1562 = vcmp.ne.s32.totalorder %v1458, 0
    %vm1563 = vcmp.ne.s32.totalorder %v1465, 0
    %vm1564 = vcmp.ne.s32.totalorder %v1472, 0
    %vm1565 = vcmp.ne.s32.totalorder %v1479, 0
    %vm1566 = vcmp.ne.s32.totalorder %v1486, 0
    %vm1567 = vcmp.ne.s32.totalorder %v1493, 0
    %vm1568 = vcmp.ne.s32.totalorder %v1500, 0
    %vm1569 = vcmp.ne.s32.totalorder %v1507, 0
    %vm1570 = vcmp.ne.s32.totalorder %v1514, 0
    %vm1571 = vcmp.ne.s32.totalorder %v1521, 0
    %vm1572 = vcmp.ne.s32.totalorder %v1528, 0
    %vm1573 = vcmp.ne.s32.totalorder %v1535, 0
    %vm1574 = vcmp.ne.s32.totalorder %v1542, 0
    %vm1575 = vcmp.lt.s32.totalorder %v1325, 0
    %vm1576 = vcmp.lt.s32.totalorder %v1332, 0
    %vm1577 = vcmp.lt.s32.totalorder %v1339, 0
    %vm1578 = vcmp.lt.s32.totalorder %v1346, 0
    %vm1579 = vcmp.lt.s32.totalorder %v1353, 0
    %vm1580 = vcmp.lt.s32.totalorder %v1360, 0
    %vm1581 = vcmp.lt.s32.totalorder %v1367, 0
    %vm1582 = vcmp.lt.s32.totalorder %v1374, 0
    %vm1583 = vcmp.lt.s32.totalorder %v1381, 0
    %vm1584 = vcmp.lt.s32.totalorder %v1388, 0
    %vm1585 = vcmp.lt.s32.totalorder %v1395, 0
    %vm1586 = vcmp.lt.s32.totalorder %v1402, 0
    %vm1587 = vcmp.lt.s32.totalorder %v1409, 0
    %vm1588 = vcmp.lt.s32.totalorder %v1416, 0
    %vm1589 = vcmp.lt.s32.totalorder %v1423, 0
    %vm1590 = vcmp.lt.s32.totalorder %v1430, 0
    %vm1591 = vcmp.lt.s32.totalorder %v1437, 0
    %vm1592 = vcmp.lt.s32.totalorder %v1444, 0
    %vm1593 = vcmp.lt.s32.totalorder %v1451, 0
    %vm1594 = vcmp.lt.s32.totalorder %v1458, 0
    %vm1595 = vcmp.lt.s32.totalorder %v1465, 0
    %vm1596 = vcmp.lt.s32.totalorder %v1472, 0
    %vm1597 = vcmp.lt.s32.totalorder %v1479, 0
    %vm1598 = vcmp.lt.s32.totalorder %v1486, 0
    %vm1599 = vcmp.lt.s32.totalorder %v1493, 0
    %vm1600 = vcmp.lt.s32.totalorder %v1500, 0
    %vm1601 = vcmp.lt.s32.totalorder %v1507, 0
    %vm1602 = vcmp.lt.s32.totalorder %v1514, 0
    %vm1603 = vcmp.lt.s32.totalorder %v1521, 0
    %vm1604 = vcmp.lt.s32.totalorder %v1528, 0
    %vm1605 = vcmp.lt.s32.totalorder %v1535, 0
    %vm1606 = vcmp.lt.s32.totalorder %v1542, 0
    %vm1607 = vmand %vm1575, %vm1543
    %vm1608 = vmand %vm1576, %vm1544
    %vm1609 = vmand %vm1577, %vm1545
    %vm1610 = vmand %vm1578, %vm1546
    %vm1611 = vmand %vm1579, %vm1547
    %vm1612 = vmand %vm1580, %vm1548
    %vm1613 = vmand %vm1581, %vm1549
    %vm1614 = vmand %vm1582, %vm1550
    %vm1615 = vmand %vm1583, %vm1551
    %vm1616 = vmand %vm1584, %vm1552
    %vm1617 = vmand %vm1585, %vm1553
    %vm1618 = vmand %vm1586, %vm1554
    %vm1619 = vmand %vm1587, %vm1555
    %vm1620 = vmand %vm1588, %vm1556
    %vm1621 = vmand %vm1589, %vm1557
    %vm1622 = vmand %vm1590, %vm1558
    %vm1623 = vmand %vm1591, %vm1559
    %vm1624 = vmand %vm1592, %vm1560
    %vm1625 = vmand %vm1593, %vm1561
    %vm1626 = vmand %vm1594, %vm1562
    %vm1627 = vmand %vm1595, %vm1563
    %vm1628 = vmand %vm1596, %vm1564
    %vm1629 = vmand %vm1597, %vm1565
    %vm1630 = vmand %vm1598, %vm1566
    %vm1631 = vmand %vm1599, %vm1567
    %vm1632 = vmand %vm1600, %vm1568
    %vm1633 = vmand %vm1601, %vm1569
    %vm1634 = vmand %vm1602, %vm1570
    %vm1635 = vmand %vm1603, %vm1571
    %vm1636 = vmand %vm1604, %vm1572
    %vm1637 = vmand %vm1605, %vm1573
    %vm1638 = vmand %vm1606, %vm1574
    %v1639 = vadd.s32 %v1325, 16
    %v1640 = vadd.s32 %v1332, 16
    %v1641 = vadd.s32 %v1339, 16
    %v1642 = vadd.s32 %v1346, 16
    %v1643 = vadd.s32 %v1353, 16
    %v1644 = vadd.s32 %v1360, 16
    %v1645 = vadd.s32 %v1367, 16
    %v1646 = vadd.s32 %v1374, 16
    %v1647 = vadd.s32 %v1381, 16
    %v1648 = vadd.s32 %v1388, 16
    %v1649 = vadd.s32 %v1395, 16
    %v1650 = vadd.s32 %v1402, 16
    %v1651 = vadd.s32 %v1409, 16
    %v1652 = vadd.s32 %v1416, 16
    %v1653 = vadd.s32 %v1423, 16
    %v1654 = vadd.s32 %v1430, 16
    %v1655 = vadd.s32 %v1437, 16
    %v1656 = vadd.s32 %v1444, 16
    %v1657 = vadd.s32 %v1451, 16
    %v1658 = vadd.s32 %v1458, 16
    %v1659 = vadd.s32 %v1465, 16
    %v1660 = vadd.s32 %v1472, 16
    %v1661 = vadd.s32 %v1479, 16
    %v1662 = vadd.s32 %v1486, 16
    %v1663 = vadd.s32 %v1493, 16
    %v1664 = vadd.s32 %v1500, 16
    %v1665 = vadd.s32 %v1507, 16
    %v1666 = vadd.s32 %v1514, 16
    %v1667 = vadd.s32 %v1521, 16
    %v1668 = vadd.s32 %v1528, 16
    %v1669 = vadd.s32 %v1535, 16
    %v1670 = vadd.s32 %v1542, 16
    %v1671 = vsel %vm1607, %v1639, %v1325
    %v1672 = vsel %vm1608, %v1640, %v1332
    %v1673 = vsel %vm1609, %v1641, %v1339
    %v1674 = vsel %vm1610, %v1642, %v1346
    %v1675 = vsel %vm1611, %v1643, %v1353
    %v1676 = vsel %vm1612, %v1644, %v1360
    %v1677 = vsel %vm1613, %v1645, %v1367
    %v1678 = vsel %vm1614, %v1646, %v1374
    %v1679 = vsel %vm1615, %v1647, %v1381
    %v1680 = vsel %vm1616, %v1648, %v1388
    %v1681 = vsel %vm1617, %v1649, %v1395
    %v1682 = vsel %vm1618, %v1650, %v1402
    %v1683 = vsel %vm1619, %v1651, %v1409
    %v1684 = vsel %vm1620, %v1652, %v1416
    %v1685 = vsel %vm1621, %v1653, %v1423
    %v1686 = vsel %vm1622, %v1654, %v1430
    %v1687 = vsel %vm1623, %v1655, %v1437
    %v1688 = vsel %vm1624, %v1656, %v1444
    %v1689 = vsel %vm1625, %v1657, %v1451
    %v1690 = vsel %vm1626, %v1658, %v1458
    %v1691 = vsel %vm1627, %v1659, %v1465
    %v1692 = vsel %vm1628, %v1660, %v1472
    %v1693 = vsel %vm1629, %v1661, %v1479
    %v1694 = vsel %vm1630, %v1662, %v1486
    %v1695 = vsel %vm1631, %v1663, %v1493
    %v1696 = vsel %vm1632, %v1664, %v1500
    %v1697 = vsel %vm1633, %v1665, %v1507
    %v1698 = vsel %vm1634, %v1666, %v1514
    %v1699 = vsel %vm1635, %v1667, %v1521
    %v1700 = vsel %vm1636, %v1668, %v1528
    %v1701 = vsel %vm1637, %v1669, %v1535
    %v1702 = vsel %vm1638, %v1670, %v1542
    %vm1703 = vcmp.ge.s32.totalorder %v1671, 1
    %vm1704 = vcmp.ge.s32.totalorder %v1672, 1
    %vm1705 = vcmp.ge.s32.totalorder %v1673, 1
    %vm1706 = vcmp.ge.s32.totalorder %v1674, 1
    %vm1707 = vcmp.ge.s32.totalorder %v1675, 1
    %vm1708 = vcmp.ge.s32.totalorder %v1676, 1
    %vm1709 = vcmp.ge.s32.totalorder %v1677, 1
    %vm1710 = vcmp.ge.s32.totalorder %v1678, 1
    %vm1711 = vcmp.ge.s32.totalorder %v1679, 1
    %vm1712 = vcmp.ge.s32.totalorder %v1680, 1
    %vm1713 = vcmp.ge.s32.totalorder %v1681, 1
    %vm1714 = vcmp.ge.s32.totalorder %v1682, 1
    %vm1715 = vcmp.ge.s32.totalorder %v1683, 1
    %vm1716 = vcmp.ge.s32.totalorder %v1684, 1
    %vm1717 = vcmp.ge.s32.totalorder %v1685, 1
    %vm1718 = vcmp.ge.s32.totalorder %v1686, 1
    %vm1719 = vcmp.ge.s32.totalorder %v1687, 1
    %vm1720 = vcmp.ge.s32.totalorder %v1688, 1
    %vm1721 = vcmp.ge.s32.totalorder %v1689, 1
    %vm1722 = vcmp.ge.s32.totalorder %v1690, 1
    %vm1723 = vcmp.ge.s32.totalorder %v1691, 1
    %vm1724 = vcmp.ge.s32.totalorder %v1692, 1
    %vm1725 = vcmp.ge.s32.totalorder %v1693, 1
    %vm1726 = vcmp.ge.s32.totalorder %v1694, 1
    %vm1727 = vcmp.ge.s32.totalorder %v1695, 1
    %vm1728 = vcmp.ge.s32.totalorder %v1696, 1
    %vm1729 = vcmp.ge.s32.totalorder %v1697, 1
    %vm1730 = vcmp.ge.s32.totalorder %v1698, 1
    %vm1731 = vcmp.ge.s32.totalorder %v1699, 1
    %vm1732 = vcmp.ge.s32.totalorder %v1700, 1
    %vm1733 = vcmp.ge.s32.totalorder %v1701, 1
    %vm1734 = vcmp.ge.s32.totalorder %v1702, 1
    %vm1735 = vcmp.le.s32.totalorder %v1671, 14
    %vm1736 = vcmp.le.s32.totalorder %v1672, 14
    %vm1737 = vcmp.le.s32.totalorder %v1673, 14
    %vm1738 = vcmp.le.s32.totalorder %v1674, 14
    %vm1739 = vcmp.le.s32.totalorder %v1675, 14
    %vm1740 = vcmp.le.s32.totalorder %v1676, 14
    %vm1741 = vcmp.le.s32.totalorder %v1677, 14
    %vm1742 = vcmp.le.s32.totalorder %v1678, 14
    %vm1743 = vcmp.le.s32.totalorder %v1679, 14
    %vm1744 = vcmp.le.s32.totalorder %v1680, 14
    %vm1745 = vcmp.le.s32.totalorder %v1681, 14
    %vm1746 = vcmp.le.s32.totalorder %v1682, 14
    %vm1747 = vcmp.le.s32.totalorder %v1683, 14
    %vm1748 = vcmp.le.s32.totalorder %v1684, 14
    %vm1749 = vcmp.le.s32.totalorder %v1685, 14
    %vm1750 = vcmp.le.s32.totalorder %v1686, 14
    %vm1751 = vcmp.le.s32.totalorder %v1687, 14
    %vm1752 = vcmp.le.s32.totalorder %v1688, 14
    %vm1753 = vcmp.le.s32.totalorder %v1689, 14
    %vm1754 = vcmp.le.s32.totalorder %v1690, 14
    %vm1755 = vcmp.le.s32.totalorder %v1691, 14
    %vm1756 = vcmp.le.s32.totalorder %v1692, 14
    %vm1757 = vcmp.le.s32.totalorder %v1693, 14
    %vm1758 = vcmp.le.s32.totalorder %v1694, 14
    %vm1759 = vcmp.le.s32.totalorder %v1695, 14
    %vm1760 = vcmp.le.s32.totalorder %v1696, 14
    %vm1761 = vcmp.le.s32.totalorder %v1697, 14
    %vm1762 = vcmp.le.s32.totalorder %v1698, 14
    %vm1763 = vcmp.le.s32.totalorder %v1699, 14
    %vm1764 = vcmp.le.s32.totalorder %v1700, 14
    %vm1765 = vcmp.le.s32.totalorder %v1701, 14
    %vm1766 = vcmp.le.s32.totalorder %v1702, 14
    %v1767 = vld [vmem:[#allocation2 + $0xf] sm:$0xff]
    %v1768 = vld [vmem:[#allocation2 + $0x17] sm:$0xff]
    %v1769 = vld [vmem:[#allocation2 + $0x1f] sm:$0xff]
    %v1770 = vld [vmem:[#allocation2 + $0x27] sm:$0xff]
    %v1771 = vld [vmem:[#allocation2 + $0x2f] sm:$0xff]
    %v1772 = vld [vmem:[#allocation2 + $0x37] sm:$0xff]
    %v1773 = vld [vmem:[#allocation2 + $0x3f] sm:$0xff]
    %v1774 = vld [vmem:[#allocation2 + $0x47] sm:$0xff]
    %v1775 = vld [vmem:[#allocation2 + $0x4f] sm:$0xff]
    %v1776 = vld [vmem:[#allocation2 + $0x57] sm:$0xff]
    %v1777 = vld [vmem:[#allocation2 + $0x5f] sm:$0xff]
    %v1778 = vld [vmem:[#allocation2 + $0x67] sm:$0xff]
    %v1779 = vld [vmem:[#allocation2 + $0x6f] sm:$0xff]
    %v1780 = vld [vmem:[#allocation2 + $0x77] sm:$0xff]
    %v1781 = vld [vmem:[#allocation2 + $0x7f] sm:$0xff]
    %v1782 = vld [vmem:[#allocation2 + $0x87] sm:$0xff]
    %v1783 = vld [vmem:[#allocation2 + $0x8f] sm:$0xff]
    %v1784 = vld [vmem:[#allocation2 + $0x97] sm:$0xff]
    %v1785 = vld [vmem:[#allocation2 + $0x9f] sm:$0xff]
    %v1786 = vld [vmem:[#allocation2 + $0xa7] sm:$0xff]
    %v1787 = vld [vmem:[#allocation2 + $0xaf] sm:$0xff]
    %v1788 = vld [vmem:[#allocation2 + $0xb7] sm:$0xff]
    %v1789 = vld [vmem:[#allocation2 + $0xbf] sm:$0xff]
    %v1790 = vld [vmem:[#allocation2 + $0xc7] sm:$0xff]
    %v1791 = vld [vmem:[#allocation2 + $0xcf] sm:$0xff]
    %v1792 = vld [vmem:[#allocation2 + $0xd7] sm:$0xff]
    %v1793 = vld [vmem:[#allocation2 + $0xdf] sm:$0xff]
    %v1794 = vld [vmem:[#allocation2 + $0xe7] sm:$0xff]
    %v1795 = vld [vmem:[#allocation2 + $0xef] sm:$0xff]
    %v1796 = vld [vmem:[#allocation2 + $0xf7] sm:$0xff]
    %v1797 = vld [vmem:[#allocation2 + $0xff] sm:$0xff]
    %v1798 = vld [vmem:[#allocation2 + $0x107] sm:$0xff]
    %v1799 = vsel %vm1703, 1, 0
    %v1800 = vsel %vm1704, 1, 0
    %v1801 = vsel %vm1705, 1, 0
    %v1802 = vsel %vm1706, 1, 0
    %v1803 = vsel %vm1707, 1, 0
    %v1804 = vsel %vm1708, 1, 0
    %v1805 = vsel %vm1709, 1, 0
    %v1806 = vsel %vm1710, 1, 0
    %v1807 = vsel %vm1711, 1, 0
    %v1808 = vsel %vm1712, 1, 0
    %v1809 = vsel %vm1713, 1, 0
    %v1810 = vsel %vm1714, 1, 0
    %v1811 = vsel %vm1715, 1, 0
    %v1812 = vsel %vm1716, 1, 0
    %v1813 = vsel %vm1717, 1, 0
    %v1814 = vsel %vm1718, 1, 0
    %v1815 = vsel %vm1719, 1, 0
    %v1816 = vsel %vm1720, 1, 0
    %v1817 = vsel %vm1721, 1, 0
    %v1818 = vsel %vm1722, 1, 0
    %v1819 = vsel %vm1723, 1, 0
    %v1820 = vsel %vm1724, 1, 0
    %v1821 = vsel %vm1725, 1, 0
    %v1822 = vsel %vm1726, 1, 0
    %v1823 = vsel %vm1727, 1, 0
    %v1824 = vsel %vm1728, 1, 0
    %v1825 = vsel %vm1729, 1, 0
    %v1826 = vsel %vm1730, 1, 0
    %v1827 = vsel %vm1731, 1, 0
    %v1828 = vsel %vm1732, 1, 0
    %v1829 = vsel %vm1733, 1, 0
    %v1830 = vsel %vm1734, 1, 0
    %vm1831 = vcmp.eq.s32.totalorder %v1799, 1
    %vm1832 = vcmp.eq.s32.totalorder %v1800, 1
    %vm1833 = vcmp.eq.s32.totalorder %v1801, 1
    %vm1834 = vcmp.eq.s32.totalorder %v1802, 1
    %vm1835 = vcmp.eq.s32.totalorder %v1803, 1
    %vm1836 = vcmp.eq.s32.totalorder %v1804, 1
    %vm1837 = vcmp.eq.s32.totalorder %v1805, 1
    %vm1838 = vcmp.eq.s32.totalorder %v1806, 1
    %vm1839 = vcmp.eq.s32.totalorder %v1807, 1
    %vm1840 = vcmp.eq.s32.totalorder %v1808, 1
    %vm1841 = vcmp.eq.s32.totalorder %v1809, 1
    %vm1842 = vcmp.eq.s32.totalorder %v1810, 1
    %vm1843 = vcmp.eq.s32.totalorder %v1811, 1
    %vm1844 = vcmp.eq.s32.totalorder %v1812, 1
    %vm1845 = vcmp.eq.s32.totalorder %v1813, 1
    %vm1846 = vcmp.eq.s32.totalorder %v1814, 1
    %vm1847 = vcmp.eq.s32.totalorder %v1815, 1
    %vm1848 = vcmp.eq.s32.totalorder %v1816, 1
    %vm1849 = vcmp.eq.s32.totalorder %v1817, 1
    %vm1850 = vcmp.eq.s32.totalorder %v1818, 1
    %vm1851 = vcmp.eq.s32.totalorder %v1819, 1
    %vm1852 = vcmp.eq.s32.totalorder %v1820, 1
    %vm1853 = vcmp.eq.s32.totalorder %v1821, 1
    %vm1854 = vcmp.eq.s32.totalorder %v1822, 1
    %vm1855 = vcmp.eq.s32.totalorder %v1823, 1
    %vm1856 = vcmp.eq.s32.totalorder %v1824, 1
    %vm1857 = vcmp.eq.s32.totalorder %v1825, 1
    %vm1858 = vcmp.eq.s32.totalorder %v1826, 1
    %vm1859 = vcmp.eq.s32.totalorder %v1827, 1
    %vm1860 = vcmp.eq.s32.totalorder %v1828, 1
    %vm1861 = vcmp.eq.s32.totalorder %v1829, 1
    %vm1862 = vcmp.eq.s32.totalorder %v1830, 1
    %v1863 = vsel %vm1831, %v1767, 0.0
    %v1864 = vsel %vm1832, %v1768, 0.0
    %v1865 = vsel %vm1833, %v1769, 0.0
    %v1866 = vsel %vm1834, %v1770, 0.0
    %v1867 = vsel %vm1835, %v1771, 0.0
    %v1868 = vsel %vm1836, %v1772, 0.0
    %v1869 = vsel %vm1837, %v1773, 0.0
    %v1870 = vsel %vm1838, %v1774, 0.0
    %v1871 = vsel %vm1839, %v1775, 0.0
    %v1872 = vsel %vm1840, %v1776, 0.0
    %v1873 = vsel %vm1841, %v1777, 0.0
    %v1874 = vsel %vm1842, %v1778, 0.0
    %v1875 = vsel %vm1843, %v1779, 0.0
    %v1876 = vsel %vm1844, %v1780, 0.0
    %v1877 = vsel %vm1845, %v1781, 0.0
    %v1878 = vsel %vm1846, %v1782, 0.0
    %v1879 = vsel %vm1847, %v1783, 0.0
    %v1880 = vsel %vm1848, %v1784, 0.0
    %v1881 = vsel %vm1849, %v1785, 0.0
    %v1882 = vsel %vm1850, %v1786, 0.0
    %v1883 = vsel %vm1851, %v1787, 0.0
    %v1884 = vsel %vm1852, %v1788, 0.0
    %v1885 = vsel %vm1853, %v1789, 0.0
    %v1886 = vsel %vm1854, %v1790, 0.0
    %v1887 = vsel %vm1855, %v1791, 0.0
    %v1888 = vsel %vm1856, %v1792, 0.0
    %v1889 = vsel %vm1857, %v1793, 0.0
    %v1890 = vsel %vm1858, %v1794, 0.0
    %v1891 = vsel %vm1859, %v1795, 0.0
    %v1892 = vsel %vm1860, %v1796, 0.0
    %v1893 = vsel %vm1861, %v1797, 0.0
    %v1894 = vsel %vm1862, %v1798, 0.0
    %v1895 = vpack.c.bf16 %v1864, %v1863
    %v1896 = vpack.c.bf16 %v1866, %v1865
    %v1897 = vpack.c.bf16 %v1868, %v1867
    %v1898 = vpack.c.bf16 %v1870, %v1869
    %v1899 = vpack.c.bf16 %v1872, %v1871
    %v1900 = vpack.c.bf16 %v1874, %v1873
    %v1901 = vpack.c.bf16 %v1876, %v1875
    %v1902 = vpack.c.bf16 %v1878, %v1877
    %v1903 = vpack.c.bf16 %v1880, %v1879
    %v1904 = vpack.c.bf16 %v1882, %v1881
    %v1905 = vpack.c.bf16 %v1884, %v1883
    %v1906 = vpack.c.bf16 %v1886, %v1885
    %v1907 = vpack.c.bf16 %v1888, %v1887
    %v1908 = vpack.c.bf16 %v1890, %v1889
    %v1909 = vpack.c.bf16 %v1892, %v1891
    %v1910 = vpack.c.bf16 %v1894, %v1893
    %1911 = vst [vmem:[#allocation3] sm:$0xff] %v1895
    %1912 = vst [vmem:[#allocation3 + $0x48] sm:$0xff] %v1896
    %1913 = vst [vmem:[#allocation3 + $0x90] sm:$0xff] %v1897
    %1914 = vst [vmem:[#allocation3 + $0xd8] sm:$0xff] %v1898
    %1915 = vst [vmem:[#allocation3 + $0x120] sm:$0xff] %v1899
    %1916 = vst [vmem:[#allocation3 + $0x168] sm:$0xff] %v1900
    %1917 = vst [vmem:[#allocation3 + $0x1b0] sm:$0xff] %v1901
    %1918 = vst [vmem:[#allocation3 + $0x1f8] sm:$0xff] %v1902
    %1919 = vst [vmem:[#allocation3 + $0x240] sm:$0xff] %v1903
    %1920 = vst [vmem:[#allocation3 + $0x288] sm:$0xff] %v1904
    %1921 = vst [vmem:[#allocation3 + $0x2d0] sm:$0xff] %v1905
    %1922 = vst [vmem:[#allocation3 + $0x318] sm:$0xff] %v1906
    %1923 = vst [vmem:[#allocation3 + $0x360] sm:$0xff] %v1907
    %1924 = vst [vmem:[#allocation3 + $0x3a8] sm:$0xff] %v1908
    %1925 = vst [vmem:[#allocation3 + $0x3f0] sm:$0xff] %v1909
    %1926 = vst [vmem:[#allocation3 + $0x438] sm:$0xff] %v1910
    %v1927 = vld [vmem:[#allocation2 + $0x12f] sm:$0xff]
    %v1928 = vld [vmem:[#allocation2 + $0x137] sm:$0xff]
    %v1929 = vld [vmem:[#allocation2 + $0x13f] sm:$0xff]
    %v1930 = vld [vmem:[#allocation2 + $0x147] sm:$0xff]
    %v1931 = vld [vmem:[#allocation2 + $0x14f] sm:$0xff]
    %v1932 = vld [vmem:[#allocation2 + $0x157] sm:$0xff]
    %v1933 = vld [vmem:[#allocation2 + $0x15f] sm:$0xff]
    %v1934 = vld [vmem:[#allocation2 + $0x167] sm:$0xff]
    %v1935 = vld [vmem:[#allocation2 + $0x16f] sm:$0xff]
    %v1936 = vld [vmem:[#allocation2 + $0x177] sm:$0xff]
    %v1937 = vld [vmem:[#allocation2 + $0x17f] sm:$0xff]
    %v1938 = vld [vmem:[#allocation2 + $0x187] sm:$0xff]
    %v1939 = vld [vmem:[#allocation2 + $0x18f] sm:$0xff]
    %v1940 = vld [vmem:[#allocation2 + $0x197] sm:$0xff]
    %v1941 = vld [vmem:[#allocation2 + $0x19f] sm:$0xff]
    %v1942 = vld [vmem:[#allocation2 + $0x1a7] sm:$0xff]
    %v1943 = vld [vmem:[#allocation2 + $0x1af] sm:$0xff]
    %v1944 = vld [vmem:[#allocation2 + $0x1b7] sm:$0xff]
    %v1945 = vld [vmem:[#allocation2 + $0x1bf] sm:$0xff]
    %v1946 = vld [vmem:[#allocation2 + $0x1c7] sm:$0xff]
    %v1947 = vld [vmem:[#allocation2 + $0x1cf] sm:$0xff]
    %v1948 = vld [vmem:[#allocation2 + $0x1d7] sm:$0xff]
    %v1949 = vld [vmem:[#allocation2 + $0x1df] sm:$0xff]
    %v1950 = vld [vmem:[#allocation2 + $0x1e7] sm:$0xff]
    %v1951 = vld [vmem:[#allocation2 + $0x1ef] sm:$0xff]
    %v1952 = vld [vmem:[#allocation2 + $0x1f7] sm:$0xff]
    %v1953 = vld [vmem:[#allocation2 + $0x1ff] sm:$0xff]
    %v1954 = vld [vmem:[#allocation2 + $0x207] sm:$0xff]
    %v1955 = vld [vmem:[#allocation2 + $0x20f] sm:$0xff]
    %v1956 = vld [vmem:[#allocation2 + $0x217] sm:$0xff]
    %v1957 = vld [vmem:[#allocation2 + $0x21f] sm:$0xff]
    %v1958 = vld [vmem:[#allocation2 + $0x227] sm:$0xff]
    %v1959 = vsel %vm1831, %v1927, 0.0
    %v1960 = vsel %vm1832, %v1928, 0.0
    %v1961 = vsel %vm1833, %v1929, 0.0
    %v1962 = vsel %vm1834, %v1930, 0.0
    %v1963 = vsel %vm1835, %v1931, 0.0
    %v1964 = vsel %vm1836, %v1932, 0.0
    %v1965 = vsel %vm1837, %v1933, 0.0
    %v1966 = vsel %vm1838, %v1934, 0.0
    %v1967 = vsel %vm1839, %v1935, 0.0
    %v1968 = vsel %vm1840, %v1936, 0.0
    %v1969 = vsel %vm1841, %v1937, 0.0
    %v1970 = vsel %vm1842, %v1938, 0.0
    %v1971 = vsel %vm1843, %v1939, 0.0
    %v1972 = vsel %vm1844, %v1940, 0.0
    %v1973 = vsel %vm1845, %v1941, 0.0
    %v1974 = vsel %vm1846, %v1942, 0.0
    %v1975 = vsel %vm1847, %v1943, 0.0
    %v1976 = vsel %vm1848, %v1944, 0.0
    %v1977 = vsel %vm1849, %v1945, 0.0
    %v1978 = vsel %vm1850, %v1946, 0.0
    %v1979 = vsel %vm1851, %v1947, 0.0
    %v1980 = vsel %vm1852, %v1948, 0.0
    %v1981 = vsel %vm1853, %v1949, 0.0
    %v1982 = vsel %vm1854, %v1950, 0.0
    %v1983 = vsel %vm1855, %v1951, 0.0
    %v1984 = vsel %vm1856, %v1952, 0.0
    %v1985 = vsel %vm1857, %v1953, 0.0
    %v1986 = vsel %vm1858, %v1954, 0.0
    %v1987 = vsel %vm1859, %v1955, 0.0
    %v1988 = vsel %vm1860, %v1956, 0.0
    %v1989 = vsel %vm1861, %v1957, 0.0
    %v1990 = vsel %vm1862, %v1958, 0.0
    %v1991 = vpack.c.bf16 %v1960, %v1959
    %v1992 = vpack.c.bf16 %v1962, %v1961
    %v1993 = vpack.c.bf16 %v1964, %v1963
    %v1994 = vpack.c.bf16 %v1966, %v1965
    %v1995 = vpack.c.bf16 %v1968, %v1967
    %v1996 = vpack.c.bf16 %v1970, %v1969
    %v1997 = vpack.c.bf16 %v1972, %v1971
    %v1998 = vpack.c.bf16 %v1974, %v1973
    %v1999 = vpack.c.bf16 %v1976, %v1975
    %v2000 = vpack.c.bf16 %v1978, %v1977
    %v2001 = vpack.c.bf16 %v1980, %v1979
    %v2002 = vpack.c.bf16 %v1982, %v1981
    %v2003 = vpack.c.bf16 %v1984, %v1983
    %v2004 = vpack.c.bf16 %v1986, %v1985
    %v2005 = vpack.c.bf16 %v1988, %v1987
    %v2006 = vpack.c.bf16 %v1990, %v1989
    %2007 = vst [vmem:[#allocation3 + $0x480] sm:$0xff] %v1991
    %2008 = vst [vmem:[#allocation3 + $0x4c8] sm:$0xff] %v1992
    %2009 = vst [vmem:[#allocation3 + $0x510] sm:$0xff] %v1993
    %2010 = vst [vmem:[#allocation3 + $0x558] sm:$0xff] %v1994
    %2011 = vst [vmem:[#allocation3 + $0x5a0] sm:$0xff] %v1995
    %2012 = vst [vmem:[#allocation3 + $0x5e8] sm:$0xff] %v1996
    %2013 = vst [vmem:[#allocation3 + $0x630] sm:$0xff] %v1997
    %2014 = vst [vmem:[#allocation3 + $0x678] sm:$0xff] %v1998
    %2015 = vst [vmem:[#allocation3 + $0x6c0] sm:$0xff] %v1999
    %2016 = vst [vmem:[#allocation3 + $0x708] sm:$0xff] %v2000
    %2017 = vst [vmem:[#allocation3 + $0x750] sm:$0xff] %v2001
    %2018 = vst [vmem:[#allocation3 + $0x798] sm:$0xff] %v2002
    %2019 = vst [vmem:[#allocation3 + $0x7e0] sm:$0xff] %v2003
    %2020 = vst [vmem:[#allocation3 + $0x828] sm:$0xff] %v2004
    %2021 = vst [vmem:[#allocation3 + $0x870] sm:$0xff] %v2005
    %2022 = vst [vmem:[#allocation3 + $0x8b8] sm:$0xff] %v2006
    %v2023 = vld [vmem:[#allocation2 + $0x10] sm:$0xff]
    %v2024 = vld [vmem:[#allocation2 + $0x18] sm:$0xff]
    %v2025 = vld [vmem:[#allocation2 + $0x20] sm:$0xff]
    %v2026 = vld [vmem:[#allocation2 + $0x28] sm:$0xff]
    %v2027 = vld [vmem:[#allocation2 + $0x30] sm:$0xff]
    %v2028 = vld [vmem:[#allocation2 + $0x38] sm:$0xff]
    %v2029 = vld [vmem:[#allocation2 + $0x40] sm:$0xff]
    %v2030 = vld [vmem:[#allocation2 + $0x48] sm:$0xff]
    %v2031 = vld [vmem:[#allocation2 + $0x50] sm:$0xff]
    %v2032 = vld [vmem:[#allocation2 + $0x58] sm:$0xff]
    %v2033 = vld [vmem:[#allocation2 + $0x60] sm:$0xff]
    %v2034 = vld [vmem:[#allocation2 + $0x68] sm:$0xff]
    %v2035 = vld [vmem:[#allocation2 + $0x70] sm:$0xff]
    %v2036 = vld [vmem:[#allocation2 + $0x78] sm:$0xff]
    %v2037 = vld [vmem:[#allocation2 + $0x80] sm:$0xff]
    %v2038 = vld [vmem:[#allocation2 + $0x88] sm:$0xff]
    %v2039 = vld [vmem:[#allocation2 + $0x90] sm:$0xff]
    %v2040 = vld [vmem:[#allocation2 + $0x98] sm:$0xff]
    %v2041 = vld [vmem:[#allocation2 + $0xa0] sm:$0xff]
    %v2042 = vld [vmem:[#allocation2 + $0xa8] sm:$0xff]
    %v2043 = vld [vmem:[#allocation2 + $0xb0] sm:$0xff]
    %v2044 = vld [vmem:[#allocation2 + $0xb8] sm:$0xff]
    %v2045 = vld [vmem:[#allocation2 + $0xc0] sm:$0xff]
    %v2046 = vld [vmem:[#allocation2 + $0xc8] sm:$0xff]
    %v2047 = vld [vmem:[#allocation2 + $0xd0] sm:$0xff]
    %v2048 = vld [vmem:[#allocation2 + $0xd8] sm:$0xff]
    %v2049 = vld [vmem:[#allocation2 + $0xe0] sm:$0xff]
    %v2050 = vld [vmem:[#allocation2 + $0xe8] sm:$0xff]
    %v2051 = vld [vmem:[#allocation2 + $0xf0] sm:$0xff]
    %v2052 = vld [vmem:[#allocation2 + $0xf8] sm:$0xff]
    %v2053 = vld [vmem:[#allocation2 + $0x100] sm:$0xff]
    %v2054 = vld [vmem:[#allocation2 + $0x108] sm:$0xff]
    %v2055 = vpack.c.bf16 %v2024, %v2023
    %v2056 = vpack.c.bf16 %v2026, %v2025
    %v2057 = vpack.c.bf16 %v2028, %v2027
    %v2058 = vpack.c.bf16 %v2030, %v2029
    %v2059 = vpack.c.bf16 %v2032, %v2031
    %v2060 = vpack.c.bf16 %v2034, %v2033
    %v2061 = vpack.c.bf16 %v2036, %v2035
    %v2062 = vpack.c.bf16 %v2038, %v2037
    %v2063 = vpack.c.bf16 %v2040, %v2039
    %v2064 = vpack.c.bf16 %v2042, %v2041
    %v2065 = vpack.c.bf16 %v2044, %v2043
    %v2066 = vpack.c.bf16 %v2046, %v2045
    %v2067 = vpack.c.bf16 %v2048, %v2047
    %v2068 = vpack.c.bf16 %v2050, %v2049
    %v2069 = vpack.c.bf16 %v2052, %v2051
    %v2070 = vpack.c.bf16 %v2054, %v2053
    %2071 = vst [vmem:[#allocation3 + $0x8] sm:$0xff] %v2055
    %2072 = vst [vmem:[#allocation3 + $0x50] sm:$0xff] %v2056
    %2073 = vst [vmem:[#allocation3 + $0x98] sm:$0xff] %v2057
    %2074 = vst [vmem:[#allocation3 + $0xe0] sm:$0xff] %v2058
    %2075 = vst [vmem:[#allocation3 + $0x128] sm:$0xff] %v2059
    %2076 = vst [vmem:[#allocation3 + $0x170] sm:$0xff] %v2060
    %2077 = vst [vmem:[#allocation3 + $0x1b8] sm:$0xff] %v2061
    %2078 = vst [vmem:[#allocation3 + $0x200] sm:$0xff] %v2062
    %2079 = vst [vmem:[#allocation3 + $0x248] sm:$0xff] %v2063
    %2080 = vst [vmem:[#allocation3 + $0x290] sm:$0xff] %v2064
    %2081 = vst [vmem:[#allocation3 + $0x2d8] sm:$0xff] %v2065
    %2082 = vst [vmem:[#allocation3 + $0x320] sm:$0xff] %v2066
    %2083 = vst [vmem:[#allocation3 + $0x368] sm:$0xff] %v2067
    %2084 = vst [vmem:[#allocation3 + $0x3b0] sm:$0xff] %v2068
    %2085 = vst [vmem:[#allocation3 + $0x3f8] sm:$0xff] %v2069
    %2086 = vst [vmem:[#allocation3 + $0x440] sm:$0xff] %v2070
    %v2087 = vld [vmem:[#allocation2 + $0x130] sm:$0xff]
    %v2088 = vld [vmem:[#allocation2 + $0x138] sm:$0xff]
    %v2089 = vld [vmem:[#allocation2 + $0x140] sm:$0xff]
    %v2090 = vld [vmem:[#allocation2 + $0x148] sm:$0xff]
    %v2091 = vld [vmem:[#allocation2 + $0x150] sm:$0xff]
    %v2092 = vld [vmem:[#allocation2 + $0x158] sm:$0xff]
    %v2093 = vld [vmem:[#allocation2 + $0x160] sm:$0xff]
    %v2094 = vld [vmem:[#allocation2 + $0x168] sm:$0xff]
    %v2095 = vld [vmem:[#allocation2 + $0x170] sm:$0xff]
    %v2096 = vld [vmem:[#allocation2 + $0x178] sm:$0xff]
    %v2097 = vld [vmem:[#allocation2 + $0x180] sm:$0xff]
    %v2098 = vld [vmem:[#allocation2 + $0x188] sm:$0xff]
    %v2099 = vld [vmem:[#allocation2 + $0x190] sm:$0xff]
    %v2100 = vld [vmem:[#allocation2 + $0x198] sm:$0xff]
    %v2101 = vld [vmem:[#allocation2 + $0x1a0] sm:$0xff]
    %v2102 = vld [vmem:[#allocation2 + $0x1a8] sm:$0xff]
    %v2103 = vld [vmem:[#allocation2 + $0x1b0] sm:$0xff]
    %v2104 = vld [vmem:[#allocation2 + $0x1b8] sm:$0xff]
    %v2105 = vld [vmem:[#allocation2 + $0x1c0] sm:$0xff]
    %v2106 = vld [vmem:[#allocation2 + $0x1c8] sm:$0xff]
    %v2107 = vld [vmem:[#allocation2 + $0x1d0] sm:$0xff]
    %v2108 = vld [vmem:[#allocation2 + $0x1d8] sm:$0xff]
    %v2109 = vld [vmem:[#allocation2 + $0x1e0] sm:$0xff]
    %v2110 = vld [vmem:[#allocation2 + $0x1e8] sm:$0xff]
    %v2111 = vld [vmem:[#allocation2 + $0x1f0] sm:$0xff]
    %v2112 = vld [vmem:[#allocation2 + $0x1f8] sm:$0xff]
    %v2113 = vld [vmem:[#allocation2 + $0x200] sm:$0xff]
    %v2114 = vld [vmem:[#allocation2 + $0x208] sm:$0xff]
    %v2115 = vld [vmem:[#allocation2 + $0x210] sm:$0xff]
    %v2116 = vld [vmem:[#allocation2 + $0x218] sm:$0xff]
    %v2117 = vld [vmem:[#allocation2 + $0x220] sm:$0xff]
    %v2118 = vld [vmem:[#allocation2 + $0x228] sm:$0xff]
    %v2119 = vpack.c.bf16 %v2088, %v2087
    %v2120 = vpack.c.bf16 %v2090, %v2089
    %v2121 = vpack.c.bf16 %v2092, %v2091
    %v2122 = vpack.c.bf16 %v2094, %v2093
    %v2123 = vpack.c.bf16 %v2096, %v2095
    %v2124 = vpack.c.bf16 %v2098, %v2097
    %v2125 = vpack.c.bf16 %v2100, %v2099
    %v2126 = vpack.c.bf16 %v2102, %v2101
    %v2127 = vpack.c.bf16 %v2104, %v2103
    %v2128 = vpack.c.bf16 %v2106, %v2105
    %v2129 = vpack.c.bf16 %v2108, %v2107
    %v2130 = vpack.c.bf16 %v2110, %v2109
    %v2131 = vpack.c.bf16 %v2112, %v2111
    %v2132 = vpack.c.bf16 %v2114, %v2113
    %v2133 = vpack.c.bf16 %v2116, %v2115
    %v2134 = vpack.c.bf16 %v2118, %v2117
    %2135 = vst [vmem:[#allocation3 + $0x488] sm:$0xff] %v2119
    %2136 = vst [vmem:[#allocation3 + $0x4d0] sm:$0xff] %v2120
    %2137 = vst [vmem:[#allocation3 + $0x518] sm:$0xff] %v2121
    %2138 = vst [vmem:[#allocation3 + $0x560] sm:$0xff] %v2122
    %2139 = vst [vmem:[#allocation3 + $0x5a8] sm:$0xff] %v2123
    %2140 = vst [vmem:[#allocation3 + $0x5f0] sm:$0xff] %v2124
    %2141 = vst [vmem:[#allocation3 + $0x638] sm:$0xff] %v2125
    %2142 = vst [vmem:[#allocation3 + $0x680] sm:$0xff] %v2126
    %2143 = vst [vmem:[#allocation3 + $0x6c8] sm:$0xff] %v2127
    %2144 = vst [vmem:[#allocation3 + $0x710] sm:$0xff] %v2128
    %2145 = vst [vmem:[#allocation3 + $0x758] sm:$0xff] %v2129
    %2146 = vst [vmem:[#allocation3 + $0x7a0] sm:$0xff] %v2130
    %2147 = vst [vmem:[#allocation3 + $0x7e8] sm:$0xff] %v2131
    %2148 = vst [vmem:[#allocation3 + $0x830] sm:$0xff] %v2132
    %2149 = vst [vmem:[#allocation3 + $0x878] sm:$0xff] %v2133
    %2150 = vst [vmem:[#allocation3 + $0x8c0] sm:$0xff] %v2134
    %v2151 = vld [vmem:[#allocation2 + $0x11] sm:$0xff]
    %v2152 = vld [vmem:[#allocation2 + $0x19] sm:$0xff]
    %v2153 = vld [vmem:[#allocation2 + $0x21] sm:$0xff]
    %v2154 = vld [vmem:[#allocation2 + $0x29] sm:$0xff]
    %v2155 = vld [vmem:[#allocation2 + $0x31] sm:$0xff]
    %v2156 = vld [vmem:[#allocation2 + $0x39] sm:$0xff]
    %v2157 = vld [vmem:[#allocation2 + $0x41] sm:$0xff]
    %v2158 = vld [vmem:[#allocation2 + $0x49] sm:$0xff]
    %v2159 = vld [vmem:[#allocation2 + $0x51] sm:$0xff]
    %v2160 = vld [vmem:[#allocation2 + $0x59] sm:$0xff]
    %v2161 = vld [vmem:[#allocation2 + $0x61] sm:$0xff]
    %v2162 = vld [vmem:[#allocation2 + $0x69] sm:$0xff]
    %v2163 = vld [vmem:[#allocation2 + $0x71] sm:$0xff]
    %v2164 = vld [vmem:[#allocation2 + $0x79] sm:$0xff]
    %v2165 = vld [vmem:[#allocation2 + $0x81] sm:$0xff]
    %v2166 = vld [vmem:[#allocation2 + $0x89] sm:$0xff]
    %v2167 = vld [vmem:[#allocation2 + $0x91] sm:$0xff]
    %v2168 = vld [vmem:[#allocation2 + $0x99] sm:$0xff]
    %v2169 = vld [vmem:[#allocation2 + $0xa1] sm:$0xff]
    %v2170 = vld [vmem:[#allocation2 + $0xa9] sm:$0xff]
    %v2171 = vld [vmem:[#allocation2 + $0xb1] sm:$0xff]
    %v2172 = vld [vmem:[#allocation2 + $0xb9] sm:$0xff]
    %v2173 = vld [vmem:[#allocation2 + $0xc1] sm:$0xff]
    %v2174 = vld [vmem:[#allocation2 + $0xc9] sm:$0xff]
    %v2175 = vld [vmem:[#allocation2 + $0xd1] sm:$0xff]
    %v2176 = vld [vmem:[#allocation2 + $0xd9] sm:$0xff]
    %v2177 = vld [vmem:[#allocation2 + $0xe1] sm:$0xff]
    %v2178 = vld [vmem:[#allocation2 + $0xe9] sm:$0xff]
    %v2179 = vld [vmem:[#allocation2 + $0xf1] sm:$0xff]
    %v2180 = vld [vmem:[#allocation2 + $0xf9] sm:$0xff]
    %v2181 = vld [vmem:[#allocation2 + $0x101] sm:$0xff]
    %v2182 = vld [vmem:[#allocation2 + $0x109] sm:$0xff]
    %v2183 = vsel %vm1735, 1, 0
    %v2184 = vsel %vm1736, 1, 0
    %v2185 = vsel %vm1737, 1, 0
    %v2186 = vsel %vm1738, 1, 0
    %v2187 = vsel %vm1739, 1, 0
    %v2188 = vsel %vm1740, 1, 0
    %v2189 = vsel %vm1741, 1, 0
    %v2190 = vsel %vm1742, 1, 0
    %v2191 = vsel %vm1743, 1, 0
    %v2192 = vsel %vm1744, 1, 0
    %v2193 = vsel %vm1745, 1, 0
    %v2194 = vsel %vm1746, 1, 0
    %v2195 = vsel %vm1747, 1, 0
    %v2196 = vsel %vm1748, 1, 0
    %v2197 = vsel %vm1749, 1, 0
    %v2198 = vsel %vm1750, 1, 0
    %v2199 = vsel %vm1751, 1, 0
    %v2200 = vsel %vm1752, 1, 0
    %v2201 = vsel %vm1753, 1, 0
    %v2202 = vsel %vm1754, 1, 0
    %v2203 = vsel %vm1755, 1, 0
    %v2204 = vsel %vm1756, 1, 0
    %v2205 = vsel %vm1757, 1, 0
    %v2206 = vsel %vm1758, 1, 0
    %v2207 = vsel %vm1759, 1, 0
    %v2208 = vsel %vm1760, 1, 0
    %v2209 = vsel %vm1761, 1, 0
    %v2210 = vsel %vm1762, 1, 0
    %v2211 = vsel %vm1763, 1, 0
    %v2212 = vsel %vm1764, 1, 0
    %v2213 = vsel %vm1765, 1, 0
    %v2214 = vsel %vm1766, 1, 0
    %vm2215 = vcmp.eq.s32.totalorder %v2183, 1
    %vm2216 = vcmp.eq.s32.totalorder %v2184, 1
    %vm2217 = vcmp.eq.s32.totalorder %v2185, 1
    %vm2218 = vcmp.eq.s32.totalorder %v2186, 1
    %vm2219 = vcmp.eq.s32.totalorder %v2187, 1
    %vm2220 = vcmp.eq.s32.totalorder %v2188, 1
    %vm2221 = vcmp.eq.s32.totalorder %v2189, 1
    %vm2222 = vcmp.eq.s32.totalorder %v2190, 1
    %vm2223 = vcmp.eq.s32.totalorder %v2191, 1
    %vm2224 = vcmp.eq.s32.totalorder %v2192, 1
    %vm2225 = vcmp.eq.s32.totalorder %v2193, 1
    %vm2226 = vcmp.eq.s32.totalorder %v2194, 1
    %vm2227 = vcmp.eq.s32.totalorder %v2195, 1
    %vm2228 = vcmp.eq.s32.totalorder %v2196, 1
    %vm2229 = vcmp.eq.s32.totalorder %v2197, 1
    %vm2230 = vcmp.eq.s32.totalorder %v2198, 1
    %vm2231 = vcmp.eq.s32.totalorder %v2199, 1
    %vm2232 = vcmp.eq.s32.totalorder %v2200, 1
    %vm2233 = vcmp.eq.s32.totalorder %v2201, 1
    %vm2234 = vcmp.eq.s32.totalorder %v2202, 1
    %vm2235 = vcmp.eq.s32.totalorder %v2203, 1
    %vm2236 = vcmp.eq.s32.totalorder %v2204, 1
    %vm2237 = vcmp.eq.s32.totalorder %v2205, 1
    %vm2238 = vcmp.eq.s32.totalorder %v2206, 1
    %vm2239 = vcmp.eq.s32.totalorder %v2207, 1
    %vm2240 = vcmp.eq.s32.totalorder %v2208, 1
    %vm2241 = vcmp.eq.s32.totalorder %v2209, 1
    %vm2242 = vcmp.eq.s32.totalorder %v2210, 1
    %vm2243 = vcmp.eq.s32.totalorder %v2211, 1
    %vm2244 = vcmp.eq.s32.totalorder %v2212, 1
    %vm2245 = vcmp.eq.s32.totalorder %v2213, 1
    %vm2246 = vcmp.eq.s32.totalorder %v2214, 1
    %v2247 = vsel %vm2215, %v2151, 0.0
    %v2248 = vsel %vm2216, %v2152, 0.0
    %v2249 = vsel %vm2217, %v2153, 0.0
    %v2250 = vsel %vm2218, %v2154, 0.0
    %v2251 = vsel %vm2219, %v2155, 0.0
    %v2252 = vsel %vm2220, %v2156, 0.0
    %v2253 = vsel %vm2221, %v2157, 0.0
    %v2254 = vsel %vm2222, %v2158, 0.0
    %v2255 = vsel %vm2223, %v2159, 0.0
    %v2256 = vsel %vm2224, %v2160, 0.0
    %v2257 = vsel %vm2225, %v2161, 0.0
    %v2258 = vsel %vm2226, %v2162, 0.0
    %v2259 = vsel %vm2227, %v2163, 0.0
    %v2260 = vsel %vm2228, %v2164, 0.0
    %v2261 = vsel %vm2229, %v2165, 0.0
    %v2262 = vsel %vm2230, %v2166, 0.0
    %v2263 = vsel %vm2231, %v2167, 0.0
    %v2264 = vsel %vm2232, %v2168, 0.0
    %v2265 = vsel %vm2233, %v2169, 0.0
    %v2266 = vsel %vm2234, %v2170, 0.0
    %v2267 = vsel %vm2235, %v2171, 0.0
    %v2268 = vsel %vm2236, %v2172, 0.0
    %v2269 = vsel %vm2237, %v2173, 0.0
    %v2270 = vsel %vm2238, %v2174, 0.0
    %v2271 = vsel %vm2239, %v2175, 0.0
    %v2272 = vsel %vm2240, %v2176, 0.0
    %v2273 = vsel %vm2241, %v2177, 0.0
    %v2274 = vsel %vm2242, %v2178, 0.0
    %v2275 = vsel %vm2243, %v2179, 0.0
    %v2276 = vsel %vm2244, %v2180, 0.0
    %v2277 = vsel %vm2245, %v2181, 0.0
    %v2278 = vsel %vm2246, %v2182, 0.0
    %v2279 = vpack.c.bf16 %v2248, %v2247
    %v2280 = vpack.c.bf16 %v2250, %v2249
    %v2281 = vpack.c.bf16 %v2252, %v2251
    %v2282 = vpack.c.bf16 %v2254, %v2253
    %v2283 = vpack.c.bf16 %v2256, %v2255
    %v2284 = vpack.c.bf16 %v2258, %v2257
    %v2285 = vpack.c.bf16 %v2260, %v2259
    %v2286 = vpack.c.bf16 %v2262, %v2261
    %v2287 = vpack.c.bf16 %v2264, %v2263
    %v2288 = vpack.c.bf16 %v2266, %v2265
    %v2289 = vpack.c.bf16 %v2268, %v2267
    %v2290 = vpack.c.bf16 %v2270, %v2269
    %v2291 = vpack.c.bf16 %v2272, %v2271
    %v2292 = vpack.c.bf16 %v2274, %v2273
    %v2293 = vpack.c.bf16 %v2276, %v2275
    %v2294 = vpack.c.bf16 %v2278, %v2277
    %2295 = vst [vmem:[#allocation3 + $0x10] sm:$0xff] %v2279
    %2296 = vst [vmem:[#allocation3 + $0x58] sm:$0xff] %v2280
    %2297 = vst [vmem:[#allocation3 + $0xa0] sm:$0xff] %v2281
    %2298 = vst [vmem:[#allocation3 + $0xe8] sm:$0xff] %v2282
    %2299 = vst [vmem:[#allocation3 + $0x130] sm:$0xff] %v2283
    %2300 = vst [vmem:[#allocation3 + $0x178] sm:$0xff] %v2284
    %2301 = vst [vmem:[#allocation3 + $0x1c0] sm:$0xff] %v2285
    %2302 = vst [vmem:[#allocation3 + $0x208] sm:$0xff] %v2286
    %2303 = vst [vmem:[#allocation3 + $0x250] sm:$0xff] %v2287
    %2304 = vst [vmem:[#allocation3 + $0x298] sm:$0xff] %v2288
    %2305 = vst [vmem:[#allocation3 + $0x2e0] sm:$0xff] %v2289
    %2306 = vst [vmem:[#allocation3 + $0x328] sm:$0xff] %v2290
    %2307 = vst [vmem:[#allocation3 + $0x370] sm:$0xff] %v2291
    %2308 = vst [vmem:[#allocation3 + $0x3b8] sm:$0xff] %v2292
    %2309 = vst [vmem:[#allocation3 + $0x400] sm:$0xff] %v2293
    %2310 = vst [vmem:[#allocation3 + $0x448] sm:$0xff] %v2294
    %v2311 = vld [vmem:[#allocation2 + $0x131] sm:$0xff]
    %v2312 = vld [vmem:[#allocation2 + $0x139] sm:$0xff]
    %v2313 = vld [vmem:[#allocation2 + $0x141] sm:$0xff]
    %v2314 = vld [vmem:[#allocation2 + $0x149] sm:$0xff]
    %v2315 = vld [vmem:[#allocation2 + $0x151] sm:$0xff]
    %v2316 = vld [vmem:[#allocation2 + $0x159] sm:$0xff]
    %v2317 = vld [vmem:[#allocation2 + $0x161] sm:$0xff]
    %v2318 = vld [vmem:[#allocation2 + $0x169] sm:$0xff]
    %v2319 = vld [vmem:[#allocation2 + $0x171] sm:$0xff]
    %v2320 = vld [vmem:[#allocation2 + $0x179] sm:$0xff]
    %v2321 = vld [vmem:[#allocation2 + $0x181] sm:$0xff]
    %v2322 = vld [vmem:[#allocation2 + $0x189] sm:$0xff]
    %v2323 = vld [vmem:[#allocation2 + $0x191] sm:$0xff]
    %v2324 = vld [vmem:[#allocation2 + $0x199] sm:$0xff]
    %v2325 = vld [vmem:[#allocation2 + $0x1a1] sm:$0xff]
    %v2326 = vld [vmem:[#allocation2 + $0x1a9] sm:$0xff]
    %v2327 = vld [vmem:[#allocation2 + $0x1b1] sm:$0xff]
    %v2328 = vld [vmem:[#allocation2 + $0x1b9] sm:$0xff]
    %v2329 = vld [vmem:[#allocation2 + $0x1c1] sm:$0xff]
    %v2330 = vld [vmem:[#allocation2 + $0x1c9] sm:$0xff]
    %v2331 = vld [vmem:[#allocation2 + $0x1d1] sm:$0xff]
    %v2332 = vld [vmem:[#allocation2 + $0x1d9] sm:$0xff]
    %v2333 = vld [vmem:[#allocation2 + $0x1e1] sm:$0xff]
    %v2334 = vld [vmem:[#allocation2 + $0x1e9] sm:$0xff]
    %v2335 = vld [vmem:[#allocation2 + $0x1f1] sm:$0xff]
    %v2336 = vld [vmem:[#allocation2 + $0x1f9] sm:$0xff]
    %v2337 = vld [vmem:[#allocation2 + $0x201] sm:$0xff]
    %v2338 = vld [vmem:[#allocation2 + $0x209] sm:$0xff]
    %v2339 = vld [vmem:[#allocation2 + $0x211] sm:$0xff]
    %v2340 = vld [vmem:[#allocation2 + $0x219] sm:$0xff]
    %v2341 = vld [vmem:[#allocation2 + $0x221] sm:$0xff]
    %v2342 = vld [vmem:[#allocation2 + $0x229] sm:$0xff]
    %v2343 = vsel %vm2215, %v2311, 0.0
    %v2344 = vsel %vm2216, %v2312, 0.0
    %v2345 = vsel %vm2217, %v2313, 0.0
    %v2346 = vsel %vm2218, %v2314, 0.0
    %v2347 = vsel %vm2219, %v2315, 0.0
    %v2348 = vsel %vm2220, %v2316, 0.0
    %v2349 = vsel %vm2221, %v2317, 0.0
    %v2350 = vsel %vm2222, %v2318, 0.0
    %v2351 = vsel %vm2223, %v2319, 0.0
    %v2352 = vsel %vm2224, %v2320, 0.0
    %v2353 = vsel %vm2225, %v2321, 0.0
    %v2354 = vsel %vm2226, %v2322, 0.0
    %v2355 = vsel %vm2227, %v2323, 0.0
    %v2356 = vsel %vm2228, %v2324, 0.0
    %v2357 = vsel %vm2229, %v2325, 0.0
    %v2358 = vsel %vm2230, %v2326, 0.0
    %v2359 = vsel %vm2231, %v2327, 0.0
    %v2360 = vsel %vm2232, %v2328, 0.0
    %v2361 = vsel %vm2233, %v2329, 0.0
    %v2362 = vsel %vm2234, %v2330, 0.0
    %v2363 = vsel %vm2235, %v2331, 0.0
    %v2364 = vsel %vm2236, %v2332, 0.0
    %v2365 = vsel %vm2237, %v2333, 0.0
    %v2366 = vsel %vm2238, %v2334, 0.0
    %v2367 = vsel %vm2239, %v2335, 0.0
    %v2368 = vsel %vm2240, %v2336, 0.0
    %v2369 = vsel %vm2241, %v2337, 0.0
    %v2370 = vsel %vm2242, %v2338, 0.0
    %v2371 = vsel %vm2243, %v2339, 0.0
    %v2372 = vsel %vm2244, %v2340, 0.0
    %v2373 = vsel %vm2245, %v2341, 0.0
    %v2374 = vsel %vm2246, %v2342, 0.0
    %v2375 = vpack.c.bf16 %v2344, %v2343
    %v2376 = vpack.c.bf16 %v2346, %v2345
    %v2377 = vpack.c.bf16 %v2348, %v2347
    %v2378 = vpack.c.bf16 %v2350, %v2349
    %v2379 = vpack.c.bf16 %v2352, %v2351
    %v2380 = vpack.c.bf16 %v2354, %v2353
    %v2381 = vpack.c.bf16 %v2356, %v2355
    %v2382 = vpack.c.bf16 %v2358, %v2357
    %v2383 = vpack.c.bf16 %v2360, %v2359
    %v2384 = vpack.c.bf16 %v2362, %v2361
    %v2385 = vpack.c.bf16 %v2364, %v2363
    %v2386 = vpack.c.bf16 %v2366, %v2365
    %v2387 = vpack.c.bf16 %v2368, %v2367
    %v2388 = vpack.c.bf16 %v2370, %v2369
    %v2389 = vpack.c.bf16 %v2372, %v2371
    %v2390 = vpack.c.bf16 %v2374, %v2373
    %2391 = vst [vmem:[#allocation3 + $0x490] sm:$0xff] %v2375
    %2392 = vst [vmem:[#allocation3 + $0x4d8] sm:$0xff] %v2376
    %2393 = vst [vmem:[#allocation3 + $0x520] sm:$0xff] %v2377
    %2394 = vst [vmem:[#allocation3 + $0x568] sm:$0xff] %v2378
    %2395 = vst [vmem:[#allocation3 + $0x5b0] sm:$0xff] %v2379
    %2396 = vst [vmem:[#allocation3 + $0x5f8] sm:$0xff] %v2380
    %2397 = vst [vmem:[#allocation3 + $0x640] sm:$0xff] %v2381
    %2398 = vst [vmem:[#allocation3 + $0x688] sm:$0xff] %v2382
    %2399 = vst [vmem:[#allocation3 + $0x6d0] sm:$0xff] %v2383
    %2400 = vst [vmem:[#allocation3 + $0x718] sm:$0xff] %v2384
    %2401 = vst [vmem:[#allocation3 + $0x760] sm:$0xff] %v2385
    %2402 = vst [vmem:[#allocation3 + $0x7a8] sm:$0xff] %v2386
    %2403 = vst [vmem:[#allocation3 + $0x7f0] sm:$0xff] %v2387
    %2404 = vst [vmem:[#allocation3 + $0x838] sm:$0xff] %v2388
    %2405 = vst [vmem:[#allocation3 + $0x880] sm:$0xff] %v2389
    %2406 = vst [vmem:[#allocation3 + $0x8c8] sm:$0xff] %v2390
    %v2407 = vld [vmem:[#allocation2 + $0x1f] sm:$0xff]
    %v2408 = vld [vmem:[#allocation2 + $0x27] sm:$0xff]
    %v2409 = vld [vmem:[#allocation2 + $0x2f] sm:$0xff]
    %v2410 = vld [vmem:[#allocation2 + $0x37] sm:$0xff]
    %v2411 = vld [vmem:[#allocation2 + $0x3f] sm:$0xff]
    %v2412 = vld [vmem:[#allocation2 + $0x47] sm:$0xff]
    %v2413 = vld [vmem:[#allocation2 + $0x4f] sm:$0xff]
    %v2414 = vld [vmem:[#allocation2 + $0x57] sm:$0xff]
    %v2415 = vld [vmem:[#allocation2 + $0x5f] sm:$0xff]
    %v2416 = vld [vmem:[#allocation2 + $0x67] sm:$0xff]
    %v2417 = vld [vmem:[#allocation2 + $0x6f] sm:$0xff]
    %v2418 = vld [vmem:[#allocation2 + $0x77] sm:$0xff]
    %v2419 = vld [vmem:[#allocation2 + $0x7f] sm:$0xff]
    %v2420 = vld [vmem:[#allocation2 + $0x87] sm:$0xff]
    %v2421 = vld [vmem:[#allocation2 + $0x8f] sm:$0xff]
    %v2422 = vld [vmem:[#allocation2 + $0x97] sm:$0xff]
    %v2423 = vld [vmem:[#allocation2 + $0x9f] sm:$0xff]
    %v2424 = vld [vmem:[#allocation2 + $0xa7] sm:$0xff]
    %v2425 = vld [vmem:[#allocation2 + $0xaf] sm:$0xff]
    %v2426 = vld [vmem:[#allocation2 + $0xb7] sm:$0xff]
    %v2427 = vld [vmem:[#allocation2 + $0xbf] sm:$0xff]
    %v2428 = vld [vmem:[#allocation2 + $0xc7] sm:$0xff]
    %v2429 = vld [vmem:[#allocation2 + $0xcf] sm:$0xff]
    %v2430 = vld [vmem:[#allocation2 + $0xd7] sm:$0xff]
    %v2431 = vld [vmem:[#allocation2 + $0xdf] sm:$0xff]
    %v2432 = vld [vmem:[#allocation2 + $0xe7] sm:$0xff]
    %v2433 = vld [vmem:[#allocation2 + $0xef] sm:$0xff]
    %v2434 = vld [vmem:[#allocation2 + $0xf7] sm:$0xff]
    %v2435 = vld [vmem:[#allocation2 + $0xff] sm:$0xff]
    %v2436 = vld [vmem:[#allocation2 + $0x107] sm:$0xff]
    %v2437 = vld [vmem:[#allocation2 + $0x10f] sm:$0xff]
    %v2438 = vld [vmem:[#allocation2 + $0x117] sm:$0xff]
    %v2439 = vsel %vm1831, %v2407, 0.0
    %v2440 = vsel %vm1832, %v2408, 0.0
    %v2441 = vsel %vm1833, %v2409, 0.0
    %v2442 = vsel %vm1834, %v2410, 0.0
    %v2443 = vsel %vm1835, %v2411, 0.0
    %v2444 = vsel %vm1836, %v2412, 0.0
    %v2445 = vsel %vm1837, %v2413, 0.0
    %v2446 = vsel %vm1838, %v2414, 0.0
    %v2447 = vsel %vm1839, %v2415, 0.0
    %v2448 = vsel %vm1840, %v2416, 0.0
    %v2449 = vsel %vm1841, %v2417, 0.0
    %v2450 = vsel %vm1842, %v2418, 0.0
    %v2451 = vsel %vm1843, %v2419, 0.0
    %v2452 = vsel %vm1844, %v2420, 0.0
    %v2453 = vsel %vm1845, %v2421, 0.0
    %v2454 = vsel %vm1846, %v2422, 0.0
    %v2455 = vsel %vm1847, %v2423, 0.0
    %v2456 = vsel %vm1848, %v2424, 0.0
    %v2457 = vsel %vm1849, %v2425, 0.0
    %v2458 = vsel %vm1850, %v2426, 0.0
    %v2459 = vsel %vm1851, %v2427, 0.0
    %v2460 = vsel %vm1852, %v2428, 0.0
    %v2461 = vsel %vm1853, %v2429, 0.0
    %v2462 = vsel %vm1854, %v2430, 0.0
    %v2463 = vsel %vm1855, %v2431, 0.0
    %v2464 = vsel %vm1856, %v2432, 0.0
    %v2465 = vsel %vm1857, %v2433, 0.0
    %v2466 = vsel %vm1858, %v2434, 0.0
    %v2467 = vsel %vm1859, %v2435, 0.0
    %v2468 = vsel %vm1860, %v2436, 0.0
    %v2469 = vsel %vm1861, %v2437, 0.0
    %v2470 = vsel %vm1862, %v2438, 0.0
    %v2471 = vpack.c.bf16 %v2440, %v2439
    %v2472 = vpack.c.bf16 %v2442, %v2441
    %v2473 = vpack.c.bf16 %v2444, %v2443
    %v2474 = vpack.c.bf16 %v2446, %v2445
    %v2475 = vpack.c.bf16 %v2448, %v2447
    %v2476 = vpack.c.bf16 %v2450, %v2449
    %v2477 = vpack.c.bf16 %v2452, %v2451
    %v2478 = vpack.c.bf16 %v2454, %v2453
    %v2479 = vpack.c.bf16 %v2456, %v2455
    %v2480 = vpack.c.bf16 %v2458, %v2457
    %v2481 = vpack.c.bf16 %v2460, %v2459
    %v2482 = vpack.c.bf16 %v2462, %v2461
    %v2483 = vpack.c.bf16 %v2464, %v2463
    %v2484 = vpack.c.bf16 %v2466, %v2465
    %v2485 = vpack.c.bf16 %v2468, %v2467
    %v2486 = vpack.c.bf16 %v2470, %v2469
    %2487 = vst [vmem:[#allocation3 + $0x18] sm:$0xff] %v2471
    %2488 = vst [vmem:[#allocation3 + $0x60] sm:$0xff] %v2472
    %2489 = vst [vmem:[#allocation3 + $0xa8] sm:$0xff] %v2473
    %2490 = vst [vmem:[#allocation3 + $0xf0] sm:$0xff] %v2474
    %2491 = vst [vmem:[#allocation3 + $0x138] sm:$0xff] %v2475
    %2492 = vst [vmem:[#allocation3 + $0x180] sm:$0xff] %v2476
    %2493 = vst [vmem:[#allocation3 + $0x1c8] sm:$0xff] %v2477
    %2494 = vst [vmem:[#allocation3 + $0x210] sm:$0xff] %v2478
    %2495 = vst [vmem:[#allocation3 + $0x258] sm:$0xff] %v2479
    %2496 = vst [vmem:[#allocation3 + $0x2a0] sm:$0xff] %v2480
    %2497 = vst [vmem:[#allocation3 + $0x2e8] sm:$0xff] %v2481
    %2498 = vst [vmem:[#allocation3 + $0x330] sm:$0xff] %v2482
    %2499 = vst [vmem:[#allocation3 + $0x378] sm:$0xff] %v2483
    %2500 = vst [vmem:[#allocation3 + $0x3c0] sm:$0xff] %v2484
    %2501 = vst [vmem:[#allocation3 + $0x408] sm:$0xff] %v2485
    %2502 = vst [vmem:[#allocation3 + $0x450] sm:$0xff] %v2486
    %v2503 = vld [vmem:[#allocation2 + $0x13f] sm:$0xff]
    %v2504 = vld [vmem:[#allocation2 + $0x147] sm:$0xff]
    %v2505 = vld [vmem:[#allocation2 + $0x14f] sm:$0xff]
    %v2506 = vld [vmem:[#allocation2 + $0x157] sm:$0xff]
    %v2507 = vld [vmem:[#allocation2 + $0x15f] sm:$0xff]
    %v2508 = vld [vmem:[#allocation2 + $0x167] sm:$0xff]
    %v2509 = vld [vmem:[#allocation2 + $0x16f] sm:$0xff]
    %v2510 = vld [vmem:[#allocation2 + $0x177] sm:$0xff]
    %v2511 = vld [vmem:[#allocation2 + $0x17f] sm:$0xff]
    %v2512 = vld [vmem:[#allocation2 + $0x187] sm:$0xff]
    %v2513 = vld [vmem:[#allocation2 + $0x18f] sm:$0xff]
    %v2514 = vld [vmem:[#allocation2 + $0x197] sm:$0xff]
    %v2515 = vld [vmem:[#allocation2 + $0x19f] sm:$0xff]
    %v2516 = vld [vmem:[#allocation2 + $0x1a7] sm:$0xff]
    %v2517 = vld [vmem:[#allocation2 + $0x1af] sm:$0xff]
    %v2518 = vld [vmem:[#allocation2 + $0x1b7] sm:$0xff]
    %v2519 = vld [vmem:[#allocation2 + $0x1bf] sm:$0xff]
    %v2520 = vld [vmem:[#allocation2 + $0x1c7] sm:$0xff]
    %v2521 = vld [vmem:[#allocation2 + $0x1cf] sm:$0xff]
    %v2522 = vld [vmem:[#allocation2 + $0x1d7] sm:$0xff]
    %v2523 = vld [vmem:[#allocation2 + $0x1df] sm:$0xff]
    %v2524 = vld [vmem:[#allocation2 + $0x1e7] sm:$0xff]
    %v2525 = vld [vmem:[#allocation2 + $0x1ef] sm:$0xff]
    %v2526 = vld [vmem:[#allocation2 + $0x1f7] sm:$0xff]
    %v2527 = vld [vmem:[#allocation2 + $0x1ff] sm:$0xff]
    %v2528 = vld [vmem:[#allocation2 + $0x207] sm:$0xff]
    %v2529 = vld [vmem:[#allocation2 + $0x20f] sm:$0xff]
    %v2530 = vld [vmem:[#allocation2 + $0x217] sm:$0xff]
    %v2531 = vld [vmem:[#allocation2 + $0x21f] sm:$0xff]
    %v2532 = vld [vmem:[#allocation2 + $0x227] sm:$0xff]
    %v2533 = vld [vmem:[#allocation2 + $0x22f] sm:$0xff]
    %v2534 = vld [vmem:[#allocation2 + $0x237] sm:$0xff]
    %v2535 = vsel %vm1831, %v2503, 0.0
    %v2536 = vsel %vm1832, %v2504, 0.0
    %v2537 = vsel %vm1833, %v2505, 0.0
    %v2538 = vsel %vm1834, %v2506, 0.0
    %v2539 = vsel %vm1835, %v2507, 0.0
    %v2540 = vsel %vm1836, %v2508, 0.0
    %v2541 = vsel %vm1837, %v2509, 0.0
    %v2542 = vsel %vm1838, %v2510, 0.0
    %v2543 = vsel %vm1839, %v2511, 0.0
    %v2544 = vsel %vm1840, %v2512, 0.0
    %v2545 = vsel %vm1841, %v2513, 0.0
    %v2546 = vsel %vm1842, %v2514, 0.0
    %v2547 = vsel %vm1843, %v2515, 0.0
    %v2548 = vsel %vm1844, %v2516, 0.0
    %v2549 = vsel %vm1845, %v2517, 0.0
    %v2550 = vsel %vm1846, %v2518, 0.0
    %v2551 = vsel %vm1847, %v2519, 0.0
    %v2552 = vsel %vm1848, %v2520, 0.0
    %v2553 = vsel %vm1849, %v2521, 0.0
    %v2554 = vsel %vm1850, %v2522, 0.0
    %v2555 = vsel %vm1851, %v2523, 0.0
    %v2556 = vsel %vm1852, %v2524, 0.0
    %v2557 = vsel %vm1853, %v2525, 0.0
    %v2558 = vsel %vm1854, %v2526, 0.0
    %v2559 = vsel %vm1855, %v2527, 0.0
    %v2560 = vsel %vm1856, %v2528, 0.0
    %v2561 = vsel %vm1857, %v2529, 0.0
    %v2562 = vsel %vm1858, %v2530, 0.0
    %v2563 = vsel %vm1859, %v2531, 0.0
    %v2564 = vsel %vm1860, %v2532, 0.0
    %v2565 = vsel %vm1861, %v2533, 0.0
    %v2566 = vsel %vm1862, %v2534, 0.0
    %v2567 = vpack.c.bf16 %v2536, %v2535
    %v2568 = vpack.c.bf16 %v2538, %v2537
    %v2569 = vpack.c.bf16 %v2540, %v2539
    %v2570 = vpack.c.bf16 %v2542, %v2541
    %v2571 = vpack.c.bf16 %v2544, %v2543
    %v2572 = vpack.c.bf16 %v2546, %v2545
    %v2573 = vpack.c.bf16 %v2548, %v2547
    %v2574 = vpack.c.bf16 %v2550, %v2549
    %v2575 = vpack.c.bf16 %v2552, %v2551
    %v2576 = vpack.c.bf16 %v2554, %v2553
    %v2577 = vpack.c.bf16 %v2556, %v2555
    %v2578 = vpack.c.bf16 %v2558, %v2557
    %v2579 = vpack.c.bf16 %v2560, %v2559
    %v2580 = vpack.c.bf16 %v2562, %v2561
    %v2581 = vpack.c.bf16 %v2564, %v2563
    %v2582 = vpack.c.bf16 %v2566, %v2565
    %2583 = vst [vmem:[#allocation3 + $0x498] sm:$0xff] %v2567
    %2584 = vst [vmem:[#allocation3 + $0x4e0] sm:$0xff] %v2568
    %2585 = vst [vmem:[#allocation3 + $0x528] sm:$0xff] %v2569
    %2586 = vst [vmem:[#allocation3 + $0x570] sm:$0xff] %v2570
    %2587 = vst [vmem:[#allocation3 + $0x5b8] sm:$0xff] %v2571
    %2588 = vst [vmem:[#allocation3 + $0x600] sm:$0xff] %v2572
    %2589 = vst [vmem:[#allocation3 + $0x648] sm:$0xff] %v2573
    %2590 = vst [vmem:[#allocation3 + $0x690] sm:$0xff] %v2574
    %2591 = vst [vmem:[#allocation3 + $0x6d8] sm:$0xff] %v2575
    %2592 = vst [vmem:[#allocation3 + $0x720] sm:$0xff] %v2576
    %2593 = vst [vmem:[#allocation3 + $0x768] sm:$0xff] %v2577
    %2594 = vst [vmem:[#allocation3 + $0x7b0] sm:$0xff] %v2578
    %2595 = vst [vmem:[#allocation3 + $0x7f8] sm:$0xff] %v2579
    %2596 = vst [vmem:[#allocation3 + $0x840] sm:$0xff] %v2580
    %2597 = vst [vmem:[#allocation3 + $0x888] sm:$0xff] %v2581
    %2598 = vst [vmem:[#allocation3 + $0x8d0] sm:$0xff] %v2582
    %v2599 = vld [vmem:[#allocation2 + $0x20] sm:$0xff]
    %v2600 = vld [vmem:[#allocation2 + $0x28] sm:$0xff]
    %v2601 = vld [vmem:[#allocation2 + $0x30] sm:$0xff]
    %v2602 = vld [vmem:[#allocation2 + $0x38] sm:$0xff]
    %v2603 = vld [vmem:[#allocation2 + $0x40] sm:$0xff]
    %v2604 = vld [vmem:[#allocation2 + $0x48] sm:$0xff]
    %v2605 = vld [vmem:[#allocation2 + $0x50] sm:$0xff]
    %v2606 = vld [vmem:[#allocation2 + $0x58] sm:$0xff]
    %v2607 = vld [vmem:[#allocation2 + $0x60] sm:$0xff]
    %v2608 = vld [vmem:[#allocation2 + $0x68] sm:$0xff]
    %v2609 = vld [vmem:[#allocation2 + $0x70] sm:$0xff]
    %v2610 = vld [vmem:[#allocation2 + $0x78] sm:$0xff]
    %v2611 = vld [vmem:[#allocation2 + $0x80] sm:$0xff]
    %v2612 = vld [vmem:[#allocation2 + $0x88] sm:$0xff]
    %v2613 = vld [vmem:[#allocation2 + $0x90] sm:$0xff]
    %v2614 = vld [vmem:[#allocation2 + $0x98] sm:$0xff]
    %v2615 = vld [vmem:[#allocation2 + $0xa0] sm:$0xff]
    %v2616 = vld [vmem:[#allocation2 + $0xa8] sm:$0xff]
    %v2617 = vld [vmem:[#allocation2 + $0xb0] sm:$0xff]
    %v2618 = vld [vmem:[#allocation2 + $0xb8] sm:$0xff]
    %v2619 = vld [vmem:[#allocation2 + $0xc0] sm:$0xff]
    %v2620 = vld [vmem:[#allocation2 + $0xc8] sm:$0xff]
    %v2621 = vld [vmem:[#allocation2 + $0xd0] sm:$0xff]
    %v2622 = vld [vmem:[#allocation2 + $0xd8] sm:$0xff]
    %v2623 = vld [vmem:[#allocation2 + $0xe0] sm:$0xff]
    %v2624 = vld [vmem:[#allocation2 + $0xe8] sm:$0xff]
    %v2625 = vld [vmem:[#allocation2 + $0xf0] sm:$0xff]
    %v2626 = vld [vmem:[#allocation2 + $0xf8] sm:$0xff]
    %v2627 = vld [vmem:[#allocation2 + $0x100] sm:$0xff]
    %v2628 = vld [vmem:[#allocation2 + $0x108] sm:$0xff]
    %v2629 = vld [vmem:[#allocation2 + $0x110] sm:$0xff]
    %v2630 = vld [vmem:[#allocation2 + $0x118] sm:$0xff]
    %v2631 = vpack.c.bf16 %v2600, %v2599
    %v2632 = vpack.c.bf16 %v2602, %v2601
    %v2633 = vpack.c.bf16 %v2604, %v2603
    %v2634 = vpack.c.bf16 %v2606, %v2605
    %v2635 = vpack.c.bf16 %v2608, %v2607
    %v2636 = vpack.c.bf16 %v2610, %v2609
    %v2637 = vpack.c.bf16 %v2612, %v2611
    %v2638 = vpack.c.bf16 %v2614, %v2613
    %v2639 = vpack.c.bf16 %v2616, %v2615
    %v2640 = vpack.c.bf16 %v2618, %v2617
    %v2641 = vpack.c.bf16 %v2620, %v2619
    %v2642 = vpack.c.bf16 %v2622, %v2621
    %v2643 = vpack.c.bf16 %v2624, %v2623
    %v2644 = vpack.c.bf16 %v2626, %v2625
    %v2645 = vpack.c.bf16 %v2628, %v2627
    %v2646 = vpack.c.bf16 %v2630, %v2629
    %2647 = vst [vmem:[#allocation3 + $0x20] sm:$0xff] %v2631
    %2648 = vst [vmem:[#allocation3 + $0x68] sm:$0xff] %v2632
    %2649 = vst [vmem:[#allocation3 + $0xb0] sm:$0xff] %v2633
    %2650 = vst [vmem:[#allocation3 + $0xf8] sm:$0xff] %v2634
    %2651 = vst [vmem:[#allocation3 + $0x140] sm:$0xff] %v2635
    %2652 = vst [vmem:[#allocation3 + $0x188] sm:$0xff] %v2636
    %2653 = vst [vmem:[#allocation3 + $0x1d0] sm:$0xff] %v2637
    %2654 = vst [vmem:[#allocation3 + $0x218] sm:$0xff] %v2638
    %2655 = vst [vmem:[#allocation3 + $0x260] sm:$0xff] %v2639
    %2656 = vst [vmem:[#allocation3 + $0x2a8] sm:$0xff] %v2640
    %2657 = vst [vmem:[#allocation3 + $0x2f0] sm:$0xff] %v2641
    %2658 = vst [vmem:[#allocation3 + $0x338] sm:$0xff] %v2642
    %2659 = vst [vmem:[#allocation3 + $0x380] sm:$0xff] %v2643
    %2660 = vst [vmem:[#allocation3 + $0x3c8] sm:$0xff] %v2644
    %2661 = vst [vmem:[#allocation3 + $0x410] sm:$0xff] %v2645
    %2662 = vst [vmem:[#allocation3 + $0x458] sm:$0xff] %v2646
    %v2663 = vld [vmem:[#allocation2 + $0x140] sm:$0xff]
    %v2664 = vld [vmem:[#allocation2 + $0x148] sm:$0xff]
    %v2665 = vld [vmem:[#allocation2 + $0x150] sm:$0xff]
    %v2666 = vld [vmem:[#allocation2 + $0x158] sm:$0xff]
    %v2667 = vld [vmem:[#allocation2 + $0x160] sm:$0xff]
    %v2668 = vld [vmem:[#allocation2 + $0x168] sm:$0xff]
    %v2669 = vld [vmem:[#allocation2 + $0x170] sm:$0xff]
    %v2670 = vld [vmem:[#allocation2 + $0x178] sm:$0xff]
    %v2671 = vld [vmem:[#allocation2 + $0x180] sm:$0xff]
    %v2672 = vld [vmem:[#allocation2 + $0x188] sm:$0xff]
    %v2673 = vld [vmem:[#allocation2 + $0x190] sm:$0xff]
    %v2674 = vld [vmem:[#allocation2 + $0x198] sm:$0xff]
    %v2675 = vld [vmem:[#allocation2 + $0x1a0] sm:$0xff]
    %v2676 = vld [vmem:[#allocation2 + $0x1a8] sm:$0xff]
    %v2677 = vld [vmem:[#allocation2 + $0x1b0] sm:$0xff]
    %v2678 = vld [vmem:[#allocation2 + $0x1b8] sm:$0xff]
    %v2679 = vld [vmem:[#allocation2 + $0x1c0] sm:$0xff]
    %v2680 = vld [vmem:[#allocation2 + $0x1c8] sm:$0xff]
    %v2681 = vld [vmem:[#allocation2 + $0x1d0] sm:$0xff]
    %v2682 = vld [vmem:[#allocation2 + $0x1d8] sm:$0xff]
    %v2683 = vld [vmem:[#allocation2 + $0x1e0] sm:$0xff]
    %v2684 = vld [vmem:[#allocation2 + $0x1e8] sm:$0xff]
    %v2685 = vld [vmem:[#allocation2 + $0x1f0] sm:$0xff]
    %v2686 = vld [vmem:[#allocation2 + $0x1f8] sm:$0xff]
    %v2687 = vld [vmem:[#allocation2 + $0x200] sm:$0xff]
    %v2688 = vld [vmem:[#allocation2 + $0x208] sm:$0xff]
    %v2689 = vld [vmem:[#allocation2 + $0x210] sm:$0xff]
    %v2690 = vld [vmem:[#allocation2 + $0x218] sm:$0xff]
    %v2691 = vld [vmem:[#allocation2 + $0x220] sm:$0xff]
    %v2692 = vld [vmem:[#allocation2 + $0x228] sm:$0xff]
    %v2693 = vld [vmem:[#allocation2 + $0x230] sm:$0xff]
    %v2694 = vld [vmem:[#allocation2 + $0x238] sm:$0xff]
    %v2695 = vpack.c.bf16 %v2664, %v2663
    %v2696 = vpack.c.bf16 %v2666, %v2665
    %v2697 = vpack.c.bf16 %v2668, %v2667
    %v2698 = vpack.c.bf16 %v2670, %v2669
    %v2699 = vpack.c.bf16 %v2672, %v2671
    %v2700 = vpack.c.bf16 %v2674, %v2673
    %v2701 = vpack.c.bf16 %v2676, %v2675
    %v2702 = vpack.c.bf16 %v2678, %v2677
    %v2703 = vpack.c.bf16 %v2680, %v2679
    %v2704 = vpack.c.bf16 %v2682, %v2681
    %v2705 = vpack.c.bf16 %v2684, %v2683
    %v2706 = vpack.c.bf16 %v2686, %v2685
    %v2707 = vpack.c.bf16 %v2688, %v2687
    %v2708 = vpack.c.bf16 %v2690, %v2689
    %v2709 = vpack.c.bf16 %v2692, %v2691
    %v2710 = vpack.c.bf16 %v2694, %v2693
    %2711 = vst [vmem:[#allocation3 + $0x4a0] sm:$0xff] %v2695
    %2712 = vst [vmem:[#allocation3 + $0x4e8] sm:$0xff] %v2696
    %2713 = vst [vmem:[#allocation3 + $0x530] sm:$0xff] %v2697
    %2714 = vst [vmem:[#allocation3 + $0x578] sm:$0xff] %v2698
    %2715 = vst [vmem:[#allocation3 + $0x5c0] sm:$0xff] %v2699
    %2716 = vst [vmem:[#allocation3 + $0x608] sm:$0xff] %v2700
    %2717 = vst [vmem:[#allocation3 + $0x650] sm:$0xff] %v2701
    %2718 = vst [vmem:[#allocation3 + $0x698] sm:$0xff] %v2702
    %2719 = vst [vmem:[#allocation3 + $0x6e0] sm:$0xff] %v2703
    %2720 = vst [vmem:[#allocation3 + $0x728] sm:$0xff] %v2704
    %2721 = vst [vmem:[#allocation3 + $0x770] sm:$0xff] %v2705
    %2722 = vst [vmem:[#allocation3 + $0x7b8] sm:$0xff] %v2706
    %2723 = vst [vmem:[#allocation3 + $0x800] sm:$0xff] %v2707
    %2724 = vst [vmem:[#allocation3 + $0x848] sm:$0xff] %v2708
    %2725 = vst [vmem:[#allocation3 + $0x890] sm:$0xff] %v2709
    %2726 = vst [vmem:[#allocation3 + $0x8d8] sm:$0xff] %v2710
    %v2727 = vld [vmem:[#allocation2 + $0x21] sm:$0xff]
    %v2728 = vld [vmem:[#allocation2 + $0x29] sm:$0xff]
    %v2729 = vld [vmem:[#allocation2 + $0x31] sm:$0xff]
    %v2730 = vld [vmem:[#allocation2 + $0x39] sm:$0xff]
    %v2731 = vld [vmem:[#allocation2 + $0x41] sm:$0xff]
    %v2732 = vld [vmem:[#allocation2 + $0x49] sm:$0xff]
    %v2733 = vld [vmem:[#allocation2 + $0x51] sm:$0xff]
    %v2734 = vld [vmem:[#allocation2 + $0x59] sm:$0xff]
    %v2735 = vld [vmem:[#allocation2 + $0x61] sm:$0xff]
    %v2736 = vld [vmem:[#allocation2 + $0x69] sm:$0xff]
    %v2737 = vld [vmem:[#allocation2 + $0x71] sm:$0xff]
    %v2738 = vld [vmem:[#allocation2 + $0x79] sm:$0xff]
    %v2739 = vld [vmem:[#allocation2 + $0x81] sm:$0xff]
    %v2740 = vld [vmem:[#allocation2 + $0x89] sm:$0xff]
    %v2741 = vld [vmem:[#allocation2 + $0x91] sm:$0xff]
    %v2742 = vld [vmem:[#allocation2 + $0x99] sm:$0xff]
    %v2743 = vld [vmem:[#allocation2 + $0xa1] sm:$0xff]
    %v2744 = vld [vmem:[#allocation2 + $0xa9] sm:$0xff]
    %v2745 = vld [vmem:[#allocation2 + $0xb1] sm:$0xff]
    %v2746 = vld [vmem:[#allocation2 + $0xb9] sm:$0xff]
    %v2747 = vld [vmem:[#allocation2 + $0xc1] sm:$0xff]
    %v2748 = vld [vmem:[#allocation2 + $0xc9] sm:$0xff]
    %v2749 = vld [vmem:[#allocation2 + $0xd1] sm:$0xff]
    %v2750 = vld [vmem:[#allocation2 + $0xd9] sm:$0xff]
    %v2751 = vld [vmem:[#allocation2 + $0xe1] sm:$0xff]
    %v2752 = vld [vmem:[#allocation2 + $0xe9] sm:$0xff]
    %v2753 = vld [vmem:[#allocation2 + $0xf1] sm:$0xff]
    %v2754 = vld [vmem:[#allocation2 + $0xf9] sm:$0xff]
    %v2755 = vld [vmem:[#allocation2 + $0x101] sm:$0xff]
    %v2756 = vld [vmem:[#allocation2 + $0x109] sm:$0xff]
    %v2757 = vld [vmem:[#allocation2 + $0x111] sm:$0xff]
    %v2758 = vld [vmem:[#allocation2 + $0x119] sm:$0xff]
    %v2759 = vsel %vm2215, %v2727, 0.0
    %v2760 = vsel %vm2216, %v2728, 0.0
    %v2761 = vsel %vm2217, %v2729, 0.0
    %v2762 = vsel %vm2218, %v2730, 0.0
    %v2763 = vsel %vm2219, %v2731, 0.0
    %v2764 = vsel %vm2220, %v2732, 0.0
    %v2765 = vsel %vm2221, %v2733, 0.0
    %v2766 = vsel %vm2222, %v2734, 0.0
    %v2767 = vsel %vm2223, %v2735, 0.0
    %v2768 = vsel %vm2224, %v2736, 0.0
    %v2769 = vsel %vm2225, %v2737, 0.0
    %v2770 = vsel %vm2226, %v2738, 0.0
    %v2771 = vsel %vm2227, %v2739, 0.0
    %v2772 = vsel %vm2228, %v2740, 0.0
    %v2773 = vsel %vm2229, %v2741, 0.0
    %v2774 = vsel %vm2230, %v2742, 0.0
    %v2775 = vsel %vm2231, %v2743, 0.0
    %v2776 = vsel %vm2232, %v2744, 0.0
    %v2777 = vsel %vm2233, %v2745, 0.0
    %v2778 = vsel %vm2234, %v2746, 0.0
    %v2779 = vsel %vm2235, %v2747, 0.0
    %v2780 = vsel %vm2236, %v2748, 0.0
    %v2781 = vsel %vm2237, %v2749, 0.0
    %v2782 = vsel %vm2238, %v2750, 0.0
    %v2783 = vsel %vm2239, %v2751, 0.0
    %v2784 = vsel %vm2240, %v2752, 0.0
    %v2785 = vsel %vm2241, %v2753, 0.0
    %v2786 = vsel %vm2242, %v2754, 0.0
    %v2787 = vsel %vm2243, %v2755, 0.0
    %v2788 = vsel %vm2244, %v2756, 0.0
    %v2789 = vsel %vm2245, %v2757, 0.0
    %v2790 = vsel %vm2246, %v2758, 0.0
    %v2791 = vpack.c.bf16 %v2760, %v2759
    %v2792 = vpack.c.bf16 %v2762, %v2761
    %v2793 = vpack.c.bf16 %v2764, %v2763
    %v2794 = vpack.c.bf16 %v2766, %v2765
    %v2795 = vpack.c.bf16 %v2768, %v2767
    %v2796 = vpack.c.bf16 %v2770, %v2769
    %v2797 = vpack.c.bf16 %v2772, %v2771
    %v2798 = vpack.c.bf16 %v2774, %v2773
    %v2799 = vpack.c.bf16 %v2776, %v2775
    %v2800 = vpack.c.bf16 %v2778, %v2777
    %v2801 = vpack.c.bf16 %v2780, %v2779
    %v2802 = vpack.c.bf16 %v2782, %v2781
    %v2803 = vpack.c.bf16 %v2784, %v2783
    %v2804 = vpack.c.bf16 %v2786, %v2785
    %v2805 = vpack.c.bf16 %v2788, %v2787
    %v2806 = vpack.c.bf16 %v2790, %v2789
    %2807 = vst [vmem:[#allocation3 + $0x28] sm:$0xff] %v2791
    %2808 = vst [vmem:[#allocation3 + $0x70] sm:$0xff] %v2792
    %2809 = vst [vmem:[#allocation3 + $0xb8] sm:$0xff] %v2793
    %2810 = vst [vmem:[#allocation3 + $0x100] sm:$0xff] %v2794
    %2811 = vst [vmem:[#allocation3 + $0x148] sm:$0xff] %v2795
    %2812 = vst [vmem:[#allocation3 + $0x190] sm:$0xff] %v2796
    %2813 = vst [vmem:[#allocation3 + $0x1d8] sm:$0xff] %v2797
    %2814 = vst [vmem:[#allocation3 + $0x220] sm:$0xff] %v2798
    %2815 = vst [vmem:[#allocation3 + $0x268] sm:$0xff] %v2799
    %2816 = vst [vmem:[#allocation3 + $0x2b0] sm:$0xff] %v2800
    %2817 = vst [vmem:[#allocation3 + $0x2f8] sm:$0xff] %v2801
    %2818 = vst [vmem:[#allocation3 + $0x340] sm:$0xff] %v2802
    %2819 = vst [vmem:[#allocation3 + $0x388] sm:$0xff] %v2803
    %2820 = vst [vmem:[#allocation3 + $0x3d0] sm:$0xff] %v2804
    %2821 = vst [vmem:[#allocation3 + $0x418] sm:$0xff] %v2805
    %2822 = vst [vmem:[#allocation3 + $0x460] sm:$0xff] %v2806
    %v2823 = vld [vmem:[#allocation2 + $0x141] sm:$0xff]
    %v2824 = vld [vmem:[#allocation2 + $0x149] sm:$0xff]
    %v2825 = vld [vmem:[#allocation2 + $0x151] sm:$0xff]
    %v2826 = vld [vmem:[#allocation2 + $0x159] sm:$0xff]
    %v2827 = vld [vmem:[#allocation2 + $0x161] sm:$0xff]
    %v2828 = vld [vmem:[#allocation2 + $0x169] sm:$0xff]
    %v2829 = vld [vmem:[#allocation2 + $0x171] sm:$0xff]
    %v2830 = vld [vmem:[#allocation2 + $0x179] sm:$0xff]
    %v2831 = vld [vmem:[#allocation2 + $0x181] sm:$0xff]
    %v2832 = vld [vmem:[#allocation2 + $0x189] sm:$0xff]
    %v2833 = vld [vmem:[#allocation2 + $0x191] sm:$0xff]
    %v2834 = vld [vmem:[#allocation2 + $0x199] sm:$0xff]
    %v2835 = vld [vmem:[#allocation2 + $0x1a1] sm:$0xff]
    %v2836 = vld [vmem:[#allocation2 + $0x1a9] sm:$0xff]
    %v2837 = vld [vmem:[#allocation2 + $0x1b1] sm:$0xff]
    %v2838 = vld [vmem:[#allocation2 + $0x1b9] sm:$0xff]
    %v2839 = vld [vmem:[#allocation2 + $0x1c1] sm:$0xff]
    %v2840 = vld [vmem:[#allocation2 + $0x1c9] sm:$0xff]
    %v2841 = vld [vmem:[#allocation2 + $0x1d1] sm:$0xff]
    %v2842 = vld [vmem:[#allocation2 + $0x1d9] sm:$0xff]
    %v2843 = vld [vmem:[#allocation2 + $0x1e1] sm:$0xff]
    %v2844 = vld [vmem:[#allocation2 + $0x1e9] sm:$0xff]
    %v2845 = vld [vmem:[#allocation2 + $0x1f1] sm:$0xff]
    %v2846 = vld [vmem:[#allocation2 + $0x1f9] sm:$0xff]
    %v2847 = vld [vmem:[#allocation2 + $0x201] sm:$0xff]
    %v2848 = vld [vmem:[#allocation2 + $0x209] sm:$0xff]
    %v2849 = vld [vmem:[#allocation2 + $0x211] sm:$0xff]
    %v2850 = vld [vmem:[#allocation2 + $0x219] sm:$0xff]
    %v2851 = vld [vmem:[#allocation2 + $0x221] sm:$0xff]
    %v2852 = vld [vmem:[#allocation2 + $0x229] sm:$0xff]
    %v2853 = vld [vmem:[#allocation2 + $0x231] sm:$0xff]
    %v2854 = vld [vmem:[#allocation2 + $0x239] sm:$0xff]
    %v2855 = vsel %vm2215, %v2823, 0.0
    %v2856 = vsel %vm2216, %v2824, 0.0
    %v2857 = vsel %vm2217, %v2825, 0.0
    %v2858 = vsel %vm2218, %v2826, 0.0
    %v2859 = vsel %vm2219, %v2827, 0.0
    %v2860 = vsel %vm2220, %v2828, 0.0
    %v2861 = vsel %vm2221, %v2829, 0.0
    %v2862 = vsel %vm2222, %v2830, 0.0
    %v2863 = vsel %vm2223, %v2831, 0.0
    %v2864 = vsel %vm2224, %v2832, 0.0
    %v2865 = vsel %vm2225, %v2833, 0.0
    %v2866 = vsel %vm2226, %v2834, 0.0
    %v2867 = vsel %vm2227, %v2835, 0.0
    %v2868 = vsel %vm2228, %v2836, 0.0
    %v2869 = vsel %vm2229, %v2837, 0.0
    %v2870 = vsel %vm2230, %v2838, 0.0
    %v2871 = vsel %vm2231, %v2839, 0.0
    %v2872 = vsel %vm2232, %v2840, 0.0
    %v2873 = vsel %vm2233, %v2841, 0.0
    %v2874 = vsel %vm2234, %v2842, 0.0
    %v2875 = vsel %vm2235, %v2843, 0.0
    %v2876 = vsel %vm2236, %v2844, 0.0
    %v2877 = vsel %vm2237, %v2845, 0.0
    %v2878 = vsel %vm2238, %v2846, 0.0
    %v2879 = vsel %vm2239, %v2847, 0.0
    %v2880 = vsel %vm2240, %v2848, 0.0
    %v2881 = vsel %vm2241, %v2849, 0.0
    %v2882 = vsel %vm2242, %v2850, 0.0
    %v2883 = vsel %vm2243, %v2851, 0.0
    %v2884 = vsel %vm2244, %v2852, 0.0
    %v2885 = vsel %vm2245, %v2853, 0.0
    %v2886 = vsel %vm2246, %v2854, 0.0
    %v2887 = vpack.c.bf16 %v2856, %v2855
    %v2888 = vpack.c.bf16 %v2858, %v2857
    %v2889 = vpack.c.bf16 %v2860, %v2859
    %v2890 = vpack.c.bf16 %v2862, %v2861
    %v2891 = vpack.c.bf16 %v2864, %v2863
    %v2892 = vpack.c.bf16 %v2866, %v2865
    %v2893 = vpack.c.bf16 %v2868, %v2867
    %v2894 = vpack.c.bf16 %v2870, %v2869
    %v2895 = vpack.c.bf16 %v2872, %v2871
    %v2896 = vpack.c.bf16 %v2874, %v2873
    %v2897 = vpack.c.bf16 %v2876, %v2875
    %v2898 = vpack.c.bf16 %v2878, %v2877
    %v2899 = vpack.c.bf16 %v2880, %v2879
    %v2900 = vpack.c.bf16 %v2882, %v2881
    %v2901 = vpack.c.bf16 %v2884, %v2883
    %v2902 = vpack.c.bf16 %v2886, %v2885
    %2903 = vst [vmem:[#allocation3 + $0x4a8] sm:$0xff] %v2887
    %2904 = vst [vmem:[#allocation3 + $0x4f0] sm:$0xff] %v2888
    %2905 = vst [vmem:[#allocation3 + $0x538] sm:$0xff] %v2889
    %2906 = vst [vmem:[#allocation3 + $0x580] sm:$0xff] %v2890
    %2907 = vst [vmem:[#allocation3 + $0x5c8] sm:$0xff] %v2891
    %2908 = vst [vmem:[#allocation3 + $0x610] sm:$0xff] %v2892
    %2909 = vst [vmem:[#allocation3 + $0x658] sm:$0xff] %v2893
    %2910 = vst [vmem:[#allocation3 + $0x6a0] sm:$0xff] %v2894
    %2911 = vst [vmem:[#allocation3 + $0x6e8] sm:$0xff] %v2895
    %2912 = vst [vmem:[#allocation3 + $0x730] sm:$0xff] %v2896
    %2913 = vst [vmem:[#allocation3 + $0x778] sm:$0xff] %v2897
    %2914 = vst [vmem:[#allocation3 + $0x7c0] sm:$0xff] %v2898
    %2915 = vst [vmem:[#allocation3 + $0x808] sm:$0xff] %v2899
    %2916 = vst [vmem:[#allocation3 + $0x850] sm:$0xff] %v2900
    %2917 = vst [vmem:[#allocation3 + $0x898] sm:$0xff] %v2901
    %2918 = vst [vmem:[#allocation3 + $0x8e0] sm:$0xff] %v2902
    %v2919 = vld [vmem:[#allocation2 + $0x2f] sm:$0xff]
    %v2920 = vld [vmem:[#allocation2 + $0x37] sm:$0xff]
    %v2921 = vld [vmem:[#allocation2 + $0x3f] sm:$0xff]
    %v2922 = vld [vmem:[#allocation2 + $0x47] sm:$0xff]
    %v2923 = vld [vmem:[#allocation2 + $0x4f] sm:$0xff]
    %v2924 = vld [vmem:[#allocation2 + $0x57] sm:$0xff]
    %v2925 = vld [vmem:[#allocation2 + $0x5f] sm:$0xff]
    %v2926 = vld [vmem:[#allocation2 + $0x67] sm:$0xff]
    %v2927 = vld [vmem:[#allocation2 + $0x6f] sm:$0xff]
    %v2928 = vld [vmem:[#allocation2 + $0x77] sm:$0xff]
    %v2929 = vld [vmem:[#allocation2 + $0x7f] sm:$0xff]
    %v2930 = vld [vmem:[#allocation2 + $0x87] sm:$0xff]
    %v2931 = vld [vmem:[#allocation2 + $0x8f] sm:$0xff]
    %v2932 = vld [vmem:[#allocation2 + $0x97] sm:$0xff]
    %v2933 = vld [vmem:[#allocation2 + $0x9f] sm:$0xff]
    %v2934 = vld [vmem:[#allocation2 + $0xa7] sm:$0xff]
    %v2935 = vld [vmem:[#allocation2 + $0xaf] sm:$0xff]
    %v2936 = vld [vmem:[#allocation2 + $0xb7] sm:$0xff]
    %v2937 = vld [vmem:[#allocation2 + $0xbf] sm:$0xff]
    %v2938 = vld [vmem:[#allocation2 + $0xc7] sm:$0xff]
    %v2939 = vld [vmem:[#allocation2 + $0xcf] sm:$0xff]
    %v2940 = vld [vmem:[#allocation2 + $0xd7] sm:$0xff]
    %v2941 = vld [vmem:[#allocation2 + $0xdf] sm:$0xff]
    %v2942 = vld [vmem:[#allocation2 + $0xe7] sm:$0xff]
    %v2943 = vld [vmem:[#allocation2 + $0xef] sm:$0xff]
    %v2944 = vld [vmem:[#allocation2 + $0xf7] sm:$0xff]
    %v2945 = vld [vmem:[#allocation2 + $0xff] sm:$0xff]
    %v2946 = vld [vmem:[#allocation2 + $0x107] sm:$0xff]
    %v2947 = vld [vmem:[#allocation2 + $0x10f] sm:$0xff]
    %v2948 = vld [vmem:[#allocation2 + $0x117] sm:$0xff]
    %v2949 = vld [vmem:[#allocation2 + $0x11f] sm:$0xff]
    %v2950 = vld [vmem:[#allocation2 + $0x127] sm:$0xff]
    %v2951 = vsel %vm1831, %v2919, 0.0
    %v2952 = vsel %vm1832, %v2920, 0.0
    %v2953 = vsel %vm1833, %v2921, 0.0
    %v2954 = vsel %vm1834, %v2922, 0.0
    %v2955 = vsel %vm1835, %v2923, 0.0
    %v2956 = vsel %vm1836, %v2924, 0.0
    %v2957 = vsel %vm1837, %v2925, 0.0
    %v2958 = vsel %vm1838, %v2926, 0.0
    %v2959 = vsel %vm1839, %v2927, 0.0
    %v2960 = vsel %vm1840, %v2928, 0.0
    %v2961 = vsel %vm1841, %v2929, 0.0
    %v2962 = vsel %vm1842, %v2930, 0.0
    %v2963 = vsel %vm1843, %v2931, 0.0
    %v2964 = vsel %vm1844, %v2932, 0.0
    %v2965 = vsel %vm1845, %v2933, 0.0
    %v2966 = vsel %vm1846, %v2934, 0.0
    %v2967 = vsel %vm1847, %v2935, 0.0
    %v2968 = vsel %vm1848, %v2936, 0.0
    %v2969 = vsel %vm1849, %v2937, 0.0
    %v2970 = vsel %vm1850, %v2938, 0.0
    %v2971 = vsel %vm1851, %v2939, 0.0
    %v2972 = vsel %vm1852, %v2940, 0.0
    %v2973 = vsel %vm1853, %v2941, 0.0
    %v2974 = vsel %vm1854, %v2942, 0.0
    %v2975 = vsel %vm1855, %v2943, 0.0
    %v2976 = vsel %vm1856, %v2944, 0.0
    %v2977 = vsel %vm1857, %v2945, 0.0
    %v2978 = vsel %vm1858, %v2946, 0.0
    %v2979 = vsel %vm1859, %v2947, 0.0
    %v2980 = vsel %vm1860, %v2948, 0.0
    %v2981 = vsel %vm1861, %v2949, 0.0
    %v2982 = vsel %vm1862, %v2950, 0.0
    %v2983 = vpack.c.bf16 %v2952, %v2951
    %v2984 = vpack.c.bf16 %v2954, %v2953
    %v2985 = vpack.c.bf16 %v2956, %v2955
    %v2986 = vpack.c.bf16 %v2958, %v2957
    %v2987 = vpack.c.bf16 %v2960, %v2959
    %v2988 = vpack.c.bf16 %v2962, %v2961
    %v2989 = vpack.c.bf16 %v2964, %v2963
    %v2990 = vpack.c.bf16 %v2966, %v2965
    %v2991 = vpack.c.bf16 %v2968, %v2967
    %v2992 = vpack.c.bf16 %v2970, %v2969
    %v2993 = vpack.c.bf16 %v2972, %v2971
    %v2994 = vpack.c.bf16 %v2974, %v2973
    %v2995 = vpack.c.bf16 %v2976, %v2975
    %v2996 = vpack.c.bf16 %v2978, %v2977
    %v2997 = vpack.c.bf16 %v2980, %v2979
    %v2998 = vpack.c.bf16 %v2982, %v2981
    %2999 = vst [vmem:[#allocation3 + $0x30] sm:$0xff] %v2983
    %3000 = vst [vmem:[#allocation3 + $0x78] sm:$0xff] %v2984
    %3001 = vst [vmem:[#allocation3 + $0xc0] sm:$0xff] %v2985
    %3002 = vst [vmem:[#allocation3 + $0x108] sm:$0xff] %v2986
    %3003 = vst [vmem:[#allocation3 + $0x150] sm:$0xff] %v2987
    %3004 = vst [vmem:[#allocation3 + $0x198] sm:$0xff] %v2988
    %3005 = vst [vmem:[#allocation3 + $0x1e0] sm:$0xff] %v2989
    %3006 = vst [vmem:[#allocation3 + $0x228] sm:$0xff] %v2990
    %3007 = vst [vmem:[#allocation3 + $0x270] sm:$0xff] %v2991
    %3008 = vst [vmem:[#allocation3 + $0x2b8] sm:$0xff] %v2992
    %3009 = vst [vmem:[#allocation3 + $0x300] sm:$0xff] %v2993
    %3010 = vst [vmem:[#allocation3 + $0x348] sm:$0xff] %v2994
    %3011 = vst [vmem:[#allocation3 + $0x390] sm:$0xff] %v2995
    %3012 = vst [vmem:[#allocation3 + $0x3d8] sm:$0xff] %v2996
    %3013 = vst [vmem:[#allocation3 + $0x420] sm:$0xff] %v2997
    %3014 = vst [vmem:[#allocation3 + $0x468] sm:$0xff] %v2998
    %v3015 = vld [vmem:[#allocation2 + $0x14f] sm:$0xff]
    %v3016 = vld [vmem:[#allocation2 + $0x157] sm:$0xff]
    %v3017 = vld [vmem:[#allocation2 + $0x15f] sm:$0xff]
    %v3018 = vld [vmem:[#allocation2 + $0x167] sm:$0xff]
    %v3019 = vld [vmem:[#allocation2 + $0x16f] sm:$0xff]
    %v3020 = vld [vmem:[#allocation2 + $0x177] sm:$0xff]
    %v3021 = vld [vmem:[#allocation2 + $0x17f] sm:$0xff]
    %v3022 = vld [vmem:[#allocation2 + $0x187] sm:$0xff]
    %v3023 = vld [vmem:[#allocation2 + $0x18f] sm:$0xff]
    %v3024 = vld [vmem:[#allocation2 + $0x197] sm:$0xff]
    %v3025 = vld [vmem:[#allocation2 + $0x19f] sm:$0xff]
    %v3026 = vld [vmem:[#allocation2 + $0x1a7] sm:$0xff]
    %v3027 = vld [vmem:[#allocation2 + $0x1af] sm:$0xff]
    %v3028 = vld [vmem:[#allocation2 + $0x1b7] sm:$0xff]
    %v3029 = vld [vmem:[#allocation2 + $0x1bf] sm:$0xff]
    %v3030 = vld [vmem:[#allocation2 + $0x1c7] sm:$0xff]
    %v3031 = vld [vmem:[#allocation2 + $0x1cf] sm:$0xff]
    %v3032 = vld [vmem:[#allocation2 + $0x1d7] sm:$0xff]
    %v3033 = vld [vmem:[#allocation2 + $0x1df] sm:$0xff]
    %v3034 = vld [vmem:[#allocation2 + $0x1e7] sm:$0xff]
    %v3035 = vld [vmem:[#allocation2 + $0x1ef] sm:$0xff]
    %v3036 = vld [vmem:[#allocation2 + $0x1f7] sm:$0xff]
    %v3037 = vld [vmem:[#allocation2 + $0x1ff] sm:$0xff]
    %v3038 = vld [vmem:[#allocation2 + $0x207] sm:$0xff]
    %v3039 = vld [vmem:[#allocation2 + $0x20f] sm:$0xff]
    %v3040 = vld [vmem:[#allocation2 + $0x217] sm:$0xff]
    %v3041 = vld [vmem:[#allocation2 + $0x21f] sm:$0xff]
    %v3042 = vld [vmem:[#allocation2 + $0x227] sm:$0xff]
    %v3043 = vld [vmem:[#allocation2 + $0x22f] sm:$0xff]
    %v3044 = vld [vmem:[#allocation2 + $0x237] sm:$0xff]
    %v3045 = vld [vmem:[#allocation2 + $0x23f] sm:$0xff]
    %v3046 = vld [vmem:[#allocation2 + $0x247] sm:$0xff]
    %v3047 = vsel %vm1831, %v3015, 0.0
    %v3048 = vsel %vm1832, %v3016, 0.0
    %v3049 = vsel %vm1833, %v3017, 0.0
    %v3050 = vsel %vm1834, %v3018, 0.0
    %v3051 = vsel %vm1835, %v3019, 0.0
    %v3052 = vsel %vm1836, %v3020, 0.0
    %v3053 = vsel %vm1837, %v3021, 0.0
    %v3054 = vsel %vm1838, %v3022, 0.0
    %v3055 = vsel %vm1839, %v3023, 0.0
    %v3056 = vsel %vm1840, %v3024, 0.0
    %v3057 = vsel %vm1841, %v3025, 0.0
    %v3058 = vsel %vm1842, %v3026, 0.0
    %v3059 = vsel %vm1843, %v3027, 0.0
    %v3060 = vsel %vm1844, %v3028, 0.0
    %v3061 = vsel %vm1845, %v3029, 0.0
    %v3062 = vsel %vm1846, %v3030, 0.0
    %v3063 = vsel %vm1847, %v3031, 0.0
    %v3064 = vsel %vm1848, %v3032, 0.0
    %v3065 = vsel %vm1849, %v3033, 0.0
    %v3066 = vsel %vm1850, %v3034, 0.0
    %v3067 = vsel %vm1851, %v3035, 0.0
    %v3068 = vsel %vm1852, %v3036, 0.0
    %v3069 = vsel %vm1853, %v3037, 0.0
    %v3070 = vsel %vm1854, %v3038, 0.0
    %v3071 = vsel %vm1855, %v3039, 0.0
    %v3072 = vsel %vm1856, %v3040, 0.0
    %v3073 = vsel %vm1857, %v3041, 0.0
    %v3074 = vsel %vm1858, %v3042, 0.0
    %v3075 = vsel %vm1859, %v3043, 0.0
    %v3076 = vsel %vm1860, %v3044, 0.0
    %v3077 = vsel %vm1861, %v3045, 0.0
    %v3078 = vsel %vm1862, %v3046, 0.0
    %v3079 = vpack.c.bf16 %v3048, %v3047
    %v3080 = vpack.c.bf16 %v3050, %v3049
    %v3081 = vpack.c.bf16 %v3052, %v3051
    %v3082 = vpack.c.bf16 %v3054, %v3053
    %v3083 = vpack.c.bf16 %v3056, %v3055
    %v3084 = vpack.c.bf16 %v3058, %v3057
    %v3085 = vpack.c.bf16 %v3060, %v3059
    %v3086 = vpack.c.bf16 %v3062, %v3061
    %v3087 = vpack.c.bf16 %v3064, %v3063
    %v3088 = vpack.c.bf16 %v3066, %v3065
    %v3089 = vpack.c.bf16 %v3068, %v3067
    %v3090 = vpack.c.bf16 %v3070, %v3069
    %v3091 = vpack.c.bf16 %v3072, %v3071
    %v3092 = vpack.c.bf16 %v3074, %v3073
    %v3093 = vpack.c.bf16 %v3076, %v3075
    %v3094 = vpack.c.bf16 %v3078, %v3077
    %3095 = vst [vmem:[#allocation3 + $0x4b0] sm:$0xff] %v3079
    %3096 = vst [vmem:[#allocation3 + $0x4f8] sm:$0xff] %v3080
    %3097 = vst [vmem:[#allocation3 + $0x540] sm:$0xff] %v3081
    %3098 = vst [vmem:[#allocation3 + $0x588] sm:$0xff] %v3082
    %3099 = vst [vmem:[#allocation3 + $0x5d0] sm:$0xff] %v3083
    %3100 = vst [vmem:[#allocation3 + $0x618] sm:$0xff] %v3084
    %3101 = vst [vmem:[#allocation3 + $0x660] sm:$0xff] %v3085
    %3102 = vst [vmem:[#allocation3 + $0x6a8] sm:$0xff] %v3086
    %3103 = vst [vmem:[#allocation3 + $0x6f0] sm:$0xff] %v3087
    %3104 = vst [vmem:[#allocation3 + $0x738] sm:$0xff] %v3088
    %3105 = vst [vmem:[#allocation3 + $0x780] sm:$0xff] %v3089
    %3106 = vst [vmem:[#allocation3 + $0x7c8] sm:$0xff] %v3090
    %3107 = vst [vmem:[#allocation3 + $0x810] sm:$0xff] %v3091
    %3108 = vst [vmem:[#allocation3 + $0x858] sm:$0xff] %v3092
    %3109 = vst [vmem:[#allocation3 + $0x8a0] sm:$0xff] %v3093
    %3110 = vst [vmem:[#allocation3 + $0x8e8] sm:$0xff] %v3094
    %v3111 = vld [vmem:[#allocation2 + $0x30] sm:$0xff]
    %v3112 = vld [vmem:[#allocation2 + $0x38] sm:$0xff]
    %v3113 = vld [vmem:[#allocation2 + $0x40] sm:$0xff]
    %v3114 = vld [vmem:[#allocation2 + $0x48] sm:$0xff]
    %v3115 = vld [vmem:[#allocation2 + $0x50] sm:$0xff]
    %v3116 = vld [vmem:[#allocation2 + $0x58] sm:$0xff]
    %v3117 = vld [vmem:[#allocation2 + $0x60] sm:$0xff]
    %v3118 = vld [vmem:[#allocation2 + $0x68] sm:$0xff]
    %v3119 = vld [vmem:[#allocation2 + $0x70] sm:$0xff]
    %v3120 = vld [vmem:[#allocation2 + $0x78] sm:$0xff]
    %v3121 = vld [vmem:[#allocation2 + $0x80] sm:$0xff]
    %v3122 = vld [vmem:[#allocation2 + $0x88] sm:$0xff]
    %v3123 = vld [vmem:[#allocation2 + $0x90] sm:$0xff]
    %v3124 = vld [vmem:[#allocation2 + $0x98] sm:$0xff]
    %v3125 = vld [vmem:[#allocation2 + $0xa0] sm:$0xff]
    %v3126 = vld [vmem:[#allocation2 + $0xa8] sm:$0xff]
    %v3127 = vld [vmem:[#allocation2 + $0xb0] sm:$0xff]
    %v3128 = vld [vmem:[#allocation2 + $0xb8] sm:$0xff]
    %v3129 = vld [vmem:[#allocation2 + $0xc0] sm:$0xff]
    %v3130 = vld [vmem:[#allocation2 + $0xc8] sm:$0xff]
    %v3131 = vld [vmem:[#allocation2 + $0xd0] sm:$0xff]
    %v3132 = vld [vmem:[#allocation2 + $0xd8] sm:$0xff]
    %v3133 = vld [vmem:[#allocation2 + $0xe0] sm:$0xff]
    %v3134 = vld [vmem:[#allocation2 + $0xe8] sm:$0xff]
    %v3135 = vld [vmem:[#allocation2 + $0xf0] sm:$0xff]
    %v3136 = vld [vmem:[#allocation2 + $0xf8] sm:$0xff]
    %v3137 = vld [vmem:[#allocation2 + $0x100] sm:$0xff]
    %v3138 = vld [vmem:[#allocation2 + $0x108] sm:$0xff]
    %v3139 = vld [vmem:[#allocation2 + $0x110] sm:$0xff]
    %v3140 = vld [vmem:[#allocation2 + $0x118] sm:$0xff]
    %v3141 = vld [vmem:[#allocation2 + $0x120] sm:$0xff]
    %v3142 = vld [vmem:[#allocation2 + $0x128] sm:$0xff]
    %v3143 = vpack.c.bf16 %v3112, %v3111
    %v3144 = vpack.c.bf16 %v3114, %v3113
    %v3145 = vpack.c.bf16 %v3116, %v3115
    %v3146 = vpack.c.bf16 %v3118, %v3117
    %v3147 = vpack.c.bf16 %v3120, %v3119
    %v3148 = vpack.c.bf16 %v3122, %v3121
    %v3149 = vpack.c.bf16 %v3124, %v3123
    %v3150 = vpack.c.bf16 %v3126, %v3125
    %v3151 = vpack.c.bf16 %v3128, %v3127
    %v3152 = vpack.c.bf16 %v3130, %v3129
    %v3153 = vpack.c.bf16 %v3132, %v3131
    %v3154 = vpack.c.bf16 %v3134, %v3133
    %v3155 = vpack.c.bf16 %v3136, %v3135
    %v3156 = vpack.c.bf16 %v3138, %v3137
    %v3157 = vpack.c.bf16 %v3140, %v3139
    %v3158 = vpack.c.bf16 %v3142, %v3141
    %3159 = vst [vmem:[#allocation3 + $0x38] sm:$0xff] %v3143
    %3160 = vst [vmem:[#allocation3 + $0x80] sm:$0xff] %v3144
    %3161 = vst [vmem:[#allocation3 + $0xc8] sm:$0xff] %v3145
    %3162 = vst [vmem:[#allocation3 + $0x110] sm:$0xff] %v3146
    %3163 = vst [vmem:[#allocation3 + $0x158] sm:$0xff] %v3147
    %3164 = vst [vmem:[#allocation3 + $0x1a0] sm:$0xff] %v3148
    %3165 = vst [vmem:[#allocation3 + $0x1e8] sm:$0xff] %v3149
    %3166 = vst [vmem:[#allocation3 + $0x230] sm:$0xff] %v3150
    %3167 = vst [vmem:[#allocation3 + $0x278] sm:$0xff] %v3151
    %3168 = vst [vmem:[#allocation3 + $0x2c0] sm:$0xff] %v3152
    %3169 = vst [vmem:[#allocation3 + $0x308] sm:$0xff] %v3153
    %3170 = vst [vmem:[#allocation3 + $0x350] sm:$0xff] %v3154
    %3171 = vst [vmem:[#allocation3 + $0x398] sm:$0xff] %v3155
    %3172 = vst [vmem:[#allocation3 + $0x3e0] sm:$0xff] %v3156
    %3173 = vst [vmem:[#allocation3 + $0x428] sm:$0xff] %v3157
    %3174 = vst [vmem:[#allocation3 + $0x470] sm:$0xff] %v3158
    %v3175 = vld [vmem:[#allocation2 + $0x150] sm:$0xff]
    %v3176 = vld [vmem:[#allocation2 + $0x158] sm:$0xff]
    %v3177 = vld [vmem:[#allocation2 + $0x160] sm:$0xff]
    %v3178 = vld [vmem:[#allocation2 + $0x168] sm:$0xff]
    %v3179 = vld [vmem:[#allocation2 + $0x170] sm:$0xff]
    %v3180 = vld [vmem:[#allocation2 + $0x178] sm:$0xff]
    %v3181 = vld [vmem:[#allocation2 + $0x180] sm:$0xff]
    %v3182 = vld [vmem:[#allocation2 + $0x188] sm:$0xff]
    %v3183 = vld [vmem:[#allocation2 + $0x190] sm:$0xff]
    %v3184 = vld [vmem:[#allocation2 + $0x198] sm:$0xff]
    %v3185 = vld [vmem:[#allocation2 + $0x1a0] sm:$0xff]
    %v3186 = vld [vmem:[#allocation2 + $0x1a8] sm:$0xff]
    %v3187 = vld [vmem:[#allocation2 + $0x1b0] sm:$0xff]
    %v3188 = vld [vmem:[#allocation2 + $0x1b8] sm:$0xff]
    %v3189 = vld [vmem:[#allocation2 + $0x1c0] sm:$0xff]
    %v3190 = vld [vmem:[#allocation2 + $0x1c8] sm:$0xff]
    %v3191 = vld [vmem:[#allocation2 + $0x1d0] sm:$0xff]
    %v3192 = vld [vmem:[#allocation2 + $0x1d8] sm:$0xff]
    %v3193 = vld [vmem:[#allocation2 + $0x1e0] sm:$0xff]
    %v3194 = vld [vmem:[#allocation2 + $0x1e8] sm:$0xff]
    %v3195 = vld [vmem:[#allocation2 + $0x1f0] sm:$0xff]
    %v3196 = vld [vmem:[#allocation2 + $0x1f8] sm:$0xff]
    %v3197 = vld [vmem:[#allocation2 + $0x200] sm:$0xff]
    %v3198 = vld [vmem:[#allocation2 + $0x208] sm:$0xff]
    %v3199 = vld [vmem:[#allocation2 + $0x210] sm:$0xff]
    %v3200 = vld [vmem:[#allocation2 + $0x218] sm:$0xff]
    %v3201 = vld [vmem:[#allocation2 + $0x220] sm:$0xff]
    %v3202 = vld [vmem:[#allocation2 + $0x228] sm:$0xff]
    %v3203 = vld [vmem:[#allocation2 + $0x230] sm:$0xff]
    %v3204 = vld [vmem:[#allocation2 + $0x238] sm:$0xff]
    %v3205 = vld [vmem:[#allocation2 + $0x240] sm:$0xff]
    %v3206 = vld [vmem:[#allocation2 + $0x248] sm:$0xff]
    %v3207 = vpack.c.bf16 %v3176, %v3175
    %v3208 = vpack.c.bf16 %v3178, %v3177
    %v3209 = vpack.c.bf16 %v3180, %v3179
    %v3210 = vpack.c.bf16 %v3182, %v3181
    %v3211 = vpack.c.bf16 %v3184, %v3183
    %v3212 = vpack.c.bf16 %v3186, %v3185
    %v3213 = vpack.c.bf16 %v3188, %v3187
    %v3214 = vpack.c.bf16 %v3190, %v3189
    %v3215 = vpack.c.bf16 %v3192, %v3191
    %v3216 = vpack.c.bf16 %v3194, %v3193
    %v3217 = vpack.c.bf16 %v3196, %v3195
    %v3218 = vpack.c.bf16 %v3198, %v3197
    %v3219 = vpack.c.bf16 %v3200, %v3199
    %v3220 = vpack.c.bf16 %v3202, %v3201
    %v3221 = vpack.c.bf16 %v3204, %v3203
    %v3222 = vpack.c.bf16 %v3206, %v3205
    %3223 = vst [vmem:[#allocation3 + $0x4b8] sm:$0xff] %v3207
    %3224 = vst [vmem:[#allocation3 + $0x500] sm:$0xff] %v3208
    %3225 = vst [vmem:[#allocation3 + $0x548] sm:$0xff] %v3209
    %3226 = vst [vmem:[#allocation3 + $0x590] sm:$0xff] %v3210
    %3227 = vst [vmem:[#allocation3 + $0x5d8] sm:$0xff] %v3211
    %3228 = vst [vmem:[#allocation3 + $0x620] sm:$0xff] %v3212
    %3229 = vst [vmem:[#allocation3 + $0x668] sm:$0xff] %v3213
    %3230 = vst [vmem:[#allocation3 + $0x6b0] sm:$0xff] %v3214
    %3231 = vst [vmem:[#allocation3 + $0x6f8] sm:$0xff] %v3215
    %3232 = vst [vmem:[#allocation3 + $0x740] sm:$0xff] %v3216
    %3233 = vst [vmem:[#allocation3 + $0x788] sm:$0xff] %v3217
    %3234 = vst [vmem:[#allocation3 + $0x7d0] sm:$0xff] %v3218
    %3235 = vst [vmem:[#allocation3 + $0x818] sm:$0xff] %v3219
    %3236 = vst [vmem:[#allocation3 + $0x860] sm:$0xff] %v3220
    %3237 = vst [vmem:[#allocation3 + $0x8a8] sm:$0xff] %v3221
    %3238 = vst [vmem:[#allocation3 + $0x8f0] sm:$0xff] %v3222
    %v3239 = vld [vmem:[#allocation2 + $0x31] sm:$0xff]
    %v3240 = vld [vmem:[#allocation2 + $0x39] sm:$0xff]
    %v3241 = vld [vmem:[#allocation2 + $0x41] sm:$0xff]
    %v3242 = vld [vmem:[#allocation2 + $0x49] sm:$0xff]
    %v3243 = vld [vmem:[#allocation2 + $0x51] sm:$0xff]
    %v3244 = vld [vmem:[#allocation2 + $0x59] sm:$0xff]
    %v3245 = vld [vmem:[#allocation2 + $0x61] sm:$0xff]
    %v3246 = vld [vmem:[#allocation2 + $0x69] sm:$0xff]
    %v3247 = vld [vmem:[#allocation2 + $0x71] sm:$0xff]
    %v3248 = vld [vmem:[#allocation2 + $0x79] sm:$0xff]
    %v3249 = vld [vmem:[#allocation2 + $0x81] sm:$0xff]
    %v3250 = vld [vmem:[#allocation2 + $0x89] sm:$0xff]
    %v3251 = vld [vmem:[#allocation2 + $0x91] sm:$0xff]
    %v3252 = vld [vmem:[#allocation2 + $0x99] sm:$0xff]
    %v3253 = vld [vmem:[#allocation2 + $0xa1] sm:$0xff]
    %v3254 = vld [vmem:[#allocation2 + $0xa9] sm:$0xff]
    %v3255 = vld [vmem:[#allocation2 + $0xb1] sm:$0xff]
    %v3256 = vld [vmem:[#allocation2 + $0xb9] sm:$0xff]
    %v3257 = vld [vmem:[#allocation2 + $0xc1] sm:$0xff]
    %v3258 = vld [vmem:[#allocation2 + $0xc9] sm:$0xff]
    %v3259 = vld [vmem:[#allocation2 + $0xd1] sm:$0xff]
    %v3260 = vld [vmem:[#allocation2 + $0xd9] sm:$0xff]
    %v3261 = vld [vmem:[#allocation2 + $0xe1] sm:$0xff]
    %v3262 = vld [vmem:[#allocation2 + $0xe9] sm:$0xff]
    %v3263 = vld [vmem:[#allocation2 + $0xf1] sm:$0xff]
    %v3264 = vld [vmem:[#allocation2 + $0xf9] sm:$0xff]
    %v3265 = vld [vmem:[#allocation2 + $0x101] sm:$0xff]
    %v3266 = vld [vmem:[#allocation2 + $0x109] sm:$0xff]
    %v3267 = vld [vmem:[#allocation2 + $0x111] sm:$0xff]
    %v3268 = vld [vmem:[#allocation2 + $0x119] sm:$0xff]
    %v3269 = vld [vmem:[#allocation2 + $0x121] sm:$0xff]
    %v3270 = vld [vmem:[#allocation2 + $0x129] sm:$0xff]
    %v3271 = vsel %vm2215, %v3239, 0.0
    %v3272 = vsel %vm2216, %v3240, 0.0
    %v3273 = vsel %vm2217, %v3241, 0.0
    %v3274 = vsel %vm2218, %v3242, 0.0
    %v3275 = vsel %vm2219, %v3243, 0.0
    %v3276 = vsel %vm2220, %v3244, 0.0
    %v3277 = vsel %vm2221, %v3245, 0.0
    %v3278 = vsel %vm2222, %v3246, 0.0
    %v3279 = vsel %vm2223, %v3247, 0.0
    %v3280 = vsel %vm2224, %v3248, 0.0
    %v3281 = vsel %vm2225, %v3249, 0.0
    %v3282 = vsel %vm2226, %v3250, 0.0
    %v3283 = vsel %vm2227, %v3251, 0.0
    %v3284 = vsel %vm2228, %v3252, 0.0
    %v3285 = vsel %vm2229, %v3253, 0.0
    %v3286 = vsel %vm2230, %v3254, 0.0
    %v3287 = vsel %vm2231, %v3255, 0.0
    %v3288 = vsel %vm2232, %v3256, 0.0
    %v3289 = vsel %vm2233, %v3257, 0.0
    %v3290 = vsel %vm2234, %v3258, 0.0
    %v3291 = vsel %vm2235, %v3259, 0.0
    %v3292 = vsel %vm2236, %v3260, 0.0
    %v3293 = vsel %vm2237, %v3261, 0.0
    %v3294 = vsel %vm2238, %v3262, 0.0
    %v3295 = vsel %vm2239, %v3263, 0.0
    %v3296 = vsel %vm2240, %v3264, 0.0
    %v3297 = vsel %vm2241, %v3265, 0.0
    %v3298 = vsel %vm2242, %v3266, 0.0
    %v3299 = vsel %vm2243, %v3267, 0.0
    %v3300 = vsel %vm2244, %v3268, 0.0
    %v3301 = vsel %vm2245, %v3269, 0.0
    %v3302 = vsel %vm2246, %v3270, 0.0
    %v3303 = vpack.c.bf16 %v3272, %v3271
    %v3304 = vpack.c.bf16 %v3274, %v3273
    %v3305 = vpack.c.bf16 %v3276, %v3275
    %v3306 = vpack.c.bf16 %v3278, %v3277
    %v3307 = vpack.c.bf16 %v3280, %v3279
    %v3308 = vpack.c.bf16 %v3282, %v3281
    %v3309 = vpack.c.bf16 %v3284, %v3283
    %v3310 = vpack.c.bf16 %v3286, %v3285
    %v3311 = vpack.c.bf16 %v3288, %v3287
    %v3312 = vpack.c.bf16 %v3290, %v3289
    %v3313 = vpack.c.bf16 %v3292, %v3291
    %v3314 = vpack.c.bf16 %v3294, %v3293
    %v3315 = vpack.c.bf16 %v3296, %v3295
    %v3316 = vpack.c.bf16 %v3298, %v3297
    %v3317 = vpack.c.bf16 %v3300, %v3299
    %v3318 = vpack.c.bf16 %v3302, %v3301
    %3319 = vst [vmem:[#allocation3 + $0x40] sm:$0xff] %v3303
    %3320 = vst [vmem:[#allocation3 + $0x88] sm:$0xff] %v3304
    %3321 = vst [vmem:[#allocation3 + $0xd0] sm:$0xff] %v3305
    %3322 = vst [vmem:[#allocation3 + $0x118] sm:$0xff] %v3306
    %3323 = vst [vmem:[#allocation3 + $0x160] sm:$0xff] %v3307
    %3324 = vst [vmem:[#allocation3 + $0x1a8] sm:$0xff] %v3308
    %3325 = vst [vmem:[#allocation3 + $0x1f0] sm:$0xff] %v3309
    %3326 = vst [vmem:[#allocation3 + $0x238] sm:$0xff] %v3310
    %3327 = vst [vmem:[#allocation3 + $0x280] sm:$0xff] %v3311
    %3328 = vst [vmem:[#allocation3 + $0x2c8] sm:$0xff] %v3312
    %3329 = vst [vmem:[#allocation3 + $0x310] sm:$0xff] %v3313
    %3330 = vst [vmem:[#allocation3 + $0x358] sm:$0xff] %v3314
    %3331 = vst [vmem:[#allocation3 + $0x3a0] sm:$0xff] %v3315
    %3332 = vst [vmem:[#allocation3 + $0x3e8] sm:$0xff] %v3316
    %3333 = vst [vmem:[#allocation3 + $0x430] sm:$0xff] %v3317
    %3334 = vst [vmem:[#allocation3 + $0x478] sm:$0xff] %v3318
    %v3335 = vld [vmem:[#allocation2 + $0x151] sm:$0xff]
    %v3336 = vld [vmem:[#allocation2 + $0x159] sm:$0xff]
    %v3337 = vld [vmem:[#allocation2 + $0x161] sm:$0xff]
    %v3338 = vld [vmem:[#allocation2 + $0x169] sm:$0xff]
    %v3339 = vld [vmem:[#allocation2 + $0x171] sm:$0xff]
    %v3340 = vld [vmem:[#allocation2 + $0x179] sm:$0xff]
    %v3341 = vld [vmem:[#allocation2 + $0x181] sm:$0xff]
    %v3342 = vld [vmem:[#allocation2 + $0x189] sm:$0xff]
    %v3343 = vld [vmem:[#allocation2 + $0x191] sm:$0xff]
    %v3344 = vld [vmem:[#allocation2 + $0x199] sm:$0xff]
    %v3345 = vld [vmem:[#allocation2 + $0x1a1] sm:$0xff]
    %v3346 = vld [vmem:[#allocation2 + $0x1a9] sm:$0xff]
    %v3347 = vld [vmem:[#allocation2 + $0x1b1] sm:$0xff]
    %v3348 = vld [vmem:[#allocation2 + $0x1b9] sm:$0xff]
    %v3349 = vld [vmem:[#allocation2 + $0x1c1] sm:$0xff]
    %v3350 = vld [vmem:[#allocation2 + $0x1c9] sm:$0xff]
    %v3351 = vld [vmem:[#allocation2 + $0x1d1] sm:$0xff]
    %v3352 = vld [vmem:[#allocation2 + $0x1d9] sm:$0xff]
    %v3353 = vld [vmem:[#allocation2 + $0x1e1] sm:$0xff]
    %v3354 = vld [vmem:[#allocation2 + $0x1e9] sm:$0xff]
    %v3355 = vld [vmem:[#allocation2 + $0x1f1] sm:$0xff]
    %v3356 = vld [vmem:[#allocation2 + $0x1f9] sm:$0xff]
    %v3357 = vld [vmem:[#allocation2 + $0x201] sm:$0xff]
    %v3358 = vld [vmem:[#allocation2 + $0x209] sm:$0xff]
    %v3359 = vld [vmem:[#allocation2 + $0x211] sm:$0xff]
    %v3360 = vld [vmem:[#allocation2 + $0x219] sm:$0xff]
    %v3361 = vld [vmem:[#allocation2 + $0x221] sm:$0xff]
    %v3362 = vld [vmem:[#allocation2 + $0x229] sm:$0xff]
    %v3363 = vld [vmem:[#allocation2 + $0x231] sm:$0xff]
    %v3364 = vld [vmem:[#allocation2 + $0x239] sm:$0xff]
    %v3365 = vld [vmem:[#allocation2 + $0x241] sm:$0xff]
    %v3366 = vld [vmem:[#allocation2 + $0x249] sm:$0xff]
    %v3367 = vsel %vm2215, %v3335, 0.0
    %v3368 = vsel %vm2216, %v3336, 0.0
    %v3369 = vsel %vm2217, %v3337, 0.0
    %v3370 = vsel %vm2218, %v3338, 0.0
    %v3371 = vsel %vm2219, %v3339, 0.0
    %v3372 = vsel %vm2220, %v3340, 0.0
    %v3373 = vsel %vm2221, %v3341, 0.0
    %v3374 = vsel %vm2222, %v3342, 0.0
    %v3375 = vsel %vm2223, %v3343, 0.0
    %v3376 = vsel %vm2224, %v3344, 0.0
    %v3377 = vsel %vm2225, %v3345, 0.0
    %v3378 = vsel %vm2226, %v3346, 0.0
    %v3379 = vsel %vm2227, %v3347, 0.0
    %v3380 = vsel %vm2228, %v3348, 0.0
    %v3381 = vsel %vm2229, %v3349, 0.0
    %v3382 = vsel %vm2230, %v3350, 0.0
    %v3383 = vsel %vm2231, %v3351, 0.0
    %v3384 = vsel %vm2232, %v3352, 0.0
    %v3385 = vsel %vm2233, %v3353, 0.0
    %v3386 = vsel %vm2234, %v3354, 0.0
    %v3387 = vsel %vm2235, %v3355, 0.0
    %v3388 = vsel %vm2236, %v3356, 0.0
    %v3389 = vsel %vm2237, %v3357, 0.0
    %v3390 = vsel %vm2238, %v3358, 0.0
    %v3391 = vsel %vm2239, %v3359, 0.0
    %v3392 = vsel %vm2240, %v3360, 0.0
    %v3393 = vsel %vm2241, %v3361, 0.0
    %v3394 = vsel %vm2242, %v3362, 0.0
    %v3395 = vsel %vm2243, %v3363, 0.0
    %v3396 = vsel %vm2244, %v3364, 0.0
    %v3397 = vsel %vm2245, %v3365, 0.0
    %v3398 = vsel %vm2246, %v3366, 0.0
    %v3399 = vpack.c.bf16 %v3368, %v3367
    %v3400 = vpack.c.bf16 %v3370, %v3369
    %v3401 = vpack.c.bf16 %v3372, %v3371
    %v3402 = vpack.c.bf16 %v3374, %v3373
    %v3403 = vpack.c.bf16 %v3376, %v3375
    %v3404 = vpack.c.bf16 %v3378, %v3377
    %v3405 = vpack.c.bf16 %v3380, %v3379
    %v3406 = vpack.c.bf16 %v3382, %v3381
    %v3407 = vpack.c.bf16 %v3384, %v3383
    %v3408 = vpack.c.bf16 %v3386, %v3385
    %v3409 = vpack.c.bf16 %v3388, %v3387
    %v3410 = vpack.c.bf16 %v3390, %v3389
    %v3411 = vpack.c.bf16 %v3392, %v3391
    %v3412 = vpack.c.bf16 %v3394, %v3393
    %v3413 = vpack.c.bf16 %v3396, %v3395
    %v3414 = vpack.c.bf16 %v3398, %v3397
    %3415 = vst [vmem:[#allocation3 + $0x4c0] sm:$0xff] %v3399
    %3416 = vst [vmem:[#allocation3 + $0x508] sm:$0xff] %v3400
    %3417 = vst [vmem:[#allocation3 + $0x550] sm:$0xff] %v3401
    %3418 = vst [vmem:[#allocation3 + $0x598] sm:$0xff] %v3402
    %3419 = vst [vmem:[#allocation3 + $0x5e0] sm:$0xff] %v3403
    %3420 = vst [vmem:[#allocation3 + $0x628] sm:$0xff] %v3404
    %3421 = vst [vmem:[#allocation3 + $0x670] sm:$0xff] %v3405
    %3422 = vst [vmem:[#allocation3 + $0x6b8] sm:$0xff] %v3406
    %3423 = vst [vmem:[#allocation3 + $0x700] sm:$0xff] %v3407
    %3424 = vst [vmem:[#allocation3 + $0x748] sm:$0xff] %v3408
    %3425 = vst [vmem:[#allocation3 + $0x790] sm:$0xff] %v3409
    %3426 = vst [vmem:[#allocation3 + $0x7d8] sm:$0xff] %v3410
    %3427 = vst [vmem:[#allocation3 + $0x820] sm:$0xff] %v3411
    %3428 = vst [vmem:[#allocation3 + $0x868] sm:$0xff] %v3412
    %3429 = vst [vmem:[#allocation3 + $0x8b0] sm:$0xff] %v3413
    %3430 = vst [vmem:[#allocation3 + $0x8f8] sm:$0xff] %v3414
    %v3431 = vld [vmem:[#allocation3] sm:$0xff]
    %v3432 = vld [vmem:[#allocation3 + $0x8] sm:$0xff]
    %v3433 = vld [vmem:[#allocation3 + $0x10] sm:$0xff]
    %v3434 = vld [vmem:[#allocation3 + $0x18] sm:$0xff]
    %v3435 = vld [vmem:[#allocation3 + $0x20] sm:$0xff]
    %v3436 = vld [vmem:[#allocation3 + $0x28] sm:$0xff]
    %v3437 = vld [vmem:[#allocation3 + $0x30] sm:$0xff]
    %v3438 = vld [vmem:[#allocation3 + $0x38] sm:$0xff]
    %v3439 = vld [vmem:[#allocation3 + $0x40] sm:$0xff]
    %v3440 = vld [vmem:[#allocation3 + $0x48] sm:$0xff]
    %v3441 = vld [vmem:[#allocation3 + $0x50] sm:$0xff]
    %v3442 = vld [vmem:[#allocation3 + $0x58] sm:$0xff]
    %v3443 = vld [vmem:[#allocation3 + $0x60] sm:$0xff]
    %v3444 = vld [vmem:[#allocation3 + $0x68] sm:$0xff]
    %v3445 = vld [vmem:[#allocation3 + $0x70] sm:$0xff]
    %v3446 = vld [vmem:[#allocation3 + $0x78] sm:$0xff]
    %v3447 = vld [vmem:[#allocation3 + $0x80] sm:$0xff]
    %v3448 = vld [vmem:[#allocation3 + $0x88] sm:$0xff]
    %v3449 = vld [vmem:[#allocation3 + $0x90] sm:$0xff]
    %v3450 = vld [vmem:[#allocation3 + $0x98] sm:$0xff]
    %v3451 = vld [vmem:[#allocation3 + $0xa0] sm:$0xff]
    %v3452 = vld [vmem:[#allocation3 + $0xa8] sm:$0xff]
    %v3453 = vld [vmem:[#allocation3 + $0xb0] sm:$0xff]
    %v3454 = vld [vmem:[#allocation3 + $0xb8] sm:$0xff]
    %v3455 = vld [vmem:[#allocation3 + $0xc0] sm:$0xff]
    %v3456 = vld [vmem:[#allocation3 + $0xc8] sm:$0xff]
    %v3457 = vld [vmem:[#allocation3 + $0xd0] sm:$0xff]
    %v3458 = vld [vmem:[#allocation3 + $0xd8] sm:$0xff]
    %v3459 = vld [vmem:[#allocation3 + $0xe0] sm:$0xff]
    %v3460 = vld [vmem:[#allocation3 + $0xe8] sm:$0xff]
    %v3461 = vld [vmem:[#allocation3 + $0xf0] sm:$0xff]
    %v3462 = vld [vmem:[#allocation3 + $0xf8] sm:$0xff]
    %v3463 = vld [vmem:[#allocation3 + $0x100] sm:$0xff]
    %v3464 = vld [vmem:[#allocation3 + $0x108] sm:$0xff]
    %v3465 = vld [vmem:[#allocation3 + $0x110] sm:$0xff]
    %v3466 = vld [vmem:[#allocation3 + $0x118] sm:$0xff]
    %v3467 = vld [vmem:[#allocation3 + $0x120] sm:$0xff]
    %v3468 = vld [vmem:[#allocation3 + $0x128] sm:$0xff]
    %v3469 = vld [vmem:[#allocation3 + $0x130] sm:$0xff]
    %v3470 = vld [vmem:[#allocation3 + $0x138] sm:$0xff]
    %v3471 = vld [vmem:[#allocation3 + $0x140] sm:$0xff]
    %v3472 = vld [vmem:[#allocation3 + $0x148] sm:$0xff]
    %v3473 = vld [vmem:[#allocation3 + $0x150] sm:$0xff]
    %v3474 = vld [vmem:[#allocation3 + $0x158] sm:$0xff]
    %v3475 = vld [vmem:[#allocation3 + $0x160] sm:$0xff]
    %v3476 = vld [vmem:[#allocation3 + $0x168] sm:$0xff]
    %v3477 = vld [vmem:[#allocation3 + $0x170] sm:$0xff]
    %v3478 = vld [vmem:[#allocation3 + $0x178] sm:$0xff]
    %v3479 = vld [vmem:[#allocation3 + $0x180] sm:$0xff]
    %v3480 = vld [vmem:[#allocation3 + $0x188] sm:$0xff]
    %v3481 = vld [vmem:[#allocation3 + $0x190] sm:$0xff]
    %v3482 = vld [vmem:[#allocation3 + $0x198] sm:$0xff]
    %v3483 = vld [vmem:[#allocation3 + $0x1a0] sm:$0xff]
    %v3484 = vld [vmem:[#allocation3 + $0x1a8] sm:$0xff]
    %v3485 = vld [vmem:[#allocation3 + $0x1b0] sm:$0xff]
    %v3486 = vld [vmem:[#allocation3 + $0x1b8] sm:$0xff]
    %v3487 = vld [vmem:[#allocation3 + $0x1c0] sm:$0xff]
    %v3488 = vld [vmem:[#allocation3 + $0x1c8] sm:$0xff]
    %v3489 = vld [vmem:[#allocation3 + $0x1d0] sm:$0xff]
    %v3490 = vld [vmem:[#allocation3 + $0x1d8] sm:$0xff]
    %v3491 = vld [vmem:[#allocation3 + $0x1e0] sm:$0xff]
    %v3492 = vld [vmem:[#allocation3 + $0x1e8] sm:$0xff]
    %v3493 = vld [vmem:[#allocation3 + $0x1f0] sm:$0xff]
    %v3494 = vld [vmem:[#allocation3 + $0x1f8] sm:$0xff]
    %v3495 = vld [vmem:[#allocation3 + $0x200] sm:$0xff]
    %v3496 = vld [vmem:[#allocation3 + $0x208] sm:$0xff]
    %v3497 = vld [vmem:[#allocation3 + $0x210] sm:$0xff]
    %v3498 = vld [vmem:[#allocation3 + $0x218] sm:$0xff]
    %v3499 = vld [vmem:[#allocation3 + $0x220] sm:$0xff]
    %v3500 = vld [vmem:[#allocation3 + $0x228] sm:$0xff]
    %v3501 = vld [vmem:[#allocation3 + $0x230] sm:$0xff]
    %v3502 = vld [vmem:[#allocation3 + $0x238] sm:$0xff]
    %v3503 = vld [vmem:[#allocation3 + $0x240] sm:$0xff]
    %v3504 = vld [vmem:[#allocation3 + $0x248] sm:$0xff]
    %v3505 = vld [vmem:[#allocation3 + $0x250] sm:$0xff]
    %v3506 = vld [vmem:[#allocation3 + $0x258] sm:$0xff]
    %v3507 = vld [vmem:[#allocation3 + $0x260] sm:$0xff]
    %v3508 = vld [vmem:[#allocation3 + $0x268] sm:$0xff]
    %v3509 = vld [vmem:[#allocation3 + $0x270] sm:$0xff]
    %v3510 = vld [vmem:[#allocation3 + $0x278] sm:$0xff]
    %v3511 = vld [vmem:[#allocation3 + $0x280] sm:$0xff]
    %v3512 = vld [vmem:[#allocation3 + $0x288] sm:$0xff]
    %v3513 = vld [vmem:[#allocation3 + $0x290] sm:$0xff]
    %v3514 = vld [vmem:[#allocation3 + $0x298] sm:$0xff]
    %v3515 = vld [vmem:[#allocation3 + $0x2a0] sm:$0xff]
    %v3516 = vld [vmem:[#allocation3 + $0x2a8] sm:$0xff]
    %v3517 = vld [vmem:[#allocation3 + $0x2b0] sm:$0xff]
    %v3518 = vld [vmem:[#allocation3 + $0x2b8] sm:$0xff]
    %v3519 = vld [vmem:[#allocation3 + $0x2c0] sm:$0xff]
    %v3520 = vld [vmem:[#allocation3 + $0x2c8] sm:$0xff]
    %v3521 = vld [vmem:[#allocation3 + $0x2d0] sm:$0xff]
    %v3522 = vld [vmem:[#allocation3 + $0x2d8] sm:$0xff]
    %v3523 = vld [vmem:[#allocation3 + $0x2e0] sm:$0xff]
    %v3524 = vld [vmem:[#allocation3 + $0x2e8] sm:$0xff]
    %v3525 = vld [vmem:[#allocation3 + $0x2f0] sm:$0xff]
    %v3526 = vld [vmem:[#allocation3 + $0x2f8] sm:$0xff]
    %v3527 = vld [vmem:[#allocation3 + $0x300] sm:$0xff]
    %v3528 = vld [vmem:[#allocation3 + $0x308] sm:$0xff]
    %v3529 = vld [vmem:[#allocation3 + $0x310] sm:$0xff]
    %v3530 = vld [vmem:[#allocation3 + $0x318] sm:$0xff]
    %v3531 = vld [vmem:[#allocation3 + $0x320] sm:$0xff]
    %v3532 = vld [vmem:[#allocation3 + $0x328] sm:$0xff]
    %v3533 = vld [vmem:[#allocation3 + $0x330] sm:$0xff]
    %v3534 = vld [vmem:[#allocation3 + $0x338] sm:$0xff]
    %v3535 = vld [vmem:[#allocation3 + $0x340] sm:$0xff]
    %v3536 = vld [vmem:[#allocation3 + $0x348] sm:$0xff]
    %v3537 = vld [vmem:[#allocation3 + $0x350] sm:$0xff]
    %v3538 = vld [vmem:[#allocation3 + $0x358] sm:$0xff]
    %v3539 = vld [vmem:[#allocation3 + $0x360] sm:$0xff]
    %v3540 = vld [vmem:[#allocation3 + $0x368] sm:$0xff]
    %v3541 = vld [vmem:[#allocation3 + $0x370] sm:$0xff]
    %v3542 = vld [vmem:[#allocation3 + $0x378] sm:$0xff]
    %v3543 = vld [vmem:[#allocation3 + $0x380] sm:$0xff]
    %v3544 = vld [vmem:[#allocation3 + $0x388] sm:$0xff]
    %v3545 = vld [vmem:[#allocation3 + $0x390] sm:$0xff]
    %v3546 = vld [vmem:[#allocation3 + $0x398] sm:$0xff]
    %v3547 = vld [vmem:[#allocation3 + $0x3a0] sm:$0xff]
    %v3548 = vld [vmem:[#allocation3 + $0x3a8] sm:$0xff]
    %v3549 = vld [vmem:[#allocation3 + $0x3b0] sm:$0xff]
    %v3550 = vld [vmem:[#allocation3 + $0x3b8] sm:$0xff]
    %v3551 = vld [vmem:[#allocation3 + $0x3c0] sm:$0xff]
    %v3552 = vld [vmem:[#allocation3 + $0x3c8] sm:$0xff]
    %v3553 = vld [vmem:[#allocation3 + $0x3d0] sm:$0xff]
    %v3554 = vld [vmem:[#allocation3 + $0x3d8] sm:$0xff]
    %v3555 = vld [vmem:[#allocation3 + $0x3e0] sm:$0xff]
    %v3556 = vld [vmem:[#allocation3 + $0x3e8] sm:$0xff]
    %v3557 = vld [vmem:[#allocation3 + $0x3f0] sm:$0xff]
    %v3558 = vld [vmem:[#allocation3 + $0x3f8] sm:$0xff]
    %v3559 = vld [vmem:[#allocation3 + $0x400] sm:$0xff]
    %v3560 = vld [vmem:[#allocation3 + $0x408] sm:$0xff]
    %v3561 = vld [vmem:[#allocation3 + $0x410] sm:$0xff]
    %v3562 = vld [vmem:[#allocation3 + $0x418] sm:$0xff]
    %v3563 = vld [vmem:[#allocation3 + $0x420] sm:$0xff]
    %v3564 = vld [vmem:[#allocation3 + $0x428] sm:$0xff]
    %v3565 = vld [vmem:[#allocation3 + $0x430] sm:$0xff]
    %v3566 = vld [vmem:[#allocation3 + $0x438] sm:$0xff]
    %v3567 = vld [vmem:[#allocation3 + $0x440] sm:$0xff]
    %v3568 = vld [vmem:[#allocation3 + $0x448] sm:$0xff]
    %v3569 = vld [vmem:[#allocation3 + $0x450] sm:$0xff]
    %v3570 = vld [vmem:[#allocation3 + $0x458] sm:$0xff]
    %v3571 = vld [vmem:[#allocation3 + $0x460] sm:$0xff]
    %v3572 = vld [vmem:[#allocation3 + $0x468] sm:$0xff]
    %v3573 = vld [vmem:[#allocation3 + $0x470] sm:$0xff]
    %v3574 = vld [vmem:[#allocation3 + $0x478] sm:$0xff]
    %v3575 = vld [vmem:[#allocation3 + $0x480] sm:$0xff]
    %v3576 = vld [vmem:[#allocation3 + $0x488] sm:$0xff]
    %v3577 = vld [vmem:[#allocation3 + $0x490] sm:$0xff]
    %v3578 = vld [vmem:[#allocation3 + $0x498] sm:$0xff]
    %v3579 = vld [vmem:[#allocation3 + $0x4a0] sm:$0xff]
    %v3580 = vld [vmem:[#allocation3 + $0x4a8] sm:$0xff]
    %v3581 = vld [vmem:[#allocation3 + $0x4b0] sm:$0xff]
    %v3582 = vld [vmem:[#allocation3 + $0x4b8] sm:$0xff]
    %v3583 = vld [vmem:[#allocation3 + $0x4c0] sm:$0xff]
    %v3584 = vld [vmem:[#allocation3 + $0x4c8] sm:$0xff]
    %v3585 = vld [vmem:[#allocation3 + $0x4d0] sm:$0xff]
    %v3586 = vld [vmem:[#allocation3 + $0x4d8] sm:$0xff]
    %v3587 = vld [vmem:[#allocation3 + $0x4e0] sm:$0xff]
    %v3588 = vld [vmem:[#allocation3 + $0x4e8] sm:$0xff]
    %v3589 = vld [vmem:[#allocation3 + $0x4f0] sm:$0xff]
    %v3590 = vld [vmem:[#allocation3 + $0x4f8] sm:$0xff]
    %v3591 = vld [vmem:[#allocation3 + $0x500] sm:$0xff]
    %v3592 = vld [vmem:[#allocation3 + $0x508] sm:$0xff]
    %v3593 = vld [vmem:[#allocation3 + $0x510] sm:$0xff]
    %v3594 = vld [vmem:[#allocation3 + $0x518] sm:$0xff]
    %v3595 = vld [vmem:[#allocation3 + $0x520] sm:$0xff]
    %v3596 = vld [vmem:[#allocation3 + $0x528] sm:$0xff]
    %v3597 = vld [vmem:[#allocation3 + $0x530] sm:$0xff]
    %v3598 = vld [vmem:[#allocation3 + $0x538] sm:$0xff]
    %v3599 = vld [vmem:[#allocation3 + $0x540] sm:$0xff]
    %v3600 = vld [vmem:[#allocation3 + $0x548] sm:$0xff]
    %v3601 = vld [vmem:[#allocation3 + $0x550] sm:$0xff]
    %v3602 = vld [vmem:[#allocation3 + $0x558] sm:$0xff]
    %v3603 = vld [vmem:[#allocation3 + $0x560] sm:$0xff]
    %v3604 = vld [vmem:[#allocation3 + $0x568] sm:$0xff]
    %v3605 = vld [vmem:[#allocation3 + $0x570] sm:$0xff]
    %v3606 = vld [vmem:[#allocation3 + $0x578] sm:$0xff]
    %v3607 = vld [vmem:[#allocation3 + $0x580] sm:$0xff]
    %v3608 = vld [vmem:[#allocation3 + $0x588] sm:$0xff]
    %v3609 = vld [vmem:[#allocation3 + $0x590] sm:$0xff]
    %v3610 = vld [vmem:[#allocation3 + $0x598] sm:$0xff]
    %v3611 = vld [vmem:[#allocation3 + $0x5a0] sm:$0xff]
    %v3612 = vld [vmem:[#allocation3 + $0x5a8] sm:$0xff]
    %v3613 = vld [vmem:[#allocation3 + $0x5b0] sm:$0xff]
    %v3614 = vld [vmem:[#allocation3 + $0x5b8] sm:$0xff]
    %v3615 = vld [vmem:[#allocation3 + $0x5c0] sm:$0xff]
    %v3616 = vld [vmem:[#allocation3 + $0x5c8] sm:$0xff]
    %v3617 = vld [vmem:[#allocation3 + $0x5d0] sm:$0xff]
    %v3618 = vld [vmem:[#allocation3 + $0x5d8] sm:$0xff]
    %v3619 = vld [vmem:[#allocation3 + $0x5e0] sm:$0xff]
    %v3620 = vld [vmem:[#allocation3 + $0x5e8] sm:$0xff]
    %v3621 = vld [vmem:[#allocation3 + $0x5f0] sm:$0xff]
    %v3622 = vld [vmem:[#allocation3 + $0x5f8] sm:$0xff]
    %v3623 = vld [vmem:[#allocation3 + $0x600] sm:$0xff]
    %v3624 = vld [vmem:[#allocation3 + $0x608] sm:$0xff]
    %v3625 = vld [vmem:[#allocation3 + $0x610] sm:$0xff]
    %v3626 = vld [vmem:[#allocation3 + $0x618] sm:$0xff]
    %v3627 = vld [vmem:[#allocation3 + $0x620] sm:$0xff]
    %v3628 = vld [vmem:[#allocation3 + $0x628] sm:$0xff]
    %v3629 = vld [vmem:[#allocation3 + $0x630] sm:$0xff]
    %v3630 = vld [vmem:[#allocation3 + $0x638] sm:$0xff]
    %v3631 = vld [vmem:[#allocation3 + $0x640] sm:$0xff]
    %v3632 = vld [vmem:[#allocation3 + $0x648] sm:$0xff]
    %v3633 = vld [vmem:[#allocation3 + $0x650] sm:$0xff]
    %v3634 = vld [vmem:[#allocation3 + $0x658] sm:$0xff]
    %v3635 = vld [vmem:[#allocation3 + $0x660] sm:$0xff]
    %v3636 = vld [vmem:[#allocation3 + $0x668] sm:$0xff]
    %v3637 = vld [vmem:[#allocation3 + $0x670] sm:$0xff]
    %v3638 = vld [vmem:[#allocation3 + $0x678] sm:$0xff]
    %v3639 = vld [vmem:[#allocation3 + $0x680] sm:$0xff]
    %v3640 = vld [vmem:[#allocation3 + $0x688] sm:$0xff]
    %v3641 = vld [vmem:[#allocation3 + $0x690] sm:$0xff]
    %v3642 = vld [vmem:[#allocation3 + $0x698] sm:$0xff]
    %v3643 = vld [vmem:[#allocation3 + $0x6a0] sm:$0xff]
    %v3644 = vld [vmem:[#allocation3 + $0x6a8] sm:$0xff]
    %v3645 = vld [vmem:[#allocation3 + $0x6b0] sm:$0xff]
    %v3646 = vld [vmem:[#allocation3 + $0x6b8] sm:$0xff]
    %v3647 = vld [vmem:[#allocation3 + $0x6c0] sm:$0xff]
    %v3648 = vld [vmem:[#allocation3 + $0x6c8] sm:$0xff]
    %v3649 = vld [vmem:[#allocation3 + $0x6d0] sm:$0xff]
    %v3650 = vld [vmem:[#allocation3 + $0x6d8] sm:$0xff]
    %v3651 = vld [vmem:[#allocation3 + $0x6e0] sm:$0xff]
    %v3652 = vld [vmem:[#allocation3 + $0x6e8] sm:$0xff]
    %v3653 = vld [vmem:[#allocation3 + $0x6f0] sm:$0xff]
    %v3654 = vld [vmem:[#allocation3 + $0x6f8] sm:$0xff]
    %v3655 = vld [vmem:[#allocation3 + $0x700] sm:$0xff]
    %v3656 = vld [vmem:[#allocation3 + $0x708] sm:$0xff]
    %v3657 = vld [vmem:[#allocation3 + $0x710] sm:$0xff]
    %v3658 = vld [vmem:[#allocation3 + $0x718] sm:$0xff]
    %v3659 = vld [vmem:[#allocation3 + $0x720] sm:$0xff]
    %v3660 = vld [vmem:[#allocation3 + $0x728] sm:$0xff]
    %v3661 = vld [vmem:[#allocation3 + $0x730] sm:$0xff]
    %v3662 = vld [vmem:[#allocation3 + $0x738] sm:$0xff]
    %v3663 = vld [vmem:[#allocation3 + $0x740] sm:$0xff]
    %v3664 = vld [vmem:[#allocation3 + $0x748] sm:$0xff]
    %v3665 = vld [vmem:[#allocation3 + $0x750] sm:$0xff]
    %v3666 = vld [vmem:[#allocation3 + $0x758] sm:$0xff]
    %v3667 = vld [vmem:[#allocation3 + $0x760] sm:$0xff]
    %v3668 = vld [vmem:[#allocation3 + $0x768] sm:$0xff]
    %v3669 = vld [vmem:[#allocation3 + $0x770] sm:$0xff]
    %v3670 = vld [vmem:[#allocation3 + $0x778] sm:$0xff]
    %v3671 = vld [vmem:[#allocation3 + $0x780] sm:$0xff]
    %v3672 = vld [vmem:[#allocation3 + $0x788] sm:$0xff]
    %v3673 = vld [vmem:[#allocation3 + $0x790] sm:$0xff]
    %v3674 = vld [vmem:[#allocation3 + $0x798] sm:$0xff]
    %v3675 = vld [vmem:[#allocation3 + $0x7a0] sm:$0xff]
    %v3676 = vld [vmem:[#allocation3 + $0x7a8] sm:$0xff]
    %v3677 = vld [vmem:[#allocation3 + $0x7b0] sm:$0xff]
    %v3678 = vld [vmem:[#allocation3 + $0x7b8] sm:$0xff]
    %v3679 = vld [vmem:[#allocation3 + $0x7c0] sm:$0xff]
    %v3680 = vld [vmem:[#allocation3 + $0x7c8] sm:$0xff]
    %v3681 = vld [vmem:[#allocation3 + $0x7d0] sm:$0xff]
    %v3682 = vld [vmem:[#allocation3 + $0x7d8] sm:$0xff]
    %v3683 = vld [vmem:[#allocation3 + $0x7e0] sm:$0xff]
    %v3684 = vld [vmem:[#allocation3 + $0x7e8] sm:$0xff]
    %v3685 = vld [vmem:[#allocation3 + $0x7f0] sm:$0xff]
    %v3686 = vld [vmem:[#allocation3 + $0x7f8] sm:$0xff]
    %v3687 = vld [vmem:[#allocation3 + $0x800] sm:$0xff]
    %v3688 = vld [vmem:[#allocation3 + $0x808] sm:$0xff]
    %v3689 = vld [vmem:[#allocation3 + $0x810] sm:$0xff]
    %v3690 = vld [vmem:[#allocation3 + $0x818] sm:$0xff]
    %v3691 = vld [vmem:[#allocation3 + $0x820] sm:$0xff]
    %v3692 = vld [vmem:[#allocation3 + $0x828] sm:$0xff]
    %v3693 = vld [vmem:[#allocation3 + $0x830] sm:$0xff]
    %v3694 = vld [vmem:[#allocation3 + $0x838] sm:$0xff]
    %v3695 = vld [vmem:[#allocation3 + $0x840] sm:$0xff]
    %v3696 = vld [vmem:[#allocation3 + $0x848] sm:$0xff]
    %v3697 = vld [vmem:[#allocation3 + $0x850] sm:$0xff]
    %v3698 = vld [vmem:[#allocation3 + $0x858] sm:$0xff]
    %v3699 = vld [vmem:[#allocation3 + $0x860] sm:$0xff]
    %v3700 = vld [vmem:[#allocation3 + $0x868] sm:$0xff]
    %v3701 = vld [vmem:[#allocation3 + $0x870] sm:$0xff]
    %v3702 = vld [vmem:[#allocation3 + $0x878] sm:$0xff]
    %v3703 = vld [vmem:[#allocation3 + $0x880] sm:$0xff]
    %v3704 = vld [vmem:[#allocation3 + $0x888] sm:$0xff]
    %v3705 = vld [vmem:[#allocation3 + $0x890] sm:$0xff]
    %v3706 = vld [vmem:[#allocation3 + $0x898] sm:$0xff]
    %v3707 = vld [vmem:[#allocation3 + $0x8a0] sm:$0xff]
    %v3708 = vld [vmem:[#allocation3 + $0x8a8] sm:$0xff]
    %v3709 = vld [vmem:[#allocation3 + $0x8b0] sm:$0xff]
    %v3710 = vld [vmem:[#allocation3 + $0x8b8] sm:$0xff]
    %v3711 = vld [vmem:[#allocation3 + $0x8c0] sm:$0xff]
    %v3712 = vld [vmem:[#allocation3 + $0x8c8] sm:$0xff]
    %v3713 = vld [vmem:[#allocation3 + $0x8d0] sm:$0xff]
    %v3714 = vld [vmem:[#allocation3 + $0x8d8] sm:$0xff]
    %v3715 = vld [vmem:[#allocation3 + $0x8e0] sm:$0xff]
    %v3716 = vld [vmem:[#allocation3 + $0x8e8] sm:$0xff]
    %v3717 = vld [vmem:[#allocation3 + $0x8f0] sm:$0xff]
    %v3718 = vld [vmem:[#allocation3 + $0x8f8] sm:$0xff]
    %v3719 = vld [vmem:[#allocation10] sm:$0xf]
    %v3720 = vld [vmem:[#allocation10 + $0x4] sm:$0xf]
    %v3721 = vld [vmem:[#allocation10 + $0x8] sm:$0xf]
    %v3722 = vld [vmem:[#allocation10 + $0xc] sm:$0xf]
    %v3723 = vld [vmem:[#allocation10 + $0x10] sm:$0xf]
    %v3724 = vld [vmem:[#allocation10 + $0x14] sm:$0xf]
    %v3725 = vld [vmem:[#allocation10 + $0x18] sm:$0xf]
    %v3726 = vld [vmem:[#allocation10 + $0x1c] sm:$0xf]
    %v3727 = vld [vmem:[#allocation10 + $0x20] sm:$0xf]
    %v3728 = vld [vmem:[#allocation10 + $0x24] sm:$0xf]
    %v3729 = vld [vmem:[#allocation10 + $0x28] sm:$0xf]
    %v3730 = vld [vmem:[#allocation10 + $0x2c] sm:$0xf]
    %v3731 = vld [vmem:[#allocation10 + $0x30] sm:$0xf]
    %v3732 = vld [vmem:[#allocation10 + $0x34] sm:$0xf]
    %v3733 = vld [vmem:[#allocation10 + $0x38] sm:$0xf]
    %v3734 = vld [vmem:[#allocation10 + $0x3c] sm:$0xf]
    %v3735 = vld [vmem:[#allocation10 + $0x40] sm:$0xf]
    %v3736 = vld [vmem:[#allocation10 + $0x44] sm:$0xf]
    %v3737 = vld [vmem:[#allocation10 + $0x48] sm:$0xf]
    %v3738 = vld [vmem:[#allocation10 + $0x4c] sm:$0xf]
    %v3739 = vld [vmem:[#allocation10 + $0x50] sm:$0xf]
    %v3740 = vld [vmem:[#allocation10 + $0x54] sm:$0xf]
    %v3741 = vld [vmem:[#allocation10 + $0x58] sm:$0xf]
    %v3742 = vld [vmem:[#allocation10 + $0x5c] sm:$0xf]
    %v3743 = vld [vmem:[#allocation10 + $0x60] sm:$0xf]
    %v3744 = vld [vmem:[#allocation10 + $0x64] sm:$0xf]
    %v3745 = vld [vmem:[#allocation10 + $0x68] sm:$0xf]
    %v3746 = vld [vmem:[#allocation10 + $0x6c] sm:$0xf]
    %v3747 = vld [vmem:[#allocation10 + $0x70] sm:$0xf]
    %v3748 = vld [vmem:[#allocation10 + $0x74] sm:$0xf]
    %v3749 = vld [vmem:[#allocation10 + $0x78] sm:$0xf]
    %v3750 = vld [vmem:[#allocation10 + $0x7c] sm:$0xf]
    %v3751 = vld [vmem:[#allocation10 + $0x80] sm:$0xf]
    %v3752 = vld [vmem:[#allocation10 + $0x84] sm:$0xf]
    %v3753 = vld [vmem:[#allocation10 + $0x88] sm:$0xf]
    %v3754 = vld [vmem:[#allocation10 + $0x8c] sm:$0xf]
    %v3755 = vld [vmem:[#allocation10 + $0x90] sm:$0xf]
    %v3756 = vld [vmem:[#allocation10 + $0x94] sm:$0xf]
    %v3757 = vld [vmem:[#allocation10 + $0x98] sm:$0xf]
    %v3758 = vld [vmem:[#allocation10 + $0x9c] sm:$0xf]
    %v3759 = vld [vmem:[#allocation10 + $0xa0] sm:$0xf]
    %v3760 = vld [vmem:[#allocation10 + $0xa4] sm:$0xf]
    %v3761 = vld [vmem:[#allocation10 + $0xa8] sm:$0xf]
    %v3762 = vld [vmem:[#allocation10 + $0xac] sm:$0xf]
    %v3763 = vld [vmem:[#allocation10 + $0xb0] sm:$0xf]
    %v3764 = vld [vmem:[#allocation10 + $0xb4] sm:$0xf]
    %v3765 = vld [vmem:[#allocation10 + $0xb8] sm:$0xf]
    %v3766 = vld [vmem:[#allocation10 + $0xbc] sm:$0xf]
    %v3767 = vld [vmem:[#allocation10 + $0xc0] sm:$0xf]
    %v3768 = vld [vmem:[#allocation10 + $0xc4] sm:$0xf]
    %v3769 = vld [vmem:[#allocation10 + $0xc8] sm:$0xf]
    %v3770 = vld [vmem:[#allocation10 + $0xcc] sm:$0xf]
    %v3771 = vld [vmem:[#allocation10 + $0xd0] sm:$0xf]
    %v3772 = vld [vmem:[#allocation10 + $0xd4] sm:$0xf]
    %v3773 = vld [vmem:[#allocation10 + $0xd8] sm:$0xf]
    %v3774 = vld [vmem:[#allocation10 + $0xdc] sm:$0xf]
    %v3775 = vld [vmem:[#allocation10 + $0xe0] sm:$0xf]
    %v3776 = vld [vmem:[#allocation10 + $0xe4] sm:$0xf]
    %v3777 = vld [vmem:[#allocation10 + $0xe8] sm:$0xf]
    %v3778 = vld [vmem:[#allocation10 + $0xec] sm:$0xf]
    %v3779 = vld [vmem:[#allocation10 + $0xf0] sm:$0xf]
    %v3780 = vld [vmem:[#allocation10 + $0xf4] sm:$0xf]
    %v3781 = vld [vmem:[#allocation10 + $0xf8] sm:$0xf]
    %v3782 = vld [vmem:[#allocation10 + $0xfc] sm:$0xf]
    %v3783 = vld [vmem:[#allocation10 + $0x100] sm:$0xf]
    %v3784 = vld [vmem:[#allocation10 + $0x104] sm:$0xf]
    %v3785 = vld [vmem:[#allocation10 + $0x108] sm:$0xf]
    %v3786 = vld [vmem:[#allocation10 + $0x10c] sm:$0xf]
    %v3787 = vld [vmem:[#allocation10 + $0x110] sm:$0xf]
    %v3788 = vld [vmem:[#allocation10 + $0x114] sm:$0xf]
    %v3789 = vld [vmem:[#allocation10 + $0x118] sm:$0xf]
    %v3790 = vld [vmem:[#allocation10 + $0x11c] sm:$0xf]
    %v3791 = vld [vmem:[#allocation10 + $0x120] sm:$0xf]
    %v3792 = vld [vmem:[#allocation10 + $0x124] sm:$0xf]
    %v3793 = vld [vmem:[#allocation10 + $0x128] sm:$0xf]
    %v3794 = vld [vmem:[#allocation10 + $0x12c] sm:$0xf]
    %v3795 = vld [vmem:[#allocation10 + $0x130] sm:$0xf]
    %v3796 = vld [vmem:[#allocation10 + $0x134] sm:$0xf]
    %v3797 = vld [vmem:[#allocation10 + $0x138] sm:$0xf]
    %v3798 = vld [vmem:[#allocation10 + $0x13c] sm:$0xf]
    %v3799 = vld [vmem:[#allocation10 + $0x140] sm:$0xf]
    %v3800 = vld [vmem:[#allocation10 + $0x144] sm:$0xf]
    %v3801 = vld [vmem:[#allocation10 + $0x148] sm:$0xf]
    %v3802 = vld [vmem:[#allocation10 + $0x14c] sm:$0xf]
    %v3803 = vld [vmem:[#allocation10 + $0x150] sm:$0xf]
    %v3804 = vld [vmem:[#allocation10 + $0x154] sm:$0xf]
    %v3805 = vld [vmem:[#allocation10 + $0x158] sm:$0xf]
    %v3806 = vld [vmem:[#allocation10 + $0x15c] sm:$0xf]
    %v3807 = vld [vmem:[#allocation10 + $0x160] sm:$0xf]
    %v3808 = vld [vmem:[#allocation10 + $0x164] sm:$0xf]
    %v3809 = vld [vmem:[#allocation10 + $0x168] sm:$0xf]
    %v3810 = vld [vmem:[#allocation10 + $0x16c] sm:$0xf]
    %v3811 = vld [vmem:[#allocation10 + $0x170] sm:$0xf]
    %v3812 = vld [vmem:[#allocation10 + $0x174] sm:$0xf]
    %v3813 = vld [vmem:[#allocation10 + $0x178] sm:$0xf]
    %v3814 = vld [vmem:[#allocation10 + $0x17c] sm:$0xf]
    %v3815 = vld [vmem:[#allocation10 + $0x180] sm:$0xf]
    %v3816 = vld [vmem:[#allocation10 + $0x184] sm:$0xf]
    %v3817 = vld [vmem:[#allocation10 + $0x188] sm:$0xf]
    %v3818 = vld [vmem:[#allocation10 + $0x18c] sm:$0xf]
    %v3819 = vld [vmem:[#allocation10 + $0x190] sm:$0xf]
    %v3820 = vld [vmem:[#allocation10 + $0x194] sm:$0xf]
    %v3821 = vld [vmem:[#allocation10 + $0x198] sm:$0xf]
    %v3822 = vld [vmem:[#allocation10 + $0x19c] sm:$0xf]
    %v3823 = vld [vmem:[#allocation10 + $0x1a0] sm:$0xf]
    %v3824 = vld [vmem:[#allocation10 + $0x1a4] sm:$0xf]
    %v3825 = vld [vmem:[#allocation10 + $0x1a8] sm:$0xf]
    %v3826 = vld [vmem:[#allocation10 + $0x1ac] sm:$0xf]
    %v3827 = vld [vmem:[#allocation10 + $0x1b0] sm:$0xf]
    %v3828 = vld [vmem:[#allocation10 + $0x1b4] sm:$0xf]
    %v3829 = vld [vmem:[#allocation10 + $0x1b8] sm:$0xf]
    %v3830 = vld [vmem:[#allocation10 + $0x1bc] sm:$0xf]
    %v3831 = vld [vmem:[#allocation10 + $0x1c0] sm:$0xf]
    %v3832 = vld [vmem:[#allocation10 + $0x1c4] sm:$0xf]
    %v3833 = vld [vmem:[#allocation10 + $0x1c8] sm:$0xf]
    %v3834 = vld [vmem:[#allocation10 + $0x1cc] sm:$0xf]
    %v3835 = vld [vmem:[#allocation10 + $0x1d0] sm:$0xf]
    %v3836 = vld [vmem:[#allocation10 + $0x1d4] sm:$0xf]
    %v3837 = vld [vmem:[#allocation10 + $0x1d8] sm:$0xf]
    %v3838 = vld [vmem:[#allocation10 + $0x1dc] sm:$0xf]
    %v3839 = vld [vmem:[#allocation10 + $0x1e0] sm:$0xf]
    %v3840 = vld [vmem:[#allocation10 + $0x1e4] sm:$0xf]
    %v3841 = vld [vmem:[#allocation10 + $0x1e8] sm:$0xf]
    %v3842 = vld [vmem:[#allocation10 + $0x1ec] sm:$0xf]
    %v3843 = vld [vmem:[#allocation10 + $0x1f0] sm:$0xf]
    %v3844 = vld [vmem:[#allocation10 + $0x1f4] sm:$0xf]
    %v3845 = vld [vmem:[#allocation10 + $0x1f8] sm:$0xf]
    %v3846 = vld [vmem:[#allocation10 + $0x1fc] sm:$0xf]
    %v3847 = vld [vmem:[#allocation10 + $0x200] sm:$0xf]
    %v3848 = vld [vmem:[#allocation10 + $0x204] sm:$0xf]
    %v3849 = vld [vmem:[#allocation10 + $0x208] sm:$0xf]
    %v3850 = vld [vmem:[#allocation10 + $0x20c] sm:$0xf]
    %v3851 = vld [vmem:[#allocation10 + $0x210] sm:$0xf]
    %v3852 = vld [vmem:[#allocation10 + $0x214] sm:$0xf]
    %v3853 = vld [vmem:[#allocation10 + $0x218] sm:$0xf]
    %v3854 = vld [vmem:[#allocation10 + $0x21c] sm:$0xf]
    %v3855 = vld [vmem:[#allocation10 + $0x220] sm:$0xf]
    %v3856 = vld [vmem:[#allocation10 + $0x224] sm:$0xf]
    %v3857 = vld [vmem:[#allocation10 + $0x228] sm:$0xf]
    %v3858 = vld [vmem:[#allocation10 + $0x22c] sm:$0xf]
    %v3859 = vld [vmem:[#allocation10 + $0x230] sm:$0xf]
    %v3860 = vld [vmem:[#allocation10 + $0x234] sm:$0xf]
    %v3861 = vld [vmem:[#allocation10 + $0x238] sm:$0xf]
    %v3862 = vld [vmem:[#allocation10 + $0x23c] sm:$0xf]
    %v3863 = vld [vmem:[%s7] sm:$0x1]
    %v3865 = vlaneseq
    %v3866 = vshrl.u32 %v3865, 7
    %v3867 = vsub.s32 0, %v3866
    %v3868 = vrot.slane %v3863, %v3867
    %v4014 = vunpack.c.l.b16 %v3719
    %v4015 = vunpack.c.l.b16 %v3720
    %v4016 = vunpack.c.l.b16 %v3721
    %v4017 = vunpack.c.l.b16 %v3722
    %v4018 = vunpack.c.l.b16 %v3723
    %v4019 = vunpack.c.l.b16 %v3724
    %v4020 = vunpack.c.l.b16 %v3725
    %v4021 = vunpack.c.l.b16 %v3726
    %v4022 = vunpack.c.l.b16 %v3727
    %v4023 = vunpack.c.l.b16 %v3728
    %v4024 = vunpack.c.l.b16 %v3729
    %v4025 = vunpack.c.l.b16 %v3730
    %v4026 = vunpack.c.l.b16 %v3731
    %v4027 = vunpack.c.l.b16 %v3732
    %v4028 = vunpack.c.l.b16 %v3733
    %v4029 = vunpack.c.l.b16 %v3734
    %v4030 = vunpack.c.l.b16 %v3735
    %v4031 = vunpack.c.l.b16 %v3736
    %v4032 = vunpack.c.l.b16 %v3737
    %v4033 = vunpack.c.l.b16 %v3738
    %v4034 = vunpack.c.l.b16 %v3739
    %v4035 = vunpack.c.l.b16 %v3740
    %v4036 = vunpack.c.l.b16 %v3741
    %v4037 = vunpack.c.l.b16 %v3742
    %v4038 = vunpack.c.l.b16 %v3743
    %v4039 = vunpack.c.l.b16 %v3744
    %v4040 = vunpack.c.l.b16 %v3745
    %v4041 = vunpack.c.l.b16 %v3746
    %v4042 = vunpack.c.l.b16 %v3747
    %v4043 = vunpack.c.l.b16 %v3748
    %v4044 = vunpack.c.l.b16 %v3749
    %v4045 = vunpack.c.l.b16 %v3750
    %v4046 = vunpack.c.l.b16 %v3751
    %v4047 = vunpack.c.l.b16 %v3752
    %v4048 = vunpack.c.l.b16 %v3753
    %v4049 = vunpack.c.l.b16 %v3754
    %v4050 = vunpack.c.l.b16 %v3755
    %v4051 = vunpack.c.l.b16 %v3756
    %v4052 = vunpack.c.l.b16 %v3757
    %v4053 = vunpack.c.l.b16 %v3758
    %v4054 = vunpack.c.l.b16 %v3759
    %v4055 = vunpack.c.l.b16 %v3760
    %v4056 = vunpack.c.l.b16 %v3761
    %v4057 = vunpack.c.l.b16 %v3762
    %v4058 = vunpack.c.l.b16 %v3763
    %v4059 = vunpack.c.l.b16 %v3764
    %v4060 = vunpack.c.l.b16 %v3765
    %v4061 = vunpack.c.l.b16 %v3766
    %v4062 = vunpack.c.l.b16 %v3767
    %v4063 = vunpack.c.l.b16 %v3768
    %v4064 = vunpack.c.l.b16 %v3769
    %v4065 = vunpack.c.l.b16 %v3770
    %v4066 = vunpack.c.l.b16 %v3771
    %v4067 = vunpack.c.l.b16 %v3772
    %v4068 = vunpack.c.l.b16 %v3773
    %v4069 = vunpack.c.l.b16 %v3774
    %v4070 = vunpack.c.l.b16 %v3775
    %v4071 = vunpack.c.l.b16 %v3776
    %v4072 = vunpack.c.l.b16 %v3777
    %v4073 = vunpack.c.l.b16 %v3778
    %v4074 = vunpack.c.l.b16 %v3779
    %v4075 = vunpack.c.l.b16 %v3780
    %v4076 = vunpack.c.l.b16 %v3781
    %v4077 = vunpack.c.l.b16 %v3782
    %v4078 = vunpack.c.l.b16 %v3783
    %v4079 = vunpack.c.l.b16 %v3784
    %v4080 = vunpack.c.l.b16 %v3785
    %v4081 = vunpack.c.l.b16 %v3786
    %v4082 = vunpack.c.l.b16 %v3787
    %v4083 = vunpack.c.l.b16 %v3788
    %v4084 = vunpack.c.l.b16 %v3789
    %v4085 = vunpack.c.l.b16 %v3790
    %v4086 = vunpack.c.l.b16 %v3791
    %v4087 = vunpack.c.l.b16 %v3792
    %v4088 = vunpack.c.l.b16 %v3793
    %v4089 = vunpack.c.l.b16 %v3794
    %v4090 = vunpack.c.l.b16 %v3795
    %v4091 = vunpack.c.l.b16 %v3796
    %v4092 = vunpack.c.l.b16 %v3797
    %v4093 = vunpack.c.l.b16 %v3798
    %v4094 = vunpack.c.l.b16 %v3799
    %v4095 = vunpack.c.l.b16 %v3800
    %v4096 = vunpack.c.l.b16 %v3801
    %v4097 = vunpack.c.l.b16 %v3802
    %v4098 = vunpack.c.l.b16 %v3803
    %v4099 = vunpack.c.l.b16 %v3804
    %v4100 = vunpack.c.l.b16 %v3805
    %v4101 = vunpack.c.l.b16 %v3806
    %v4102 = vunpack.c.l.b16 %v3807
    %v4103 = vunpack.c.l.b16 %v3808
    %v4104 = vunpack.c.l.b16 %v3809
    %v4105 = vunpack.c.l.b16 %v3810
    %v4106 = vunpack.c.l.b16 %v3811
    %v4107 = vunpack.c.l.b16 %v3812
    %v4108 = vunpack.c.l.b16 %v3813
    %v4109 = vunpack.c.l.b16 %v3814
    %v4110 = vunpack.c.l.b16 %v3815
    %v4111 = vunpack.c.l.b16 %v3816
    %v4112 = vunpack.c.l.b16 %v3817
    %v4113 = vunpack.c.l.b16 %v3818
    %v4114 = vunpack.c.l.b16 %v3819
    %v4115 = vunpack.c.l.b16 %v3820
    %v4116 = vunpack.c.l.b16 %v3821
    %v4117 = vunpack.c.l.b16 %v3822
    %v4118 = vunpack.c.l.b16 %v3823
    %v4119 = vunpack.c.l.b16 %v3824
    %v4120 = vunpack.c.l.b16 %v3825
    %v4121 = vunpack.c.l.b16 %v3826
    %v4122 = vunpack.c.l.b16 %v3827
    %v4123 = vunpack.c.l.b16 %v3828
    %v4124 = vunpack.c.l.b16 %v3829
    %v4125 = vunpack.c.l.b16 %v3830
    %v4126 = vunpack.c.l.b16 %v3831
    %v4127 = vunpack.c.l.b16 %v3832
    %v4128 = vunpack.c.l.b16 %v3833
    %v4129 = vunpack.c.l.b16 %v3834
    %v4130 = vunpack.c.l.b16 %v3835
    %v4131 = vunpack.c.l.b16 %v3836
    %v4132 = vunpack.c.l.b16 %v3837
    %v4133 = vunpack.c.l.b16 %v3838
    %v4134 = vunpack.c.l.b16 %v3839
    %v4135 = vunpack.c.l.b16 %v3840
    %v4136 = vunpack.c.l.b16 %v3841
    %v4137 = vunpack.c.l.b16 %v3842
    %v4138 = vunpack.c.l.b16 %v3843
    %v4139 = vunpack.c.l.b16 %v3844
    %v4140 = vunpack.c.l.b16 %v3845
    %v4141 = vunpack.c.l.b16 %v3846
    %v4142 = vunpack.c.l.b16 %v3847
    %v4143 = vunpack.c.l.b16 %v3848
    %v4144 = vunpack.c.l.b16 %v3849
    %v4145 = vunpack.c.l.b16 %v3850
    %v4146 = vunpack.c.l.b16 %v3851
    %v4147 = vunpack.c.l.b16 %v3852
    %v4148 = vunpack.c.l.b16 %v3853
    %v4149 = vunpack.c.l.b16 %v3854
    %v4150 = vunpack.c.l.b16 %v3855
    %v4151 = vunpack.c.l.b16 %v3856
    %v4152 = vunpack.c.l.b16 %v3857
    %v4153 = vunpack.c.l.b16 %v3858
    %v4154 = vunpack.c.l.b16 %v3859
    %v4155 = vunpack.c.l.b16 %v3860
    %v4156 = vunpack.c.l.b16 %v3861
    %v4157 = vunpack.c.l.b16 %v3862
    %v4158 = vpack.c.b16 %v4015, %v4014
    %v4159 = vpack.c.b16 %v4017, %v4016
    %v4160 = vpack.c.b16 %v4019, %v4018
    %v4161 = vpack.c.b16 %v4021, %v4020
    %v4162 = vpack.c.b16 %v4023, %v4022
    %v4163 = vpack.c.b16 %v4025, %v4024
    %v4164 = vpack.c.b16 %v4027, %v4026
    %v4165 = vpack.c.b16 %v4029, %v4028
    %v4166 = vpack.c.b16 %v4031, %v4030
    %v4167 = vpack.c.b16 %v4033, %v4032
    %v4168 = vpack.c.b16 %v4035, %v4034
    %v4169 = vpack.c.b16 %v4037, %v4036
    %v4170 = vpack.c.b16 %v4039, %v4038
    %v4171 = vpack.c.b16 %v4041, %v4040
    %v4172 = vpack.c.b16 %v4043, %v4042
    %v4173 = vpack.c.b16 %v4045, %v4044
    %v4174 = vpack.c.b16 %v4047, %v4046
    %v4175 = vpack.c.b16 %v4049, %v4048
    %v4176 = vpack.c.b16 %v4051, %v4050
    %v4177 = vpack.c.b16 %v4053, %v4052
    %v4178 = vpack.c.b16 %v4055, %v4054
    %v4179 = vpack.c.b16 %v4057, %v4056
    %v4180 = vpack.c.b16 %v4059, %v4058
    %v4181 = vpack.c.b16 %v4061, %v4060
    %v4182 = vpack.c.b16 %v4063, %v4062
    %v4183 = vpack.c.b16 %v4065, %v4064
    %v4184 = vpack.c.b16 %v4067, %v4066
    %v4185 = vpack.c.b16 %v4069, %v4068
    %v4186 = vpack.c.b16 %v4071, %v4070
    %v4187 = vpack.c.b16 %v4073, %v4072
    %v4188 = vpack.c.b16 %v4075, %v4074
    %v4189 = vpack.c.b16 %v4077, %v4076
    %v4190 = vpack.c.b16 %v4079, %v4078
    %v4191 = vpack.c.b16 %v4081, %v4080
    %v4192 = vpack.c.b16 %v4083, %v4082
    %v4193 = vpack.c.b16 %v4085, %v4084
    %v4194 = vpack.c.b16 %v4087, %v4086
    %v4195 = vpack.c.b16 %v4089, %v4088
    %v4196 = vpack.c.b16 %v4091, %v4090
    %v4197 = vpack.c.b16 %v4093, %v4092
    %v4198 = vpack.c.b16 %v4095, %v4094
    %v4199 = vpack.c.b16 %v4097, %v4096
    %v4200 = vpack.c.b16 %v4099, %v4098
    %v4201 = vpack.c.b16 %v4101, %v4100
    %v4202 = vpack.c.b16 %v4103, %v4102
    %v4203 = vpack.c.b16 %v4105, %v4104
    %v4204 = vpack.c.b16 %v4107, %v4106
    %v4205 = vpack.c.b16 %v4109, %v4108
    %v4206 = vpack.c.b16 %v4111, %v4110
    %v4207 = vpack.c.b16 %v4113, %v4112
    %v4208 = vpack.c.b16 %v4115, %v4114
    %v4209 = vpack.c.b16 %v4117, %v4116
    %v4210 = vpack.c.b16 %v4119, %v4118
    %v4211 = vpack.c.b16 %v4121, %v4120
    %v4212 = vpack.c.b16 %v4123, %v4122
    %v4213 = vpack.c.b16 %v4125, %v4124
    %v4214 = vpack.c.b16 %v4127, %v4126
    %v4215 = vpack.c.b16 %v4129, %v4128
    %v4216 = vpack.c.b16 %v4131, %v4130
    %v4217 = vpack.c.b16 %v4133, %v4132
    %v4218 = vpack.c.b16 %v4135, %v4134
    %v4219 = vpack.c.b16 %v4137, %v4136
    %v4220 = vpack.c.b16 %v4139, %v4138
    %v4221 = vpack.c.b16 %v4141, %v4140
    %v4222 = vpack.c.b16 %v4143, %v4142
    %v4223 = vpack.c.b16 %v4145, %v4144
    %v4224 = vpack.c.b16 %v4147, %v4146
    %v4225 = vpack.c.b16 %v4149, %v4148
    %v4226 = vpack.c.b16 %v4151, %v4150
    %v4227 = vpack.c.b16 %v4153, %v4152
    %v4228 = vpack.c.b16 %v4155, %v4154
    %v4229 = vpack.c.b16 %v4157, %v4156
    %4302 = vmatprep.subr.bf16.mxu0 0
    %4303 = vmatpush1.bf16.msra.mxu0 %v4158
    %4304 = vmatprep.subr.bf16.mxu0 0
    %4305 = vmatpush1.bf16.msra.mxu0 %v4159
    %4306 = vmatprep.subr.bf16.mxu0 0
    %4307 = vmatpush1.bf16.msra.mxu0 %v4160
    %4308 = vmatprep.subr.bf16.mxu0 0
    %4309 = vmatpush1.bf16.msra.mxu0 %v4161
    %4310 = vmatprep.subr.bf16.mxu0 0
    %4311 = vmatpush1.bf16.msra.mxu0 %v4162
    %4312 = vmatprep.subr.bf16.mxu0 0
    %4313 = vmatpush1.bf16.msra.mxu0 %v4163
    %4314 = vmatprep.subr.bf16.mxu0 0
    %4315 = vmatpush1.bf16.msra.mxu0 %v4164
    %4316 = vmatprep.subr.bf16.mxu0 0
    %4317 = vmatpush1.bf16.msra.mxu0 %v4165
    %4318 = vmatprep.subr.bf16.mxu0 0
    %4319 = vmatpush1.bf16.msra.mxu0 %v4166
    %4320 = vmatprep.subr.bf16.mxu0 0
    %4321 = vmatpush1.bf16.msra.mxu0 %v4167
    %4322 = vmatprep.subr.bf16.mxu0 0
    %4323 = vmatpush1.bf16.msra.mxu0 %v4168
    %4324 = vmatprep.subr.bf16.mxu0 0
    %4325 = vmatpush1.bf16.msra.mxu0 %v4169
    %4326 = vmatprep.subr.bf16.mxu0 0
    %4327 = vmatpush1.bf16.msra.mxu0 %v4170
    %4328 = vmatprep.subr.bf16.mxu0 0
    %4329 = vmatpush1.bf16.msra.mxu0 %v4171
    %4330 = vmatprep.subr.bf16.mxu0 0
    %4331 = vmatpush1.bf16.msra.mxu0 %v4172
    %4332 = vmatprep.subr.bf16.mxu0 0
    %4333 = vmatpush1.bf16.msra.mxu0 %v4173
    %4334 = vmatprep.mubr.bf16.mxu0 %v3432
    %4335 = vmatmul.mubr.bf16.gmra.mrb[0].mxu0 %v3431
    %v4336 = vpop.f32.mrb[0].mxu0
    %v4337 = vadd.f32 %v3868, %v4336
    %v4338 = vpop.f32.mrb[0].mxu0
    %v4339 = vpop.f32.mrb[0].mxu0
    %v4340 = vadd.f32 %v3868, %v4339
    %v4341 = vpop.f32.mrb[0].mxu0
    %4342 = vmatprep.mubr.bf16.mxu0 %v3441
    %4343 = vmatmul.mubr.bf16.gmra.mrb[0].mxu0 %v3440
    %v4344 = vpop.f32.mrb[0].mxu0
    %v4345 = vadd.f32 %v3868, %v4344
    %v4346 = vpop.f32.mrb[0].mxu0
    %v4347 = vpop.f32.mrb[0].mxu0
    %v4348 = vadd.f32 %v3868, %v4347
    %v4349 = vpop.f32.mrb[0].mxu0
    %4350 = vmatprep.mubr.bf16.mxu0 %v3450
    %4351 = vmatmul.mubr.bf16.gmra.mrb[0].mxu0 %v3449
    %v4352 = vpop.f32.mrb[0].mxu0
    %v4353 = vadd.f32 %v3868, %v4352
    %v4354 = vpop.f32.mrb[0].mxu0
    %v4355 = vpop.f32.mrb[0].mxu0
    %v4356 = vadd.f32 %v3868, %v4355
    %v4357 = vpop.f32.mrb[0].mxu0
    %4358 = vmatprep.mubr.bf16.mxu0 %v3459
    %4359 = vmatmul.mubr.bf16.gmra.mrb[0].mxu0 %v3458
    %v4360 = vpop.f32.mrb[0].mxu0
    %v4361 = vadd.f32 %v3868, %v4360
    %v4362 = vpop.f32.mrb[0].mxu0
    %v4363 = vpop.f32.mrb[0].mxu0
    %v4364 = vadd.f32 %v3868, %v4363
    %v4365 = vpop.f32.mrb[0].mxu0
    %4366 = vmatprep.mubr.bf16.mxu0 %v3468
    %4367 = vmatmul.mubr.bf16.gmra.mrb[0].mxu0 %v3467
    %v4368 = vpop.f32.mrb[0].mxu0
    %v4369 = vadd.f32 %v3868, %v4368
    %v4370 = vpop.f32.mrb[0].mxu0
    %v4371 = vpop.f32.mrb[0].mxu0
    %v4372 = vadd.f32 %v3868, %v4371
    %v4373 = vpop.f32.mrb[0].mxu0
    %4374 = vmatprep.mubr.bf16.mxu0 %v3477
    %4375 = vmatmul.mubr.bf16.gmra.mrb[0].mxu0 %v3476
    %v4376 = vpop.f32.mrb[0].mxu0
    %v4377 = vadd.f32 %v3868, %v4376
    %v4378 = vpop.f32.mrb[0].mxu0
    %v4379 = vpop.f32.mrb[0].mxu0
    %v4380 = vadd.f32 %v3868, %v4379
    %v4381 = vpop.f32.mrb[0].mxu0
    %4382 = vmatprep.mubr.bf16.mxu0 %v3486
    %4383 = vmatmul.mubr.bf16.gmra.mrb[0].mxu0 %v3485
    %v4384 = vpop.f32.mrb[0].mxu0
    %v4385 = vadd.f32 %v3868, %v4384
    %v4386 = vpop.f32.mrb[0].mxu0
    %v4387 = vpop.f32.mrb[0].mxu0
    %v4388 = vadd.f32 %v3868, %v4387
    %v4389 = vpop.f32.mrb[0].mxu0
    %4390 = vmatprep.mubr.bf16.mxu0 %v3495
    %4391 = vmatmul.mubr.bf16.gmra.mrb[0].mxu0 %v3494
    %v4392 = vpop.f32.mrb[0].mxu0
    %v4393 = vadd.f32 %v3868, %v4392
    %v4394 = vpop.f32.mrb[0].mxu0
    %v4395 = vpop.f32.mrb[0].mxu0
    %v4396 = vadd.f32 %v3868, %v4395
    %v4397 = vpop.f32.mrb[0].mxu0
    %4398 = vmatprep.mubr.bf16.mxu0 %v3504
    %4399 = vmatmul.mubr.bf16.gmra.mrb[0].mxu0 %v3503
    %v4400 = vpop.f32.mrb[0].mxu0
    %v4401 = vadd.f32 %v3868, %v4400
    %v4402 = vpop.f32.mrb[0].mxu0
    %v4403 = vpop.f32.mrb[0].mxu0
    %v4404 = vadd.f32 %v3868, %v4403
    %v4405 = vpop.f32.mrb[0].mxu0
    %4406 = vmatprep.mubr.bf16.mxu0 %v3513
    %4407 = vmatmul.mubr.bf16.gmra.mrb[0].mxu0 %v3512
    %v4408 = vpop.f32.mrb[0].mxu0
    %v4409 = vadd.f32 %v3868, %v4408
    %v4410 = vpop.f32.mrb[0].mxu0
    %v4411 = vpop.f32.mrb[0].mxu0
    %v4412 = vadd.f32 %v3868, %v4411
    %v4413 = vpop.f32.mrb[0].mxu0
    %4414 = vmatprep.mubr.bf16.mxu0 %v3522
    %4415 = vmatmul.mubr.bf16.gmra.mrb[0].mxu0 %v3521
    %v4416 = vpop.f32.mrb[0].mxu0
    %v4417 = vadd.f32 %v3868, %v4416
    %v4418 = vpop.f32.mrb[0].mxu0
    %v4419 = vpop.f32.mrb[0].mxu0
    %v4420 = vadd.f32 %v3868, %v4419
    %v4421 = vpop.f32.mrb[0].mxu0
    %4422 = vmatprep.mubr.bf16.mxu0 %v3531
    %4423 = vmatmul.mubr.bf16.gmra.mrb[0].mxu0 %v3530
    %v4424 = vpop.f32.mrb[0].mxu0
    %v4425 = vadd.f32 %v3868, %v4424
    %v4426 = vpop.f32.mrb[0].mxu0
    %v4427 = vpop.f32.mrb[0].mxu0
    %v4428 = vadd.f32 %v3868, %v4427
    %v4429 = vpop.f32.mrb[0].mxu0
    %4430 = vmatprep.mubr.bf16.mxu0 %v3540
    %4431 = vmatmul.mubr.bf16.gmra.mrb[0].mxu0 %v3539
    %v4432 = vpop.f32.mrb[0].mxu0
    %v4433 = vadd.f32 %v3868, %v4432
    %v4434 = vpop.f32.mrb[0].mxu0
    %v4435 = vpop.f32.mrb[0].mxu0
    %v4436 = vadd.f32 %v3868, %v4435
    %v4437 = vpop.f32.mrb[0].mxu0
    %4438 = vmatprep.mubr.bf16.mxu0 %v3549
    %4439 = vmatmul.mubr.bf16.gmra.mrb[0].mxu0 %v3548
    %v4440 = vpop.f32.mrb[0].mxu0
    %v4441 = vadd.f32 %v3868, %v4440
    %v4442 = vpop.f32.mrb[0].mxu0
    %v4443 = vpop.f32.mrb[0].mxu0
    %v4444 = vadd.f32 %v3868, %v4443
    %v4445 = vpop.f32.mrb[0].mxu0
    %4446 = vmatprep.mubr.bf16.mxu0 %v3558
    %4447 = vmatmul.mubr.bf16.gmra.mrb[0].mxu0 %v3557
    %v4448 = vpop.f32.mrb[0].mxu0
    %v4449 = vadd.f32 %v3868, %v4448
    %v4450 = vpop.f32.mrb[0].mxu0
    %v4451 = vpop.f32.mrb[0].mxu0
    %v4452 = vadd.f32 %v3868, %v4451
    %v4453 = vpop.f32.mrb[0].mxu0
    %4454 = vmatprep.mubr.bf16.mxu0 %v3567
    %4455 = vmatmul.mubr.bf16.gmra.mrb[0].mxu0 %v3566
    %v4456 = vpop.f32.mrb[0].mxu0
    %v4457 = vadd.f32 %v3868, %v4456
    %v4458 = vpop.f32.mrb[0].mxu0
    %v4459 = vpop.f32.mrb[0].mxu0
    %v4460 = vadd.f32 %v3868, %v4459
    %v4461 = vpop.f32.mrb[0].mxu0
    %4462 = vmatprep.mubr.bf16.mxu0 %v3576
    %4463 = vmatmul.mubr.bf16.gmra.mrb[0].mxu0 %v3575
    %v4464 = vpop.f32.mrb[0].mxu0
    %v4465 = vadd.f32 %v3868, %v4464
    %v4466 = vpop.f32.mrb[0].mxu0
    %v4467 = vpop.f32.mrb[0].mxu0
    %v4468 = vadd.f32 %v3868, %v4467
    %v4469 = vpop.f32.mrb[0].mxu0
    %4470 = vmatprep.mubr.bf16.mxu0 %v3585
    %4471 = vmatmul.mubr.bf16.gmra.mrb[0].mxu0 %v3584
    %v4472 = vpop.f32.mrb[0].mxu0
    %v4473 = vadd.f32 %v3868, %v4472
    %v4474 = vpop.f32.mrb[0].mxu0
    %v4475 = vpop.f32.mrb[0].mxu0
    %v4476 = vadd.f32 %v3868, %v4475
    %v4477 = vpop.f32.mrb[0].mxu0
    %4478 = vmatprep.mubr.bf16.mxu0 %v3594
    %4479 = vmatmul.mubr.bf16.gmra.mrb[0].mxu0 %v3593
    %v4480 = vpop.f32.mrb[0].mxu0
    %v4481 = vadd.f32 %v3868, %v4480
    %v4482 = vpop.f32.mrb[0].mxu0
    %v4483 = vpop.f32.mrb[0].mxu0
    %v4484 = vadd.f32 %v3868, %v4483
    %v4485 = vpop.f32.mrb[0].mxu0
    %4486 = vmatprep.mubr.bf16.mxu0 %v3603
    %4487 = vmatmul.mubr.bf16.gmra.mrb[0].mxu0 %v3602
    %v4488 = vpop.f32.mrb[0].mxu0
    %v4489 = vadd.f32 %v3868, %v4488
    %v4490 = vpop.f32.mrb[0].mxu0
    %v4491 = vpop.f32.mrb[0].mxu0
    %v4492 = vadd.f32 %v3868, %v4491
    %v4493 = vpop.f32.mrb[0].mxu0
    %4494 = vmatprep.mubr.bf16.mxu0 %v3612
    %4495 = vmatmul.mubr.bf16.gmra.mrb[0].mxu0 %v3611
    %v4496 = vpop.f32.mrb[0].mxu0
    %v4497 = vadd.f32 %v3868, %v4496
    %v4498 = vpop.f32.mrb[0].mxu0
    %v4499 = vpop.f32.mrb[0].mxu0
    %v4500 = vadd.f32 %v3868, %v4499
    %v4501 = vpop.f32.mrb[0].mxu0
    %4502 = vmatprep.mubr.bf16.mxu0 %v3621
    %4503 = vmatmul.mubr.bf16.gmra.mrb[0].mxu0 %v3620
    %v4504 = vpop.f32.mrb[0].mxu0
    %v4505 = vadd.f32 %v3868, %v4504
    %v4506 = vpop.f32.mrb[0].mxu0
    %v4507 = vpop.f32.mrb[0].mxu0
    %v4508 = vadd.f32 %v3868, %v4507
    %v4509 = vpop.f32.mrb[0].mxu0
    %4510 = vmatprep.mubr.bf16.mxu0 %v3630
    %4511 = vmatmul.mubr.bf16.gmra.mrb[0].mxu0 %v3629
    %v4512 = vpop.f32.mrb[0].mxu0
    %v4513 = vadd.f32 %v3868, %v4512
    %v4514 = vpop.f32.mrb[0].mxu0
    %v4515 = vpop.f32.mrb[0].mxu0
    %v4516 = vadd.f32 %v3868, %v4515
    %v4517 = vpop.f32.mrb[0].mxu0
    %4518 = vmatprep.mubr.bf16.mxu0 %v3639
    %4519 = vmatmul.mubr.bf16.gmra.mrb[0].mxu0 %v3638
    %v4520 = vpop.f32.mrb[0].mxu0
    %v4521 = vadd.f32 %v3868, %v4520
    %v4522 = vpop.f32.mrb[0].mxu0
    %v4523 = vpop.f32.mrb[0].mxu0
    %v4524 = vadd.f32 %v3868, %v4523
    %v4525 = vpop.f32.mrb[0].mxu0
    %4526 = vmatprep.mubr.bf16.mxu0 %v3648
    %4527 = vmatmul.mubr.bf16.gmra.mrb[0].mxu0 %v3647
    %v4528 = vpop.f32.mrb[0].mxu0
    %v4529 = vadd.f32 %v3868, %v4528
    %v4530 = vpop.f32.mrb[0].mxu0
    %v4531 = vpop.f32.mrb[0].mxu0
    %v4532 = vadd.f32 %v3868, %v4531
    %v4533 = vpop.f32.mrb[0].mxu0
    %4534 = vmatprep.mubr.bf16.mxu0 %v3657
    %4535 = vmatmul.mubr.bf16.gmra.mrb[0].mxu0 %v3656
    %v4536 = vpop.f32.mrb[0].mxu0
    %v4537 = vadd.f32 %v3868, %v4536
    %v4538 = vpop.f32.mrb[0].mxu0
    %v4539 = vpop.f32.mrb[0].mxu0
    %v4540 = vadd.f32 %v3868, %v4539
    %v4541 = vpop.f32.mrb[0].mxu0
    %4542 = vmatprep.mubr.bf16.mxu0 %v3666
    %4543 = vmatmul.mubr.bf16.gmra.mrb[0].mxu0 %v3665
    %v4544 = vpop.f32.mrb[0].mxu0
    %v4545 = vadd.f32 %v3868, %v4544
    %v4546 = vpop.f32.mrb[0].mxu0
    %v4547 = vpop.f32.mrb[0].mxu0
    %v4548 = vadd.f32 %v3868, %v4547
    %v4549 = vpop.f32.mrb[0].mxu0
    %4550 = vmatprep.mubr.bf16.mxu0 %v3675
    %4551 = vmatmul.mubr.bf16.gmra.mrb[0].mxu0 %v3674
    %v4552 = vpop.f32.mrb[0].mxu0
    %v4553 = vadd.f32 %v3868, %v4552
    %v4554 = vpop.f32.mrb[0].mxu0
    %v4555 = vpop.f32.mrb[0].mxu0
    %v4556 = vadd.f32 %v3868, %v4555
    %v4557 = vpop.f32.mrb[0].mxu0
    %4558 = vmatprep.mubr.bf16.mxu0 %v3684
    %4559 = vmatmul.mubr.bf16.gmra.mrb[0].mxu0 %v3683
    %v4560 = vpop.f32.mrb[0].mxu0
    %v4561 = vadd.f32 %v3868, %v4560
    %v4562 = vpop.f32.mrb[0].mxu0
    %v4563 = vpop.f32.mrb[0].mxu0
    %v4564 = vadd.f32 %v3868, %v4563
    %v4565 = vpop.f32.mrb[0].mxu0
    %4566 = vmatprep.mubr.bf16.mxu0 %v3693
    %4567 = vmatmul.mubr.bf16.gmra.mrb[0].mxu0 %v3692
    %v4568 = vpop.f32.mrb[0].mxu0
    %v4569 = vadd.f32 %v3868, %v4568
    %v4570 = vpop.f32.mrb[0].mxu0
    %v4571 = vpop.f32.mrb[0].mxu0
    %v4572 = vadd.f32 %v3868, %v4571
    %v4573 = vpop.f32.mrb[0].mxu0
    %4574 = vmatprep.mubr.bf16.mxu0 %v3702
    %4575 = vmatmul.mubr.bf16.gmra.mrb[0].mxu0 %v3701
    %v4576 = vpop.f32.mrb[0].mxu0
    %v4577 = vadd.f32 %v3868, %v4576
    %v4578 = vpop.f32.mrb[0].mxu0
    %v4579 = vpop.f32.mrb[0].mxu0
    %v4580 = vadd.f32 %v3868, %v4579
    %v4581 = vpop.f32.mrb[0].mxu0
    %4582 = vmatprep.mubr.bf16.mxu0 %v3711
    %4583 = vmatmul.mubr.bf16.gmra.mrb[0].mxu0 %v3710
    %v4584 = vpop.f32.mrb[0].mxu0
    %v4585 = vadd.f32 %v3868, %v4584
    %v4586 = vpop.f32.mrb[0].mxu0
    %v4587 = vpop.f32.mrb[0].mxu0
    %v4588 = vadd.f32 %v3868, %v4587
    %v4589 = vpop.f32.mrb[0].mxu0
    %4590 = vdwg.mxu0
    %4591 = vmatprep.subr.bf16.mxu0 0
    %4592 = vmatpush1.bf16.msra.mxu0 %v4174
    %4593 = vmatprep.subr.bf16.mxu0 0
    %4594 = vmatpush1.bf16.msra.mxu0 %v4175
    %4595 = vmatprep.subr.bf16.mxu0 0
    %4596 = vmatpush1.bf16.msra.mxu0 %v4176
    %4597 = vmatprep.subr.bf16.mxu0 0
    %4598 = vmatpush1.bf16.msra.mxu0 %v4177
    %4599 = vmatprep.subr.bf16.mxu0 0
    %4600 = vmatpush1.bf16.msra.mxu0 %v4178
    %4601 = vmatprep.subr.bf16.mxu0 0
    %4602 = vmatpush1.bf16.msra.mxu0 %v4179
    %4603 = vmatprep.subr.bf16.mxu0 0
    %4604 = vmatpush1.bf16.msra.mxu0 %v4180
    %4605 = vmatprep.subr.bf16.mxu0 0
    %4606 = vmatpush1.bf16.msra.mxu0 %v4181
    %4607 = vmatprep.subr.bf16.mxu0 0
    %4608 = vmatpush1.bf16.msra.mxu0 %v4182
    %4609 = vmatprep.subr.bf16.mxu0 0
    %4610 = vmatpush1.bf16.msra.mxu0 %v4183
    %4611 = vmatprep.subr.bf16.mxu0 0
    %4612 = vmatpush1.bf16.msra.mxu0 %v4184
    %4613 = vmatprep.subr.bf16.mxu0 0
    %4614 = vmatpush1.bf16.msra.mxu0 %v4185
    %4615 = vmatprep.subr.bf16.mxu0 0
    %4616 = vmatpush1.bf16.msra.mxu0 %v4186
    %4617 = vmatprep.subr.bf16.mxu0 0
    %4618 = vmatpush1.bf16.msra.mxu0 %v4187
    %4619 = vmatprep.subr.bf16.mxu0 0
    %4620 = vmatpush1.bf16.msra.mxu0 %v4188
    %4621 = vmatprep.subr.bf16.mxu0 0
    %4622 = vmatpush1.bf16.msra.mxu0 %v4189
    %4623 = vmatprep.mubr.bf16.mxu0 %v3434
    %4624 = vmatmul.mubr.bf16.gmra.mrb[0].mxu0 %v3433
    %v4625 = vpop.f32.mrb[0].mxu0
    %v4626 = vadd.f32 %v4337, %v4625
    %v4627 = vpop.f32.mrb[0].mxu0
    %v4628 = vpop.f32.mrb[0].mxu0
    %v4629 = vadd.f32 %v4340, %v4628
    %v4630 = vpop.f32.mrb[0].mxu0
    %4631 = vmatprep.mubr.bf16.mxu0 %v3443
    %4632 = vmatmul.mubr.bf16.gmra.mrb[0].mxu0 %v3442
    %v4633 = vpop.f32.mrb[0].mxu0
    %v4634 = vadd.f32 %v4345, %v4633
    %v4635 = vpop.f32.mrb[0].mxu0
    %v4636 = vpop.f32.mrb[0].mxu0
    %v4637 = vadd.f32 %v4348, %v4636
    %v4638 = vpop.f32.mrb[0].mxu0
    %4639 = vmatprep.mubr.bf16.mxu0 %v3452
    %4640 = vmatmul.mubr.bf16.gmra.mrb[0].mxu0 %v3451
    %v4641 = vpop.f32.mrb[0].mxu0
    %v4642 = vadd.f32 %v4353, %v4641
    %v4643 = vpop.f32.mrb[0].mxu0
    %v4644 = vpop.f32.mrb[0].mxu0
    %v4645 = vadd.f32 %v4356, %v4644
    %v4646 = vpop.f32.mrb[0].mxu0
    %4647 = vmatprep.mubr.bf16.mxu0 %v3461
    %4648 = vmatmul.mubr.bf16.gmra.mrb[0].mxu0 %v3460
    %v4649 = vpop.f32.mrb[0].mxu0
    %v4650 = vadd.f32 %v4361, %v4649
    %v4651 = vpop.f32.mrb[0].mxu0
    %v4652 = vpop.f32.mrb[0].mxu0
    %v4653 = vadd.f32 %v4364, %v4652
    %v4654 = vpop.f32.mrb[0].mxu0
    %4655 = vmatprep.mubr.bf16.mxu0 %v3470
    %4656 = vmatmul.mubr.bf16.gmra.mrb[0].mxu0 %v3469
    %v4657 = vpop.f32.mrb[0].mxu0
    %v4658 = vadd.f32 %v4369, %v4657
    %v4659 = vpop.f32.mrb[0].mxu0
    %v4660 = vpop.f32.mrb[0].mxu0
    %v4661 = vadd.f32 %v4372, %v4660
    %v4662 = vpop.f32.mrb[0].mxu0
    %4663 = vmatprep.mubr.bf16.mxu0 %v3479
    %4664 = vmatmul.mubr.bf16.gmra.mrb[0].mxu0 %v3478
    %v4665 = vpop.f32.mrb[0].mxu0
    %v4666 = vadd.f32 %v4377, %v4665
    %v4667 = vpop.f32.mrb[0].mxu0
    %v4668 = vpop.f32.mrb[0].mxu0
    %v4669 = vadd.f32 %v4380, %v4668
    %v4670 = vpop.f32.mrb[0].mxu0
    %4671 = vmatprep.mubr.bf16.mxu0 %v3488
    %4672 = vmatmul.mubr.bf16.gmra.mrb[0].mxu0 %v3487
    %v4673 = vpop.f32.mrb[0].mxu0
    %v4674 = vadd.f32 %v4385, %v4673
    %v4675 = vpop.f32.mrb[0].mxu0
    %v4676 = vpop.f32.mrb[0].mxu0
    %v4677 = vadd.f32 %v4388, %v4676
    %v4678 = vpop.f32.mrb[0].mxu0
    %4679 = vmatprep.mubr.bf16.mxu0 %v3497
    %4680 = vmatmul.mubr.bf16.gmra.mrb[0].mxu0 %v3496
    %v4681 = vpop.f32.mrb[0].mxu0
    %v4682 = vadd.f32 %v4393, %v4681
    %v4683 = vpop.f32.mrb[0].mxu0
    %v4684 = vpop.f32.mrb[0].mxu0
    %v4685 = vadd.f32 %v4396, %v4684
    %v4686 = vpop.f32.mrb[0].mxu0
    %4687 = vmatprep.mubr.bf16.mxu0 %v3506
    %4688 = vmatmul.mubr.bf16.gmra.mrb[0].mxu0 %v3505
    %v4689 = vpop.f32.mrb[0].mxu0
    %v4690 = vadd.f32 %v4401, %v4689
    %v4691 = vpop.f32.mrb[0].mxu0
    %v4692 = vpop.f32.mrb[0].mxu0
    %v4693 = vadd.f32 %v4404, %v4692
    %v4694 = vpop.f32.mrb[0].mxu0
    %4695 = vmatprep.mubr.bf16.mxu0 %v3515
    %4696 = vmatmul.mubr.bf16.gmra.mrb[0].mxu0 %v3514
    %v4697 = vpop.f32.mrb[0].mxu0
    %v4698 = vadd.f32 %v4409, %v4697
    %v4699 = vpop.f32.mrb[0].mxu0
    %v4700 = vpop.f32.mrb[0].mxu0
    %v4701 = vadd.f32 %v4412, %v4700
    %v4702 = vpop.f32.mrb[0].mxu0
    %4703 = vmatprep.mubr.bf16.mxu0 %v3524
    %4704 = vmatmul.mubr.bf16.gmra.mrb[0].mxu0 %v3523
    %v4705 = vpop.f32.mrb[0].mxu0
    %v4706 = vadd.f32 %v4417, %v4705
    %v4707 = vpop.f32.mrb[0].mxu0
    %v4708 = vpop.f32.mrb[0].mxu0
    %v4709 = vadd.f32 %v4420, %v4708
    %v4710 = vpop.f32.mrb[0].mxu0
    %4711 = vmatprep.mubr.bf16.mxu0 %v3533
    %4712 = vmatmul.mubr.bf16.gmra.mrb[0].mxu0 %v3532
    %v4713 = vpop.f32.mrb[0].mxu0
    %v4714 = vadd.f32 %v4425, %v4713
    %v4715 = vpop.f32.mrb[0].mxu0
    %v4716 = vpop.f32.mrb[0].mxu0
    %v4717 = vadd.f32 %v4428, %v4716
    %v4718 = vpop.f32.mrb[0].mxu0
    %4719 = vmatprep.mubr.bf16.mxu0 %v3542
    %4720 = vmatmul.mubr.bf16.gmra.mrb[0].mxu0 %v3541
    %v4721 = vpop.f32.mrb[0].mxu0
    %v4722 = vadd.f32 %v4433, %v4721
    %v4723 = vpop.f32.mrb[0].mxu0
    %v4724 = vpop.f32.mrb[0].mxu0
    %v4725 = vadd.f32 %v4436, %v4724
    %v4726 = vpop.f32.mrb[0].mxu0
    %4727 = vmatprep.mubr.bf16.mxu0 %v3551
    %4728 = vmatmul.mubr.bf16.gmra.mrb[0].mxu0 %v3550
    %v4729 = vpop.f32.mrb[0].mxu0
    %v4730 = vadd.f32 %v4441, %v4729
    %v4731 = vpop.f32.mrb[0].mxu0
    %v4732 = vpop.f32.mrb[0].mxu0
    %v4733 = vadd.f32 %v4444, %v4732
    %v4734 = vpop.f32.mrb[0].mxu0
    %4735 = vmatprep.mubr.bf16.mxu0 %v3560
    %4736 = vmatmul.mubr.bf16.gmra.mrb[0].mxu0 %v3559
    %v4737 = vpop.f32.mrb[0].mxu0
    %v4738 = vadd.f32 %v4449, %v4737
    %v4739 = vpop.f32.mrb[0].mxu0
    %v4740 = vpop.f32.mrb[0].mxu0
    %v4741 = vadd.f32 %v4452, %v4740
    %v4742 = vpop.f32.mrb[0].mxu0
    %4743 = vmatprep.mubr.bf16.mxu0 %v3569
    %4744 = vmatmul.mubr.bf16.gmra.mrb[0].mxu0 %v3568
    %v4745 = vpop.f32.mrb[0].mxu0
    %v4746 = vadd.f32 %v4457, %v4745
    %v4747 = vpop.f32.mrb[0].mxu0
    %v4748 = vpop.f32.mrb[0].mxu0
    %v4749 = vadd.f32 %v4460, %v4748
    %v4750 = vpop.f32.mrb[0].mxu0
    %4751 = vmatprep.mubr.bf16.mxu0 %v3578
    %4752 = vmatmul.mubr.bf16.gmra.mrb[0].mxu0 %v3577
    %v4753 = vpop.f32.mrb[0].mxu0
    %v4754 = vadd.f32 %v4465, %v4753
    %v4755 = vpop.f32.mrb[0].mxu0
    %v4756 = vpop.f32.mrb[0].mxu0
    %v4757 = vadd.f32 %v4468, %v4756
    %v4758 = vpop.f32.mrb[0].mxu0
    %4759 = vmatprep.mubr.bf16.mxu0 %v3587
    %4760 = vmatmul.mubr.bf16.gmra.mrb[0].mxu0 %v3586
    %v4761 = vpop.f32.mrb[0].mxu0
    %v4762 = vadd.f32 %v4473, %v4761
    %v4763 = vpop.f32.mrb[0].mxu0
    %v4764 = vpop.f32.mrb[0].mxu0
    %v4765 = vadd.f32 %v4476, %v4764
    %v4766 = vpop.f32.mrb[0].mxu0
    %4767 = vmatprep.mubr.bf16.mxu0 %v3596
    %4768 = vmatmul.mubr.bf16.gmra.mrb[0].mxu0 %v3595
    %v4769 = vpop.f32.mrb[0].mxu0
    %v4770 = vadd.f32 %v4481, %v4769
    %v4771 = vpop.f32.mrb[0].mxu0
    %v4772 = vpop.f32.mrb[0].mxu0
    %v4773 = vadd.f32 %v4484, %v4772
    %v4774 = vpop.f32.mrb[0].mxu0
    %4775 = vmatprep.mubr.bf16.mxu0 %v3605
    %4776 = vmatmul.mubr.bf16.gmra.mrb[0].mxu0 %v3604
    %v4777 = vpop.f32.mrb[0].mxu0
    %v4778 = vadd.f32 %v4489, %v4777
    %v4779 = vpop.f32.mrb[0].mxu0
    %v4780 = vpop.f32.mrb[0].mxu0
    %v4781 = vadd.f32 %v4492, %v4780
    %v4782 = vpop.f32.mrb[0].mxu0
    %4783 = vmatprep.mubr.bf16.mxu0 %v3614
    %4784 = vmatmul.mubr.bf16.gmra.mrb[0].mxu0 %v3613
    %v4785 = vpop.f32.mrb[0].mxu0
    %v4786 = vadd.f32 %v4497, %v4785
    %v4787 = vpop.f32.mrb[0].mxu0
    %v4788 = vpop.f32.mrb[0].mxu0
    %v4789 = vadd.f32 %v4500, %v4788
    %v4790 = vpop.f32.mrb[0].mxu0
    %4791 = vmatprep.mubr.bf16.mxu0 %v3623
    %4792 = vmatmul.mubr.bf16.gmra.mrb[0].mxu0 %v3622
    %v4793 = vpop.f32.mrb[0].mxu0
    %v4794 = vadd.f32 %v4505, %v4793
    %v4795 = vpop.f32.mrb[0].mxu0
    %v4796 = vpop.f32.mrb[0].mxu0
    %v4797 = vadd.f32 %v4508, %v4796
    %v4798 = vpop.f32.mrb[0].mxu0
    %4799 = vmatprep.mubr.bf16.mxu0 %v3632
    %4800 = vmatmul.mubr.bf16.gmra.mrb[0].mxu0 %v3631
    %v4801 = vpop.f32.mrb[0].mxu0
    %v4802 = vadd.f32 %v4513, %v4801
    %v4803 = vpop.f32.mrb[0].mxu0
    %v4804 = vpop.f32.mrb[0].mxu0
    %v4805 = vadd.f32 %v4516, %v4804
    %v4806 = vpop.f32.mrb[0].mxu0
    %4807 = vmatprep.mubr.bf16.mxu0 %v3641
    %4808 = vmatmul.mubr.bf16.gmra.mrb[0].mxu0 %v3640
    %v4809 = vpop.f32.mrb[0].mxu0
    %v4810 = vadd.f32 %v4521, %v4809
    %v4811 = vpop.f32.mrb[0].mxu0
    %v4812 = vpop.f32.mrb[0].mxu0
    %v4813 = vadd.f32 %v4524, %v4812
    %v4814 = vpop.f32.mrb[0].mxu0
    %4815 = vmatprep.mubr.bf16.mxu0 %v3650
    %4816 = vmatmul.mubr.bf16.gmra.mrb[0].mxu0 %v3649
    %v4817 = vpop.f32.mrb[0].mxu0
    %v4818 = vadd.f32 %v4529, %v4817
    %v4819 = vpop.f32.mrb[0].mxu0
    %v4820 = vpop.f32.mrb[0].mxu0
    %v4821 = vadd.f32 %v4532, %v4820
    %v4822 = vpop.f32.mrb[0].mxu0
    %4823 = vmatprep.mubr.bf16.mxu0 %v3659
    %4824 = vmatmul.mubr.bf16.gmra.mrb[0].mxu0 %v3658
    %v4825 = vpop.f32.mrb[0].mxu0
    %v4826 = vadd.f32 %v4537, %v4825
    %v4827 = vpop.f32.mrb[0].mxu0
    %v4828 = vpop.f32.mrb[0].mxu0
    %v4829 = vadd.f32 %v4540, %v4828
    %v4830 = vpop.f32.mrb[0].mxu0
    %4831 = vmatprep.mubr.bf16.mxu0 %v3668
    %4832 = vmatmul.mubr.bf16.gmra.mrb[0].mxu0 %v3667
    %v4833 = vpop.f32.mrb[0].mxu0
    %v4834 = vadd.f32 %v4545, %v4833
    %v4835 = vpop.f32.mrb[0].mxu0
    %v4836 = vpop.f32.mrb[0].mxu0
    %v4837 = vadd.f32 %v4548, %v4836
    %v4838 = vpop.f32.mrb[0].mxu0
    %4839 = vmatprep.mubr.bf16.mxu0 %v3677
    %4840 = vmatmul.mubr.bf16.gmra.mrb[0].mxu0 %v3676
    %v4841 = vpop.f32.mrb[0].mxu0
    %v4842 = vadd.f32 %v4553, %v4841
    %v4843 = vpop.f32.mrb[0].mxu0
    %v4844 = vpop.f32.mrb[0].mxu0
    %v4845 = vadd.f32 %v4556, %v4844
    %v4846 = vpop.f32.mrb[0].mxu0
    %4847 = vmatprep.mubr.bf16.mxu0 %v3686
    %4848 = vmatmul.mubr.bf16.gmra.mrb[0].mxu0 %v3685
    %v4849 = vpop.f32.mrb[0].mxu0
    %v4850 = vadd.f32 %v4561, %v4849
    %v4851 = vpop.f32.mrb[0].mxu0
    %v4852 = vpop.f32.mrb[0].mxu0
    %v4853 = vadd.f32 %v4564, %v4852
    %v4854 = vpop.f32.mrb[0].mxu0
    %4855 = vmatprep.mubr.bf16.mxu0 %v3695
    %4856 = vmatmul.mubr.bf16.gmra.mrb[0].mxu0 %v3694
    %v4857 = vpop.f32.mrb[0].mxu0
    %v4858 = vadd.f32 %v4569, %v4857
    %v4859 = vpop.f32.mrb[0].mxu0
    %v4860 = vpop.f32.mrb[0].mxu0
    %v4861 = vadd.f32 %v4572, %v4860
    %v4862 = vpop.f32.mrb[0].mxu0
    %4863 = vmatprep.mubr.bf16.mxu0 %v3704
    %4864 = vmatmul.mubr.bf16.gmra.mrb[0].mxu0 %v3703
    %v4865 = vpop.f32.mrb[0].mxu0
    %v4866 = vadd.f32 %v4577, %v4865
    %v4867 = vpop.f32.mrb[0].mxu0
    %v4868 = vpop.f32.mrb[0].mxu0
    %v4869 = vadd.f32 %v4580, %v4868
    %v4870 = vpop.f32.mrb[0].mxu0
    %4871 = vmatprep.mubr.bf16.mxu0 %v3713
    %4872 = vmatmul.mubr.bf16.gmra.mrb[0].mxu0 %v3712
    %v4873 = vpop.f32.mrb[0].mxu0
    %v4874 = vadd.f32 %v4585, %v4873
    %v4875 = vpop.f32.mrb[0].mxu0
    %v4876 = vpop.f32.mrb[0].mxu0
    %v4877 = vadd.f32 %v4588, %v4876
    %v4878 = vpop.f32.mrb[0].mxu0
    %4879 = vdwg.mxu0
    %4880 = vmatprep.subr.bf16.mxu0 0
    %4881 = vmatpush1.bf16.msra.mxu0 %v4190
    %4882 = vmatprep.subr.bf16.mxu0 0
    %4883 = vmatpush1.bf16.msra.mxu0 %v4191
    %4884 = vmatprep.subr.bf16.mxu0 0
    %4885 = vmatpush1.bf16.msra.mxu0 %v4192
    %4886 = vmatprep.subr.bf16.mxu0 0
    %4887 = vmatpush1.bf16.msra.mxu0 %v4193
    %4888 = vmatprep.subr.bf16.mxu0 0
    %4889 = vmatpush1.bf16.msra.mxu0 %v4194
    %4890 = vmatprep.subr.bf16.mxu0 0
    %4891 = vmatpush1.bf16.msra.mxu0 %v4195
    %4892 = vmatprep.subr.bf16.mxu0 0
    %4893 = vmatpush1.bf16.msra.mxu0 %v4196
    %4894 = vmatprep.subr.bf16.mxu0 0
    %4895 = vmatpush1.bf16.msra.mxu0 %v4197
    %4896 = vmatprep.subr.bf16.mxu0 0
    %4897 = vmatpush1.bf16.msra.mxu0 %v4198
    %4898 = vmatprep.subr.bf16.mxu0 0
    %4899 = vmatpush1.bf16.msra.mxu0 %v4199
    %4900 = vmatprep.subr.bf16.mxu0 0
    %4901 = vmatpush1.bf16.msra.mxu0 %v4200
    %4902 = vmatprep.subr.bf16.mxu0 0
    %4903 = vmatpush1.bf16.msra.mxu0 %v4201
    %4904 = vmatprep.subr.bf16.mxu0 0
    %4905 = vmatpush1.bf16.msra.mxu0 %v4202
    %4906 = vmatprep.subr.bf16.mxu0 0
    %4907 = vmatpush1.bf16.msra.mxu0 %v4203
    %4908 = vmatprep.subr.bf16.mxu0 0
    %4909 = vmatpush1.bf16.msra.mxu0 %v4204
    %4910 = vmatprep.subr.bf16.mxu0 0
    %4911 = vmatpush1.bf16.msra.mxu0 %v4205
    %4912 = vmatprep.mubr.bf16.mxu0 %v3436
    %4913 = vmatmul.mubr.bf16.gmra.mrb[0].mxu0 %v3435
    %v4914 = vpop.f32.mrb[0].mxu0
    %v4915 = vadd.f32 %v4626, %v4914
    %v4916 = vpop.f32.mrb[0].mxu0
    %v4917 = vpop.f32.mrb[0].mxu0
    %v4918 = vadd.f32 %v4629, %v4917
    %v4919 = vpop.f32.mrb[0].mxu0
    %4920 = vmatprep.mubr.bf16.mxu0 %v3445
    %4921 = vmatmul.mubr.bf16.gmra.mrb[0].mxu0 %v3444
    %v4922 = vpop.f32.mrb[0].mxu0
    %v4923 = vadd.f32 %v4634, %v4922
    %v4924 = vpop.f32.mrb[0].mxu0
    %v4925 = vpop.f32.mrb[0].mxu0
    %v4926 = vadd.f32 %v4637, %v4925
    %v4927 = vpop.f32.mrb[0].mxu0
    %4928 = vmatprep.mubr.bf16.mxu0 %v3454
    %4929 = vmatmul.mubr.bf16.gmra.mrb[0].mxu0 %v3453
    %v4930 = vpop.f32.mrb[0].mxu0
    %v4931 = vadd.f32 %v4642, %v4930
    %v4932 = vpop.f32.mrb[0].mxu0
    %v4933 = vpop.f32.mrb[0].mxu0
    %v4934 = vadd.f32 %v4645, %v4933
    %v4935 = vpop.f32.mrb[0].mxu0
    %4936 = vmatprep.mubr.bf16.mxu0 %v3463
    %4937 = vmatmul.mubr.bf16.gmra.mrb[0].mxu0 %v3462
    %v4938 = vpop.f32.mrb[0].mxu0
    %v4939 = vadd.f32 %v4650, %v4938
    %v4940 = vpop.f32.mrb[0].mxu0
    %v4941 = vpop.f32.mrb[0].mxu0
    %v4942 = vadd.f32 %v4653, %v4941
    %v4943 = vpop.f32.mrb[0].mxu0
    %4944 = vmatprep.mubr.bf16.mxu0 %v3472
    %4945 = vmatmul.mubr.bf16.gmra.mrb[0].mxu0 %v3471
    %v4946 = vpop.f32.mrb[0].mxu0
    %v4947 = vadd.f32 %v4658, %v4946
    %v4948 = vpop.f32.mrb[0].mxu0
    %v4949 = vpop.f32.mrb[0].mxu0
    %v4950 = vadd.f32 %v4661, %v4949
    %v4951 = vpop.f32.mrb[0].mxu0
    %4952 = vmatprep.mubr.bf16.mxu0 %v3481
    %4953 = vmatmul.mubr.bf16.gmra.mrb[0].mxu0 %v3480
    %v4954 = vpop.f32.mrb[0].mxu0
    %v4955 = vadd.f32 %v4666, %v4954
    %v4956 = vpop.f32.mrb[0].mxu0
    %v4957 = vpop.f32.mrb[0].mxu0
    %v4958 = vadd.f32 %v4669, %v4957
    %v4959 = vpop.f32.mrb[0].mxu0
    %4960 = vmatprep.mubr.bf16.mxu0 %v3490
    %4961 = vmatmul.mubr.bf16.gmra.mrb[0].mxu0 %v3489
    %v4962 = vpop.f32.mrb[0].mxu0
    %v4963 = vadd.f32 %v4674, %v4962
    %v4964 = vpop.f32.mrb[0].mxu0
    %v4965 = vpop.f32.mrb[0].mxu0
    %v4966 = vadd.f32 %v4677, %v4965
    %v4967 = vpop.f32.mrb[0].mxu0
    %4968 = vmatprep.mubr.bf16.mxu0 %v3499
    %4969 = vmatmul.mubr.bf16.gmra.mrb[0].mxu0 %v3498
    %v4970 = vpop.f32.mrb[0].mxu0
    %v4971 = vadd.f32 %v4682, %v4970
    %v4972 = vpop.f32.mrb[0].mxu0
    %v4973 = vpop.f32.mrb[0].mxu0
    %v4974 = vadd.f32 %v4685, %v4973
    %v4975 = vpop.f32.mrb[0].mxu0
    %4976 = vmatprep.mubr.bf16.mxu0 %v3508
    %4977 = vmatmul.mubr.bf16.gmra.mrb[0].mxu0 %v3507
    %v4978 = vpop.f32.mrb[0].mxu0
    %v4979 = vadd.f32 %v4690, %v4978
    %v4980 = vpop.f32.mrb[0].mxu0
    %v4981 = vpop.f32.mrb[0].mxu0
    %v4982 = vadd.f32 %v4693, %v4981
    %v4983 = vpop.f32.mrb[0].mxu0
    %4984 = vmatprep.mubr.bf16.mxu0 %v3517
    %4985 = vmatmul.mubr.bf16.gmra.mrb[0].mxu0 %v3516
    %v4986 = vpop.f32.mrb[0].mxu0
    %v4987 = vadd.f32 %v4698, %v4986
    %v4988 = vpop.f32.mrb[0].mxu0
    %v4989 = vpop.f32.mrb[0].mxu0
    %v4990 = vadd.f32 %v4701, %v4989
    %v4991 = vpop.f32.mrb[0].mxu0
    %4992 = vmatprep.mubr.bf16.mxu0 %v3526
    %4993 = vmatmul.mubr.bf16.gmra.mrb[0].mxu0 %v3525
    %v4994 = vpop.f32.mrb[0].mxu0
    %v4995 = vadd.f32 %v4706, %v4994
    %v4996 = vpop.f32.mrb[0].mxu0
    %v4997 = vpop.f32.mrb[0].mxu0
    %v4998 = vadd.f32 %v4709, %v4997
    %v4999 = vpop.f32.mrb[0].mxu0
    %5000 = vmatprep.mubr.bf16.mxu0 %v3535
    %5001 = vmatmul.mubr.bf16.gmra.mrb[0].mxu0 %v3534
    %v5002 = vpop.f32.mrb[0].mxu0
    %v5003 = vadd.f32 %v4714, %v5002
    %v5004 = vpop.f32.mrb[0].mxu0
    %v5005 = vpop.f32.mrb[0].mxu0
    %v5006 = vadd.f32 %v4717, %v5005
    %v5007 = vpop.f32.mrb[0].mxu0
    %5008 = vmatprep.mubr.bf16.mxu0 %v3544
    %5009 = vmatmul.mubr.bf16.gmra.mrb[0].mxu0 %v3543
    %v5010 = vpop.f32.mrb[0].mxu0
    %v5011 = vadd.f32 %v4722, %v5010
    %v5012 = vpop.f32.mrb[0].mxu0
    %v5013 = vpop.f32.mrb[0].mxu0
    %v5014 = vadd.f32 %v4725, %v5013
    %v5015 = vpop.f32.mrb[0].mxu0
    %5016 = vmatprep.mubr.bf16.mxu0 %v3553
    %5017 = vmatmul.mubr.bf16.gmra.mrb[0].mxu0 %v3552
    %v5018 = vpop.f32.mrb[0].mxu0
    %v5019 = vadd.f32 %v4730, %v5018
    %v5020 = vpop.f32.mrb[0].mxu0
    %v5021 = vpop.f32.mrb[0].mxu0
    %v5022 = vadd.f32 %v4733, %v5021
    %v5023 = vpop.f32.mrb[0].mxu0
    %5024 = vmatprep.mubr.bf16.mxu0 %v3562
    %5025 = vmatmul.mubr.bf16.gmra.mrb[0].mxu0 %v3561
    %v5026 = vpop.f32.mrb[0].mxu0
    %v5027 = vadd.f32 %v4738, %v5026
    %v5028 = vpop.f32.mrb[0].mxu0
    %v5029 = vpop.f32.mrb[0].mxu0
    %v5030 = vadd.f32 %v4741, %v5029
    %v5031 = vpop.f32.mrb[0].mxu0
    %5032 = vmatprep.mubr.bf16.mxu0 %v3571
    %5033 = vmatmul.mubr.bf16.gmra.mrb[0].mxu0 %v3570
    %v5034 = vpop.f32.mrb[0].mxu0
    %v5035 = vadd.f32 %v4746, %v5034
    %v5036 = vpop.f32.mrb[0].mxu0
    %v5037 = vpop.f32.mrb[0].mxu0
    %v5038 = vadd.f32 %v4749, %v5037
    %v5039 = vpop.f32.mrb[0].mxu0
    %5040 = vmatprep.mubr.bf16.mxu0 %v3580
    %5041 = vmatmul.mubr.bf16.gmra.mrb[0].mxu0 %v3579
    %v5042 = vpop.f32.mrb[0].mxu0
    %v5043 = vadd.f32 %v4754, %v5042
    %v5044 = vpop.f32.mrb[0].mxu0
    %v5045 = vpop.f32.mrb[0].mxu0
    %v5046 = vadd.f32 %v4757, %v5045
    %v5047 = vpop.f32.mrb[0].mxu0
    %5048 = vmatprep.mubr.bf16.mxu0 %v3589
    %5049 = vmatmul.mubr.bf16.gmra.mrb[0].mxu0 %v3588
    %v5050 = vpop.f32.mrb[0].mxu0
    %v5051 = vadd.f32 %v4762, %v5050
    %v5052 = vpop.f32.mrb[0].mxu0
    %v5053 = vpop.f32.mrb[0].mxu0
    %v5054 = vadd.f32 %v4765, %v5053
    %v5055 = vpop.f32.mrb[0].mxu0
    %5056 = vmatprep.mubr.bf16.mxu0 %v3598
    %5057 = vmatmul.mubr.bf16.gmra.mrb[0].mxu0 %v3597
    %v5058 = vpop.f32.mrb[0].mxu0
    %v5059 = vadd.f32 %v4770, %v5058
    %v5060 = vpop.f32.mrb[0].mxu0
    %v5061 = vpop.f32.mrb[0].mxu0
    %v5062 = vadd.f32 %v4773, %v5061
    %v5063 = vpop.f32.mrb[0].mxu0
    %5064 = vmatprep.mubr.bf16.mxu0 %v3607
    %5065 = vmatmul.mubr.bf16.gmra.mrb[0].mxu0 %v3606
    %v5066 = vpop.f32.mrb[0].mxu0
    %v5067 = vadd.f32 %v4778, %v5066
    %v5068 = vpop.f32.mrb[0].mxu0
    %v5069 = vpop.f32.mrb[0].mxu0
    %v5070 = vadd.f32 %v4781, %v5069
    %v5071 = vpop.f32.mrb[0].mxu0
    %5072 = vmatprep.mubr.bf16.mxu0 %v3616
    %5073 = vmatmul.mubr.bf16.gmra.mrb[0].mxu0 %v3615
    %v5074 = vpop.f32.mrb[0].mxu0
    %v5075 = vadd.f32 %v4786, %v5074
    %v5076 = vpop.f32.mrb[0].mxu0
    %v5077 = vpop.f32.mrb[0].mxu0
    %v5078 = vadd.f32 %v4789, %v5077
    %v5079 = vpop.f32.mrb[0].mxu0
    %5080 = vmatprep.mubr.bf16.mxu0 %v3625
    %5081 = vmatmul.mubr.bf16.gmra.mrb[0].mxu0 %v3624
    %v5082 = vpop.f32.mrb[0].mxu0
    %v5083 = vadd.f32 %v4794, %v5082
    %v5084 = vpop.f32.mrb[0].mxu0
    %v5085 = vpop.f32.mrb[0].mxu0
    %v5086 = vadd.f32 %v4797, %v5085
    %v5087 = vpop.f32.mrb[0].mxu0
    %5088 = vmatprep.mubr.bf16.mxu0 %v3634
    %5089 = vmatmul.mubr.bf16.gmra.mrb[0].mxu0 %v3633
    %v5090 = vpop.f32.mrb[0].mxu0
    %v5091 = vadd.f32 %v4802, %v5090
    %v5092 = vpop.f32.mrb[0].mxu0
    %v5093 = vpop.f32.mrb[0].mxu0
    %v5094 = vadd.f32 %v4805, %v5093
    %v5095 = vpop.f32.mrb[0].mxu0
    %5096 = vmatprep.mubr.bf16.mxu0 %v3643
    %5097 = vmatmul.mubr.bf16.gmra.mrb[0].mxu0 %v3642
    %v5098 = vpop.f32.mrb[0].mxu0
    %v5099 = vadd.f32 %v4810, %v5098
    %v5100 = vpop.f32.mrb[0].mxu0
    %v5101 = vpop.f32.mrb[0].mxu0
    %v5102 = vadd.f32 %v4813, %v5101
    %v5103 = vpop.f32.mrb[0].mxu0
    %5104 = vmatprep.mubr.bf16.mxu0 %v3652
    %5105 = vmatmul.mubr.bf16.gmra.mrb[0].mxu0 %v3651
    %v5106 = vpop.f32.mrb[0].mxu0
    %v5107 = vadd.f32 %v4818, %v5106
    %v5108 = vpop.f32.mrb[0].mxu0
    %v5109 = vpop.f32.mrb[0].mxu0
    %v5110 = vadd.f32 %v4821, %v5109
    %v5111 = vpop.f32.mrb[0].mxu0
    %5112 = vmatprep.mubr.bf16.mxu0 %v3661
    %5113 = vmatmul.mubr.bf16.gmra.mrb[0].mxu0 %v3660
    %v5114 = vpop.f32.mrb[0].mxu0
    %v5115 = vadd.f32 %v4826, %v5114
    %v5116 = vpop.f32.mrb[0].mxu0
    %v5117 = vpop.f32.mrb[0].mxu0
    %v5118 = vadd.f32 %v4829, %v5117
    %v5119 = vpop.f32.mrb[0].mxu0
    %5120 = vmatprep.mubr.bf16.mxu0 %v3670
    %5121 = vmatmul.mubr.bf16.gmra.mrb[0].mxu0 %v3669
    %v5122 = vpop.f32.mrb[0].mxu0
    %v5123 = vadd.f32 %v4834, %v5122
    %v5124 = vpop.f32.mrb[0].mxu0
    %v5125 = vpop.f32.mrb[0].mxu0
    %v5126 = vadd.f32 %v4837, %v5125
    %v5127 = vpop.f32.mrb[0].mxu0
    %5128 = vmatprep.mubr.bf16.mxu0 %v3679
    %5129 = vmatmul.mubr.bf16.gmra.mrb[0].mxu0 %v3678
    %v5130 = vpop.f32.mrb[0].mxu0
    %v5131 = vadd.f32 %v4842, %v5130
    %v5132 = vpop.f32.mrb[0].mxu0
    %v5133 = vpop.f32.mrb[0].mxu0
    %v5134 = vadd.f32 %v4845, %v5133
    %v5135 = vpop.f32.mrb[0].mxu0
    %5136 = vmatprep.mubr.bf16.mxu0 %v3688
    %5137 = vmatmul.mubr.bf16.gmra.mrb[0].mxu0 %v3687
    %v5138 = vpop.f32.mrb[0].mxu0
    %v5139 = vadd.f32 %v4850, %v5138
    %v5140 = vpop.f32.mrb[0].mxu0
    %v5141 = vpop.f32.mrb[0].mxu0
    %v5142 = vadd.f32 %v4853, %v5141
    %v5143 = vpop.f32.mrb[0].mxu0
    %5144 = vmatprep.mubr.bf16.mxu0 %v3697
    %5145 = vmatmul.mubr.bf16.gmra.mrb[0].mxu0 %v3696
    %v5146 = vpop.f32.mrb[0].mxu0
    %v5147 = vadd.f32 %v4858, %v5146
    %v5148 = vpop.f32.mrb[0].mxu0
    %v5149 = vpop.f32.mrb[0].mxu0
    %v5150 = vadd.f32 %v4861, %v5149
    %v5151 = vpop.f32.mrb[0].mxu0
    %5152 = vmatprep.mubr.bf16.mxu0 %v3706
    %5153 = vmatmul.mubr.bf16.gmra.mrb[0].mxu0 %v3705
    %v5154 = vpop.f32.mrb[0].mxu0
    %v5155 = vadd.f32 %v4866, %v5154
    %v5156 = vpop.f32.mrb[0].mxu0
    %v5157 = vpop.f32.mrb[0].mxu0
    %v5158 = vadd.f32 %v4869, %v5157
    %v5159 = vpop.f32.mrb[0].mxu0
    %5160 = vmatprep.mubr.bf16.mxu0 %v3715
    %5161 = vmatmul.mubr.bf16.gmra.mrb[0].mxu0 %v3714
    %v5162 = vpop.f32.mrb[0].mxu0
    %v5163 = vadd.f32 %v4874, %v5162
    %v5164 = vpop.f32.mrb[0].mxu0
    %v5165 = vpop.f32.mrb[0].mxu0
    %v5166 = vadd.f32 %v4877, %v5165
    %v5167 = vpop.f32.mrb[0].mxu0
    %5168 = vdwg.mxu0
    %5169 = vmatprep.subr.bf16.mxu0 0
    %5170 = vmatpush1.bf16.msra.mxu0 %v4206
    %5171 = vmatprep.subr.bf16.mxu0 0
    %5172 = vmatpush1.bf16.msra.mxu0 %v4207
    %5173 = vmatprep.subr.bf16.mxu0 0
    %5174 = vmatpush1.bf16.msra.mxu0 %v4208
    %5175 = vmatprep.subr.bf16.mxu0 0
    %5176 = vmatpush1.bf16.msra.mxu0 %v4209
    %5177 = vmatprep.subr.bf16.mxu0 0
    %5178 = vmatpush1.bf16.msra.mxu0 %v4210
    %5179 = vmatprep.subr.bf16.mxu0 0
    %5180 = vmatpush1.bf16.msra.mxu0 %v4211
    %5181 = vmatprep.subr.bf16.mxu0 0
    %5182 = vmatpush1.bf16.msra.mxu0 %v4212
    %5183 = vmatprep.subr.bf16.mxu0 0
    %5184 = vmatpush1.bf16.msra.mxu0 %v4213
    %5185 = vmatprep.subr.bf16.mxu0 0
    %5186 = vmatpush1.bf16.msra.mxu0 %v4214
    %5187 = vmatprep.subr.bf16.mxu0 0
    %5188 = vmatpush1.bf16.msra.mxu0 %v4215
    %5189 = vmatprep.subr.bf16.mxu0 0
    %5190 = vmatpush1.bf16.msra.mxu0 %v4216
    %5191 = vmatprep.subr.bf16.mxu0 0
    %5192 = vmatpush1.bf16.msra.mxu0 %v4217
    %5193 = vmatprep.subr.bf16.mxu0 0
    %5194 = vmatpush1.bf16.msra.mxu0 %v4218
    %5195 = vmatprep.subr.bf16.mxu0 0
    %5196 = vmatpush1.bf16.msra.mxu0 %v4219
    %5197 = vmatprep.subr.bf16.mxu0 0
    %5198 = vmatpush1.bf16.msra.mxu0 %v4220
    %5199 = vmatprep.subr.bf16.mxu0 0
    %5200 = vmatpush1.bf16.msra.mxu0 %v4221
    %5201 = vmatprep.mubr.bf16.mxu0 %v3438
    %5202 = vmatmul.mubr.bf16.gmra.mrb[0].mxu0 %v3437
    %v5203 = vpop.f32.mrb[0].mxu0
    %v5204 = vadd.f32 %v4915, %v5203
    %v5205 = vpop.f32.mrb[0].mxu0
    %v5206 = vpop.f32.mrb[0].mxu0
    %v5207 = vadd.f32 %v4918, %v5206
    %v5208 = vpop.f32.mrb[0].mxu0
    %5209 = vmatprep.mubr.bf16.mxu0 %v3447
    %5210 = vmatmul.mubr.bf16.gmra.mrb[0].mxu0 %v3446
    %v5211 = vpop.f32.mrb[0].mxu0
    %v5212 = vadd.f32 %v4923, %v5211
    %v5213 = vpop.f32.mrb[0].mxu0
    %v5214 = vpop.f32.mrb[0].mxu0
    %v5215 = vadd.f32 %v4926, %v5214
    %v5216 = vpop.f32.mrb[0].mxu0
    %5217 = vmatprep.mubr.bf16.mxu0 %v3456
    %5218 = vmatmul.mubr.bf16.gmra.mrb[0].mxu0 %v3455
    %v5219 = vpop.f32.mrb[0].mxu0
    %v5220 = vadd.f32 %v4931, %v5219
    %v5221 = vpop.f32.mrb[0].mxu0
    %v5222 = vpop.f32.mrb[0].mxu0
    %v5223 = vadd.f32 %v4934, %v5222
    %v5224 = vpop.f32.mrb[0].mxu0
    %5225 = vmatprep.mubr.bf16.mxu0 %v3465
    %5226 = vmatmul.mubr.bf16.gmra.mrb[0].mxu0 %v3464
    %v5227 = vpop.f32.mrb[0].mxu0
    %v5228 = vadd.f32 %v4939, %v5227
    %v5229 = vpop.f32.mrb[0].mxu0
    %v5230 = vpop.f32.mrb[0].mxu0
    %v5231 = vadd.f32 %v4942, %v5230
    %v5232 = vpop.f32.mrb[0].mxu0
    %5233 = vmatprep.mubr.bf16.mxu0 %v3474
    %5234 = vmatmul.mubr.bf16.gmra.mrb[0].mxu0 %v3473
    %v5235 = vpop.f32.mrb[0].mxu0
    %v5236 = vadd.f32 %v4947, %v5235
    %v5237 = vpop.f32.mrb[0].mxu0
    %v5238 = vpop.f32.mrb[0].mxu0
    %v5239 = vadd.f32 %v4950, %v5238
    %v5240 = vpop.f32.mrb[0].mxu0
    %5241 = vmatprep.mubr.bf16.mxu0 %v3483
    %5242 = vmatmul.mubr.bf16.gmra.mrb[0].mxu0 %v3482
    %v5243 = vpop.f32.mrb[0].mxu0
    %v5244 = vadd.f32 %v4955, %v5243
    %v5245 = vpop.f32.mrb[0].mxu0
    %v5246 = vpop.f32.mrb[0].mxu0
    %v5247 = vadd.f32 %v4958, %v5246
    %v5248 = vpop.f32.mrb[0].mxu0
    %5249 = vmatprep.mubr.bf16.mxu0 %v3492
    %5250 = vmatmul.mubr.bf16.gmra.mrb[0].mxu0 %v3491
    %v5251 = vpop.f32.mrb[0].mxu0
    %v5252 = vadd.f32 %v4963, %v5251
    %v5253 = vpop.f32.mrb[0].mxu0
    %v5254 = vpop.f32.mrb[0].mxu0
    %v5255 = vadd.f32 %v4966, %v5254
    %v5256 = vpop.f32.mrb[0].mxu0
    %5257 = vmatprep.mubr.bf16.mxu0 %v3501
    %5258 = vmatmul.mubr.bf16.gmra.mrb[0].mxu0 %v3500
    %v5259 = vpop.f32.mrb[0].mxu0
    %v5260 = vadd.f32 %v4971, %v5259
    %v5261 = vpop.f32.mrb[0].mxu0
    %v5262 = vpop.f32.mrb[0].mxu0
    %v5263 = vadd.f32 %v4974, %v5262
    %v5264 = vpop.f32.mrb[0].mxu0
    %5265 = vmatprep.mubr.bf16.mxu0 %v3510
    %5266 = vmatmul.mubr.bf16.gmra.mrb[0].mxu0 %v3509
    %v5267 = vpop.f32.mrb[0].mxu0
    %v5268 = vadd.f32 %v4979, %v5267
    %v5269 = vpop.f32.mrb[0].mxu0
    %v5270 = vpop.f32.mrb[0].mxu0
    %v5271 = vadd.f32 %v4982, %v5270
    %v5272 = vpop.f32.mrb[0].mxu0
    %5273 = vmatprep.mubr.bf16.mxu0 %v3519
    %5274 = vmatmul.mubr.bf16.gmra.mrb[0].mxu0 %v3518
    %v5275 = vpop.f32.mrb[0].mxu0
    %v5276 = vadd.f32 %v4987, %v5275
    %v5277 = vpop.f32.mrb[0].mxu0
    %v5278 = vpop.f32.mrb[0].mxu0
    %v5279 = vadd.f32 %v4990, %v5278
    %v5280 = vpop.f32.mrb[0].mxu0
    %5281 = vmatprep.mubr.bf16.mxu0 %v3528
    %5282 = vmatmul.mubr.bf16.gmra.mrb[0].mxu0 %v3527
    %v5283 = vpop.f32.mrb[0].mxu0
    %v5284 = vadd.f32 %v4995, %v5283
    %v5285 = vpop.f32.mrb[0].mxu0
    %v5286 = vpop.f32.mrb[0].mxu0
    %v5287 = vadd.f32 %v4998, %v5286
    %v5288 = vpop.f32.mrb[0].mxu0
    %5289 = vmatprep.mubr.bf16.mxu0 %v3537
    %5290 = vmatmul.mubr.bf16.gmra.mrb[0].mxu0 %v3536
    %v5291 = vpop.f32.mrb[0].mxu0
    %v5292 = vadd.f32 %v5003, %v5291
    %v5293 = vpop.f32.mrb[0].mxu0
    %v5294 = vpop.f32.mrb[0].mxu0
    %v5295 = vadd.f32 %v5006, %v5294
    %v5296 = vpop.f32.mrb[0].mxu0
    %5297 = vmatprep.mubr.bf16.mxu0 %v3546
    %5298 = vmatmul.mubr.bf16.gmra.mrb[0].mxu0 %v3545
    %v5299 = vpop.f32.mrb[0].mxu0
    %v5300 = vadd.f32 %v5011, %v5299
    %v5301 = vpop.f32.mrb[0].mxu0
    %v5302 = vpop.f32.mrb[0].mxu0
    %v5303 = vadd.f32 %v5014, %v5302
    %v5304 = vpop.f32.mrb[0].mxu0
    %5305 = vmatprep.mubr.bf16.mxu0 %v3555
    %5306 = vmatmul.mubr.bf16.gmra.mrb[0].mxu0 %v3554
    %v5307 = vpop.f32.mrb[0].mxu0
    %v5308 = vadd.f32 %v5019, %v5307
    %v5309 = vpop.f32.mrb[0].mxu0
    %v5310 = vpop.f32.mrb[0].mxu0
    %v5311 = vadd.f32 %v5022, %v5310
    %v5312 = vpop.f32.mrb[0].mxu0
    %5313 = vmatprep.mubr.bf16.mxu0 %v3564
    %5314 = vmatmul.mubr.bf16.gmra.mrb[0].mxu0 %v3563
    %v5315 = vpop.f32.mrb[0].mxu0
    %v5316 = vadd.f32 %v5027, %v5315
    %v5317 = vpop.f32.mrb[0].mxu0
    %v5318 = vpop.f32.mrb[0].mxu0
    %v5319 = vadd.f32 %v5030, %v5318
    %v5320 = vpop.f32.mrb[0].mxu0
    %5321 = vmatprep.mubr.bf16.mxu0 %v3573
    %5322 = vmatmul.mubr.bf16.gmra.mrb[0].mxu0 %v3572
    %v5323 = vpop.f32.mrb[0].mxu0
    %v5324 = vadd.f32 %v5035, %v5323
    %v5325 = vpop.f32.mrb[0].mxu0
    %v5326 = vpop.f32.mrb[0].mxu0
    %v5327 = vadd.f32 %v5038, %v5326
    %v5328 = vpop.f32.mrb[0].mxu0
    %5329 = vmatprep.mubr.bf16.mxu0 %v3582
    %5330 = vmatmul.mubr.bf16.gmra.mrb[0].mxu0 %v3581
    %v5331 = vpop.f32.mrb[0].mxu0
    %v5332 = vadd.f32 %v5043, %v5331
    %v5333 = vpop.f32.mrb[0].mxu0
    %v5334 = vpop.f32.mrb[0].mxu0
    %v5335 = vadd.f32 %v5046, %v5334
    %v5336 = vpop.f32.mrb[0].mxu0
    %5337 = vmatprep.mubr.bf16.mxu0 %v3591
    %5338 = vmatmul.mubr.bf16.gmra.mrb[0].mxu0 %v3590
    %v5339 = vpop.f32.mrb[0].mxu0
    %v5340 = vadd.f32 %v5051, %v5339
    %v5341 = vpop.f32.mrb[0].mxu0
    %v5342 = vpop.f32.mrb[0].mxu0
    %v5343 = vadd.f32 %v5054, %v5342
    %v5344 = vpop.f32.mrb[0].mxu0
    %5345 = vmatprep.mubr.bf16.mxu0 %v3600
    %5346 = vmatmul.mubr.bf16.gmra.mrb[0].mxu0 %v3599
    %v5347 = vpop.f32.mrb[0].mxu0
    %v5348 = vadd.f32 %v5059, %v5347
    %v5349 = vpop.f32.mrb[0].mxu0
    %v5350 = vpop.f32.mrb[0].mxu0
    %v5351 = vadd.f32 %v5062, %v5350
    %v5352 = vpop.f32.mrb[0].mxu0
    %5353 = vmatprep.mubr.bf16.mxu0 %v3609
    %5354 = vmatmul.mubr.bf16.gmra.mrb[0].mxu0 %v3608
    %v5355 = vpop.f32.mrb[0].mxu0
    %v5356 = vadd.f32 %v5067, %v5355
    %v5357 = vpop.f32.mrb[0].mxu0
    %v5358 = vpop.f32.mrb[0].mxu0
    %v5359 = vadd.f32 %v5070, %v5358
    %v5360 = vpop.f32.mrb[0].mxu0
    %5361 = vmatprep.mubr.bf16.mxu0 %v3618
    %5362 = vmatmul.mubr.bf16.gmra.mrb[0].mxu0 %v3617
    %v5363 = vpop.f32.mrb[0].mxu0
    %v5364 = vadd.f32 %v5075, %v5363
    %v5365 = vpop.f32.mrb[0].mxu0
    %v5366 = vpop.f32.mrb[0].mxu0
    %v5367 = vadd.f32 %v5078, %v5366
    %v5368 = vpop.f32.mrb[0].mxu0
    %5369 = vmatprep.mubr.bf16.mxu0 %v3627
    %5370 = vmatmul.mubr.bf16.gmra.mrb[0].mxu0 %v3626
    %v5371 = vpop.f32.mrb[0].mxu0
    %v5372 = vadd.f32 %v5083, %v5371
    %v5373 = vpop.f32.mrb[0].mxu0
    %v5374 = vpop.f32.mrb[0].mxu0
    %v5375 = vadd.f32 %v5086, %v5374
    %v5376 = vpop.f32.mrb[0].mxu0
    %5377 = vmatprep.mubr.bf16.mxu0 %v3636
    %5378 = vmatmul.mubr.bf16.gmra.mrb[0].mxu0 %v3635
    %v5379 = vpop.f32.mrb[0].mxu0
    %v5380 = vadd.f32 %v5091, %v5379
    %v5381 = vpop.f32.mrb[0].mxu0
    %v5382 = vpop.f32.mrb[0].mxu0
    %v5383 = vadd.f32 %v5094, %v5382
    %v5384 = vpop.f32.mrb[0].mxu0
    %5385 = vmatprep.mubr.bf16.mxu0 %v3645
    %5386 = vmatmul.mubr.bf16.gmra.mrb[0].mxu0 %v3644
    %v5387 = vpop.f32.mrb[0].mxu0
    %v5388 = vadd.f32 %v5099, %v5387
    %v5389 = vpop.f32.mrb[0].mxu0
    %v5390 = vpop.f32.mrb[0].mxu0
    %v5391 = vadd.f32 %v5102, %v5390
    %v5392 = vpop.f32.mrb[0].mxu0
    %5393 = vmatprep.mubr.bf16.mxu0 %v3654
    %5394 = vmatmul.mubr.bf16.gmra.mrb[0].mxu0 %v3653
    %v5395 = vpop.f32.mrb[0].mxu0
    %v5396 = vadd.f32 %v5107, %v5395
    %v5397 = vpop.f32.mrb[0].mxu0
    %v5398 = vpop.f32.mrb[0].mxu0
    %v5399 = vadd.f32 %v5110, %v5398
    %v5400 = vpop.f32.mrb[0].mxu0
    %5401 = vmatprep.mubr.bf16.mxu0 %v3663
    %5402 = vmatmul.mubr.bf16.gmra.mrb[0].mxu0 %v3662
    %v5403 = vpop.f32.mrb[0].mxu0
    %v5404 = vadd.f32 %v5115, %v5403
    %v5405 = vpop.f32.mrb[0].mxu0
    %v5406 = vpop.f32.mrb[0].mxu0
    %v5407 = vadd.f32 %v5118, %v5406
    %v5408 = vpop.f32.mrb[0].mxu0
    %5409 = vmatprep.mubr.bf16.mxu0 %v3672
    %5410 = vmatmul.mubr.bf16.gmra.mrb[0].mxu0 %v3671
    %v5411 = vpop.f32.mrb[0].mxu0
    %v5412 = vadd.f32 %v5123, %v5411
    %v5413 = vpop.f32.mrb[0].mxu0
    %v5414 = vpop.f32.mrb[0].mxu0
    %v5415 = vadd.f32 %v5126, %v5414
    %v5416 = vpop.f32.mrb[0].mxu0
    %5417 = vmatprep.mubr.bf16.mxu0 %v3681
    %5418 = vmatmul.mubr.bf16.gmra.mrb[0].mxu0 %v3680
    %v5419 = vpop.f32.mrb[0].mxu0
    %v5420 = vadd.f32 %v5131, %v5419
    %v5421 = vpop.f32.mrb[0].mxu0
    %v5422 = vpop.f32.mrb[0].mxu0
    %v5423 = vadd.f32 %v5134, %v5422
    %v5424 = vpop.f32.mrb[0].mxu0
    %5425 = vmatprep.mubr.bf16.mxu0 %v3690
    %5426 = vmatmul.mubr.bf16.gmra.mrb[0].mxu0 %v3689
    %v5427 = vpop.f32.mrb[0].mxu0
    %v5428 = vadd.f32 %v5139, %v5427
    %v5429 = vpop.f32.mrb[0].mxu0
    %v5430 = vpop.f32.mrb[0].mxu0
    %v5431 = vadd.f32 %v5142, %v5430
    %v5432 = vpop.f32.mrb[0].mxu0
    %5433 = vmatprep.mubr.bf16.mxu0 %v3699
    %5434 = vmatmul.mubr.bf16.gmra.mrb[0].mxu0 %v3698
    %v5435 = vpop.f32.mrb[0].mxu0
    %v5436 = vadd.f32 %v5147, %v5435
    %v5437 = vpop.f32.mrb[0].mxu0
    %v5438 = vpop.f32.mrb[0].mxu0
    %v5439 = vadd.f32 %v5150, %v5438
    %v5440 = vpop.f32.mrb[0].mxu0
    %5441 = vmatprep.mubr.bf16.mxu0 %v3708
    %5442 = vmatmul.mubr.bf16.gmra.mrb[0].mxu0 %v3707
    %v5443 = vpop.f32.mrb[0].mxu0
    %v5444 = vadd.f32 %v5155, %v5443
    %v5445 = vpop.f32.mrb[0].mxu0
    %v5446 = vpop.f32.mrb[0].mxu0
    %v5447 = vadd.f32 %v5158, %v5446
    %v5448 = vpop.f32.mrb[0].mxu0
    %5449 = vmatprep.mubr.bf16.mxu0 %v3717
    %5450 = vmatmul.mubr.bf16.gmra.mrb[0].mxu0 %v3716
    %v5451 = vpop.f32.mrb[0].mxu0
    %v5452 = vadd.f32 %v5163, %v5451
    %v5453 = vpop.f32.mrb[0].mxu0
    %v5454 = vpop.f32.mrb[0].mxu0
    %v5455 = vadd.f32 %v5166, %v5454
    %v5456 = vpop.f32.mrb[0].mxu0
    %5457 = vdwg.mxu0
    %5458 = vmatprep.subr.bf16.mxu0 0
    %5459 = vmatpush1.bf16.msra.mxu0 %v4222
    %5460 = vmatprep.subr.bf16.mxu0 0
    %5461 = vmatpush1.bf16.msra.mxu0 %v4223
    %5462 = vmatprep.subr.bf16.mxu0 0
    %5463 = vmatpush1.bf16.msra.mxu0 %v4224
    %5464 = vmatprep.subr.bf16.mxu0 0
    %5465 = vmatpush1.bf16.msra.mxu0 %v4225
    %5466 = vmatprep.subr.bf16.mxu0 0
    %5467 = vmatpush1.bf16.msra.mxu0 %v4226
    %5468 = vmatprep.subr.bf16.mxu0 0
    %5469 = vmatpush1.bf16.msra.mxu0 %v4227
    %5470 = vmatprep.subr.bf16.mxu0 0
    %5471 = vmatpush1.bf16.msra.mxu0 %v4228
    %5472 = vmatprep.subr.bf16.mxu0 0
    %5473 = vmatpush1.bf16.msra.mxu0 %v4229
    %5474 = vmatprep.subr.bf16.mxu0 0
    %5475 = vmatpush1.bf16.msra.mxu0 0
    %5476 = vmatprep.subr.bf16.mxu0 0
    %5477 = vmatpush1.bf16.msra.mxu0 0
    %5478 = vmatprep.subr.bf16.mxu0 0
    %5479 = vmatpush1.bf16.msra.mxu0 0
    %5480 = vmatprep.subr.bf16.mxu0 0
    %5481 = vmatpush1.bf16.msra.mxu0 0
    %5482 = vmatprep.subr.bf16.mxu0 0
    %5483 = vmatpush1.bf16.msra.mxu0 0
    %5484 = vmatprep.subr.bf16.mxu0 0
    %5485 = vmatpush1.bf16.msra.mxu0 0
    %5486 = vmatprep.subr.bf16.mxu0 0
    %5487 = vmatpush1.bf16.msra.mxu0 0
    %5488 = vmatprep.subr.bf16.mxu0 0
    %5489 = vmatpush1.bf16.msra.mxu0 0
    %5490 = vmatprep.mubr.bf16.mxu0 0
    %5491 = vmatmul.mubr.bf16.gmra.mrb[0].mxu0 %v3439
    %v5492 = vpop.f32.mrb[0].mxu0
    %v5493 = vadd.f32 %v5204, %v5492
    %v5494 = vpop.f32.mrb[0].mxu0
    %v5495 = vpop.f32.mrb[0].mxu0
    %v5496 = vadd.f32 %v5207, %v5495
    %v5497 = vpop.f32.mrb[0].mxu0
    %5498 = vmatprep.mubr.bf16.mxu0 0
    %5499 = vmatmul.mubr.bf16.gmra.mrb[0].mxu0 %v3448
    %v5500 = vpop.f32.mrb[0].mxu0
    %v5501 = vadd.f32 %v5212, %v5500
    %v5502 = vpop.f32.mrb[0].mxu0
    %v5503 = vpop.f32.mrb[0].mxu0
    %v5504 = vadd.f32 %v5215, %v5503
    %v5505 = vpop.f32.mrb[0].mxu0
    %5506 = vmatprep.mubr.bf16.mxu0 0
    %5507 = vmatmul.mubr.bf16.gmra.mrb[0].mxu0 %v3457
    %v5508 = vpop.f32.mrb[0].mxu0
    %v5509 = vadd.f32 %v5220, %v5508
    %v5510 = vpop.f32.mrb[0].mxu0
    %v5511 = vpop.f32.mrb[0].mxu0
    %v5512 = vadd.f32 %v5223, %v5511
    %v5513 = vpop.f32.mrb[0].mxu0
    %5514 = vmatprep.mubr.bf16.mxu0 0
    %5515 = vmatmul.mubr.bf16.gmra.mrb[0].mxu0 %v3466
    %v5516 = vpop.f32.mrb[0].mxu0
    %v5517 = vadd.f32 %v5228, %v5516
    %v5518 = vpop.f32.mrb[0].mxu0
    %v5519 = vpop.f32.mrb[0].mxu0
    %v5520 = vadd.f32 %v5231, %v5519
    %v5521 = vpop.f32.mrb[0].mxu0
    %5522 = vmatprep.mubr.bf16.mxu0 0
    %5523 = vmatmul.mubr.bf16.gmra.mrb[0].mxu0 %v3475
    %v5524 = vpop.f32.mrb[0].mxu0
    %v5525 = vadd.f32 %v5236, %v5524
    %v5526 = vpop.f32.mrb[0].mxu0
    %v5527 = vpop.f32.mrb[0].mxu0
    %v5528 = vadd.f32 %v5239, %v5527
    %v5529 = vpop.f32.mrb[0].mxu0
    %5530 = vmatprep.mubr.bf16.mxu0 0
    %5531 = vmatmul.mubr.bf16.gmra.mrb[0].mxu0 %v3484
    %v5532 = vpop.f32.mrb[0].mxu0
    %v5533 = vadd.f32 %v5244, %v5532
    %v5534 = vpop.f32.mrb[0].mxu0
    %v5535 = vpop.f32.mrb[0].mxu0
    %v5536 = vadd.f32 %v5247, %v5535
    %v5537 = vpop.f32.mrb[0].mxu0
    %5538 = vmatprep.mubr.bf16.mxu0 0
    %5539 = vmatmul.mubr.bf16.gmra.mrb[0].mxu0 %v3493
    %v5540 = vpop.f32.mrb[0].mxu0
    %v5541 = vadd.f32 %v5252, %v5540
    %v5542 = vpop.f32.mrb[0].mxu0
    %v5543 = vpop.f32.mrb[0].mxu0
    %v5544 = vadd.f32 %v5255, %v5543
    %v5545 = vpop.f32.mrb[0].mxu0
    %5546 = vmatprep.mubr.bf16.mxu0 0
    %5547 = vmatmul.mubr.bf16.gmra.mrb[0].mxu0 %v3502
    %v5548 = vpop.f32.mrb[0].mxu0
    %v5549 = vadd.f32 %v5260, %v5548
    %v5550 = vpop.f32.mrb[0].mxu0
    %v5551 = vpop.f32.mrb[0].mxu0
    %v5552 = vadd.f32 %v5263, %v5551
    %v5553 = vpop.f32.mrb[0].mxu0
    %5554 = vmatprep.mubr.bf16.mxu0 0
    %5555 = vmatmul.mubr.bf16.gmra.mrb[0].mxu0 %v3511
    %v5556 = vpop.f32.mrb[0].mxu0
    %v5557 = vadd.f32 %v5268, %v5556
    %v5558 = vpop.f32.mrb[0].mxu0
    %v5559 = vpop.f32.mrb[0].mxu0
    %v5560 = vadd.f32 %v5271, %v5559
    %v5561 = vpop.f32.mrb[0].mxu0
    %5562 = vmatprep.mubr.bf16.mxu0 0
    %5563 = vmatmul.mubr.bf16.gmra.mrb[0].mxu0 %v3520
    %v5564 = vpop.f32.mrb[0].mxu0
    %v5565 = vadd.f32 %v5276, %v5564
    %v5566 = vpop.f32.mrb[0].mxu0
    %v5567 = vpop.f32.mrb[0].mxu0
    %v5568 = vadd.f32 %v5279, %v5567
    %v5569 = vpop.f32.mrb[0].mxu0
    %5570 = vmatprep.mubr.bf16.mxu0 0
    %5571 = vmatmul.mubr.bf16.gmra.mrb[0].mxu0 %v3529
    %v5572 = vpop.f32.mrb[0].mxu0
    %v5573 = vadd.f32 %v5284, %v5572
    %v5574 = vpop.f32.mrb[0].mxu0
    %v5575 = vpop.f32.mrb[0].mxu0
    %v5576 = vadd.f32 %v5287, %v5575
    %v5577 = vpop.f32.mrb[0].mxu0
    %5578 = vmatprep.mubr.bf16.mxu0 0
    %5579 = vmatmul.mubr.bf16.gmra.mrb[0].mxu0 %v3538
    %v5580 = vpop.f32.mrb[0].mxu0
    %v5581 = vadd.f32 %v5292, %v5580
    %v5582 = vpop.f32.mrb[0].mxu0
    %v5583 = vpop.f32.mrb[0].mxu0
    %v5584 = vadd.f32 %v5295, %v5583
    %v5585 = vpop.f32.mrb[0].mxu0
    %5586 = vmatprep.mubr.bf16.mxu0 0
    %5587 = vmatmul.mubr.bf16.gmra.mrb[0].mxu0 %v3547
    %v5588 = vpop.f32.mrb[0].mxu0
    %v5589 = vadd.f32 %v5300, %v5588
    %v5590 = vpop.f32.mrb[0].mxu0
    %v5591 = vpop.f32.mrb[0].mxu0
    %v5592 = vadd.f32 %v5303, %v5591
    %v5593 = vpop.f32.mrb[0].mxu0
    %5594 = vmatprep.mubr.bf16.mxu0 0
    %5595 = vmatmul.mubr.bf16.gmra.mrb[0].mxu0 %v3556
    %v5596 = vpop.f32.mrb[0].mxu0
    %v5597 = vadd.f32 %v5308, %v5596
    %v5598 = vpop.f32.mrb[0].mxu0
    %v5599 = vpop.f32.mrb[0].mxu0
    %v5600 = vadd.f32 %v5311, %v5599
    %v5601 = vpop.f32.mrb[0].mxu0
    %5602 = vmatprep.mubr.bf16.mxu0 0
    %5603 = vmatmul.mubr.bf16.gmra.mrb[0].mxu0 %v3565
    %v5604 = vpop.f32.mrb[0].mxu0
    %v5605 = vadd.f32 %v5316, %v5604
    %v5606 = vpop.f32.mrb[0].mxu0
    %v5607 = vpop.f32.mrb[0].mxu0
    %v5608 = vadd.f32 %v5319, %v5607
    %v5609 = vpop.f32.mrb[0].mxu0
    %5610 = vmatprep.mubr.bf16.mxu0 0
    %5611 = vmatmul.mubr.bf16.gmra.mrb[0].mxu0 %v3574
    %v5612 = vpop.f32.mrb[0].mxu0
    %v5613 = vadd.f32 %v5324, %v5612
    %v5614 = vpop.f32.mrb[0].mxu0
    %v5615 = vpop.f32.mrb[0].mxu0
    %v5616 = vadd.f32 %v5327, %v5615
    %v5617 = vpop.f32.mrb[0].mxu0
    %5618 = vmatprep.mubr.bf16.mxu0 0
    %5619 = vmatmul.mubr.bf16.gmra.mrb[0].mxu0 %v3583
    %v5620 = vpop.f32.mrb[0].mxu0
    %v5621 = vadd.f32 %v5332, %v5620
    %v5622 = vpop.f32.mrb[0].mxu0
    %v5623 = vpop.f32.mrb[0].mxu0
    %v5624 = vadd.f32 %v5335, %v5623
    %v5625 = vpop.f32.mrb[0].mxu0
    %5626 = vmatprep.mubr.bf16.mxu0 0
    %5627 = vmatmul.mubr.bf16.gmra.mrb[0].mxu0 %v3592
    %v5628 = vpop.f32.mrb[0].mxu0
    %v5629 = vadd.f32 %v5340, %v5628
    %v5630 = vpop.f32.mrb[0].mxu0
    %v5631 = vpop.f32.mrb[0].mxu0
    %v5632 = vadd.f32 %v5343, %v5631
    %v5633 = vpop.f32.mrb[0].mxu0
    %5634 = vmatprep.mubr.bf16.mxu0 0
    %5635 = vmatmul.mubr.bf16.gmra.mrb[0].mxu0 %v3601
    %v5636 = vpop.f32.mrb[0].mxu0
    %v5637 = vadd.f32 %v5348, %v5636
    %v5638 = vpop.f32.mrb[0].mxu0
    %v5639 = vpop.f32.mrb[0].mxu0
    %v5640 = vadd.f32 %v5351, %v5639
    %v5641 = vpop.f32.mrb[0].mxu0
    %5642 = vmatprep.mubr.bf16.mxu0 0
    %5643 = vmatmul.mubr.bf16.gmra.mrb[0].mxu0 %v3610
    %v5644 = vpop.f32.mrb[0].mxu0
    %v5645 = vadd.f32 %v5356, %v5644
    %v5646 = vpop.f32.mrb[0].mxu0
    %v5647 = vpop.f32.mrb[0].mxu0
    %v5648 = vadd.f32 %v5359, %v5647
    %v5649 = vpop.f32.mrb[0].mxu0
    %5650 = vmatprep.mubr.bf16.mxu0 0
    %5651 = vmatmul.mubr.bf16.gmra.mrb[0].mxu0 %v3619
    %v5652 = vpop.f32.mrb[0].mxu0
    %v5653 = vadd.f32 %v5364, %v5652
    %v5654 = vpop.f32.mrb[0].mxu0
    %v5655 = vpop.f32.mrb[0].mxu0
    %v5656 = vadd.f32 %v5367, %v5655
    %v5657 = vpop.f32.mrb[0].mxu0
    %5658 = vmatprep.mubr.bf16.mxu0 0
    %5659 = vmatmul.mubr.bf16.gmra.mrb[0].mxu0 %v3628
    %v5660 = vpop.f32.mrb[0].mxu0
    %v5661 = vadd.f32 %v5372, %v5660
    %v5662 = vpop.f32.mrb[0].mxu0
    %v5663 = vpop.f32.mrb[0].mxu0
    %v5664 = vadd.f32 %v5375, %v5663
    %v5665 = vpop.f32.mrb[0].mxu0
    %5666 = vmatprep.mubr.bf16.mxu0 0
    %5667 = vmatmul.mubr.bf16.gmra.mrb[0].mxu0 %v3637
    %v5668 = vpop.f32.mrb[0].mxu0
    %v5669 = vadd.f32 %v5380, %v5668
    %v5670 = vpop.f32.mrb[0].mxu0
    %v5671 = vpop.f32.mrb[0].mxu0
    %v5672 = vadd.f32 %v5383, %v5671
    %v5673 = vpop.f32.mrb[0].mxu0
    %5674 = vmatprep.mubr.bf16.mxu0 0
    %5675 = vmatmul.mubr.bf16.gmra.mrb[0].mxu0 %v3646
    %v5676 = vpop.f32.mrb[0].mxu0
    %v5677 = vadd.f32 %v5388, %v5676
    %v5678 = vpop.f32.mrb[0].mxu0
    %v5679 = vpop.f32.mrb[0].mxu0
    %v5680 = vadd.f32 %v5391, %v5679
    %v5681 = vpop.f32.mrb[0].mxu0
    %5682 = vmatprep.mubr.bf16.mxu0 0
    %5683 = vmatmul.mubr.bf16.gmra.mrb[0].mxu0 %v3655
    %v5684 = vpop.f32.mrb[0].mxu0
    %v5685 = vadd.f32 %v5396, %v5684
    %v5686 = vpop.f32.mrb[0].mxu0
    %v5687 = vpop.f32.mrb[0].mxu0
    %v5688 = vadd.f32 %v5399, %v5687
    %v5689 = vpop.f32.mrb[0].mxu0
    %5690 = vmatprep.mubr.bf16.mxu0 0
    %5691 = vmatmul.mubr.bf16.gmra.mrb[0].mxu0 %v3664
    %v5692 = vpop.f32.mrb[0].mxu0
    %v5693 = vadd.f32 %v5404, %v5692
    %v5694 = vpop.f32.mrb[0].mxu0
    %v5695 = vpop.f32.mrb[0].mxu0
    %v5696 = vadd.f32 %v5407, %v5695
    %v5697 = vpop.f32.mrb[0].mxu0
    %5698 = vmatprep.mubr.bf16.mxu0 0
    %5699 = vmatmul.mubr.bf16.gmra.mrb[0].mxu0 %v3673
    %v5700 = vpop.f32.mrb[0].mxu0
    %v5701 = vadd.f32 %v5412, %v5700
    %v5702 = vpop.f32.mrb[0].mxu0
    %v5703 = vpop.f32.mrb[0].mxu0
    %v5704 = vadd.f32 %v5415, %v5703
    %v5705 = vpop.f32.mrb[0].mxu0
    %5706 = vmatprep.mubr.bf16.mxu0 0
    %5707 = vmatmul.mubr.bf16.gmra.mrb[0].mxu0 %v3682
    %v5708 = vpop.f32.mrb[0].mxu0
    %v5709 = vadd.f32 %v5420, %v5708
    %v5710 = vpop.f32.mrb[0].mxu0
    %v5711 = vpop.f32.mrb[0].mxu0
    %v5712 = vadd.f32 %v5423, %v5711
    %v5713 = vpop.f32.mrb[0].mxu0
    %5714 = vmatprep.mubr.bf16.mxu0 0
    %5715 = vmatmul.mubr.bf16.gmra.mrb[0].mxu0 %v3691
    %v5716 = vpop.f32.mrb[0].mxu0
    %v5717 = vadd.f32 %v5428, %v5716
    %v5718 = vpop.f32.mrb[0].mxu0
    %v5719 = vpop.f32.mrb[0].mxu0
    %v5720 = vadd.f32 %v5431, %v5719
    %v5721 = vpop.f32.mrb[0].mxu0
    %5722 = vmatprep.mubr.bf16.mxu0 0
    %5723 = vmatmul.mubr.bf16.gmra.mrb[0].mxu0 %v3700
    %v5724 = vpop.f32.mrb[0].mxu0
    %v5725 = vadd.f32 %v5436, %v5724
    %v5726 = vpop.f32.mrb[0].mxu0
    %v5727 = vpop.f32.mrb[0].mxu0
    %v5728 = vadd.f32 %v5439, %v5727
    %v5729 = vpop.f32.mrb[0].mxu0
    %5730 = vmatprep.mubr.bf16.mxu0 0
    %5731 = vmatmul.mubr.bf16.gmra.mrb[0].mxu0 %v3709
    %v5732 = vpop.f32.mrb[0].mxu0
    %v5733 = vadd.f32 %v5444, %v5732
    %v5734 = vpop.f32.mrb[0].mxu0
    %v5735 = vpop.f32.mrb[0].mxu0
    %v5736 = vadd.f32 %v5447, %v5735
    %v5737 = vpop.f32.mrb[0].mxu0
    %5738 = vmatprep.mubr.bf16.mxu0 0
    %5739 = vmatmul.mubr.bf16.gmra.mrb[0].mxu0 %v3718
    %v5740 = vpop.f32.mrb[0].mxu0
    %v5741 = vadd.f32 %v5452, %v5740
    %v5742 = vpop.f32.mrb[0].mxu0
    %v5743 = vpop.f32.mrb[0].mxu0
    %v5744 = vadd.f32 %v5455, %v5743
    %v5745 = vpop.f32.mrb[0].mxu0
    %5746 = vdwg.mxu0
    %v5747 = vld [vmem:[%s8] sm:$0x1]
    %v5748 = vld [vmem:[%s9] sm:$0x1]
    %v5749 = vadd.f32 %v5493, %v5496
    %v5750 = vadd.f32 %v5749, %v5501
    %v5751 = vadd.f32 %v5750, %v5504
    %v5752 = vadd.f32 %v5751, %v5509
    %v5753 = vadd.f32 %v5752, %v5512
    %v5754 = vadd.f32 %v5753, %v5517
    %v5755 = vadd.f32 %v5754, %v5520
    %v5756 = vadd.f32 %v5755, %v5525
    %v5757 = vadd.f32 %v5756, %v5528
    %v5758 = vadd.f32 %v5757, %v5533
    %v5759 = vadd.f32 %v5758, %v5536
    %v5760 = vadd.f32 %v5759, %v5541
    %v5761 = vadd.f32 %v5760, %v5544
    %v5762 = vadd.f32 %v5761, %v5549
    %v5763 = vadd.f32 %v5762, %v5552
    %v5764 = vadd.f32 %v5763, %v5557
    %v5765 = vadd.f32 %v5764, %v5560
    %v5766 = vadd.f32 %v5765, %v5565
    %v5767 = vadd.f32 %v5766, %v5568
    %v5768 = vadd.f32 %v5767, %v5573
    %v5769 = vadd.f32 %v5768, %v5576
    %v5770 = vadd.f32 %v5769, %v5581
    %v5771 = vadd.f32 %v5770, %v5584
    %v5772 = vadd.f32 %v5771, %v5589
    %v5773 = vadd.f32 %v5772, %v5592
    %v5774 = vadd.f32 %v5773, %v5597
    %v5775 = vadd.f32 %v5774, %v5600
    %v5776 = vadd.f32 %v5775, %v5605
    %v5777 = vadd.f32 %v5776, %v5608
    %v5778 = vadd.f32 %v5777, %v5613
    %v5779 = vadd.f32 %v5778, %v5616
    %v5780 = vadd.f32 %v5779, %v5621
    %v5781 = vadd.f32 %v5780, %v5624
    %v5782 = vadd.f32 %v5781, %v5629
    %v5783 = vadd.f32 %v5782, %v5632
    %v5784 = vadd.f32 %v5783, %v5637
    %v5785 = vadd.f32 %v5784, %v5640
    %v5786 = vadd.f32 %v5785, %v5645
    %v5787 = vadd.f32 %v5786, %v5648
    %v5788 = vadd.f32 %v5787, %v5653
    %v5789 = vadd.f32 %v5788, %v5656
    %v5790 = vadd.f32 %v5789, %v5661
    %v5791 = vadd.f32 %v5790, %v5664
    %v5792 = vadd.f32 %v5791, %v5669
    %v5793 = vadd.f32 %v5792, %v5672
    %v5794 = vadd.f32 %v5793, %v5677
    %v5795 = vadd.f32 %v5794, %v5680
    %v5796 = vadd.f32 %v5795, %v5685
    %v5797 = vadd.f32 %v5796, %v5688
    %v5798 = vadd.f32 %v5797, %v5693
    %v5799 = vadd.f32 %v5798, %v5696
    %v5800 = vadd.f32 %v5799, %v5701
    %v5801 = vadd.f32 %v5800, %v5704
    %v5802 = vadd.f32 %v5801, %v5709
    %v5803 = vadd.f32 %v5802, %v5712
    %v5804 = vadd.f32 %v5803, %v5717
    %v5805 = vadd.f32 %v5804, %v5720
    %v5806 = vadd.f32 %v5805, %v5725
    %v5807 = vadd.f32 %v5806, %v5728
    %v5808 = vadd.f32 %v5807, %v5733
    %v5809 = vadd.f32 %v5808, %v5736
    %v5810 = vadd.f32 %v5809, %v5741
    %v5811 = vadd.f32 %v5810, %v5744
    %v5812 = vrot.slane %v5811, 4
    %v5813 = vadd.f32 %v5811, %v5812
    %v5814 = vrot.slane %v5813, 2
    %v5815 = vadd.f32 %v5813, %v5814
    %v5816 = vrot.slane %v5815, 1
    %v5817 = vadd.f32 %v5815, %v5816
    %v5818 = vmul.f32 %v5493, %v5493
    %v5819 = vmul.f32 %v5496, %v5496
    %v5820 = vmul.f32 %v5501, %v5501
    %v5821 = vmul.f32 %v5504, %v5504
    %v5822 = vmul.f32 %v5509, %v5509
    %v5823 = vmul.f32 %v5512, %v5512
    %v5824 = vmul.f32 %v5517, %v5517
    %v5825 = vmul.f32 %v5520, %v5520
    %v5826 = vmul.f32 %v5525, %v5525
    %v5827 = vmul.f32 %v5528, %v5528
    %v5828 = vmul.f32 %v5533, %v5533
    %v5829 = vmul.f32 %v5536, %v5536
    %v5830 = vmul.f32 %v5541, %v5541
    %v5831 = vmul.f32 %v5544, %v5544
    %v5832 = vmul.f32 %v5549, %v5549
    %v5833 = vmul.f32 %v5552, %v5552
    %v5834 = vmul.f32 %v5557, %v5557
    %v5835 = vmul.f32 %v5560, %v5560
    %v5836 = vmul.f32 %v5565, %v5565
    %v5837 = vmul.f32 %v5568, %v5568
    %v5838 = vmul.f32 %v5573, %v5573
    %v5839 = vmul.f32 %v5576, %v5576
    %v5840 = vmul.f32 %v5581, %v5581
    %v5841 = vmul.f32 %v5584, %v5584
    %v5842 = vmul.f32 %v5589, %v5589
    %v5843 = vmul.f32 %v5592, %v5592
    %v5844 = vmul.f32 %v5597, %v5597
    %v5845 = vmul.f32 %v5600, %v5600
    %v5846 = vmul.f32 %v5605, %v5605
    %v5847 = vmul.f32 %v5608, %v5608
    %v5848 = vmul.f32 %v5613, %v5613
    %v5849 = vmul.f32 %v5616, %v5616
    %v5850 = vmul.f32 %v5621, %v5621
    %v5851 = vmul.f32 %v5624, %v5624
    %v5852 = vmul.f32 %v5629, %v5629
    %v5853 = vmul.f32 %v5632, %v5632
    %v5854 = vmul.f32 %v5637, %v5637
    %v5855 = vmul.f32 %v5640, %v5640
    %v5856 = vmul.f32 %v5645, %v5645
    %v5857 = vmul.f32 %v5648, %v5648
    %v5858 = vmul.f32 %v5653, %v5653
    %v5859 = vmul.f32 %v5656, %v5656
    %v5860 = vmul.f32 %v5661, %v5661
    %v5861 = vmul.f32 %v5664, %v5664
    %v5862 = vmul.f32 %v5669, %v5669
    %v5863 = vmul.f32 %v5672, %v5672
    %v5864 = vmul.f32 %v5677, %v5677
    %v5865 = vmul.f32 %v5680, %v5680
    %v5866 = vmul.f32 %v5685, %v5685
    %v5867 = vmul.f32 %v5688, %v5688
    %v5868 = vmul.f32 %v5693, %v5693
    %v5869 = vmul.f32 %v5696, %v5696
    %v5870 = vmul.f32 %v5701, %v5701
    %v5871 = vmul.f32 %v5704, %v5704
    %v5872 = vmul.f32 %v5709, %v5709
    %v5873 = vmul.f32 %v5712, %v5712
    %v5874 = vmul.f32 %v5717, %v5717
    %v5875 = vmul.f32 %v5720, %v5720
    %v5876 = vmul.f32 %v5725, %v5725
    %v5877 = vmul.f32 %v5728, %v5728
    %v5878 = vmul.f32 %v5733, %v5733
    %v5879 = vmul.f32 %v5736, %v5736
    %v5880 = vmul.f32 %v5741, %v5741
    %v5881 = vmul.f32 %v5744, %v5744
    %v5882 = vadd.f32 %v5818, %v5819
    %v5883 = vadd.f32 %v5882, %v5820
    %v5884 = vadd.f32 %v5883, %v5821
    %v5885 = vadd.f32 %v5884, %v5822
    %v5886 = vadd.f32 %v5885, %v5823
    %v5887 = vadd.f32 %v5886, %v5824
    %v5888 = vadd.f32 %v5887, %v5825
    %v5889 = vadd.f32 %v5888, %v5826
    %v5890 = vadd.f32 %v5889, %v5827
    %v5891 = vadd.f32 %v5890, %v5828
    %v5892 = vadd.f32 %v5891, %v5829
    %v5893 = vadd.f32 %v5892, %v5830
    %v5894 = vadd.f32 %v5893, %v5831
    %v5895 = vadd.f32 %v5894, %v5832
    %v5896 = vadd.f32 %v5895, %v5833
    %v5897 = vadd.f32 %v5896, %v5834
    %v5898 = vadd.f32 %v5897, %v5835
    %v5899 = vadd.f32 %v5898, %v5836
    %v5900 = vadd.f32 %v5899, %v5837
    %v5901 = vadd.f32 %v5900, %v5838
    %v5902 = vadd.f32 %v5901, %v5839
    %v5903 = vadd.f32 %v5902, %v5840
    %v5904 = vadd.f32 %v5903, %v5841
    %v5905 = vadd.f32 %v5904, %v5842
    %v5906 = vadd.f32 %v5905, %v5843
    %v5907 = vadd.f32 %v5906, %v5844
    %v5908 = vadd.f32 %v5907, %v5845
    %v5909 = vadd.f32 %v5908, %v5846
    %v5910 = vadd.f32 %v5909, %v5847
    %v5911 = vadd.f32 %v5910, %v5848
    %v5912 = vadd.f32 %v5911, %v5849
    %v5913 = vadd.f32 %v5912, %v5850
    %v5914 = vadd.f32 %v5913, %v5851
    %v5915 = vadd.f32 %v5914, %v5852
    %v5916 = vadd.f32 %v5915, %v5853
    %v5917 = vadd.f32 %v5916, %v5854
    %v5918 = vadd.f32 %v5917, %v5855
    %v5919 = vadd.f32 %v5918, %v5856
    %v5920 = vadd.f32 %v5919, %v5857
    %v5921 = vadd.f32 %v5920, %v5858
    %v5922 = vadd.f32 %v5921, %v5859
    %v5923 = vadd.f32 %v5922, %v5860
    %v5924 = vadd.f32 %v5923, %v5861
    %v5925 = vadd.f32 %v5924, %v5862
    %v5926 = vadd.f32 %v5925, %v5863
    %v5927 = vadd.f32 %v5926, %v5864
    %v5928 = vadd.f32 %v5927, %v5865
    %v5929 = vadd.f32 %v5928, %v5866
    %v5930 = vadd.f32 %v5929, %v5867
    %v5931 = vadd.f32 %v5930, %v5868
    %v5932 = vadd.f32 %v5931, %v5869
    %v5933 = vadd.f32 %v5932, %v5870
    %v5934 = vadd.f32 %v5933, %v5871
    %v5935 = vadd.f32 %v5934, %v5872
    %v5936 = vadd.f32 %v5935, %v5873
    %v5937 = vadd.f32 %v5936, %v5874
    %v5938 = vadd.f32 %v5937, %v5875
    %v5939 = vadd.f32 %v5938, %v5876
    %v5940 = vadd.f32 %v5939, %v5877
    %v5941 = vadd.f32 %v5940, %v5878
    %v5942 = vadd.f32 %v5941, %v5879
    %v5943 = vadd.f32 %v5942, %v5880
    %v5944 = vadd.f32 %v5943, %v5881
    %v5945 = vrot.slane %v5944, 4
    %v5946 = vadd.f32 %v5944, %v5945
    %v5947 = vrot.slane %v5946, 2
    %v5948 = vadd.f32 %v5946, %v5947
    %v5949 = vrot.slane %v5948, 1
    %v5950 = vadd.f32 %v5948, %v5949
    %v5951 = vmul.f32 %v5817, 0.001953125
    %v5952 = vmul.f32 %v5950, 0.001953125
    %v5953 = vmul.f32 %v5951, %v5951
    %v5954 = vsub.f32 %v5952, %v5953
    %v5955 = vsub.f32 %v5493, %v5951
    %v5956 = vsub.f32 %v5496, %v5951
    %v5957 = vsub.f32 %v5501, %v5951
    %v5958 = vsub.f32 %v5504, %v5951
    %v5959 = vsub.f32 %v5509, %v5951
    %v5960 = vsub.f32 %v5512, %v5951
    %v5961 = vsub.f32 %v5517, %v5951
    %v5962 = vsub.f32 %v5520, %v5951
    %v5963 = vsub.f32 %v5525, %v5951
    %v5964 = vsub.f32 %v5528, %v5951
    %v5965 = vsub.f32 %v5533, %v5951
    %v5966 = vsub.f32 %v5536, %v5951
    %v5967 = vsub.f32 %v5541, %v5951
    %v5968 = vsub.f32 %v5544, %v5951
    %v5969 = vsub.f32 %v5549, %v5951
    %v5970 = vsub.f32 %v5552, %v5951
    %v5971 = vsub.f32 %v5557, %v5951
    %v5972 = vsub.f32 %v5560, %v5951
    %v5973 = vsub.f32 %v5565, %v5951
    %v5974 = vsub.f32 %v5568, %v5951
    %v5975 = vsub.f32 %v5573, %v5951
    %v5976 = vsub.f32 %v5576, %v5951
    %v5977 = vsub.f32 %v5581, %v5951
    %v5978 = vsub.f32 %v5584, %v5951
    %v5979 = vsub.f32 %v5589, %v5951
    %v5980 = vsub.f32 %v5592, %v5951
    %v5981 = vsub.f32 %v5597, %v5951
    %v5982 = vsub.f32 %v5600, %v5951
    %v5983 = vsub.f32 %v5605, %v5951
    %v5984 = vsub.f32 %v5608, %v5951
    %v5985 = vsub.f32 %v5613, %v5951
    %v5986 = vsub.f32 %v5616, %v5951
    %v5987 = vsub.f32 %v5621, %v5951
    %v5988 = vsub.f32 %v5624, %v5951
    %v5989 = vsub.f32 %v5629, %v5951
    %v5990 = vsub.f32 %v5632, %v5951
    %v5991 = vsub.f32 %v5637, %v5951
    %v5992 = vsub.f32 %v5640, %v5951
    %v5993 = vsub.f32 %v5645, %v5951
    %v5994 = vsub.f32 %v5648, %v5951
    %v5995 = vsub.f32 %v5653, %v5951
    %v5996 = vsub.f32 %v5656, %v5951
    %v5997 = vsub.f32 %v5661, %v5951
    %v5998 = vsub.f32 %v5664, %v5951
    %v5999 = vsub.f32 %v5669, %v5951
    %v6000 = vsub.f32 %v5672, %v5951
    %v6001 = vsub.f32 %v5677, %v5951
    %v6002 = vsub.f32 %v5680, %v5951
    %v6003 = vsub.f32 %v5685, %v5951
    %v6004 = vsub.f32 %v5688, %v5951
    %v6005 = vsub.f32 %v5693, %v5951
    %v6006 = vsub.f32 %v5696, %v5951
    %v6007 = vsub.f32 %v5701, %v5951
    %v6008 = vsub.f32 %v5704, %v5951
    %v6009 = vsub.f32 %v5709, %v5951
    %v6010 = vsub.f32 %v5712, %v5951
    %v6011 = vsub.f32 %v5717, %v5951
    %v6012 = vsub.f32 %v5720, %v5951
    %v6013 = vsub.f32 %v5725, %v5951
    %v6014 = vsub.f32 %v5728, %v5951
    %v6015 = vsub.f32 %v5733, %v5951
    %v6016 = vsub.f32 %v5736, %v5951
    %v6017 = vsub.f32 %v5741, %v5951
    %v6018 = vsub.f32 %v5744, %v5951
    %v6019 = vadd.f32 %v5954, 1e-05
    %v6020 = vrsqrt.pop %v6019
    %v6021 = vmul.f32 %v6020, %v5747
    %v6022 = vlaneseq
    %v6023 = vshrl.u32 %v6022, 7
    %v6024 = vsub.s32 0, %v6023
    %v6025 = vrot.slane %v6021, %v6024
    %v6026 = vmul.f32 %v5955, %v6025
    %v6027 = vmul.f32 %v5956, %v6025
    %v6028 = vmul.f32 %v5957, %v6025
    %v6029 = vmul.f32 %v5958, %v6025
    %v6030 = vmul.f32 %v5959, %v6025
    %v6031 = vmul.f32 %v5960, %v6025
    %v6032 = vmul.f32 %v5961, %v6025
    %v6033 = vmul.f32 %v5962, %v6025
    %v6034 = vmul.f32 %v5963, %v6025
    %v6035 = vmul.f32 %v5964, %v6025
    %v6036 = vmul.f32 %v5965, %v6025
    %v6037 = vmul.f32 %v5966, %v6025
    %v6038 = vmul.f32 %v5967, %v6025
    %v6039 = vmul.f32 %v5968, %v6025
    %v6040 = vmul.f32 %v5969, %v6025
    %v6041 = vmul.f32 %v5970, %v6025
    %v6042 = vmul.f32 %v5971, %v6025
    %v6043 = vmul.f32 %v5972, %v6025
    %v6044 = vmul.f32 %v5973, %v6025
    %v6045 = vmul.f32 %v5974, %v6025
    %v6046 = vmul.f32 %v5975, %v6025
    %v6047 = vmul.f32 %v5976, %v6025
    %v6048 = vmul.f32 %v5977, %v6025
    %v6049 = vmul.f32 %v5978, %v6025
    %v6050 = vmul.f32 %v5979, %v6025
    %v6051 = vmul.f32 %v5980, %v6025
    %v6052 = vmul.f32 %v5981, %v6025
    %v6053 = vmul.f32 %v5982, %v6025
    %v6054 = vmul.f32 %v5983, %v6025
    %v6055 = vmul.f32 %v5984, %v6025
    %v6056 = vmul.f32 %v5985, %v6025
    %v6057 = vmul.f32 %v5986, %v6025
    %v6058 = vmul.f32 %v5987, %v6025
    %v6059 = vmul.f32 %v5988, %v6025
    %v6060 = vmul.f32 %v5989, %v6025
    %v6061 = vmul.f32 %v5990, %v6025
    %v6062 = vmul.f32 %v5991, %v6025
    %v6063 = vmul.f32 %v5992, %v6025
    %v6064 = vmul.f32 %v5993, %v6025
    %v6065 = vmul.f32 %v5994, %v6025
    %v6066 = vmul.f32 %v5995, %v6025
    %v6067 = vmul.f32 %v5996, %v6025
    %v6068 = vmul.f32 %v5997, %v6025
    %v6069 = vmul.f32 %v5998, %v6025
    %v6070 = vmul.f32 %v5999, %v6025
    %v6071 = vmul.f32 %v6000, %v6025
    %v6072 = vmul.f32 %v6001, %v6025
    %v6073 = vmul.f32 %v6002, %v6025
    %v6074 = vmul.f32 %v6003, %v6025
    %v6075 = vmul.f32 %v6004, %v6025
    %v6076 = vmul.f32 %v6005, %v6025
    %v6077 = vmul.f32 %v6006, %v6025
    %v6078 = vmul.f32 %v6007, %v6025
    %v6079 = vmul.f32 %v6008, %v6025
    %v6080 = vmul.f32 %v6009, %v6025
    %v6081 = vmul.f32 %v6010, %v6025
    %v6082 = vmul.f32 %v6011, %v6025
    %v6083 = vmul.f32 %v6012, %v6025
    %v6084 = vmul.f32 %v6013, %v6025
    %v6085 = vmul.f32 %v6014, %v6025
    %v6086 = vmul.f32 %v6015, %v6025
    %v6087 = vmul.f32 %v6016, %v6025
    %v6088 = vmul.f32 %v6017, %v6025
    %v6089 = vmul.f32 %v6018, %v6025
    %v6091 = vlaneseq
    %v6092 = vshrl.u32 %v6091, 7
    %v6093 = vsub.s32 0, %v6092
    %v6094 = vrot.slane %v5748, %v6093
    %v6096 = vadd.f32 %v6026, %v6094
    %v6097 = vadd.f32 %v6027, %v6094
    %v6098 = vadd.f32 %v6028, %v6094
    %v6099 = vadd.f32 %v6029, %v6094
    %v6100 = vadd.f32 %v6030, %v6094
    %v6101 = vadd.f32 %v6031, %v6094
    %v6102 = vadd.f32 %v6032, %v6094
    %v6103 = vadd.f32 %v6033, %v6094
    %v6104 = vadd.f32 %v6034, %v6094
    %v6105 = vadd.f32 %v6035, %v6094
    %v6106 = vadd.f32 %v6036, %v6094
    %v6107 = vadd.f32 %v6037, %v6094
    %v6108 = vadd.f32 %v6038, %v6094
    %v6109 = vadd.f32 %v6039, %v6094
    %v6110 = vadd.f32 %v6040, %v6094
    %v6111 = vadd.f32 %v6041, %v6094
    %v6112 = vadd.f32 %v6042, %v6094
    %v6113 = vadd.f32 %v6043, %v6094
    %v6114 = vadd.f32 %v6044, %v6094
    %v6115 = vadd.f32 %v6045, %v6094
    %v6116 = vadd.f32 %v6046, %v6094
    %v6117 = vadd.f32 %v6047, %v6094
    %v6118 = vadd.f32 %v6048, %v6094
    %v6119 = vadd.f32 %v6049, %v6094
    %v6120 = vadd.f32 %v6050, %v6094
    %v6121 = vadd.f32 %v6051, %v6094
    %v6122 = vadd.f32 %v6052, %v6094
    %v6123 = vadd.f32 %v6053, %v6094
    %v6124 = vadd.f32 %v6054, %v6094
    %v6125 = vadd.f32 %v6055, %v6094
    %v6126 = vadd.f32 %v6056, %v6094
    %v6127 = vadd.f32 %v6057, %v6094
    %v6128 = vadd.f32 %v6058, %v6094
    %v6129 = vadd.f32 %v6059, %v6094
    %v6130 = vadd.f32 %v6060, %v6094
    %v6131 = vadd.f32 %v6061, %v6094
    %v6132 = vadd.f32 %v6062, %v6094
    %v6133 = vadd.f32 %v6063, %v6094
    %v6134 = vadd.f32 %v6064, %v6094
    %v6135 = vadd.f32 %v6065, %v6094
    %v6136 = vadd.f32 %v6066, %v6094
    %v6137 = vadd.f32 %v6067, %v6094
    %v6138 = vadd.f32 %v6068, %v6094
    %v6139 = vadd.f32 %v6069, %v6094
    %v6140 = vadd.f32 %v6070, %v6094
    %v6141 = vadd.f32 %v6071, %v6094
    %v6142 = vadd.f32 %v6072, %v6094
    %v6143 = vadd.f32 %v6073, %v6094
    %v6144 = vadd.f32 %v6074, %v6094
    %v6145 = vadd.f32 %v6075, %v6094
    %v6146 = vadd.f32 %v6076, %v6094
    %v6147 = vadd.f32 %v6077, %v6094
    %v6148 = vadd.f32 %v6078, %v6094
    %v6149 = vadd.f32 %v6079, %v6094
    %v6150 = vadd.f32 %v6080, %v6094
    %v6151 = vadd.f32 %v6081, %v6094
    %v6152 = vadd.f32 %v6082, %v6094
    %v6153 = vadd.f32 %v6083, %v6094
    %v6154 = vadd.f32 %v6084, %v6094
    %v6155 = vadd.f32 %v6085, %v6094
    %v6156 = vadd.f32 %v6086, %v6094
    %v6157 = vadd.f32 %v6087, %v6094
    %v6158 = vadd.f32 %v6088, %v6094
    %v6159 = vadd.f32 %v6089, %v6094
    %v6160 = vld [vmem:[#allocation7] sm:$0xf]
    %v6161 = vld [vmem:[#allocation7 + $0x4] sm:$0xf]
    %v6162 = vld [vmem:[#allocation7 + $0x8] sm:$0xf]
    %v6163 = vld [vmem:[#allocation7 + $0xc] sm:$0xf]
    %v6164 = vld [vmem:[#allocation7 + $0x10] sm:$0xf]
    %v6165 = vld [vmem:[#allocation7 + $0x14] sm:$0xf]
    %v6166 = vld [vmem:[#allocation7 + $0x18] sm:$0xf]
    %v6167 = vld [vmem:[#allocation7 + $0x1c] sm:$0xf]
    %v6168 = vld [vmem:[#allocation7 + $0x20] sm:$0xf]
    %v6169 = vld [vmem:[#allocation7 + $0x24] sm:$0xf]
    %v6170 = vld [vmem:[#allocation7 + $0x28] sm:$0xf]
    %v6171 = vld [vmem:[#allocation7 + $0x2c] sm:$0xf]
    %v6172 = vld [vmem:[#allocation7 + $0x30] sm:$0xf]
    %v6173 = vld [vmem:[#allocation7 + $0x34] sm:$0xf]
    %v6174 = vld [vmem:[#allocation7 + $0x38] sm:$0xf]
    %v6175 = vld [vmem:[#allocation7 + $0x3c] sm:$0xf]
    %v6176 = vld [vmem:[#allocation7 + $0x40] sm:$0xf]
    %v6177 = vld [vmem:[#allocation7 + $0x44] sm:$0xf]
    %v6178 = vld [vmem:[#allocation7 + $0x48] sm:$0xf]
    %v6179 = vld [vmem:[#allocation7 + $0x4c] sm:$0xf]
    %v6180 = vld [vmem:[#allocation7 + $0x50] sm:$0xf]
    %v6181 = vld [vmem:[#allocation7 + $0x54] sm:$0xf]
    %v6182 = vld [vmem:[#allocation7 + $0x58] sm:$0xf]
    %v6183 = vld [vmem:[#allocation7 + $0x5c] sm:$0xf]
    %v6184 = vld [vmem:[#allocation7 + $0x60] sm:$0xf]
    %v6185 = vld [vmem:[#allocation7 + $0x64] sm:$0xf]
    %v6186 = vld [vmem:[#allocation7 + $0x68] sm:$0xf]
    %v6187 = vld [vmem:[#allocation7 + $0x6c] sm:$0xf]
    %v6188 = vld [vmem:[#allocation7 + $0x70] sm:$0xf]
    %v6189 = vld [vmem:[#allocation7 + $0x74] sm:$0xf]
    %v6190 = vld [vmem:[#allocation7 + $0x78] sm:$0xf]
    %v6191 = vld [vmem:[#allocation7 + $0x7c] sm:$0xf]
    %v6192 = vld [vmem:[#allocation7 + $0x80] sm:$0xf]
    %v6193 = vld [vmem:[#allocation7 + $0x84] sm:$0xf]
    %v6194 = vld [vmem:[#allocation7 + $0x88] sm:$0xf]
    %v6195 = vld [vmem:[#allocation7 + $0x8c] sm:$0xf]
    %v6196 = vld [vmem:[#allocation7 + $0x90] sm:$0xf]
    %v6197 = vld [vmem:[#allocation7 + $0x94] sm:$0xf]
    %v6198 = vld [vmem:[#allocation7 + $0x98] sm:$0xf]
    %v6199 = vld [vmem:[#allocation7 + $0x9c] sm:$0xf]
    %v6200 = vld [vmem:[#allocation7 + $0xa0] sm:$0xf]
    %v6201 = vld [vmem:[#allocation7 + $0xa4] sm:$0xf]
    %v6202 = vld [vmem:[#allocation7 + $0xa8] sm:$0xf]
    %v6203 = vld [vmem:[#allocation7 + $0xac] sm:$0xf]
    %v6204 = vld [vmem:[#allocation7 + $0xb0] sm:$0xf]
    %v6205 = vld [vmem:[#allocation7 + $0xb4] sm:$0xf]
    %v6206 = vld [vmem:[#allocation7 + $0xb8] sm:$0xf]
    %v6207 = vld [vmem:[#allocation7 + $0xbc] sm:$0xf]
    %v6208 = vld [vmem:[#allocation7 + $0xc0] sm:$0xf]
    %v6209 = vld [vmem:[#allocation7 + $0xc4] sm:$0xf]
    %v6210 = vld [vmem:[#allocation7 + $0xc8] sm:$0xf]
    %v6211 = vld [vmem:[#allocation7 + $0xcc] sm:$0xf]
    %v6212 = vld [vmem:[#allocation7 + $0xd0] sm:$0xf]
    %v6213 = vld [vmem:[#allocation7 + $0xd4] sm:$0xf]
    %v6214 = vld [vmem:[#allocation7 + $0xd8] sm:$0xf]
    %v6215 = vld [vmem:[#allocation7 + $0xdc] sm:$0xf]
    %v6216 = vld [vmem:[#allocation7 + $0xe0] sm:$0xf]
    %v6217 = vld [vmem:[#allocation7 + $0xe4] sm:$0xf]
    %v6218 = vld [vmem:[#allocation7 + $0xe8] sm:$0xf]
    %v6219 = vld [vmem:[#allocation7 + $0xec] sm:$0xf]
    %v6220 = vld [vmem:[#allocation7 + $0xf0] sm:$0xf]
    %v6221 = vld [vmem:[#allocation7 + $0xf4] sm:$0xf]
    %v6222 = vld [vmem:[#allocation7 + $0xf8] sm:$0xf]
    %v6223 = vld [vmem:[#allocation7 + $0xfc] sm:$0xf]
    %v6224 = vld [vmem:[#allocation12] sm:$0xf]
    %v6225 = vld [vmem:[#allocation12 + $0x4] sm:$0xf]
    %v6226 = vld [vmem:[#allocation12 + $0x8] sm:$0xf]
    %v6227 = vld [vmem:[#allocation12 + $0xc] sm:$0xf]
    %v6228 = vld [vmem:[#allocation12 + $0x10] sm:$0xf]
    %v6229 = vld [vmem:[#allocation12 + $0x14] sm:$0xf]
    %v6230 = vld [vmem:[#allocation12 + $0x18] sm:$0xf]
    %v6231 = vld [vmem:[#allocation12 + $0x1c] sm:$0xf]
    %v6232 = vld [vmem:[#allocation12 + $0x20] sm:$0xf]
    %v6233 = vld [vmem:[#allocation12 + $0x24] sm:$0xf]
    %v6234 = vld [vmem:[#allocation12 + $0x28] sm:$0xf]
    %v6235 = vld [vmem:[#allocation12 + $0x2c] sm:$0xf]
    %v6236 = vld [vmem:[#allocation12 + $0x30] sm:$0xf]
    %v6237 = vld [vmem:[#allocation12 + $0x34] sm:$0xf]
    %v6238 = vld [vmem:[#allocation12 + $0x38] sm:$0xf]
    %v6239 = vld [vmem:[#allocation12 + $0x3c] sm:$0xf]
    %v6240 = vld [vmem:[%s11] sm:$0x1]
    %v6242 = vlaneseq
    %v6243 = vshrl.u32 %v6242, 7
    %v6244 = vsub.s32 0, %v6243
    %v6245 = vrot.slane %v6240, %v6244
    %v6311 = vunpack.c.l.b16 %v6160
    %v6312 = vunpack.c.l.b16 %v6161
    %v6313 = vunpack.c.l.b16 %v6162
    %v6314 = vunpack.c.l.b16 %v6163
    %v6315 = vunpack.c.l.b16 %v6164
    %v6316 = vunpack.c.l.b16 %v6165
    %v6317 = vunpack.c.l.b16 %v6166
    %v6318 = vunpack.c.l.b16 %v6167
    %v6319 = vunpack.c.l.b16 %v6168
    %v6320 = vunpack.c.l.b16 %v6169
    %v6321 = vunpack.c.l.b16 %v6170
    %v6322 = vunpack.c.l.b16 %v6171
    %v6323 = vunpack.c.l.b16 %v6172
    %v6324 = vunpack.c.l.b16 %v6173
    %v6325 = vunpack.c.l.b16 %v6174
    %v6326 = vunpack.c.l.b16 %v6175
    %v6327 = vunpack.c.l.b16 %v6176
    %v6328 = vunpack.c.l.b16 %v6177
    %v6329 = vunpack.c.l.b16 %v6178
    %v6330 = vunpack.c.l.b16 %v6179
    %v6331 = vunpack.c.l.b16 %v6180
    %v6332 = vunpack.c.l.b16 %v6181
    %v6333 = vunpack.c.l.b16 %v6182
    %v6334 = vunpack.c.l.b16 %v6183
    %v6335 = vunpack.c.l.b16 %v6184
    %v6336 = vunpack.c.l.b16 %v6185
    %v6337 = vunpack.c.l.b16 %v6186
    %v6338 = vunpack.c.l.b16 %v6187
    %v6339 = vunpack.c.l.b16 %v6188
    %v6340 = vunpack.c.l.b16 %v6189
    %v6341 = vunpack.c.l.b16 %v6190
    %v6342 = vunpack.c.l.b16 %v6191
    %v6343 = vunpack.c.l.b16 %v6192
    %v6344 = vunpack.c.l.b16 %v6193
    %v6345 = vunpack.c.l.b16 %v6194
    %v6346 = vunpack.c.l.b16 %v6195
    %v6347 = vunpack.c.l.b16 %v6196
    %v6348 = vunpack.c.l.b16 %v6197
    %v6349 = vunpack.c.l.b16 %v6198
    %v6350 = vunpack.c.l.b16 %v6199
    %v6351 = vunpack.c.l.b16 %v6200
    %v6352 = vunpack.c.l.b16 %v6201
    %v6353 = vunpack.c.l.b16 %v6202
    %v6354 = vunpack.c.l.b16 %v6203
    %v6355 = vunpack.c.l.b16 %v6204
    %v6356 = vunpack.c.l.b16 %v6205
    %v6357 = vunpack.c.l.b16 %v6206
    %v6358 = vunpack.c.l.b16 %v6207
    %v6359 = vunpack.c.l.b16 %v6208
    %v6360 = vunpack.c.l.b16 %v6209
    %v6361 = vunpack.c.l.b16 %v6210
    %v6362 = vunpack.c.l.b16 %v6211
    %v6363 = vunpack.c.l.b16 %v6212
    %v6364 = vunpack.c.l.b16 %v6213
    %v6365 = vunpack.c.l.b16 %v6214
    %v6366 = vunpack.c.l.b16 %v6215
    %v6367 = vunpack.c.l.b16 %v6216
    %v6368 = vunpack.c.l.b16 %v6217
    %v6369 = vunpack.c.l.b16 %v6218
    %v6370 = vunpack.c.l.b16 %v6219
    %v6371 = vunpack.c.l.b16 %v6220
    %v6372 = vunpack.c.l.b16 %v6221
    %v6373 = vunpack.c.l.b16 %v6222
    %v6374 = vunpack.c.l.b16 %v6223
    %v6375 = vpack.c.b16 %v6312, %v6311
    %v6376 = vpack.c.b16 %v6314, %v6313
    %v6377 = vpack.c.b16 %v6316, %v6315
    %v6378 = vpack.c.b16 %v6318, %v6317
    %v6379 = vpack.c.b16 %v6320, %v6319
    %v6380 = vpack.c.b16 %v6322, %v6321
    %v6381 = vpack.c.b16 %v6324, %v6323
    %v6382 = vpack.c.b16 %v6326, %v6325
    %v6383 = vpack.c.b16 %v6328, %v6327
    %v6384 = vpack.c.b16 %v6330, %v6329
    %v6385 = vpack.c.b16 %v6332, %v6331
    %v6386 = vpack.c.b16 %v6334, %v6333
    %v6387 = vpack.c.b16 %v6336, %v6335
    %v6388 = vpack.c.b16 %v6338, %v6337
    %v6389 = vpack.c.b16 %v6340, %v6339
    %v6390 = vpack.c.b16 %v6342, %v6341
    %v6391 = vpack.c.b16 %v6344, %v6343
    %v6392 = vpack.c.b16 %v6346, %v6345
    %v6393 = vpack.c.b16 %v6348, %v6347
    %v6394 = vpack.c.b16 %v6350, %v6349
    %v6395 = vpack.c.b16 %v6352, %v6351
    %v6396 = vpack.c.b16 %v6354, %v6353
    %v6397 = vpack.c.b16 %v6356, %v6355
    %v6398 = vpack.c.b16 %v6358, %v6357
    %v6399 = vpack.c.b16 %v6360, %v6359
    %v6400 = vpack.c.b16 %v6362, %v6361
    %v6401 = vpack.c.b16 %v6364, %v6363
    %v6402 = vpack.c.b16 %v6366, %v6365
    %v6403 = vpack.c.b16 %v6368, %v6367
    %v6404 = vpack.c.b16 %v6370, %v6369
    %v6405 = vpack.c.b16 %v6372, %v6371
    %v6406 = vpack.c.b16 %v6374, %v6373
    %v6455 = vunpack.c.l.b16 %v6224
    %v6456 = vunpack.c.l.b16 %v6225
    %v6457 = vunpack.c.l.b16 %v6226
    %v6458 = vunpack.c.l.b16 %v6227
    %v6459 = vunpack.c.l.b16 %v6228
    %v6460 = vunpack.c.l.b16 %v6229
    %v6461 = vunpack.c.l.b16 %v6230
    %v6462 = vunpack.c.l.b16 %v6231
    %v6463 = vunpack.c.l.b16 %v6232
    %v6464 = vunpack.c.l.b16 %v6233
    %v6465 = vunpack.c.l.b16 %v6234
    %v6466 = vunpack.c.l.b16 %v6235
    %v6467 = vunpack.c.l.b16 %v6236
    %v6468 = vunpack.c.l.b16 %v6237
    %v6469 = vunpack.c.l.b16 %v6238
    %v6470 = vunpack.c.l.b16 %v6239
    %v6471 = vpack.c.b16 %v6456, %v6455
    %v6472 = vpack.c.b16 %v6458, %v6457
    %v6473 = vpack.c.b16 %v6460, %v6459
    %v6474 = vpack.c.b16 %v6462, %v6461
    %v6475 = vpack.c.b16 %v6464, %v6463
    %v6476 = vpack.c.b16 %v6466, %v6465
    %v6477 = vpack.c.b16 %v6468, %v6467
    %v6478 = vpack.c.b16 %v6470, %v6469
    %6487 = vmatprep.subr.bf16.mxu0 0
    %6488 = vmatpush1.bf16.msra.mxu0 %v6471
    %6489 = vmatprep.subr.bf16.mxu0 0
    %6490 = vmatpush1.bf16.msra.mxu0 %v6472
    %6491 = vmatprep.subr.bf16.mxu0 0
    %6492 = vmatpush1.bf16.msra.mxu0 %v6473
    %6493 = vmatprep.subr.bf16.mxu0 0
    %6494 = vmatpush1.bf16.msra.mxu0 %v6474
    %6495 = vmatprep.subr.bf16.mxu0 0
    %6496 = vmatpush1.bf16.msra.mxu0 %v6475
    %6497 = vmatprep.subr.bf16.mxu0 0
    %6498 = vmatpush1.bf16.msra.mxu0 %v6476
    %6499 = vmatprep.subr.bf16.mxu0 0
    %6500 = vmatpush1.bf16.msra.mxu0 %v6477
    %6501 = vmatprep.subr.bf16.mxu0 0
    %6502 = vmatpush1.bf16.msra.mxu0 %v6478
    %6503 = vmatprep.subr.bf16.mxu0 0
    %6504 = vmatpush1.bf16.msra.mxu0 0
    %6505 = vmatprep.subr.bf16.mxu0 0
    %6506 = vmatpush1.bf16.msra.mxu0 0
    %6507 = vmatprep.subr.bf16.mxu0 0
    %6508 = vmatpush1.bf16.msra.mxu0 0
    %6509 = vmatprep.subr.bf16.mxu0 0
    %6510 = vmatpush1.bf16.msra.mxu0 0
    %6511 = vmatprep.subr.bf16.mxu0 0
    %6512 = vmatpush1.bf16.msra.mxu0 0
    %6513 = vmatprep.subr.bf16.mxu0 0
    %6514 = vmatpush1.bf16.msra.mxu0 0
    %6515 = vmatprep.subr.bf16.mxu0 0
    %6516 = vmatpush1.bf16.msra.mxu0 0
    %6517 = vmatprep.subr.bf16.mxu0 0
    %6518 = vmatpush1.bf16.msra.mxu0 0
    %6519 = vmatprep.mubr.bf16.mxu0 0
    %6520 = vmatmul.mubr.bf16.gmra.mrb[0].mxu0 %v6375
    %v6521 = vpop.f32.mrb[0].mxu0
    %v6522 = vadd.f32 %v6245, %v6521
    %v6523 = vpop.f32.mrb[0].mxu0
    %v6524 = vpop.f32.mrb[0].mxu0
    %v6525 = vadd.f32 %v6245, %v6524
    %v6526 = vpop.f32.mrb[0].mxu0
    %6527 = vmatprep.mubr.bf16.mxu0 0
    %6528 = vmatmul.mubr.bf16.gmra.mrb[0].mxu0 %v6376
    %v6529 = vpop.f32.mrb[0].mxu0
    %v6530 = vadd.f32 %v6245, %v6529
    %v6531 = vpop.f32.mrb[0].mxu0
    %v6532 = vpop.f32.mrb[0].mxu0
    %v6533 = vadd.f32 %v6245, %v6532
    %v6534 = vpop.f32.mrb[0].mxu0
    %6535 = vmatprep.mubr.bf16.mxu0 0
    %6536 = vmatmul.mubr.bf16.gmra.mrb[0].mxu0 %v6377
    %v6537 = vpop.f32.mrb[0].mxu0
    %v6538 = vadd.f32 %v6245, %v6537
    %v6539 = vpop.f32.mrb[0].mxu0
    %v6540 = vpop.f32.mrb[0].mxu0
    %v6541 = vadd.f32 %v6245, %v6540
    %v6542 = vpop.f32.mrb[0].mxu0
    %6543 = vmatprep.mubr.bf16.mxu0 0
    %6544 = vmatmul.mubr.bf16.gmra.mrb[0].mxu0 %v6378
    %v6545 = vpop.f32.mrb[0].mxu0
    %v6546 = vadd.f32 %v6245, %v6545
    %v6547 = vpop.f32.mrb[0].mxu0
    %v6548 = vpop.f32.mrb[0].mxu0
    %v6549 = vadd.f32 %v6245, %v6548
    %v6550 = vpop.f32.mrb[0].mxu0
    %6551 = vmatprep.mubr.bf16.mxu0 0
    %6552 = vmatmul.mubr.bf16.gmra.mrb[0].mxu0 %v6379
    %v6553 = vpop.f32.mrb[0].mxu0
    %v6554 = vadd.f32 %v6245, %v6553
    %v6555 = vpop.f32.mrb[0].mxu0
    %v6556 = vpop.f32.mrb[0].mxu0
    %v6557 = vadd.f32 %v6245, %v6556
    %v6558 = vpop.f32.mrb[0].mxu0
    %6559 = vmatprep.mubr.bf16.mxu0 0
    %6560 = vmatmul.mubr.bf16.gmra.mrb[0].mxu0 %v6380
    %v6561 = vpop.f32.mrb[0].mxu0
    %v6562 = vadd.f32 %v6245, %v6561
    %v6563 = vpop.f32.mrb[0].mxu0
    %v6564 = vpop.f32.mrb[0].mxu0
    %v6565 = vadd.f32 %v6245, %v6564
    %v6566 = vpop.f32.mrb[0].mxu0
    %6567 = vmatprep.mubr.bf16.mxu0 0
    %6568 = vmatmul.mubr.bf16.gmra.mrb[0].mxu0 %v6381
    %v6569 = vpop.f32.mrb[0].mxu0
    %v6570 = vadd.f32 %v6245, %v6569
    %v6571 = vpop.f32.mrb[0].mxu0
    %v6572 = vpop.f32.mrb[0].mxu0
    %v6573 = vadd.f32 %v6245, %v6572
    %v6574 = vpop.f32.mrb[0].mxu0
    %6575 = vmatprep.mubr.bf16.mxu0 0
    %6576 = vmatmul.mubr.bf16.gmra.mrb[0].mxu0 %v6382
    %v6577 = vpop.f32.mrb[0].mxu0
    %v6578 = vadd.f32 %v6245, %v6577
    %v6579 = vpop.f32.mrb[0].mxu0
    %v6580 = vpop.f32.mrb[0].mxu0
    %v6581 = vadd.f32 %v6245, %v6580
    %v6582 = vpop.f32.mrb[0].mxu0
    %6583 = vmatprep.mubr.bf16.mxu0 0
    %6584 = vmatmul.mubr.bf16.gmra.mrb[0].mxu0 %v6383
    %v6585 = vpop.f32.mrb[0].mxu0
    %v6586 = vadd.f32 %v6245, %v6585
    %v6587 = vpop.f32.mrb[0].mxu0
    %v6588 = vpop.f32.mrb[0].mxu0
    %v6589 = vadd.f32 %v6245, %v6588
    %v6590 = vpop.f32.mrb[0].mxu0
    %6591 = vmatprep.mubr.bf16.mxu0 0
    %6592 = vmatmul.mubr.bf16.gmra.mrb[0].mxu0 %v6384
    %v6593 = vpop.f32.mrb[0].mxu0
    %v6594 = vadd.f32 %v6245, %v6593
    %v6595 = vpop.f32.mrb[0].mxu0
    %v6596 = vpop.f32.mrb[0].mxu0
    %v6597 = vadd.f32 %v6245, %v6596
    %v6598 = vpop.f32.mrb[0].mxu0
    %6599 = vmatprep.mubr.bf16.mxu0 0
    %6600 = vmatmul.mubr.bf16.gmra.mrb[0].mxu0 %v6385
    %v6601 = vpop.f32.mrb[0].mxu0
    %v6602 = vadd.f32 %v6245, %v6601
    %v6603 = vpop.f32.mrb[0].mxu0
    %v6604 = vpop.f32.mrb[0].mxu0
    %v6605 = vadd.f32 %v6245, %v6604
    %v6606 = vpop.f32.mrb[0].mxu0
    %6607 = vmatprep.mubr.bf16.mxu0 0
    %6608 = vmatmul.mubr.bf16.gmra.mrb[0].mxu0 %v6386
    %v6609 = vpop.f32.mrb[0].mxu0
    %v6610 = vadd.f32 %v6245, %v6609
    %v6611 = vpop.f32.mrb[0].mxu0
    %v6612 = vpop.f32.mrb[0].mxu0
    %v6613 = vadd.f32 %v6245, %v6612
    %v6614 = vpop.f32.mrb[0].mxu0
    %6615 = vmatprep.mubr.bf16.mxu0 0
    %6616 = vmatmul.mubr.bf16.gmra.mrb[0].mxu0 %v6387
    %v6617 = vpop.f32.mrb[0].mxu0
    %v6618 = vadd.f32 %v6245, %v6617
    %v6619 = vpop.f32.mrb[0].mxu0
    %v6620 = vpop.f32.mrb[0].mxu0
    %v6621 = vadd.f32 %v6245, %v6620
    %v6622 = vpop.f32.mrb[0].mxu0
    %6623 = vmatprep.mubr.bf16.mxu0 0
    %6624 = vmatmul.mubr.bf16.gmra.mrb[0].mxu0 %v6388
    %v6625 = vpop.f32.mrb[0].mxu0
    %v6626 = vadd.f32 %v6245, %v6625
    %v6627 = vpop.f32.mrb[0].mxu0
    %v6628 = vpop.f32.mrb[0].mxu0
    %v6629 = vadd.f32 %v6245, %v6628
    %v6630 = vpop.f32.mrb[0].mxu0
    %6631 = vmatprep.mubr.bf16.mxu0 0
    %6632 = vmatmul.mubr.bf16.gmra.mrb[0].mxu0 %v6389
    %v6633 = vpop.f32.mrb[0].mxu0
    %v6634 = vadd.f32 %v6245, %v6633
    %v6635 = vpop.f32.mrb[0].mxu0
    %v6636 = vpop.f32.mrb[0].mxu0
    %v6637 = vadd.f32 %v6245, %v6636
    %v6638 = vpop.f32.mrb[0].mxu0
    %6639 = vmatprep.mubr.bf16.mxu0 0
    %6640 = vmatmul.mubr.bf16.gmra.mrb[0].mxu0 %v6390
    %v6641 = vpop.f32.mrb[0].mxu0
    %v6642 = vadd.f32 %v6245, %v6641
    %v6643 = vpop.f32.mrb[0].mxu0
    %v6644 = vpop.f32.mrb[0].mxu0
    %v6645 = vadd.f32 %v6245, %v6644
    %v6646 = vpop.f32.mrb[0].mxu0
    %6647 = vmatprep.mubr.bf16.mxu0 0
    %6648 = vmatmul.mubr.bf16.gmra.mrb[0].mxu0 %v6391
    %v6649 = vpop.f32.mrb[0].mxu0
    %v6650 = vadd.f32 %v6245, %v6649
    %v6651 = vpop.f32.mrb[0].mxu0
    %v6652 = vpop.f32.mrb[0].mxu0
    %v6653 = vadd.f32 %v6245, %v6652
    %v6654 = vpop.f32.mrb[0].mxu0
    %6655 = vmatprep.mubr.bf16.mxu0 0
    %6656 = vmatmul.mubr.bf16.gmra.mrb[0].mxu0 %v6392
    %v6657 = vpop.f32.mrb[0].mxu0
    %v6658 = vadd.f32 %v6245, %v6657
    %v6659 = vpop.f32.mrb[0].mxu0
    %v6660 = vpop.f32.mrb[0].mxu0
    %v6661 = vadd.f32 %v6245, %v6660
    %v6662 = vpop.f32.mrb[0].mxu0
    %6663 = vmatprep.mubr.bf16.mxu0 0
    %6664 = vmatmul.mubr.bf16.gmra.mrb[0].mxu0 %v6393
    %v6665 = vpop.f32.mrb[0].mxu0
    %v6666 = vadd.f32 %v6245, %v6665
    %v6667 = vpop.f32.mrb[0].mxu0
    %v6668 = vpop.f32.mrb[0].mxu0
    %v6669 = vadd.f32 %v6245, %v6668
    %v6670 = vpop.f32.mrb[0].mxu0
    %6671 = vmatprep.mubr.bf16.mxu0 0
    %6672 = vmatmul.mubr.bf16.gmra.mrb[0].mxu0 %v6394
    %v6673 = vpop.f32.mrb[0].mxu0
    %v6674 = vadd.f32 %v6245, %v6673
    %v6675 = vpop.f32.mrb[0].mxu0
    %v6676 = vpop.f32.mrb[0].mxu0
    %v6677 = vadd.f32 %v6245, %v6676
    %v6678 = vpop.f32.mrb[0].mxu0
    %6679 = vmatprep.mubr.bf16.mxu0 0
    %6680 = vmatmul.mubr.bf16.gmra.mrb[0].mxu0 %v6395
    %v6681 = vpop.f32.mrb[0].mxu0
    %v6682 = vadd.f32 %v6245, %v6681
    %v6683 = vpop.f32.mrb[0].mxu0
    %v6684 = vpop.f32.mrb[0].mxu0
    %v6685 = vadd.f32 %v6245, %v6684
    %v6686 = vpop.f32.mrb[0].mxu0
    %6687 = vmatprep.mubr.bf16.mxu0 0
    %6688 = vmatmul.mubr.bf16.gmra.mrb[0].mxu0 %v6396
    %v6689 = vpop.f32.mrb[0].mxu0
    %v6690 = vadd.f32 %v6245, %v6689
    %v6691 = vpop.f32.mrb[0].mxu0
    %v6692 = vpop.f32.mrb[0].mxu0
    %v6693 = vadd.f32 %v6245, %v6692
    %v6694 = vpop.f32.mrb[0].mxu0
    %6695 = vmatprep.mubr.bf16.mxu0 0
    %6696 = vmatmul.mubr.bf16.gmra.mrb[0].mxu0 %v6397
    %v6697 = vpop.f32.mrb[0].mxu0
    %v6698 = vadd.f32 %v6245, %v6697
    %v6699 = vpop.f32.mrb[0].mxu0
    %v6700 = vpop.f32.mrb[0].mxu0
    %v6701 = vadd.f32 %v6245, %v6700
    %v6702 = vpop.f32.mrb[0].mxu0
    %6703 = vmatprep.mubr.bf16.mxu0 0
    %6704 = vmatmul.mubr.bf16.gmra.mrb[0].mxu0 %v6398
    %v6705 = vpop.f32.mrb[0].mxu0
    %v6706 = vadd.f32 %v6245, %v6705
    %v6707 = vpop.f32.mrb[0].mxu0
    %v6708 = vpop.f32.mrb[0].mxu0
    %v6709 = vadd.f32 %v6245, %v6708
    %v6710 = vpop.f32.mrb[0].mxu0
    %6711 = vmatprep.mubr.bf16.mxu0 0
    %6712 = vmatmul.mubr.bf16.gmra.mrb[0].mxu0 %v6399
    %v6713 = vpop.f32.mrb[0].mxu0
    %v6714 = vadd.f32 %v6245, %v6713
    %v6715 = vpop.f32.mrb[0].mxu0
    %v6716 = vpop.f32.mrb[0].mxu0
    %v6717 = vadd.f32 %v6245, %v6716
    %v6718 = vpop.f32.mrb[0].mxu0
    %6719 = vmatprep.mubr.bf16.mxu0 0
    %6720 = vmatmul.mubr.bf16.gmra.mrb[0].mxu0 %v6400
    %v6721 = vpop.f32.mrb[0].mxu0
    %v6722 = vadd.f32 %v6245, %v6721
    %v6723 = vpop.f32.mrb[0].mxu0
    %v6724 = vpop.f32.mrb[0].mxu0
    %v6725 = vadd.f32 %v6245, %v6724
    %v6726 = vpop.f32.mrb[0].mxu0
    %6727 = vmatprep.mubr.bf16.mxu0 0
    %6728 = vmatmul.mubr.bf16.gmra.mrb[0].mxu0 %v6401
    %v6729 = vpop.f32.mrb[0].mxu0
    %v6730 = vadd.f32 %v6245, %v6729
    %v6731 = vpop.f32.mrb[0].mxu0
    %v6732 = vpop.f32.mrb[0].mxu0
    %v6733 = vadd.f32 %v6245, %v6732
    %v6734 = vpop.f32.mrb[0].mxu0
    %6735 = vmatprep.mubr.bf16.mxu0 0
    %6736 = vmatmul.mubr.bf16.gmra.mrb[0].mxu0 %v6402
    %v6737 = vpop.f32.mrb[0].mxu0
    %v6738 = vadd.f32 %v6245, %v6737
    %v6739 = vpop.f32.mrb[0].mxu0
    %v6740 = vpop.f32.mrb[0].mxu0
    %v6741 = vadd.f32 %v6245, %v6740
    %v6742 = vpop.f32.mrb[0].mxu0
    %6743 = vmatprep.mubr.bf16.mxu0 0
    %6744 = vmatmul.mubr.bf16.gmra.mrb[0].mxu0 %v6403
    %v6745 = vpop.f32.mrb[0].mxu0
    %v6746 = vadd.f32 %v6245, %v6745
    %v6747 = vpop.f32.mrb[0].mxu0
    %v6748 = vpop.f32.mrb[0].mxu0
    %v6749 = vadd.f32 %v6245, %v6748
    %v6750 = vpop.f32.mrb[0].mxu0
    %6751 = vmatprep.mubr.bf16.mxu0 0
    %6752 = vmatmul.mubr.bf16.gmra.mrb[0].mxu0 %v6404
    %v6753 = vpop.f32.mrb[0].mxu0
    %v6754 = vadd.f32 %v6245, %v6753
    %v6755 = vpop.f32.mrb[0].mxu0
    %v6756 = vpop.f32.mrb[0].mxu0
    %v6757 = vadd.f32 %v6245, %v6756
    %v6758 = vpop.f32.mrb[0].mxu0
    %6759 = vmatprep.mubr.bf16.mxu0 0
    %6760 = vmatmul.mubr.bf16.gmra.mrb[0].mxu0 %v6405
    %v6761 = vpop.f32.mrb[0].mxu0
    %v6762 = vadd.f32 %v6245, %v6761
    %v6763 = vpop.f32.mrb[0].mxu0
    %v6764 = vpop.f32.mrb[0].mxu0
    %v6765 = vadd.f32 %v6245, %v6764
    %v6766 = vpop.f32.mrb[0].mxu0
    %6767 = vmatprep.mubr.bf16.mxu0 0
    %6768 = vmatmul.mubr.bf16.gmra.mrb[0].mxu0 %v6406
    %v6769 = vpop.f32.mrb[0].mxu0
    %v6770 = vadd.f32 %v6245, %v6769
    %v6771 = vpop.f32.mrb[0].mxu0
    %v6772 = vpop.f32.mrb[0].mxu0
    %v6773 = vadd.f32 %v6245, %v6772
    %v6774 = vpop.f32.mrb[0].mxu0
    %6775 = vdwg.mxu0
    %v6776 = vld [vmem:[%s12] sm:$0x1]
    %v6777 = vld [vmem:[%s13] sm:$0x1]
    %v6778 = vadd.f32 %v6522, %v6525
    %v6779 = vadd.f32 %v6778, %v6530
    %v6780 = vadd.f32 %v6779, %v6533
    %v6781 = vadd.f32 %v6780, %v6538
    %v6782 = vadd.f32 %v6781, %v6541
    %v6783 = vadd.f32 %v6782, %v6546
    %v6784 = vadd.f32 %v6783, %v6549
    %v6785 = vadd.f32 %v6784, %v6554
    %v6786 = vadd.f32 %v6785, %v6557
    %v6787 = vadd.f32 %v6786, %v6562
    %v6788 = vadd.f32 %v6787, %v6565
    %v6789 = vadd.f32 %v6788, %v6570
    %v6790 = vadd.f32 %v6789, %v6573
    %v6791 = vadd.f32 %v6790, %v6578
    %v6792 = vadd.f32 %v6791, %v6581
    %v6793 = vadd.f32 %v6792, %v6586
    %v6794 = vadd.f32 %v6793, %v6589
    %v6795 = vadd.f32 %v6794, %v6594
    %v6796 = vadd.f32 %v6795, %v6597
    %v6797 = vadd.f32 %v6796, %v6602
    %v6798 = vadd.f32 %v6797, %v6605
    %v6799 = vadd.f32 %v6798, %v6610
    %v6800 = vadd.f32 %v6799, %v6613
    %v6801 = vadd.f32 %v6800, %v6618
    %v6802 = vadd.f32 %v6801, %v6621
    %v6803 = vadd.f32 %v6802, %v6626
    %v6804 = vadd.f32 %v6803, %v6629
    %v6805 = vadd.f32 %v6804, %v6634
    %v6806 = vadd.f32 %v6805, %v6637
    %v6807 = vadd.f32 %v6806, %v6642
    %v6808 = vadd.f32 %v6807, %v6645
    %v6809 = vadd.f32 %v6808, %v6650
    %v6810 = vadd.f32 %v6809, %v6653
    %v6811 = vadd.f32 %v6810, %v6658
    %v6812 = vadd.f32 %v6811, %v6661
    %v6813 = vadd.f32 %v6812, %v6666
    %v6814 = vadd.f32 %v6813, %v6669
    %v6815 = vadd.f32 %v6814, %v6674
    %v6816 = vadd.f32 %v6815, %v6677
    %v6817 = vadd.f32 %v6816, %v6682
    %v6818 = vadd.f32 %v6817, %v6685
    %v6819 = vadd.f32 %v6818, %v6690
    %v6820 = vadd.f32 %v6819, %v6693
    %v6821 = vadd.f32 %v6820, %v6698
    %v6822 = vadd.f32 %v6821, %v6701
    %v6823 = vadd.f32 %v6822, %v6706
    %v6824 = vadd.f32 %v6823, %v6709
    %v6825 = vadd.f32 %v6824, %v6714
    %v6826 = vadd.f32 %v6825, %v6717
    %v6827 = vadd.f32 %v6826, %v6722
    %v6828 = vadd.f32 %v6827, %v6725
    %v6829 = vadd.f32 %v6828, %v6730
    %v6830 = vadd.f32 %v6829, %v6733
    %v6831 = vadd.f32 %v6830, %v6738
    %v6832 = vadd.f32 %v6831, %v6741
    %v6833 = vadd.f32 %v6832, %v6746
    %v6834 = vadd.f32 %v6833, %v6749
    %v6835 = vadd.f32 %v6834, %v6754
    %v6836 = vadd.f32 %v6835, %v6757
    %v6837 = vadd.f32 %v6836, %v6762
    %v6838 = vadd.f32 %v6837, %v6765
    %v6839 = vadd.f32 %v6838, %v6770
    %v6840 = vadd.f32 %v6839, %v6773
    %v6841 = vrot.slane %v6840, 4
    %v6842 = vadd.f32 %v6840, %v6841
    %v6843 = vrot.slane %v6842, 2
    %v6844 = vadd.f32 %v6842, %v6843
    %v6845 = vrot.slane %v6844, 1
    %v6846 = vadd.f32 %v6844, %v6845
    %v6847 = vmul.f32 %v6522, %v6522
    %v6848 = vmul.f32 %v6525, %v6525
    %v6849 = vmul.f32 %v6530, %v6530
    %v6850 = vmul.f32 %v6533, %v6533
    %v6851 = vmul.f32 %v6538, %v6538
    %v6852 = vmul.f32 %v6541, %v6541
    %v6853 = vmul.f32 %v6546, %v6546
    %v6854 = vmul.f32 %v6549, %v6549
    %v6855 = vmul.f32 %v6554, %v6554
    %v6856 = vmul.f32 %v6557, %v6557
    %v6857 = vmul.f32 %v6562, %v6562
    %v6858 = vmul.f32 %v6565, %v6565
    %v6859 = vmul.f32 %v6570, %v6570
    %v6860 = vmul.f32 %v6573, %v6573
    %v6861 = vmul.f32 %v6578, %v6578
    %v6862 = vmul.f32 %v6581, %v6581
    %v6863 = vmul.f32 %v6586, %v6586
    %v6864 = vmul.f32 %v6589, %v6589
    %v6865 = vmul.f32 %v6594, %v6594
    %v6866 = vmul.f32 %v6597, %v6597
    %v6867 = vmul.f32 %v6602, %v6602
    %v6868 = vmul.f32 %v6605, %v6605
    %v6869 = vmul.f32 %v6610, %v6610
    %v6870 = vmul.f32 %v6613, %v6613
    %v6871 = vmul.f32 %v6618, %v6618
    %v6872 = vmul.f32 %v6621, %v6621
    %v6873 = vmul.f32 %v6626, %v6626
    %v6874 = vmul.f32 %v6629, %v6629
    %v6875 = vmul.f32 %v6634, %v6634
    %v6876 = vmul.f32 %v6637, %v6637
    %v6877 = vmul.f32 %v6642, %v6642
    %v6878 = vmul.f32 %v6645, %v6645
    %v6879 = vmul.f32 %v6650, %v6650
    %v6880 = vmul.f32 %v6653, %v6653
    %v6881 = vmul.f32 %v6658, %v6658
    %v6882 = vmul.f32 %v6661, %v6661
    %v6883 = vmul.f32 %v6666, %v6666
    %v6884 = vmul.f32 %v6669, %v6669
    %v6885 = vmul.f32 %v6674, %v6674
    %v6886 = vmul.f32 %v6677, %v6677
    %v6887 = vmul.f32 %v6682, %v6682
    %v6888 = vmul.f32 %v6685, %v6685
    %v6889 = vmul.f32 %v6690, %v6690
    %v6890 = vmul.f32 %v6693, %v6693
    %v6891 = vmul.f32 %v6698, %v6698
    %v6892 = vmul.f32 %v6701, %v6701
    %v6893 = vmul.f32 %v6706, %v6706
    %v6894 = vmul.f32 %v6709, %v6709
    %v6895 = vmul.f32 %v6714, %v6714
    %v6896 = vmul.f32 %v6717, %v6717
    %v6897 = vmul.f32 %v6722, %v6722
    %v6898 = vmul.f32 %v6725, %v6725
    %v6899 = vmul.f32 %v6730, %v6730
    %v6900 = vmul.f32 %v6733, %v6733
    %v6901 = vmul.f32 %v6738, %v6738
    %v6902 = vmul.f32 %v6741, %v6741
    %v6903 = vmul.f32 %v6746, %v6746
    %v6904 = vmul.f32 %v6749, %v6749
    %v6905 = vmul.f32 %v6754, %v6754
    %v6906 = vmul.f32 %v6757, %v6757
    %v6907 = vmul.f32 %v6762, %v6762
    %v6908 = vmul.f32 %v6765, %v6765
    %v6909 = vmul.f32 %v6770, %v6770
    %v6910 = vmul.f32 %v6773, %v6773
    %v6911 = vadd.f32 %v6847, %v6848
    %v6912 = vadd.f32 %v6911, %v6849
    %v6913 = vadd.f32 %v6912, %v6850
    %v6914 = vadd.f32 %v6913, %v6851
    %v6915 = vadd.f32 %v6914, %v6852
    %v6916 = vadd.f32 %v6915, %v6853
    %v6917 = vadd.f32 %v6916, %v6854
    %v6918 = vadd.f32 %v6917, %v6855
    %v6919 = vadd.f32 %v6918, %v6856
    %v6920 = vadd.f32 %v6919, %v6857
    %v6921 = vadd.f32 %v6920, %v6858
    %v6922 = vadd.f32 %v6921, %v6859
    %v6923 = vadd.f32 %v6922, %v6860
    %v6924 = vadd.f32 %v6923, %v6861
    %v6925 = vadd.f32 %v6924, %v6862
    %v6926 = vadd.f32 %v6925, %v6863
    %v6927 = vadd.f32 %v6926, %v6864
    %v6928 = vadd.f32 %v6927, %v6865
    %v6929 = vadd.f32 %v6928, %v6866
    %v6930 = vadd.f32 %v6929, %v6867
    %v6931 = vadd.f32 %v6930, %v6868
    %v6932 = vadd.f32 %v6931, %v6869
    %v6933 = vadd.f32 %v6932, %v6870
    %v6934 = vadd.f32 %v6933, %v6871
    %v6935 = vadd.f32 %v6934, %v6872
    %v6936 = vadd.f32 %v6935, %v6873
    %v6937 = vadd.f32 %v6936, %v6874
    %v6938 = vadd.f32 %v6937, %v6875
    %v6939 = vadd.f32 %v6938, %v6876
    %v6940 = vadd.f32 %v6939, %v6877
    %v6941 = vadd.f32 %v6940, %v6878
    %v6942 = vadd.f32 %v6941, %v6879
    %v6943 = vadd.f32 %v6942, %v6880
    %v6944 = vadd.f32 %v6943, %v6881
    %v6945 = vadd.f32 %v6944, %v6882
    %v6946 = vadd.f32 %v6945, %v6883
    %v6947 = vadd.f32 %v6946, %v6884
    %v6948 = vadd.f32 %v6947, %v6885
    %v6949 = vadd.f32 %v6948, %v6886
    %v6950 = vadd.f32 %v6949, %v6887
    %v6951 = vadd.f32 %v6950, %v6888
    %v6952 = vadd.f32 %v6951, %v6889
    %v6953 = vadd.f32 %v6952, %v6890
    %v6954 = vadd.f32 %v6953, %v6891
    %v6955 = vadd.f32 %v6954, %v6892
    %v6956 = vadd.f32 %v6955, %v6893
    %v6957 = vadd.f32 %v6956, %v6894
    %v6958 = vadd.f32 %v6957, %v6895
    %v6959 = vadd.f32 %v6958, %v6896
    %v6960 = vadd.f32 %v6959, %v6897
    %v6961 = vadd.f32 %v6960, %v6898
    %v6962 = vadd.f32 %v6961, %v6899
    %v6963 = vadd.f32 %v6962, %v6900
    %v6964 = vadd.f32 %v6963, %v6901
    %v6965 = vadd.f32 %v6964, %v6902
    %v6966 = vadd.f32 %v6965, %v6903
    %v6967 = vadd.f32 %v6966, %v6904
    %v6968 = vadd.f32 %v6967, %v6905
    %v6969 = vadd.f32 %v6968, %v6906
    %v6970 = vadd.f32 %v6969, %v6907
    %v6971 = vadd.f32 %v6970, %v6908
    %v6972 = vadd.f32 %v6971, %v6909
    %v6973 = vadd.f32 %v6972, %v6910
    %v6974 = vrot.slane %v6973, 4
    %v6975 = vadd.f32 %v6973, %v6974
    %v6976 = vrot.slane %v6975, 2
    %v6977 = vadd.f32 %v6975, %v6976
    %v6978 = vrot.slane %v6977, 1
    %v6979 = vadd.f32 %v6977, %v6978
    %v6980 = vmul.f32 %v6846, 0.001953125
    %v6981 = vmul.f32 %v6979, 0.001953125
    %v6982 = vmul.f32 %v6980, %v6980
    %v6983 = vsub.f32 %v6981, %v6982
    %v6984 = vsub.f32 %v6522, %v6980
    %v6985 = vsub.f32 %v6525, %v6980
    %v6986 = vsub.f32 %v6530, %v6980
    %v6987 = vsub.f32 %v6533, %v6980
    %v6988 = vsub.f32 %v6538, %v6980
    %v6989 = vsub.f32 %v6541, %v6980
    %v6990 = vsub.f32 %v6546, %v6980
    %v6991 = vsub.f32 %v6549, %v6980
    %v6992 = vsub.f32 %v6554, %v6980
    %v6993 = vsub.f32 %v6557, %v6980
    %v6994 = vsub.f32 %v6562, %v6980
    %v6995 = vsub.f32 %v6565, %v6980
    %v6996 = vsub.f32 %v6570, %v6980
    %v6997 = vsub.f32 %v6573, %v6980
    %v6998 = vsub.f32 %v6578, %v6980
    %v6999 = vsub.f32 %v6581, %v6980
    %v7000 = vsub.f32 %v6586, %v6980
    %v7001 = vsub.f32 %v6589, %v6980
    %v7002 = vsub.f32 %v6594, %v6980
    %v7003 = vsub.f32 %v6597, %v6980
    %v7004 = vsub.f32 %v6602, %v6980
    %v7005 = vsub.f32 %v6605, %v6980
    %v7006 = vsub.f32 %v6610, %v6980
    %v7007 = vsub.f32 %v6613, %v6980
    %v7008 = vsub.f32 %v6618, %v6980
    %v7009 = vsub.f32 %v6621, %v6980
    %v7010 = vsub.f32 %v6626, %v6980
    %v7011 = vsub.f32 %v6629, %v6980
    %v7012 = vsub.f32 %v6634, %v6980
    %v7013 = vsub.f32 %v6637, %v6980
    %v7014 = vsub.f32 %v6642, %v6980
    %v7015 = vsub.f32 %v6645, %v6980
    %v7016 = vsub.f32 %v6650, %v6980
    %v7017 = vsub.f32 %v6653, %v6980
    %v7018 = vsub.f32 %v6658, %v6980
    %v7019 = vsub.f32 %v6661, %v6980
    %v7020 = vsub.f32 %v6666, %v6980
    %v7021 = vsub.f32 %v6669, %v6980
    %v7022 = vsub.f32 %v6674, %v6980
    %v7023 = vsub.f32 %v6677, %v6980
    %v7024 = vsub.f32 %v6682, %v6980
    %v7025 = vsub.f32 %v6685, %v6980
    %v7026 = vsub.f32 %v6690, %v6980
    %v7027 = vsub.f32 %v6693, %v6980
    %v7028 = vsub.f32 %v6698, %v6980
    %v7029 = vsub.f32 %v6701, %v6980
    %v7030 = vsub.f32 %v6706, %v6980
    %v7031 = vsub.f32 %v6709, %v6980
    %v7032 = vsub.f32 %v6714, %v6980
    %v7033 = vsub.f32 %v6717, %v6980
    %v7034 = vsub.f32 %v6722, %v6980
    %v7035 = vsub.f32 %v6725, %v6980
    %v7036 = vsub.f32 %v6730, %v6980
    %v7037 = vsub.f32 %v6733, %v6980
    %v7038 = vsub.f32 %v6738, %v6980
    %v7039 = vsub.f32 %v6741, %v6980
    %v7040 = vsub.f32 %v6746, %v6980
    %v7041 = vsub.f32 %v6749, %v6980
    %v7042 = vsub.f32 %v6754, %v6980
    %v7043 = vsub.f32 %v6757, %v6980
    %v7044 = vsub.f32 %v6762, %v6980
    %v7045 = vsub.f32 %v6765, %v6980
    %v7046 = vsub.f32 %v6770, %v6980
    %v7047 = vsub.f32 %v6773, %v6980
    %v7048 = vadd.f32 %v6983, 1e-05
    %v7049 = vrsqrt.pop %v7048
    %v7050 = vmul.f32 %v7049, %v6776
    %v7051 = vlaneseq
    %v7052 = vshrl.u32 %v7051, 7
    %v7053 = vsub.s32 0, %v7052
    %v7054 = vrot.slane %v7050, %v7053
    %v7055 = vmul.f32 %v6984, %v7054
    %v7056 = vmul.f32 %v6985, %v7054
    %v7057 = vmul.f32 %v6986, %v7054
    %v7058 = vmul.f32 %v6987, %v7054
    %v7059 = vmul.f32 %v6988, %v7054
    %v7060 = vmul.f32 %v6989, %v7054
    %v7061 = vmul.f32 %v6990, %v7054
    %v7062 = vmul.f32 %v6991, %v7054
    %v7063 = vmul.f32 %v6992, %v7054
    %v7064 = vmul.f32 %v6993, %v7054
    %v7065 = vmul.f32 %v6994, %v7054
    %v7066 = vmul.f32 %v6995, %v7054
    %v7067 = vmul.f32 %v6996, %v7054
    %v7068 = vmul.f32 %v6997, %v7054
    %v7069 = vmul.f32 %v6998, %v7054
    %v7070 = vmul.f32 %v6999, %v7054
    %v7071 = vmul.f32 %v7000, %v7054
    %v7072 = vmul.f32 %v7001, %v7054
    %v7073 = vmul.f32 %v7002, %v7054
    %v7074 = vmul.f32 %v7003, %v7054
    %v7075 = vmul.f32 %v7004, %v7054
    %v7076 = vmul.f32 %v7005, %v7054
    %v7077 = vmul.f32 %v7006, %v7054
    %v7078 = vmul.f32 %v7007, %v7054
    %v7079 = vmul.f32 %v7008, %v7054
    %v7080 = vmul.f32 %v7009, %v7054
    %v7081 = vmul.f32 %v7010, %v7054
    %v7082 = vmul.f32 %v7011, %v7054
    %v7083 = vmul.f32 %v7012, %v7054
    %v7084 = vmul.f32 %v7013, %v7054
    %v7085 = vmul.f32 %v7014, %v7054
    %v7086 = vmul.f32 %v7015, %v7054
    %v7087 = vmul.f32 %v7016, %v7054
    %v7088 = vmul.f32 %v7017, %v7054
    %v7089 = vmul.f32 %v7018, %v7054
    %v7090 = vmul.f32 %v7019, %v7054
    %v7091 = vmul.f32 %v7020, %v7054
    %v7092 = vmul.f32 %v7021, %v7054
    %v7093 = vmul.f32 %v7022, %v7054
    %v7094 = vmul.f32 %v7023, %v7054
    %v7095 = vmul.f32 %v7024, %v7054
    %v7096 = vmul.f32 %v7025, %v7054
    %v7097 = vmul.f32 %v7026, %v7054
    %v7098 = vmul.f32 %v7027, %v7054
    %v7099 = vmul.f32 %v7028, %v7054
    %v7100 = vmul.f32 %v7029, %v7054
    %v7101 = vmul.f32 %v7030, %v7054
    %v7102 = vmul.f32 %v7031, %v7054
    %v7103 = vmul.f32 %v7032, %v7054
    %v7104 = vmul.f32 %v7033, %v7054
    %v7105 = vmul.f32 %v7034, %v7054
    %v7106 = vmul.f32 %v7035, %v7054
    %v7107 = vmul.f32 %v7036, %v7054
    %v7108 = vmul.f32 %v7037, %v7054
    %v7109 = vmul.f32 %v7038, %v7054
    %v7110 = vmul.f32 %v7039, %v7054
    %v7111 = vmul.f32 %v7040, %v7054
    %v7112 = vmul.f32 %v7041, %v7054
    %v7113 = vmul.f32 %v7042, %v7054
    %v7114 = vmul.f32 %v7043, %v7054
    %v7115 = vmul.f32 %v7044, %v7054
    %v7116 = vmul.f32 %v7045, %v7054
    %v7117 = vmul.f32 %v7046, %v7054
    %v7118 = vmul.f32 %v7047, %v7054
    %v7120 = vlaneseq
    %v7121 = vshrl.u32 %v7120, 7
    %v7122 = vsub.s32 0, %v7121
    %v7123 = vrot.slane %v6777, %v7122
    %v7125 = vadd.f32 %v7055, %v7123
    %v7126 = vadd.f32 %v7056, %v7123
    %v7127 = vadd.f32 %v7057, %v7123
    %v7128 = vadd.f32 %v7058, %v7123
    %v7129 = vadd.f32 %v7059, %v7123
    %v7130 = vadd.f32 %v7060, %v7123
    %v7131 = vadd.f32 %v7061, %v7123
    %v7132 = vadd.f32 %v7062, %v7123
    %v7133 = vadd.f32 %v7063, %v7123
    %v7134 = vadd.f32 %v7064, %v7123
    %v7135 = vadd.f32 %v7065, %v7123
    %v7136 = vadd.f32 %v7066, %v7123
    %v7137 = vadd.f32 %v7067, %v7123
    %v7138 = vadd.f32 %v7068, %v7123
    %v7139 = vadd.f32 %v7069, %v7123
    %v7140 = vadd.f32 %v7070, %v7123
    %v7141 = vadd.f32 %v7071, %v7123
    %v7142 = vadd.f32 %v7072, %v7123
    %v7143 = vadd.f32 %v7073, %v7123
    %v7144 = vadd.f32 %v7074, %v7123
    %v7145 = vadd.f32 %v7075, %v7123
    %v7146 = vadd.f32 %v7076, %v7123
    %v7147 = vadd.f32 %v7077, %v7123
    %v7148 = vadd.f32 %v7078, %v7123
    %v7149 = vadd.f32 %v7079, %v7123
    %v7150 = vadd.f32 %v7080, %v7123
    %v7151 = vadd.f32 %v7081, %v7123
    %v7152 = vadd.f32 %v7082, %v7123
    %v7153 = vadd.f32 %v7083, %v7123
    %v7154 = vadd.f32 %v7084, %v7123
    %v7155 = vadd.f32 %v7085, %v7123
    %v7156 = vadd.f32 %v7086, %v7123
    %v7157 = vadd.f32 %v7087, %v7123
    %v7158 = vadd.f32 %v7088, %v7123
    %v7159 = vadd.f32 %v7089, %v7123
    %v7160 = vadd.f32 %v7090, %v7123
    %v7161 = vadd.f32 %v7091, %v7123
    %v7162 = vadd.f32 %v7092, %v7123
    %v7163 = vadd.f32 %v7093, %v7123
    %v7164 = vadd.f32 %v7094, %v7123
    %v7165 = vadd.f32 %v7095, %v7123
    %v7166 = vadd.f32 %v7096, %v7123
    %v7167 = vadd.f32 %v7097, %v7123
    %v7168 = vadd.f32 %v7098, %v7123
    %v7169 = vadd.f32 %v7099, %v7123
    %v7170 = vadd.f32 %v7100, %v7123
    %v7171 = vadd.f32 %v7101, %v7123
    %v7172 = vadd.f32 %v7102, %v7123
    %v7173 = vadd.f32 %v7103, %v7123
    %v7174 = vadd.f32 %v7104, %v7123
    %v7175 = vadd.f32 %v7105, %v7123
    %v7176 = vadd.f32 %v7106, %v7123
    %v7177 = vadd.f32 %v7107, %v7123
    %v7178 = vadd.f32 %v7108, %v7123
    %v7179 = vadd.f32 %v7109, %v7123
    %v7180 = vadd.f32 %v7110, %v7123
    %v7181 = vadd.f32 %v7111, %v7123
    %v7182 = vadd.f32 %v7112, %v7123
    %v7183 = vadd.f32 %v7113, %v7123
    %v7184 = vadd.f32 %v7114, %v7123
    %v7185 = vadd.f32 %v7115, %v7123
    %v7186 = vadd.f32 %v7116, %v7123
    %v7187 = vadd.f32 %v7117, %v7123
    %v7188 = vadd.f32 %v7118, %v7123
    %v7189 = vadd.f32 %v6096, %v7125
    %v7190 = vadd.f32 %v6097, %v7126
    %v7191 = vadd.f32 %v6098, %v7127
    %v7192 = vadd.f32 %v6099, %v7128
    %v7193 = vadd.f32 %v6100, %v7129
    %v7194 = vadd.f32 %v6101, %v7130
    %v7195 = vadd.f32 %v6102, %v7131
    %v7196 = vadd.f32 %v6103, %v7132
    %v7197 = vadd.f32 %v6104, %v7133
    %v7198 = vadd.f32 %v6105, %v7134
    %v7199 = vadd.f32 %v6106, %v7135
    %v7200 = vadd.f32 %v6107, %v7136
    %v7201 = vadd.f32 %v6108, %v7137
    %v7202 = vadd.f32 %v6109, %v7138
    %v7203 = vadd.f32 %v6110, %v7139
    %v7204 = vadd.f32 %v6111, %v7140
    %v7205 = vadd.f32 %v6112, %v7141
    %v7206 = vadd.f32 %v6113, %v7142
    %v7207 = vadd.f32 %v6114, %v7143
    %v7208 = vadd.f32 %v6115, %v7144
    %v7209 = vadd.f32 %v6116, %v7145
    %v7210 = vadd.f32 %v6117, %v7146
    %v7211 = vadd.f32 %v6118, %v7147
    %v7212 = vadd.f32 %v6119, %v7148
    %v7213 = vadd.f32 %v6120, %v7149
    %v7214 = vadd.f32 %v6121, %v7150
    %v7215 = vadd.f32 %v6122, %v7151
    %v7216 = vadd.f32 %v6123, %v7152
    %v7217 = vadd.f32 %v6124, %v7153
    %v7218 = vadd.f32 %v6125, %v7154
    %v7219 = vadd.f32 %v6126, %v7155
    %v7220 = vadd.f32 %v6127, %v7156
    %v7221 = vadd.f32 %v6128, %v7157
    %v7222 = vadd.f32 %v6129, %v7158
    %v7223 = vadd.f32 %v6130, %v7159
    %v7224 = vadd.f32 %v6131, %v7160
    %v7225 = vadd.f32 %v6132, %v7161
    %v7226 = vadd.f32 %v6133, %v7162
    %v7227 = vadd.f32 %v6134, %v7163
    %v7228 = vadd.f32 %v6135, %v7164
    %v7229 = vadd.f32 %v6136, %v7165
    %v7230 = vadd.f32 %v6137, %v7166
    %v7231 = vadd.f32 %v6138, %v7167
    %v7232 = vadd.f32 %v6139, %v7168
    %v7233 = vadd.f32 %v6140, %v7169
    %v7234 = vadd.f32 %v6141, %v7170
    %v7235 = vadd.f32 %v6142, %v7171
    %v7236 = vadd.f32 %v6143, %v7172
    %v7237 = vadd.f32 %v6144, %v7173
    %v7238 = vadd.f32 %v6145, %v7174
    %v7239 = vadd.f32 %v6146, %v7175
    %v7240 = vadd.f32 %v6147, %v7176
    %v7241 = vadd.f32 %v6148, %v7177
    %v7242 = vadd.f32 %v6149, %v7178
    %v7243 = vadd.f32 %v6150, %v7179
    %v7244 = vadd.f32 %v6151, %v7180
    %v7245 = vadd.f32 %v6152, %v7181
    %v7246 = vadd.f32 %v6153, %v7182
    %v7247 = vadd.f32 %v6154, %v7183
    %v7248 = vadd.f32 %v6155, %v7184
    %v7249 = vadd.f32 %v6156, %v7185
    %v7250 = vadd.f32 %v6157, %v7186
    %v7251 = vadd.f32 %v6158, %v7187
    %v7252 = vadd.f32 %v6159, %v7188
    %v7253 = vmax.f32 %v7189, 0.0
    %v7254 = vmax.f32 %v7190, 0.0
    %v7255 = vmax.f32 %v7191, 0.0
    %v7256 = vmax.f32 %v7192, 0.0
    %v7257 = vmax.f32 %v7193, 0.0
    %v7258 = vmax.f32 %v7194, 0.0
    %v7259 = vmax.f32 %v7195, 0.0
    %v7260 = vmax.f32 %v7196, 0.0
    %v7261 = vmax.f32 %v7197, 0.0
    %v7262 = vmax.f32 %v7198, 0.0
    %v7263 = vmax.f32 %v7199, 0.0
    %v7264 = vmax.f32 %v7200, 0.0
    %v7265 = vmax.f32 %v7201, 0.0
    %v7266 = vmax.f32 %v7202, 0.0
    %v7267 = vmax.f32 %v7203, 0.0
    %v7268 = vmax.f32 %v7204, 0.0
    %v7269 = vmax.f32 %v7205, 0.0
    %v7270 = vmax.f32 %v7206, 0.0
    %v7271 = vmax.f32 %v7207, 0.0
    %v7272 = vmax.f32 %v7208, 0.0
    %v7273 = vmax.f32 %v7209, 0.0
    %v7274 = vmax.f32 %v7210, 0.0
    %v7275 = vmax.f32 %v7211, 0.0
    %v7276 = vmax.f32 %v7212, 0.0
    %v7277 = vmax.f32 %v7213, 0.0
    %v7278 = vmax.f32 %v7214, 0.0
    %v7279 = vmax.f32 %v7215, 0.0
    %v7280 = vmax.f32 %v7216, 0.0
    %v7281 = vmax.f32 %v7217, 0.0
    %v7282 = vmax.f32 %v7218, 0.0
    %v7283 = vmax.f32 %v7219, 0.0
    %v7284 = vmax.f32 %v7220, 0.0
    %v7285 = vmax.f32 %v7221, 0.0
    %v7286 = vmax.f32 %v7222, 0.0
    %v7287 = vmax.f32 %v7223, 0.0
    %v7288 = vmax.f32 %v7224, 0.0
    %v7289 = vmax.f32 %v7225, 0.0
    %v7290 = vmax.f32 %v7226, 0.0
    %v7291 = vmax.f32 %v7227, 0.0
    %v7292 = vmax.f32 %v7228, 0.0
    %v7293 = vmax.f32 %v7229, 0.0
    %v7294 = vmax.f32 %v7230, 0.0
    %v7295 = vmax.f32 %v7231, 0.0
    %v7296 = vmax.f32 %v7232, 0.0
    %v7297 = vmax.f32 %v7233, 0.0
    %v7298 = vmax.f32 %v7234, 0.0
    %v7299 = vmax.f32 %v7235, 0.0
    %v7300 = vmax.f32 %v7236, 0.0
    %v7301 = vmax.f32 %v7237, 0.0
    %v7302 = vmax.f32 %v7238, 0.0
    %v7303 = vmax.f32 %v7239, 0.0
    %v7304 = vmax.f32 %v7240, 0.0
    %v7305 = vmax.f32 %v7241, 0.0
    %v7306 = vmax.f32 %v7242, 0.0
    %v7307 = vmax.f32 %v7243, 0.0
    %v7308 = vmax.f32 %v7244, 0.0
    %v7309 = vmax.f32 %v7245, 0.0
    %v7310 = vmax.f32 %v7246, 0.0
    %v7311 = vmax.f32 %v7247, 0.0
    %v7312 = vmax.f32 %v7248, 0.0
    %v7313 = vmax.f32 %v7249, 0.0
    %v7314 = vmax.f32 %v7250, 0.0
    %v7315 = vmax.f32 %v7251, 0.0
    %v7316 = vmax.f32 %v7252, 0.0
    %7317 = vst [vmem:[#allocation13] sm:$0xff] %v7253
    %7318 = vst [vmem:[#allocation13 + $0x8] sm:$0xff] %v7254
    %7319 = vst [vmem:[#allocation13 + $0x10] sm:$0xff] %v7255
    %7320 = vst [vmem:[#allocation13 + $0x18] sm:$0xff] %v7256
    %7321 = vst [vmem:[#allocation13 + $0x20] sm:$0xff] %v7257
    %7322 = vst [vmem:[#allocation13 + $0x28] sm:$0xff] %v7258
    %7323 = vst [vmem:[#allocation13 + $0x30] sm:$0xff] %v7259
    %7324 = vst [vmem:[#allocation13 + $0x38] sm:$0xff] %v7260
    %7325 = vst [vmem:[#allocation13 + $0x40] sm:$0xff] %v7261
    %7326 = vst [vmem:[#allocation13 + $0x48] sm:$0xff] %v7262
    %7327 = vst [vmem:[#allocation13 + $0x50] sm:$0xff] %v7263
    %7328 = vst [vmem:[#allocation13 + $0x58] sm:$0xff] %v7264
    %7329 = vst [vmem:[#allocation13 + $0x60] sm:$0xff] %v7265
    %7330 = vst [vmem:[#allocation13 + $0x68] sm:$0xff] %v7266
    %7331 = vst [vmem:[#allocation13 + $0x70] sm:$0xff] %v7267
    %7332 = vst [vmem:[#allocation13 + $0x78] sm:$0xff] %v7268
    %7333 = vst [vmem:[#allocation13 + $0x80] sm:$0xff] %v7269
    %7334 = vst [vmem:[#allocation13 + $0x88] sm:$0xff] %v7270
    %7335 = vst [vmem:[#allocation13 + $0x90] sm:$0xff] %v7271
    %7336 = vst [vmem:[#allocation13 + $0x98] sm:$0xff] %v7272
    %7337 = vst [vmem:[#allocation13 + $0xa0] sm:$0xff] %v7273
    %7338 = vst [vmem:[#allocation13 + $0xa8] sm:$0xff] %v7274
    %7339 = vst [vmem:[#allocation13 + $0xb0] sm:$0xff] %v7275
    %7340 = vst [vmem:[#allocation13 + $0xb8] sm:$0xff] %v7276
    %7341 = vst [vmem:[#allocation13 + $0xc0] sm:$0xff] %v7277
    %7342 = vst [vmem:[#allocation13 + $0xc8] sm:$0xff] %v7278
    %7343 = vst [vmem:[#allocation13 + $0xd0] sm:$0xff] %v7279
    %7344 = vst [vmem:[#allocation13 + $0xd8] sm:$0xff] %v7280
    %7345 = vst [vmem:[#allocation13 + $0xe0] sm:$0xff] %v7281
    %7346 = vst [vmem:[#allocation13 + $0xe8] sm:$0xff] %v7282
    %7347 = vst [vmem:[#allocation13 + $0xf0] sm:$0xff] %v7283
    %7348 = vst [vmem:[#allocation13 + $0xf8] sm:$0xff] %v7284
    %7349 = vst [vmem:[#allocation13 + $0x100] sm:$0xff] %v7285
    %7350 = vst [vmem:[#allocation13 + $0x108] sm:$0xff] %v7286
    %7351 = vst [vmem:[#allocation13 + $0x110] sm:$0xff] %v7287
    %7352 = vst [vmem:[#allocation13 + $0x118] sm:$0xff] %v7288
    %7353 = vst [vmem:[#allocation13 + $0x120] sm:$0xff] %v7289
    %7354 = vst [vmem:[#allocation13 + $0x128] sm:$0xff] %v7290
    %7355 = vst [vmem:[#allocation13 + $0x130] sm:$0xff] %v7291
    %7356 = vst [vmem:[#allocation13 + $0x138] sm:$0xff] %v7292
    %7357 = vst [vmem:[#allocation13 + $0x140] sm:$0xff] %v7293
    %7358 = vst [vmem:[#allocation13 + $0x148] sm:$0xff] %v7294
    %7359 = vst [vmem:[#allocation13 + $0x150] sm:$0xff] %v7295
    %7360 = vst [vmem:[#allocation13 + $0x158] sm:$0xff] %v7296
    %7361 = vst [vmem:[#allocation13 + $0x160] sm:$0xff] %v7297
    %7362 = vst [vmem:[#allocation13 + $0x168] sm:$0xff] %v7298
    %7363 = vst [vmem:[#allocation13 + $0x170] sm:$0xff] %v7299
    %7364 = vst [vmem:[#allocation13 + $0x178] sm:$0xff] %v7300
    %7365 = vst [vmem:[#allocation13 + $0x180] sm:$0xff] %v7301
    %7366 = vst [vmem:[#allocation13 + $0x188] sm:$0xff] %v7302
    %7367 = vst [vmem:[#allocation13 + $0x190] sm:$0xff] %v7303
    %7368 = vst [vmem:[#allocation13 + $0x198] sm:$0xff] %v7304
    %7369 = vst [vmem:[#allocation13 + $0x1a0] sm:$0xff] %v7305
    %7370 = vst [vmem:[#allocation13 + $0x1a8] sm:$0xff] %v7306
    %7371 = vst [vmem:[#allocation13 + $0x1b0] sm:$0xff] %v7307
    %7372 = vst [vmem:[#allocation13 + $0x1b8] sm:$0xff] %v7308
    %7373 = vst [vmem:[#allocation13 + $0x1c0] sm:$0xff] %v7309
    %7374 = vst [vmem:[#allocation13 + $0x1c8] sm:$0xff] %v7310
    %7375 = vst [vmem:[#allocation13 + $0x1d0] sm:$0xff] %v7311
    %7376 = vst [vmem:[#allocation13 + $0x1d8] sm:$0xff] %v7312
    %7377 = vst [vmem:[#allocation13 + $0x1e0] sm:$0xff] %v7313
    %7378 = vst [vmem:[#allocation13 + $0x1e8] sm:$0xff] %v7314
    %7379 = vst [vmem:[#allocation13 + $0x1f0] sm:$0xff] %v7315
    %7380 = vst [vmem:[#allocation13 + $0x1f8] sm:$0xff] %v7316
    // Predicated region
    $region78: #{tpu_custom_call.1} parent=1 // pred_check
      _
    $region79: #{tpu_custom_call.1} parent=1 // pred_check_branch
      %7382 = sbr.rel (0) target = $region81
    $region80: #{tpu_custom_call.1} parent=1 // pred_region
      %s7384 = ssub.s32 8192, 8192
      %7385 = vsyncadd [#allocation6], %s7384
      %s7386 = sshll.u32 [#allocation13], 4
      %s7387 = int_to_ptr.vmem [resolvable:$true] %s7386
      %7392 = dma.vmem_to_hbm [thread:$0]  %s7387, 8192, %s14, [#allocation6], 128, 128, 8
    $region81: #{tpu_custom_call.1} parent=1 // pred_fallthru
      _
    // Predicated region
    $region82: #{tpu_custom_call.1} parent=1 // pred_check
      _
    $region83: #{tpu_custom_call.1} parent=1 // pred_check_branch
      %7394 = sbr.rel (0) target = $region85
    $region84: #{tpu_custom_call.1} parent=1 // pred_region
      %7395 = dma.done [#allocation6], 8192
    $region85: #{tpu_custom_call.1} parent=1 // pred_fallthru
      _
    %7396 = vsyncpa [#allocation5], 1
    %7397 = vsyncpa [#allocation8], 1
    %7398 = vsyncpa [#allocation11], 1
    %7399 = vsyncpa [#allocation6], 1

</llo_original>
